<compile_context>
chip_gen: v7x
topology: tpu7x:2x2x1
jax: 0.10.0
libtpu: 0.0.40
codegen_flags: <defaults>
</compile_context>

<pallas_src>
import jax
import jax.numpy as jnp
from jax.experimental import pallas as pl
from jax.experimental.pallas import tpu as pltpu

_EPS = 1e-5
_VMEM_LIMIT = 32 * 1024 * 1024  # safe on v5e/v6e (128 MiB) and v7x (64 MiB physical)


# ----------------------------------------------------------------------------
# helpers
# ----------------------------------------------------------------------------
def _choose_tm(n, cap=512):
    """Largest multiple-of-8 divisor of n that is <= cap, else n (full extent)."""
    tm = (min(cap, n) // 8) * 8
    while tm >= 8:
        if n % tm == 0:
            return tm
        tm -= 8
    return n


def _shared(shape):
    """BlockSpec for a grid-invariant operand (weight/shift): whole array, VMEM-resident."""
    return pl.BlockSpec(shape, lambda *_: (0,) * len(shape))


def _full(arr):
    """Whole-array BlockSpec for the small (B, ...) matmuls (grid=(1,))."""
    return pl.BlockSpec(arr.shape, lambda *_: (0,) * arr.ndim)


# ----------------------------------------------------------------------------
# Kernel 1: TNet conv chain (3 -> 64 -> 128 -> 1024) fused with max-over-points
# ----------------------------------------------------------------------------
def _tnet_conv_max_kernel(x_ref, w1_ref, s1_ref, w2_ref, s2_ref, w3_ref, s3_ref,
                          gmax_ref):
    t = pl.program_id(1)
    x = x_ref[0]                                                       # (TM, 3) f32
    h = jnp.dot(x, w1_ref[...], preferred_element_type=jnp.float32) + s1_ref[...]
    h = jnp.maximum(h, 0.0).astype(jnp.bfloat16)                       # (TM, 64)
    h = jnp.dot(h, w2_ref[...], preferred_element_type=jnp.float32) + s2_ref[...]
    h = jnp.maximum(h, 0.0).astype(jnp.bfloat16)                       # (TM, 128)
    h = jnp.dot(h, w3_ref[...], preferred_element_type=jnp.float32) + s3_ref[...]
    h = jnp.maximum(h, 0.0)                                            # (TM, 1024) f32
    m = jnp.max(h, axis=0, keepdims=True)                              # (1, 1024)

    @pl.when(t == 0)
    def _init():
        gmax_ref[...] = jnp.full(gmax_ref.shape, -jnp.inf, dtype=gmax_ref.dtype)

    gmax_ref[...] = jnp.maximum(gmax_ref[...], m[None])


def tnet_conv_max(x, w1, s1, w2, s2, w3, s3):
    """x: (B, N, 3) -> per-batch max feature (B, 1, 1024) f32."""
    B, N, _ = x.shape
    TM = _choose_tm(N)
    grid = (B, N // TM)
    return pl.pallas_call(
        _tnet_conv_max_kernel,
        out_shape=jax.ShapeDtypeStruct((B, 1, 1024), jnp.float32),
        grid=grid,
        in_specs=[
            pl.BlockSpec((1, TM, 3), lambda b, t: (b, t, 0)),
            _shared(w1.shape), _shared(s1.shape),
            _shared(w2.shape), _shared(s2.shape),
            _shared(w3.shape), _shared(s3.shape),
        ],
        out_specs=pl.BlockSpec((1, 1, 1024), lambda b, t: (b, 0, 0)),
        compiler_params=pltpu.CompilerParams(
            dimension_semantics=("parallel", "arbitrary"),
            vmem_limit_bytes=_VMEM_LIMIT),
    )(x, w1, s1, w2, s2, w3, s3)


# ----------------------------------------------------------------------------
# Kernel 2: base conv chain with fused 3x3 transform + max-over-points + to_seg feat
# ----------------------------------------------------------------------------
def _base_conv_max_kernel(x_ref, tw_ref, s1_ref, w2_ref, s2_ref, w3_ref, s3_ref,
                          seg_ref, gmax_ref):
    t = pl.program_id(1)
    x = x_ref[0]                                                       # (TM, 3) f32
    tw = tw_ref[0]                                                     # (3, 64) f32 = T_b @ W_conv1
    h1 = jnp.dot(x, tw, preferred_element_type=jnp.float32) + s1_ref[...]
    h1 = jnp.maximum(h1, 0.0)                                          # (TM, 64)
    seg_ref[0] = h1.astype(seg_ref.dtype)                              # bf16 per-point features
    h = h1.astype(jnp.bfloat16)
    h = jnp.dot(h, w2_ref[...], preferred_element_type=jnp.float32) + s2_ref[...]
    h = jnp.maximum(h, 0.0).astype(jnp.bfloat16)                       # (TM, 128)
    h = jnp.dot(h, w3_ref[...], preferred_element_type=jnp.float32) + s3_ref[...]
    h = jnp.maximum(h, 0.0)                                            # (TM, 1024) f32
    m = jnp.max(h, axis=0, keepdims=True)

    @pl.when(t == 0)
    def _init():
        gmax_ref[...] = jnp.full(gmax_ref.shape, -jnp.inf, dtype=gmax_ref.dtype)

    gmax_ref[...] = jnp.maximum(gmax_ref[...], m[None])


def base_conv_max(x, tw, s1, w2, s2, w3, s3):
    """x: (B, N, 3), tw: (B, 3, 64) -> (to_seg (B,N,64) bf16, gmax (B,1,1024) f32)."""
    B, N, _ = x.shape
    TM = _choose_tm(N)
    grid = (B, N // TM)
    return pl.pallas_call(
        _base_conv_max_kernel,
        out_shape=(jax.ShapeDtypeStruct((B, N, 64), jnp.bfloat16),
                   jax.ShapeDtypeStruct((B, 1, 1024), jnp.float32)),
        grid=grid,
        in_specs=[
            pl.BlockSpec((1, TM, 3), lambda b, t: (b, t, 0)),
            pl.BlockSpec((1, 3, 64), lambda b, t: (b, 0, 0)),
            _shared(s1.shape),
            _shared(w2.shape), _shared(s2.shape),
            _shared(w3.shape), _shared(s3.shape),
        ],
        out_specs=(pl.BlockSpec((1, TM, 64), lambda b, t: (b, t, 0)),
                   pl.BlockSpec((1, 1, 1024), lambda b, t: (b, 0, 0))),
        compiler_params=pltpu.CompilerParams(
            dimension_semantics=("parallel", "arbitrary"),
            vmem_limit_bytes=_VMEM_LIMIT),
    )(x, tw, s1, w2, s2, w3, s3)


# ----------------------------------------------------------------------------
# Kernel 3: TNet FC head (fc1 -> fc2 -> fc3, fc3 padded to 128 output lanes)
# ----------------------------------------------------------------------------
def _tnet_head_kernel(g_ref, w1_ref, s1_ref, w2_ref, s2_ref, w3_ref, s3_ref, o_ref):
    g = g_ref[...].astype(jnp.bfloat16)                                # (B, 1024)
    h = jnp.dot(g, w1_ref[...], preferred_element_type=jnp.float32) + s1_ref[...]
    h = jnp.maximum(h, 0.0).astype(jnp.bfloat16)                       # (B, 512)
    h = jnp.dot(h, w2_ref[...], preferred_element_type=jnp.float32) + s2_ref[...]
    h = jnp.maximum(h, 0.0).astype(jnp.bfloat16)                       # (B, 256)
    o_ref[...] = jnp.dot(h, w3_ref[...], preferred_element_type=jnp.float32) + s3_ref[...]


def tnet_head(g, w1, s1, w2, s2, w3p, s3p):
    B = g.shape[0]
    NP = w3p.shape[1]
    return pl.pallas_call(
        _tnet_head_kernel,
        out_shape=jax.ShapeDtypeStruct((B, NP), jnp.float32),
        grid=(1,),
        in_specs=[_full(g), _full(w1), _full(s1), _full(w2), _full(s2),
                  _full(w3p), _full(s3p)],
        out_specs=pl.BlockSpec((B, NP), lambda i: (0, 0)),
        compiler_params=pltpu.CompilerParams(
            dimension_semantics=("arbitrary",),
            vmem_limit_bytes=_VMEM_LIMIT),
    )(g, w1, s1, w2, s2, w3p, s3p)


# ----------------------------------------------------------------------------
# Kernel 4: global-feature half of the head conv1:  g @ W_global + shift  (per batch)
# ----------------------------------------------------------------------------
def _global_proj_kernel(g_ref, w_ref, s_ref, o_ref):
    g = g_ref[...].astype(jnp.bfloat16)
    o_ref[...] = jnp.dot(g, w_ref[...], preferred_element_type=jnp.float32) + s_ref[...]


def global_proj(g, w, s):
    B = g.shape[0]
    Cout = w.shape[1]
    return pl.pallas_call(
        _global_proj_kernel,
        out_shape=jax.ShapeDtypeStruct((B, Cout), jnp.float32),
        grid=(1,),
        in_specs=[_full(g), _full(w), _full(s)],
        out_specs=pl.BlockSpec((B, Cout), lambda i: (0, 0)),
        compiler_params=pltpu.CompilerParams(
            dimension_semantics=("arbitrary",),
            vmem_limit_bytes=_VMEM_LIMIT),
    )(g, w, s)


# ----------------------------------------------------------------------------
# Kernel 5: segmentation head (conv1_local + global shift -> conv2 -> conv3 -> conv4
#           -> log_softmax over classes), fused per point tile
# ----------------------------------------------------------------------------
def _seg_head_kernel(seg_ref, gsh_ref, w1_ref, w2_ref, s2_ref, w3_ref, s3_ref,
                     w4_ref, s4_ref, o_ref):
    h = seg_ref[0]                                                     # (TM, 64) bf16
    gsh = gsh_ref[0]                                                   # (1, 512) f32
    h = jnp.dot(h, w1_ref[...], preferred_element_type=jnp.float32) + gsh
    h = jnp.maximum(h, 0.0).astype(jnp.bfloat16)                       # (TM, 512)
    h = jnp.dot(h, w2_ref[...], preferred_element_type=jnp.float32) + s2_ref[...]
    h = jnp.maximum(h, 0.0).astype(jnp.bfloat16)                       # (TM, 256)
    h = jnp.dot(h, w3_ref[...], preferred_element_type=jnp.float32) + s3_ref[...]
    h = jnp.maximum(h, 0.0).astype(jnp.bfloat16)                       # (TM, 128)
    y = jnp.dot(h, w4_ref[...], preferred_element_type=jnp.float32) + s4_ref[...]
    # log_softmax over the class axis (== torch log_softmax over channel dim)
    m = jnp.max(y, axis=-1, keepdims=True)
    z = y - m
    lse = jnp.log(jnp.sum(jnp.exp(z), axis=-1, keepdims=True))
    o_ref[0] = (z - lse).astype(o_ref.dtype)


def seg_head(seg_feat, gshift, w1, w2, s2, w3, s3, w4, s4):
    B, N, _ = seg_feat.shape
    classes = w4.shape[1]
    TM = _choose_tm(N)
    grid = (B, N // TM)
    return pl.pallas_call(
        _seg_head_kernel,
        out_shape=jax.ShapeDtypeStruct((B, N, classes), jnp.float32),
        grid=grid,
        in_specs=[
            pl.BlockSpec((1, TM, 64), lambda b, t: (b, t, 0)),
            pl.BlockSpec((1, 1, 512), lambda b, t: (b, 0, 0)),
            _shared(w1.shape),
            _shared(w2.shape), _shared(s2.shape),
            _shared(w3.shape), _shared(s3.shape),
            _shared(w4.shape), _shared(s4.shape),
        ],
        out_specs=pl.BlockSpec((1, TM, classes), lambda b, t: (b, t, 0)),
        compiler_params=pltpu.CompilerParams(
            dimension_semantics=("parallel", "parallel"),
            vmem_limit_bytes=_VMEM_LIMIT),
    )(seg_feat, gshift, w1, w2, s2, w3, s3, w4, s4)


# ----------------------------------------------------------------------------
# Parameters (deterministic, synthetic) & BN folding
# ----------------------------------------------------------------------------
def init_linear(key, cin, cout, with_bn=True):
    kw, kb = jax.random.split(key, 2)
    p = {
        "w": 0.1 * jax.random.normal(kw, (cin, cout), jnp.float32),
        "b": 0.05 * jax.random.normal(kb, (cout,), jnp.float32),
    }
    if with_bn:  # PyTorch defaults: gamma=1, beta=0, running_mean=0, running_var=1
        p["gamma"] = jnp.ones((cout,), jnp.float32)
        p["beta"] = jnp.zeros((cout,), jnp.float32)
        p["mean"] = jnp.zeros((cout,), jnp.float32)
        p["var"] = jnp.ones((cout,), jnp.float32)
    return p


def fold_layer(p, dtype=jnp.bfloat16):
    """Fold eval-mode BatchNorm into the weight columns and a per-channel shift.

    Returns (w_folded [cin, cout] in `dtype`, shift [1, cout] f32).
    """
    w, b = p["w"], p["b"]
    if "gamma" in p:
        s = p["gamma"] / jnp.sqrt(p["var"] + _EPS)
        w = w * s[None, :]
        shift = (b - p["mean"]) * s + p["beta"]
    else:
        shift = b
    return w.astype(dtype), shift[None, :].astype(jnp.float32)


def init_params(key, classes):
    keys = jax.random.split(key, 13)
    tnet = {
        "conv1": init_linear(keys[0], 3, 64),
        "conv2": init_linear(keys[1], 64, 128),
        "conv3": init_linear(keys[2], 128, 1024),
        "fc1": init_linear(keys[3], 1024, 512),
        "fc2": init_linear(keys[4], 512, 256),
        "fc3": init_linear(keys[5], 256, 9, with_bn=False),
    }
    base = {
        "tnet3d": tnet,
        "conv_1": init_linear(keys[6], 3, 64),
        "conv_2": init_linear(keys[7], 64, 128),
        "conv_3": init_linear(keys[8], 128, 1024),
    }
    return {
        "base": base,
        "conv1": init_linear(keys[9], 64 + 1024, 512),
        "conv2": init_linear(keys[10], 512, 256),
        "conv3": init_linear(keys[11], 256, 128),
        "conv4": init_linear(keys[12], 128, classes, with_bn=False),
    }


# ----------------------------------------------------------------------------
# Forward passes (mirror the PyTorch module structure)
# ----------------------------------------------------------------------------
def tnet3d_forward(x, p):
    """x: (B, N, 3) -> (B, 3, 3)"""
    B, _, _ = x.shape
    w1, s1 = fold_layer(p["conv1"], dtype=jnp.float32)  # K=3 layer kept f32
    w2, s2 = fold_layer(p["conv2"])
    w3, s3 = fold_layer(p["conv3"])
    fw1, fs1 = fold_layer(p["fc1"])
    fw2, fs2 = fold_layer(p["fc2"])
    fw3, fs3 = fold_layer(p["fc3"])
    # pad fc3 (256 -> 9) to 128 output lanes for a lane-dense store; sliced below.
    fw3p = jnp.zeros((fw3.shape[0], 128), fw3.dtype).at[:, :9].set(fw3)
    fs3p = jnp.zeros((1, 128), jnp.float32).at[:, :9].set(fs3)

    g = tnet_conv_max(x, w1, s1, w2, s2, w3, s3).reshape(B, 1024)
    y = tnet_head(g, fw1, fs1, fw2, fs2, fw3p, fs3p)     # (B, 128)
    y9 = y[:, :9] + jnp.eye(3, dtype=jnp.float32).reshape(1, 9)
    return y9.reshape(B, 3, 3)


def base_feature_forward(x, p):
    """x: (B, N, 3) -> (to_seg (B,N,64) bf16, global_feature (B,1024) f32, trans (B,3,3))."""
    B, _, _ = x.shape
    trans_point = tnet3d_forward(x, p["tnet3d"])
    w1, s1 = fold_layer(p["conv_1"], dtype=jnp.float32)
    w2, s2 = fold_layer(p["conv_2"])
    w3, s3 = fold_layer(p["conv_3"])
    # Fuse the per-batch 3x3 transform into conv_1:  (x @ T) @ W1 == x @ (T @ W1).
    tw = jnp.einsum("bij,jk->bik", trans_point, w1)      # (B, 3, 64), tiny param fold
    seg_feat, gmax = base_conv_max(x, tw, s1, w2, s2, w3, s3)
    return seg_feat, gmax.reshape(B, 1024), trans_point


def segment_forward(x, p):
    """x: (B, N, 3) -> (log_probs (B, N, classes), trans_point (B,3,3), trans_feature=None)."""
    B, _, _ = x.shape
    seg_feat, gfeat, trans_point = base_feature_forward(x, p["base"])

    # Head conv1 (1088 -> 512): split into local (first 64 input channels) and global
    # (last 1024) parts.  The global part is a per-batch matmul done once; the
    # (B, N, 1024) broadcast + concat of the reference model is never materialized.
    w1, s1 = fold_layer(p["conv1"])
    gshift = global_proj(gfeat, w1[64:, :], s1).reshape(B, 1, 512)
    w2, s2 = fold_layer(p["conv2"])
    w3, s3 = fold_layer(p["conv3"])
    w4, s4 = fold_layer(p["conv4"])
    logp = seg_head(seg_feat, gshift, w1[:64, :], w2, s2, w3, s3, w4, s4)
    return logp, trans_point, None


# ----------------------------------------------------------------------------
if __name__ == "__main__":
    B, N, CLASSES = 2, 64, 4
    x = jax.random.normal(jax.random.PRNGKey(0), (B, N, 3), dtype=jnp.float32)
    params = init_params(jax.random.PRNGKey(42), CLASSES)

    fwd = jax.jit(segment_forward)
    log_probs, trans_point, trans_feature = fwd(x, params)
    jax.block_until_ready(log_probs)
    jax.block_until_ready(trans_point)

    assert log_probs.shape == (B, N, CLASSES)
    assert log_probs.dtype == jnp.float32
    assert trans_point.shape == (B, 3, 3)
    assert trans_feature is None
    # log_softmax sanity: probabilities over classes sum to ~1, everything finite
    assert jnp.allclose(jnp.sum(jnp.exp(log_probs), axis=-1), 1.0, atol=1e-4)
    assert bool(jnp.all(jnp.isfinite(log_probs)))
    print("KERNEL_OK")
</pallas_src>

<mosaic_0001>
module attributes {stable_mosaic.version = 11 : i64} {
  func.func @_tnet_conv_max_kernel(%arg0: i32, %arg1: i32, %arg2: memref<1x64x3xf32, #tpu.memory_space<vmem>>, %arg3: memref<3x64xf32, #tpu.memory_space<vmem>>, %arg4: memref<1x64xf32, #tpu.memory_space<vmem>>, %arg5: memref<64x128xbf16, #tpu.memory_space<vmem>>, %arg6: memref<1x128xf32, #tpu.memory_space<vmem>>, %arg7: memref<128x1024xbf16, #tpu.memory_space<vmem>>, %arg8: memref<1x1024xf32, #tpu.memory_space<vmem>>, %arg9: memref<1x1x1024xf32, #tpu.memory_space<vmem>>) attributes {dimension_semantics = [#tpu.dimension_semantics<parallel>, #tpu.dimension_semantics<arbitrary>], iteration_bounds = array<i64: 2, 1>, scalar_prefetch = 0 : i64, scratch_operands = 0 : i64, tpu.core_type = #tpu.core_type<tc>, window_params = [{transform_indices = @transform_0, window_bounds = array<i64: 1, 64, 3>}, {pipeline_mode = #tpu.pipeline_mode<synchronous>, transform_indices = @transform_1, window_bounds = array<i64: 3, 64>}, {pipeline_mode = #tpu.pipeline_mode<synchronous>, transform_indices = @transform_2, window_bounds = array<i64: 1, 64>}, {pipeline_mode = #tpu.pipeline_mode<synchronous>, transform_indices = @transform_3, window_bounds = array<i64: 64, 128>}, {pipeline_mode = #tpu.pipeline_mode<synchronous>, transform_indices = @transform_4, window_bounds = array<i64: 1, 128>}, {pipeline_mode = #tpu.pipeline_mode<synchronous>, transform_indices = @transform_5, window_bounds = array<i64: 128, 1024>}, {pipeline_mode = #tpu.pipeline_mode<synchronous>, transform_indices = @transform_6, window_bounds = array<i64: 1, 1024>}, {transform_indices = @transform_7, window_bounds = array<i64: 1, 1, 1024>}]} {
    %c0 = arith.constant 0 : index
    %c0_0 = arith.constant 0 : index
    %c0_1 = arith.constant 0 : index
    %0 = vector.load %arg2[%c0, %c0_0, %c0_1] : memref<1x64x3xf32, #tpu.memory_space<vmem>>, vector<1x64x3xf32>
    %1 = vector.shape_cast %0 : vector<1x64x3xf32> to vector<64x3xf32>
    %c0_2 = arith.constant 0 : index
    %c0_3 = arith.constant 0 : index
    %2 = vector.load %arg3[%c0_2, %c0_3] : memref<3x64xf32, #tpu.memory_space<vmem>>, vector<3x64xf32>
    %cst = arith.constant dense<0.000000e+00> : vector<64x64xf32>
    %3 = tpu.matmul %1, %2, %cst {dimension_numbers = #tpu.dot_dimension_numbers<[1], [0], [0], [1], [0, 0, 1, 1], [], []>} : vector<64x3xf32>, vector<3x64xf32>, vector<64x64xf32> -> vector<64x64xf32>
    %c0_4 = arith.constant 0 : index
    %c0_5 = arith.constant 0 : index
    %4 = vector.load %arg4[%c0_4, %c0_5] : memref<1x64xf32, #tpu.memory_space<vmem>>, vector<1x64xf32>
    %5 = vector.broadcast %4 : vector<1x64xf32> to vector<64x64xf32>
    %6 = arith.addf %3, %5 : vector<64x64xf32>
    %cst_6 = arith.constant 0.000000e+00 : f32
    %7 = vector.broadcast %cst_6 : f32 to vector<64x64xf32>
    %8 = arith.maximumf %6, %7 : vector<64x64xf32>
    %9 = arith.truncf %8 : vector<64x64xf32> to vector<64x64xbf16>
    %c0_7 = arith.constant 0 : index
    %c0_8 = arith.constant 0 : index
    %10 = vector.load %arg5[%c0_7, %c0_8] : memref<64x128xbf16, #tpu.memory_space<vmem>>, vector<64x128xbf16>
    %cst_9 = arith.constant dense<0.000000e+00> : vector<64x128xf32>
    %11 = tpu.matmul %9, %10, %cst_9 {dimension_numbers = #tpu.dot_dimension_numbers<[1], [0], [0], [1], [0, 0, 1, 1], [], []>} : vector<64x64xbf16>, vector<64x128xbf16>, vector<64x128xf32> -> vector<64x128xf32>
    %c0_10 = arith.constant 0 : index
    %c0_11 = arith.constant 0 : index
    %12 = vector.load %arg6[%c0_10, %c0_11] : memref<1x128xf32, #tpu.memory_space<vmem>>, vector<1x128xf32>
    %13 = vector.broadcast %12 : vector<1x128xf32> to vector<64x128xf32>
    %14 = arith.addf %11, %13 : vector<64x128xf32>
    %cst_12 = arith.constant 0.000000e+00 : f32
    %15 = vector.broadcast %cst_12 : f32 to vector<64x128xf32>
    %16 = arith.maximumf %14, %15 : vector<64x128xf32>
    %17 = arith.truncf %16 : vector<64x128xf32> to vector<64x128xbf16>
    %c0_13 = arith.constant 0 : index
    %c0_14 = arith.constant 0 : index
    %18 = vector.load %arg7[%c0_13, %c0_14] : memref<128x1024xbf16, #tpu.memory_space<vmem>>, vector<128x1024xbf16>
    %cst_15 = arith.constant dense<0.000000e+00> : vector<64x1024xf32>
    %19 = tpu.matmul %17, %18, %cst_15 {dimension_numbers = #tpu.dot_dimension_numbers<[1], [0], [0], [1], [0, 0, 1, 1], [], []>} : vector<64x128xbf16>, vector<128x1024xbf16>, vector<64x1024xf32> -> vector<64x1024xf32>
    %c0_16 = arith.constant 0 : index
    %c0_17 = arith.constant 0 : index
    %20 = vector.load %arg8[%c0_16, %c0_17] : memref<1x1024xf32, #tpu.memory_space<vmem>>, vector<1x1024xf32>
    %21 = vector.broadcast %20 : vector<1x1024xf32> to vector<64x1024xf32>
    %22 = arith.addf %19, %21 : vector<64x1024xf32>
    %cst_18 = arith.constant 0.000000e+00 : f32
    %23 = vector.broadcast %cst_18 : f32 to vector<64x1024xf32>
    %24 = arith.maximumf %22, %23 : vector<64x1024xf32>
    %cst_19 = arith.constant dense<0xFF800000> : vector<1024xf32>
    %25 = vector.multi_reduction <maximumf>, %24, %cst_19 [0] : vector<64x1024xf32> to vector<1024xf32>
    %26 = vector.shape_cast %25 : vector<1024xf32> to vector<1x1024xf32>
    %c0_i32 = arith.constant 0 : i32
    %27 = arith.cmpi eq, %arg1, %c0_i32 : i32
    %28 = arith.extui %27 : i1 to i32
    %c0_i32_20 = arith.constant 0 : i32
    %29 = arith.cmpi ne, %28, %c0_i32_20 : i32
    scf.if %29 {
      %cst_27 = arith.constant 0xFF800000 : f32
      %34 = vector.broadcast %cst_27 : f32 to vector<1x1x1024xf32>
      %c0_28 = arith.constant 0 : index
      %c0_29 = arith.constant 0 : index
      %c0_30 = arith.constant 0 : index
      %35 = vector.load %arg9[%c0_28, %c0_29, %c0_30] : memref<1x1x1024xf32, #tpu.memory_space<vmem>>, vector<1x1x1024xf32>
      tpu.vector_store %arg9[%c0_28, %c0_29, %c0_30], %34 {strides = array<i32>} : memref<1x1x1024xf32, #tpu.memory_space<vmem>>, vector<1x1x1024xf32>,
    } else {
    }
    %c0_21 = arith.constant 0 : index
    %c0_22 = arith.constant 0 : index
    %c0_23 = arith.constant 0 : index
    %30 = vector.load %arg9[%c0_21, %c0_22, %c0_23] : memref<1x1x1024xf32, #tpu.memory_space<vmem>>, vector<1x1x1024xf32>
    %31 = vector.shape_cast %26 : vector<1x1024xf32> to vector<1x1x1024xf32>
    %32 = arith.maximumf %30, %31 : vector<1x1x1024xf32>
    %c0_24 = arith.constant 0 : index
    %c0_25 = arith.constant 0 : index
    %c0_26 = arith.constant 0 : index
    %33 = vector.load %arg9[%c0_24, %c0_25, %c0_26] : memref<1x1x1024xf32, #tpu.memory_space<vmem>>, vector<1x1x1024xf32>
    tpu.vector_store %arg9[%c0_24, %c0_25, %c0_26], %32 {strides = array<i32>} : memref<1x1x1024xf32, #tpu.memory_space<vmem>>, vector<1x1x1024xf32>,
    return
  }
  func.func @transform_0(%arg0: i32, %arg1: i32) -> (i32, i32, i32) {
    %c0_i32 = arith.constant 0 : i32
    %c0_i32_0 = arith.constant 0 : i32
    return %arg0, %arg1, %c0_i32 : i32, i32, i32
  }
  func.func @transform_1(%arg0: i32, %arg1: i32) -> (i32, i32) {
    %c0_i32 = arith.constant 0 : i32
    %c0_i32_0 = arith.constant 0 : i32
    %c0_i32_1 = arith.constant 0 : i32
    return %c0_i32, %c0_i32_0 : i32, i32
  }
  func.func @transform_2(%arg0: i32, %arg1: i32) -> (i32, i32) {
    %c0_i32 = arith.constant 0 : i32
    %c0_i32_0 = arith.constant 0 : i32
    %c0_i32_1 = arith.constant 0 : i32
    return %c0_i32, %c0_i32_0 : i32, i32
  }
  func.func @transform_3(%arg0: i32, %arg1: i32) -> (i32, i32) {
    %c0_i32 = arith.constant 0 : i32
    %c0_i32_0 = arith.constant 0 : i32
    %c0_i32_1 = arith.constant 0 : i32
    return %c0_i32, %c0_i32_0 : i32, i32
  }
  func.func @transform_4(%arg0: i32, %arg1: i32) -> (i32, i32) {
    %c0_i32 = arith.constant 0 : i32
    %c0_i32_0 = arith.constant 0 : i32
    %c0_i32_1 = arith.constant 0 : i32
    return %c0_i32, %c0_i32_0 : i32, i32
  }
  func.func @transform_5(%arg0: i32, %arg1: i32) -> (i32, i32) {
    %c0_i32 = arith.constant 0 : i32
    %c0_i32_0 = arith.constant 0 : i32
    %c0_i32_1 = arith.constant 0 : i32
    return %c0_i32, %c0_i32_0 : i32, i32
  }
  func.func @transform_6(%arg0: i32, %arg1: i32) -> (i32, i32) {
    %c0_i32 = arith.constant 0 : i32
    %c0_i32_0 = arith.constant 0 : i32
    %c0_i32_1 = arith.constant 0 : i32
    return %c0_i32, %c0_i32_0 : i32, i32
  }
  func.func @transform_7(%arg0: i32, %arg1: i32) -> (i32, i32, i32) {
    %c0_i32 = arith.constant 0 : i32
    %c0_i32_0 = arith.constant 0 : i32
    %c0_i32_1 = arith.constant 0 : i32
    return %arg0, %c0_i32, %c0_i32_0 : i32, i32, i32
  }
}

module attributes {stable_mosaic.version = 11 : i64} {
  func.func @_tnet_head_kernel(%arg0: i32, %arg1: memref<2x1024xf32, #tpu.memory_space<vmem>>, %arg2: memref<1024x512xbf16, #tpu.memory_space<vmem>>, %arg3: memref<1x512xf32, #tpu.memory_space<vmem>>, %arg4: memref<512x256xbf16, #tpu.memory_space<vmem>>, %arg5: memref<1x256xf32, #tpu.memory_space<vmem>>, %arg6: memref<256x128xbf16, #tpu.memory_space<vmem>>, %arg7: memref<1x128xf32, #tpu.memory_space<vmem>>, %arg8: memref<2x128xf32, #tpu.memory_space<vmem>>) attributes {dimension_semantics = [#tpu.dimension_semantics<arbitrary>], iteration_bounds = array<i64: 1>, scalar_prefetch = 0 : i64, scratch_operands = 0 : i64, tpu.core_type = #tpu.core_type<tc>, window_params = [{pipeline_mode = #tpu.pipeline_mode<synchronous>, transform_indices = @transform_0, window_bounds = array<i64: 2, 1024>}, {pipeline_mode = #tpu.pipeline_mode<synchronous>, transform_indices = @transform_1, window_bounds = array<i64: 1024, 512>}, {pipeline_mode = #tpu.pipeline_mode<synchronous>, transform_indices = @transform_2, window_bounds = array<i64: 1, 512>}, {pipeline_mode = #tpu.pipeline_mode<synchronous>, transform_indices = @transform_3, window_bounds = array<i64: 512, 256>}, {pipeline_mode = #tpu.pipeline_mode<synchronous>, transform_indices = @transform_4, window_bounds = array<i64: 1, 256>}, {pipeline_mode = #tpu.pipeline_mode<synchronous>, transform_indices = @transform_5, window_bounds = array<i64: 256, 128>}, {pipeline_mode = #tpu.pipeline_mode<synchronous>, transform_indices = @transform_6, window_bounds = array<i64: 1, 128>}, {pipeline_mode = #tpu.pipeline_mode<synchronous>, transform_indices = @transform_7, window_bounds = array<i64: 2, 128>}]} {
    %c0 = arith.constant 0 : index
    %c0_0 = arith.constant 0 : index
    %0 = vector.load %arg1[%c0, %c0_0] : memref<2x1024xf32, #tpu.memory_space<vmem>>, vector<2x1024xf32>
    %1 = arith.truncf %0 : vector<2x1024xf32> to vector<2x1024xbf16>
    %c0_1 = arith.constant 0 : index
    %c0_2 = arith.constant 0 : index
    %2 = vector.load %arg2[%c0_1, %c0_2] : memref<1024x512xbf16, #tpu.memory_space<vmem>>, vector<1024x512xbf16>
    %cst = arith.constant dense<0.000000e+00> : vector<2x512xf32>
    %3 = tpu.matmul %1, %2, %cst {dimension_numbers = #tpu.dot_dimension_numbers<[1], [0], [0], [1], [0, 0, 1, 1], [], []>} : vector<2x1024xbf16>, vector<1024x512xbf16>, vector<2x512xf32> -> vector<2x512xf32>
    %c0_3 = arith.constant 0 : index
    %c0_4 = arith.constant 0 : index
    %4 = vector.load %arg3[%c0_3, %c0_4] : memref<1x512xf32, #tpu.memory_space<vmem>>, vector<1x512xf32>
    %5 = vector.broadcast %4 : vector<1x512xf32> to vector<2x512xf32>
    %6 = arith.addf %3, %5 : vector<2x512xf32>
    %cst_5 = arith.constant 0.000000e+00 : f32
    %7 = vector.broadcast %cst_5 : f32 to vector<2x512xf32>
    %8 = arith.maximumf %6, %7 : vector<2x512xf32>
    %9 = arith.truncf %8 : vector<2x512xf32> to vector<2x512xbf16>
    %c0_6 = arith.constant 0 : index
    %c0_7 = arith.constant 0 : index
    %10 = vector.load %arg4[%c0_6, %c0_7] : memref<512x256xbf16, #tpu.memory_space<vmem>>, vector<512x256xbf16>
    %cst_8 = arith.constant dense<0.000000e+00> : vector<2x256xf32>
    %11 = tpu.matmul %9, %10, %cst_8 {dimension_numbers = #tpu.dot_dimension_numbers<[1], [0], [0], [1], [0, 0, 1, 1], [], []>} : vector<2x512xbf16>, vector<512x256xbf16>, vector<2x256xf32> -> vector<2x256xf32>
    %c0_9 = arith.constant 0 : index
    %c0_10 = arith.constant 0 : index
    %12 = vector.load %arg5[%c0_9, %c0_10] : memref<1x256xf32, #tpu.memory_space<vmem>>, vector<1x256xf32>
    %13 = vector.broadcast %12 : vector<1x256xf32> to vector<2x256xf32>
    %14 = arith.addf %11, %13 : vector<2x256xf32>
    %cst_11 = arith.constant 0.000000e+00 : f32
    %15 = vector.broadcast %cst_11 : f32 to vector<2x256xf32>
    %16 = arith.maximumf %14, %15 : vector<2x256xf32>
    %17 = arith.truncf %16 : vector<2x256xf32> to vector<2x256xbf16>
    %c0_12 = arith.constant 0 : index
    %c0_13 = arith.constant 0 : index
    %18 = vector.load %arg6[%c0_12, %c0_13] : memref<256x128xbf16, #tpu.memory_space<vmem>>, vector<256x128xbf16>
    %cst_14 = arith.constant dense<0.000000e+00> : vector<2x128xf32>
    %19 = tpu.matmul %17, %18, %cst_14 {dimension_numbers = #tpu.dot_dimension_numbers<[1], [0], [0], [1], [0, 0, 1, 1], [], []>} : vector<2x256xbf16>, vector<256x128xbf16>, vector<2x128xf32> -> vector<2x128xf32>
    %c0_15 = arith.constant 0 : index
    %c0_16 = arith.constant 0 : index
    %20 = vector.load %arg7[%c0_15, %c0_16] : memref<1x128xf32, #tpu.memory_space<vmem>>, vector<1x128xf32>
    %21 = vector.broadcast %20 : vector<1x128xf32> to vector<2x128xf32>
    %22 = arith.addf %19, %21 : vector<2x128xf32>
    %c0_17 = arith.constant 0 : index
    %c0_18 = arith.constant 0 : index
    %23 = vector.load %arg8[%c0_17, %c0_18] : memref<2x128xf32, #tpu.memory_space<vmem>>, vector<2x128xf32>
    tpu.vector_store %arg8[%c0_17, %c0_18], %22 {strides = array<i32>} : memref<2x128xf32, #tpu.memory_space<vmem>>, vector<2x128xf32>,
    return
  }
  func.func @transform_0(%arg0: i32) -> (i32, i32) {
    %c0_i32 = arith.constant 0 : i32
    %c0_i32_0 = arith.constant 0 : i32
    %c0_i32_1 = arith.constant 0 : i32
    return %c0_i32, %c0_i32_0 : i32, i32
  }
  func.func @transform_1(%arg0: i32) -> (i32, i32) {
    %c0_i32 = arith.constant 0 : i32
    %c0_i32_0 = arith.constant 0 : i32
    %c0_i32_1 = arith.constant 0 : i32
    return %c0_i32, %c0_i32_0 : i32, i32
  }
  func.func @transform_2(%arg0: i32) -> (i32, i32) {
    %c0_i32 = arith.constant 0 : i32
    %c0_i32_0 = arith.constant 0 : i32
    %c0_i32_1 = arith.constant 0 : i32
    return %c0_i32, %c0_i32_0 : i32, i32
  }
  func.func @transform_3(%arg0: i32) -> (i32, i32) {
    %c0_i32 = arith.constant 0 : i32
    %c0_i32_0 = arith.constant 0 : i32
    %c0_i32_1 = arith.constant 0 : i32
    return %c0_i32, %c0_i32_0 : i32, i32
  }
  func.func @transform_4(%arg0: i32) -> (i32, i32) {
    %c0_i32 = arith.constant 0 : i32
    %c0_i32_0 = arith.constant 0 : i32
    %c0_i32_1 = arith.constant 0 : i32
    return %c0_i32, %c0_i32_0 : i32, i32
  }
  func.func @transform_5(%arg0: i32) -> (i32, i32) {
    %c0_i32 = arith.constant 0 : i32
    %c0_i32_0 = arith.constant 0 : i32
    %c0_i32_1 = arith.constant 0 : i32
    return %c0_i32, %c0_i32_0 : i32, i32
  }
  func.func @transform_6(%arg0: i32) -> (i32, i32) {
    %c0_i32 = arith.constant 0 : i32
    %c0_i32_0 = arith.constant 0 : i32
    %c0_i32_1 = arith.constant 0 : i32
    return %c0_i32, %c0_i32_0 : i32, i32
  }
  func.func @transform_7(%arg0: i32) -> (i32, i32) {
    %c0_i32 = arith.constant 0 : i32
    %c0_i32_0 = arith.constant 0 : i32
    %c0_i32_1 = arith.constant 0 : i32
    return %c0_i32, %c0_i32_0 : i32, i32
  }
}

module attributes {stable_mosaic.version = 11 : i64} {
  func.func @_base_conv_max_kernel(%arg0: i32, %arg1: i32, %arg2: memref<1x64x3xf32, #tpu.memory_space<vmem>>, %arg3: memref<1x3x64xf32, #tpu.memory_space<vmem>>, %arg4: memref<1x64xf32, #tpu.memory_space<vmem>>, %arg5: memref<64x128xbf16, #tpu.memory_space<vmem>>, %arg6: memref<1x128xf32, #tpu.memory_space<vmem>>, %arg7: memref<128x1024xbf16, #tpu.memory_space<vmem>>, %arg8: memref<1x1024xf32, #tpu.memory_space<vmem>>, %arg9: memref<1x64x64xbf16, #tpu.memory_space<vmem>>, %arg10: memref<1x1x1024xf32, #tpu.memory_space<vmem>>) attributes {dimension_semantics = [#tpu.dimension_semantics<parallel>, #tpu.dimension_semantics<arbitrary>], iteration_bounds = array<i64: 2, 1>, scalar_prefetch = 0 : i64, scratch_operands = 0 : i64, tpu.core_type = #tpu.core_type<tc>, window_params = [{transform_indices = @transform_0, window_bounds = array<i64: 1, 64, 3>}, {transform_indices = @transform_1, window_bounds = array<i64: 1, 3, 64>}, {pipeline_mode = #tpu.pipeline_mode<synchronous>, transform_indices = @transform_2, window_bounds = array<i64: 1, 64>}, {pipeline_mode = #tpu.pipeline_mode<synchronous>, transform_indices = @transform_3, window_bounds = array<i64: 64, 128>}, {pipeline_mode = #tpu.pipeline_mode<synchronous>, transform_indices = @transform_4, window_bounds = array<i64: 1, 128>}, {pipeline_mode = #tpu.pipeline_mode<synchronous>, transform_indices = @transform_5, window_bounds = array<i64: 128, 1024>}, {pipeline_mode = #tpu.pipeline_mode<synchronous>, transform_indices = @transform_6, window_bounds = array<i64: 1, 1024>}, {transform_indices = @transform_7, window_bounds = array<i64: 1, 64, 64>}, {transform_indices = @transform_8, window_bounds = array<i64: 1, 1, 1024>}]} {
    %c0 = arith.constant 0 : index
    %c0_0 = arith.constant 0 : index
    %c0_1 = arith.constant 0 : index
    %0 = vector.load %arg2[%c0, %c0_0, %c0_1] : memref<1x64x3xf32, #tpu.memory_space<vmem>>, vector<1x64x3xf32>
    %1 = vector.shape_cast %0 : vector<1x64x3xf32> to vector<64x3xf32>
    %c0_2 = arith.constant 0 : index
    %c0_3 = arith.constant 0 : index
    %c0_4 = arith.constant 0 : index
    %2 = vector.load %arg3[%c0_2, %c0_3, %c0_4] : memref<1x3x64xf32, #tpu.memory_space<vmem>>, vector<1x3x64xf32>
    %3 = vector.shape_cast %2 : vector<1x3x64xf32> to vector<3x64xf32>
    %cst = arith.constant dense<0.000000e+00> : vector<64x64xf32>
    %4 = tpu.matmul %1, %3, %cst {dimension_numbers = #tpu.dot_dimension_numbers<[1], [0], [0], [1], [0, 0, 1, 1], [], []>} : vector<64x3xf32>, vector<3x64xf32>, vector<64x64xf32> -> vector<64x64xf32>
    %c0_5 = arith.constant 0 : index
    %c0_6 = arith.constant 0 : index
    %5 = vector.load %arg4[%c0_5, %c0_6] : memref<1x64xf32, #tpu.memory_space<vmem>>, vector<1x64xf32>
    %6 = vector.broadcast %5 : vector<1x64xf32> to vector<64x64xf32>
    %7 = arith.addf %4, %6 : vector<64x64xf32>
    %cst_7 = arith.constant 0.000000e+00 : f32
    %8 = vector.broadcast %cst_7 : f32 to vector<64x64xf32>
    %9 = arith.maximumf %7, %8 : vector<64x64xf32>
    %10 = arith.truncf %9 : vector<64x64xf32> to vector<64x64xbf16>
    %c0_8 = arith.constant 0 : index
    %c0_9 = arith.constant 0 : index
    %c0_10 = arith.constant 0 : index
    %11 = vector.load %arg9[%c0_8, %c0_9, %c0_10] : memref<1x64x64xbf16, #tpu.memory_space<vmem>>, vector<1x64x64xbf16>
    %12 = vector.shape_cast %11 : vector<1x64x64xbf16> to vector<64x64xbf16>
    %13 = vector.shape_cast %10 : vector<64x64xbf16> to vector<1x64x64xbf16>
    tpu.vector_store %arg9[%c0_8, %c0_9, %c0_10], %13 {strides = array<i32>} : memref<1x64x64xbf16, #tpu.memory_space<vmem>>, vector<1x64x64xbf16>,
    %14 = arith.truncf %9 : vector<64x64xf32> to vector<64x64xbf16>
    %c0_11 = arith.constant 0 : index
    %c0_12 = arith.constant 0 : index
    %15 = vector.load %arg5[%c0_11, %c0_12] : memref<64x128xbf16, #tpu.memory_space<vmem>>, vector<64x128xbf16>
    %cst_13 = arith.constant dense<0.000000e+00> : vector<64x128xf32>
    %16 = tpu.matmul %14, %15, %cst_13 {dimension_numbers = #tpu.dot_dimension_numbers<[1], [0], [0], [1], [0, 0, 1, 1], [], []>} : vector<64x64xbf16>, vector<64x128xbf16>, vector<64x128xf32> -> vector<64x128xf32>
    %c0_14 = arith.constant 0 : index
    %c0_15 = arith.constant 0 : index
    %17 = vector.load %arg6[%c0_14, %c0_15] : memref<1x128xf32, #tpu.memory_space<vmem>>, vector<1x128xf32>
    %18 = vector.broadcast %17 : vector<1x128xf32> to vector<64x128xf32>
    %19 = arith.addf %16, %18 : vector<64x128xf32>
    %cst_16 = arith.constant 0.000000e+00 : f32
    %20 = vector.broadcast %cst_16 : f32 to vector<64x128xf32>
    %21 = arith.maximumf %19, %20 : vector<64x128xf32>
    %22 = arith.truncf %21 : vector<64x128xf32> to vector<64x128xbf16>
    %c0_17 = arith.constant 0 : index
    %c0_18 = arith.constant 0 : index
    %23 = vector.load %arg7[%c0_17, %c0_18] : memref<128x1024xbf16, #tpu.memory_space<vmem>>, vector<128x1024xbf16>
    %cst_19 = arith.constant dense<0.000000e+00> : vector<64x1024xf32>
    %24 = tpu.matmul %22, %23, %cst_19 {dimension_numbers = #tpu.dot_dimension_numbers<[1], [0], [0], [1], [0, 0, 1, 1], [], []>} : vector<64x128xbf16>, vector<128x1024xbf16>, vector<64x1024xf32> -> vector<64x1024xf32>
    %c0_20 = arith.constant 0 : index
    %c0_21 = arith.constant 0 : index
    %25 = vector.load %arg8[%c0_20, %c0_21] : memref<1x1024xf32, #tpu.memory_space<vmem>>, vector<1x1024xf32>
    %26 = vector.broadcast %25 : vector<1x1024xf32> to vector<64x1024xf32>
    %27 = arith.addf %24, %26 : vector<64x1024xf32>
    %cst_22 = arith.constant 0.000000e+00 : f32
    %28 = vector.broadcast %cst_22 : f32 to vector<64x1024xf32>
    %29 = arith.maximumf %27, %28 : vector<64x1024xf32>
    %cst_23 = arith.constant dense<0xFF800000> : vector<1024xf32>
    %30 = vector.multi_reduction <maximumf>, %29, %cst_23 [0] : vector<64x1024xf32> to vector<1024xf32>
    %31 = vector.shape_cast %30 : vector<1024xf32> to vector<1x1024xf32>
    %c0_i32 = arith.constant 0 : i32
    %32 = arith.cmpi eq, %arg1, %c0_i32 : i32
    %33 = arith.extui %32 : i1 to i32
    %c0_i32_24 = arith.constant 0 : i32
    %34 = arith.cmpi ne, %33, %c0_i32_24 : i32
    scf.if %34 {
      %cst_31 = arith.constant 0xFF800000 : f32
      %39 = vector.broadcast %cst_31 : f32 to vector<1x1x1024xf32>
      %c0_32 = arith.constant 0 : index
      %c0_33 = arith.constant 0 : index
      %c0_34 = arith.constant 0 : index
      %40 = vector.load %arg10[%c0_32, %c0_33, %c0_34] : memref<1x1x1024xf32, #tpu.memory_space<vmem>>, vector<1x1x1024xf32>
      tpu.vector_store %arg10[%c0_32, %c0_33, %c0_34], %39 {strides = array<i32>} : memref<1x1x1024xf32, #tpu.memory_space<vmem>>, vector<1x1x1024xf32>,
    } else {
    }
    %c0_25 = arith.constant 0 : index
    %c0_26 = arith.constant 0 : index
    %c0_27 = arith.constant 0 : index
    %35 = vector.load %arg10[%c0_25, %c0_26, %c0_27] : memref<1x1x1024xf32, #tpu.memory_space<vmem>>, vector<1x1x1024xf32>
    %36 = vector.shape_cast %31 : vector<1x1024xf32> to vector<1x1x1024xf32>
    %37 = arith.maximumf %35, %36 : vector<1x1x1024xf32>
    %c0_28 = arith.constant 0 : index
    %c0_29 = arith.constant 0 : index
    %c0_30 = arith.constant 0 : index
    %38 = vector.load %arg10[%c0_28, %c0_29, %c0_30] : memref<1x1x1024xf32, #tpu.memory_space<vmem>>, vector<1x1x1024xf32>
    tpu.vector_store %arg10[%c0_28, %c0_29, %c0_30], %37 {strides = array<i32>} : memref<1x1x1024xf32, #tpu.memory_space<vmem>>, vector<1x1x1024xf32>,
    return
  }
  func.func @transform_0(%arg0: i32, %arg1: i32) -> (i32, i32, i32) {
    %c0_i32 = arith.constant 0 : i32
    %c0_i32_0 = arith.constant 0 : i32
    return %arg0, %arg1, %c0_i32 : i32, i32, i32
  }
  func.func @transform_1(%arg0: i32, %arg1: i32) -> (i32, i32, i32) {
    %c0_i32 = arith.constant 0 : i32
    %c0_i32_0 = arith.constant 0 : i32
    %c0_i32_1 = arith.constant 0 : i32
    return %arg0, %c0_i32, %c0_i32_0 : i32, i32, i32
  }
  func.func @transform_2(%arg0: i32, %arg1: i32) -> (i32, i32) {
    %c0_i32 = arith.constant 0 : i32
    %c0_i32_0 = arith.constant 0 : i32
    %c0_i32_1 = arith.constant 0 : i32
    return %c0_i32, %c0_i32_0 : i32, i32
  }
  func.func @transform_3(%arg0: i32, %arg1: i32) -> (i32, i32) {
    %c0_i32 = arith.constant 0 : i32
    %c0_i32_0 = arith.constant 0 : i32
    %c0_i32_1 = arith.constant 0 : i32
    return %c0_i32, %c0_i32_0 : i32, i32
  }
  func.func @transform_4(%arg0: i32, %arg1: i32) -> (i32, i32) {
    %c0_i32 = arith.constant 0 : i32
    %c0_i32_0 = arith.constant 0 : i32
    %c0_i32_1 = arith.constant 0 : i32
    return %c0_i32, %c0_i32_0 : i32, i32
  }
  func.func @transform_5(%arg0: i32, %arg1: i32) -> (i32, i32) {
    %c0_i32 = arith.constant 0 : i32
    %c0_i32_0 = arith.constant 0 : i32
    %c0_i32_1 = arith.constant 0 : i32
    return %c0_i32, %c0_i32_0 : i32, i32
  }
  func.func @transform_6(%arg0: i32, %arg1: i32) -> (i32, i32) {
    %c0_i32 = arith.constant 0 : i32
    %c0_i32_0 = arith.constant 0 : i32
    %c0_i32_1 = arith.constant 0 : i32
    return %c0_i32, %c0_i32_0 : i32, i32
  }
  func.func @transform_7(%arg0: i32, %arg1: i32) -> (i32, i32, i32) {
    %c0_i32 = arith.constant 0 : i32
    %c0_i32_0 = arith.constant 0 : i32
    return %arg0, %arg1, %c0_i32 : i32, i32, i32
  }
  func.func @transform_8(%arg0: i32, %arg1: i32) -> (i32, i32, i32) {
    %c0_i32 = arith.constant 0 : i32
    %c0_i32_0 = arith.constant 0 : i32
    %c0_i32_1 = arith.constant 0 : i32
    return %arg0, %c0_i32, %c0_i32_0 : i32, i32, i32
  }
}

module attributes {stable_mosaic.version = 11 : i64} {
  func.func @_global_proj_kernel(%arg0: i32, %arg1: memref<2x1024xf32, #tpu.memory_space<vmem>>, %arg2: memref<1024x512xbf16, #tpu.memory_space<vmem>>, %arg3: memref<1x512xf32, #tpu.memory_space<vmem>>, %arg4: memref<2x512xf32, #tpu.memory_space<vmem>>) attributes {dimension_semantics = [#tpu.dimension_semantics<arbitrary>], iteration_bounds = array<i64: 1>, scalar_prefetch = 0 : i64, scratch_operands = 0 : i64, tpu.core_type = #tpu.core_type<tc>, window_params = [{pipeline_mode = #tpu.pipeline_mode<synchronous>, transform_indices = @transform_0, window_bounds = array<i64: 2, 1024>}, {pipeline_mode = #tpu.pipeline_mode<synchronous>, transform_indices = @transform_1, window_bounds = array<i64: 1024, 512>}, {pipeline_mode = #tpu.pipeline_mode<synchronous>, transform_indices = @transform_2, window_bounds = array<i64: 1, 512>}, {pipeline_mode = #tpu.pipeline_mode<synchronous>, transform_indices = @transform_3, window_bounds = array<i64: 2, 512>}]} {
    %c0 = arith.constant 0 : index
    %c0_0 = arith.constant 0 : index
    %0 = vector.load %arg1[%c0, %c0_0] : memref<2x1024xf32, #tpu.memory_space<vmem>>, vector<2x1024xf32>
    %1 = arith.truncf %0 : vector<2x1024xf32> to vector<2x1024xbf16>
    %c0_1 = arith.constant 0 : index
    %c0_2 = arith.constant 0 : index
    %2 = vector.load %arg2[%c0_1, %c0_2] : memref<1024x512xbf16, #tpu.memory_space<vmem>>, vector<1024x512xbf16>
    %cst = arith.constant dense<0.000000e+00> : vector<2x512xf32>
    %3 = tpu.matmul %1, %2, %cst {dimension_numbers = #tpu.dot_dimension_numbers<[1], [0], [0], [1], [0, 0, 1, 1], [], []>} : vector<2x1024xbf16>, vector<1024x512xbf16>, vector<2x512xf32> -> vector<2x512xf32>
    %c0_3 = arith.constant 0 : index
    %c0_4 = arith.constant 0 : index
    %4 = vector.load %arg3[%c0_3, %c0_4] : memref<1x512xf32, #tpu.memory_space<vmem>>, vector<1x512xf32>
    %5 = vector.broadcast %4 : vector<1x512xf32> to vector<2x512xf32>
    %6 = arith.addf %3, %5 : vector<2x512xf32>
    %c0_5 = arith.constant 0 : index
    %c0_6 = arith.constant 0 : index
    %7 = vector.load %arg4[%c0_5, %c0_6] : memref<2x512xf32, #tpu.memory_space<vmem>>, vector<2x512xf32>
    tpu.vector_store %arg4[%c0_5, %c0_6], %6 {strides = array<i32>} : memref<2x512xf32, #tpu.memory_space<vmem>>, vector<2x512xf32>,
    return
  }
  func.func @transform_0(%arg0: i32) -> (i32, i32) {
    %c0_i32 = arith.constant 0 : i32
    %c0_i32_0 = arith.constant 0 : i32
    %c0_i32_1 = arith.constant 0 : i32
    return %c0_i32, %c0_i32_0 : i32, i32
  }
  func.func @transform_1(%arg0: i32) -> (i32, i32) {
    %c0_i32 = arith.constant 0 : i32
    %c0_i32_0 = arith.constant 0 : i32
    %c0_i32_1 = arith.constant 0 : i32
    return %c0_i32, %c0_i32_0 : i32, i32
  }
  func.func @transform_2(%arg0: i32) -> (i32, i32) {
    %c0_i32 = arith.constant 0 : i32
    %c0_i32_0 = arith.constant 0 : i32
    %c0_i32_1 = arith.constant 0 : i32
    return %c0_i32, %c0_i32_0 : i32, i32
  }
  func.func @transform_3(%arg0: i32) -> (i32, i32) {
    %c0_i32 = arith.constant 0 : i32
    %c0_i32_0 = arith.constant 0 : i32
    %c0_i32_1 = arith.constant 0 : i32
    return %c0_i32, %c0_i32_0 : i32, i32
  }
}

module attributes {stable_mosaic.version = 11 : i64} {
  func.func @_seg_head_kernel(%arg0: i32, %arg1: i32, %arg2: memref<1x64x64xbf16, #tpu.memory_space<vmem>>, %arg3: memref<1x1x512xf32, #tpu.memory_space<vmem>>, %arg4: memref<64x512xbf16, #tpu.memory_space<vmem>>, %arg5: memref<512x256xbf16, #tpu.memory_space<vmem>>, %arg6: memref<1x256xf32, #tpu.memory_space<vmem>>, %arg7: memref<256x128xbf16, #tpu.memory_space<vmem>>, %arg8: memref<1x128xf32, #tpu.memory_space<vmem>>, %arg9: memref<128x4xbf16, #tpu.memory_space<vmem>>, %arg10: memref<1x4xf32, #tpu.memory_space<vmem>>, %arg11: memref<1x64x4xf32, #tpu.memory_space<vmem>>) attributes {dimension_semantics = [#tpu.dimension_semantics<parallel>, #tpu.dimension_semantics<parallel>], iteration_bounds = array<i64: 2, 1>, scalar_prefetch = 0 : i64, scratch_operands = 0 : i64, tpu.core_type = #tpu.core_type<tc>, window_params = [{transform_indices = @transform_0, window_bounds = array<i64: 1, 64, 64>}, {transform_indices = @transform_1, window_bounds = array<i64: 1, 1, 512>}, {pipeline_mode = #tpu.pipeline_mode<synchronous>, transform_indices = @transform_2, window_bounds = array<i64: 64, 512>}, {pipeline_mode = #tpu.pipeline_mode<synchronous>, transform_indices = @transform_3, window_bounds = array<i64: 512, 256>}, {pipeline_mode = #tpu.pipeline_mode<synchronous>, transform_indices = @transform_4, window_bounds = array<i64: 1, 256>}, {pipeline_mode = #tpu.pipeline_mode<synchronous>, transform_indices = @transform_5, window_bounds = array<i64: 256, 128>}, {pipeline_mode = #tpu.pipeline_mode<synchronous>, transform_indices = @transform_6, window_bounds = array<i64: 1, 128>}, {pipeline_mode = #tpu.pipeline_mode<synchronous>, transform_indices = @transform_7, window_bounds = array<i64: 128, 4>}, {pipeline_mode = #tpu.pipeline_mode<synchronous>, transform_indices = @transform_8, window_bounds = array<i64: 1, 4>}, {transform_indices = @transform_9, window_bounds = array<i64: 1, 64, 4>}]} {
    %c0 = arith.constant 0 : index
    %c0_0 = arith.constant 0 : index
    %c0_1 = arith.constant 0 : index
    %0 = vector.load %arg2[%c0, %c0_0, %c0_1] : memref<1x64x64xbf16, #tpu.memory_space<vmem>>, vector<1x64x64xbf16>
    %1 = vector.shape_cast %0 : vector<1x64x64xbf16> to vector<64x64xbf16>
    %c0_2 = arith.constant 0 : index
    %c0_3 = arith.constant 0 : index
    %c0_4 = arith.constant 0 : index
    %2 = vector.load %arg3[%c0_2, %c0_3, %c0_4] : memref<1x1x512xf32, #tpu.memory_space<vmem>>, vector<1x1x512xf32>
    %3 = vector.shape_cast %2 : vector<1x1x512xf32> to vector<1x512xf32>
    %c0_5 = arith.constant 0 : index
    %c0_6 = arith.constant 0 : index
    %4 = vector.load %arg4[%c0_5, %c0_6] : memref<64x512xbf16, #tpu.memory_space<vmem>>, vector<64x512xbf16>
    %cst = arith.constant dense<0.000000e+00> : vector<64x512xf32>
    %5 = tpu.matmul %1, %4, %cst {dimension_numbers = #tpu.dot_dimension_numbers<[1], [0], [0], [1], [0, 0, 1, 1], [], []>} : vector<64x64xbf16>, vector<64x512xbf16>, vector<64x512xf32> -> vector<64x512xf32>
    %6 = vector.broadcast %3 : vector<1x512xf32> to vector<64x512xf32>
    %7 = arith.addf %5, %6 : vector<64x512xf32>
    %cst_7 = arith.constant 0.000000e+00 : f32
    %8 = vector.broadcast %cst_7 : f32 to vector<64x512xf32>
    %9 = arith.maximumf %7, %8 : vector<64x512xf32>
    %10 = arith.truncf %9 : vector<64x512xf32> to vector<64x512xbf16>
    %c0_8 = arith.constant 0 : index
    %c0_9 = arith.constant 0 : index
    %11 = vector.load %arg5[%c0_8, %c0_9] : memref<512x256xbf16, #tpu.memory_space<vmem>>, vector<512x256xbf16>
    %cst_10 = arith.constant dense<0.000000e+00> : vector<64x256xf32>
    %12 = tpu.matmul %10, %11, %cst_10 {dimension_numbers = #tpu.dot_dimension_numbers<[1], [0], [0], [1], [0, 0, 1, 1], [], []>} : vector<64x512xbf16>, vector<512x256xbf16>, vector<64x256xf32> -> vector<64x256xf32>
    %c0_11 = arith.constant 0 : index
    %c0_12 = arith.constant 0 : index
    %13 = vector.load %arg6[%c0_11, %c0_12] : memref<1x256xf32, #tpu.memory_space<vmem>>, vector<1x256xf32>
    %14 = vector.broadcast %13 : vector<1x256xf32> to vector<64x256xf32>
    %15 = arith.addf %12, %14 : vector<64x256xf32>
    %cst_13 = arith.constant 0.000000e+00 : f32
    %16 = vector.broadcast %cst_13 : f32 to vector<64x256xf32>
    %17 = arith.maximumf %15, %16 : vector<64x256xf32>
    %18 = arith.truncf %17 : vector<64x256xf32> to vector<64x256xbf16>
    %c0_14 = arith.constant 0 : index
    %c0_15 = arith.constant 0 : index
    %19 = vector.load %arg7[%c0_14, %c0_15] : memref<256x128xbf16, #tpu.memory_space<vmem>>, vector<256x128xbf16>
    %cst_16 = arith.constant dense<0.000000e+00> : vector<64x128xf32>
    %20 = tpu.matmul %18, %19, %cst_16 {dimension_numbers = #tpu.dot_dimension_numbers<[1], [0], [0], [1], [0, 0, 1, 1], [], []>} : vector<64x256xbf16>, vector<256x128xbf16>, vector<64x128xf32> -> vector<64x128xf32>
    %c0_17 = arith.constant 0 : index
    %c0_18 = arith.constant 0 : index
    %21 = vector.load %arg8[%c0_17, %c0_18] : memref<1x128xf32, #tpu.memory_space<vmem>>, vector<1x128xf32>
    %22 = vector.broadcast %21 : vector<1x128xf32> to vector<64x128xf32>
    %23 = arith.addf %20, %22 : vector<64x128xf32>
    %cst_19 = arith.constant 0.000000e+00 : f32
    %24 = vector.broadcast %cst_19 : f32 to vector<64x128xf32>
    %25 = arith.maximumf %23, %24 : vector<64x128xf32>
    %26 = arith.truncf %25 : vector<64x128xf32> to vector<64x128xbf16>
    %c0_20 = arith.constant 0 : index
    %c0_21 = arith.constant 0 : index
    %27 = vector.load %arg9[%c0_20, %c0_21] : memref<128x4xbf16, #tpu.memory_space<vmem>>, vector<128x4xbf16>
    %cst_22 = arith.constant dense<0.000000e+00> : vector<64x4xf32>
    %28 = tpu.matmul %26, %27, %cst_22 {dimension_numbers = #tpu.dot_dimension_numbers<[1], [0], [0], [1], [0, 0, 1, 1], [], []>} : vector<64x128xbf16>, vector<128x4xbf16>, vector<64x4xf32> -> vector<64x4xf32>
    %c0_23 = arith.constant 0 : index
    %c0_24 = arith.constant 0 : index
    %29 = vector.load %arg10[%c0_23, %c0_24] : memref<1x4xf32, #tpu.memory_space<vmem>>, vector<1x4xf32>
    %30 = vector.broadcast %29 : vector<1x4xf32> to vector<64x4xf32>
    %31 = arith.addf %28, %30 : vector<64x4xf32>
    %cst_25 = arith.constant dense<0xFF800000> : vector<64xf32>
    %32 = vector.multi_reduction <maximumf>, %31, %cst_25 [1] : vector<64x4xf32> to vector<64xf32>
    %33 = vector.shape_cast %32 : vector<64xf32> to vector<64x1xf32>
    %34 = vector.broadcast %33 : vector<64x1xf32> to vector<64x4xf32>
    %35 = arith.subf %31, %34 : vector<64x4xf32>
    %36 = math.exp %35 : vector<64x4xf32>
    %cst_26 = arith.constant dense<0.000000e+00> : vector<64xf32>
    %37 = vector.multi_reduction <add>, %36, %cst_26 [1] : vector<64x4xf32> to vector<64xf32>
    %38 = vector.shape_cast %37 : vector<64xf32> to vector<64x1xf32>
    %39 = math.log %38 : vector<64x1xf32>
    %40 = vector.broadcast %39 : vector<64x1xf32> to vector<64x4xf32>
    %41 = arith.subf %35, %40 : vector<64x4xf32>
    %c0_27 = arith.constant 0 : index
    %c0_28 = arith.constant 0 : index
    %c0_29 = arith.constant 0 : index
    %42 = vector.load %arg11[%c0_27, %c0_28, %c0_29] : memref<1x64x4xf32, #tpu.memory_space<vmem>>, vector<1x64x4xf32>
    %43 = vector.shape_cast %42 : vector<1x64x4xf32> to vector<64x4xf32>
    %44 = vector.shape_cast %41 : vector<64x4xf32> to vector<1x64x4xf32>
    tpu.vector_store %arg11[%c0_27, %c0_28, %c0_29], %44 {strides = array<i32>} : memref<1x64x4xf32, #tpu.memory_space<vmem>>, vector<1x64x4xf32>,
    return
  }
  func.func @transform_0(%arg0: i32, %arg1: i32) -> (i32, i32, i32) {
    %c0_i32 = arith.constant 0 : i32
    %c0_i32_0 = arith.constant 0 : i32
    return %arg0, %arg1, %c0_i32 : i32, i32, i32
  }
  func.func @transform_1(%arg0: i32, %arg1: i32) -> (i32, i32, i32) {
    %c0_i32 = arith.constant 0 : i32
    %c0_i32_0 = arith.constant 0 : i32
    %c0_i32_1 = arith.constant 0 : i32
    return %arg0, %c0_i32, %c0_i32_0 : i32, i32, i32
  }
  func.func @transform_2(%arg0: i32, %arg1: i32) -> (i32, i32) {
    %c0_i32 = arith.constant 0 : i32
    %c0_i32_0 = arith.constant 0 : i32
    %c0_i32_1 = arith.constant 0 : i32
    return %c0_i32, %c0_i32_0 : i32, i32
  }
  func.func @transform_3(%arg0: i32, %arg1: i32) -> (i32, i32) {
    %c0_i32 = arith.constant 0 : i32
    %c0_i32_0 = arith.constant 0 : i32
    %c0_i32_1 = arith.constant 0 : i32
    return %c0_i32, %c0_i32_0 : i32, i32
  }
  func.func @transform_4(%arg0: i32, %arg1: i32) -> (i32, i32) {
    %c0_i32 = arith.constant 0 : i32
    %c0_i32_0 = arith.constant 0 : i32
    %c0_i32_1 = arith.constant 0 : i32
    return %c0_i32, %c0_i32_0 : i32, i32
  }
  func.func @transform_5(%arg0: i32, %arg1: i32) -> (i32, i32) {
    %c0_i32 = arith.constant 0 : i32
    %c0_i32_0 = arith.constant 0 : i32
    %c0_i32_1 = arith.constant 0 : i32
    return %c0_i32, %c0_i32_0 : i32, i32
  }
  func.func @transform_6(%arg0: i32, %arg1: i32) -> (i32, i32) {
    %c0_i32 = arith.constant 0 : i32
    %c0_i32_0 = arith.constant 0 : i32
    %c0_i32_1 = arith.constant 0 : i32
    return %c0_i32, %c0_i32_0 : i32, i32
  }
  func.func @transform_7(%arg0: i32, %arg1: i32) -> (i32, i32) {
    %c0_i32 = arith.constant 0 : i32
    %c0_i32_0 = arith.constant 0 : i32
    %c0_i32_1 = arith.constant 0 : i32
    return %c0_i32, %c0_i32_0 : i32, i32
  }
  func.func @transform_8(%arg0: i32, %arg1: i32) -> (i32, i32) {
    %c0_i32 = arith.constant 0 : i32
    %c0_i32_0 = arith.constant 0 : i32
    %c0_i32_1 = arith.constant 0 : i32
    return %c0_i32, %c0_i32_0 : i32, i32
  }
  func.func @transform_9(%arg0: i32, %arg1: i32) -> (i32, i32, i32) {
    %c0_i32 = arith.constant 0 : i32
    %c0_i32_0 = arith.constant 0 : i32
    return %arg0, %arg1, %c0_i32 : i32, i32, i32
  }
}

</mosaic_0001>

<llo_original>
// kernel: segment_forward.5
$region0: #{segment_forward.5}
  #allocation0 [shape = 'u32[]', space=smem, size = 0x4, offset = 0x4, fixed_abs, tag = 'smem constant byte address 0x4 - core index']
  #allocation1 [shape = 'u32[144,128]{1,0:T(1,128)}', space=vmem, size = 0x12000, scoped, tag = 'internal scratch']
  %s0 = inlined_call_operand.vmem [shape: f32[2,64,3], index: 0, kind: input, shape index: {}]
  %s1 = inlined_call_operand.vmem [shape: f32[3,64], index: 1, kind: input, shape index: {}]
  %s2 = inlined_call_operand.vmem [shape: f32[1,64], index: 2, kind: input, shape index: {}]
  %s3 = inlined_call_operand.vmem [shape: bf16[64,128], index: 3, kind: input, shape index: {}]
  %s4 = inlined_call_operand.vmem [shape: f32[1,128], index: 4, kind: input, shape index: {}]
  %s5 = inlined_call_operand.vmem [shape: bf16[128,1024], index: 5, kind: input, shape index: {}]
  %s6 = inlined_call_operand.vmem [shape: f32[1,1024], index: 6, kind: input, shape index: {}]
  %s7 = inlined_call_operand.vmem [shape: f32[2,1,1024], index: 7, kind: output, shape index: {}]
  %s8 = sld [smem:[#allocation0]]
  $region65: #{segment_forward.5} parent=0
    _
  %s10 = ssub.s32 1, %s8
  %s11 = scalar_select 0, %s10, %s8
  loop: start=0, step=1, limit=4
  $region2: #{segment_forward.5} parent=0 // loop_pre_header
    _
  $region3: #{segment_forward.5} parent=0 // loop_header
    %s13 = sphi 0, %s17
    %p14 = scmp.ge.s32.totalorder %s13, 4
    %s20 = sphi 0, %s32
    %s21 = sphi 0, %s28
    %s22 = sphi 0, %s20
    %s23 = sphi 0, %s21
    %s24 = sphi 0, %s22
    %s25 = sphi 0, %s23
    %s37 = sphi 0, %s39
    %s40 = sphi 0, %s37
    %s41 = sphi 0, %s40
    %s57 = sphi 0, %s41
    %s61 = sphi 0, %s61
    %s63 = sphi 0, %s61
    %s64 = sphi 0, %s63
    %s78 = sphi 0, %s64
    %s82 = sphi 0, %s82
    %s84 = sphi 0, %s82
    %s85 = sphi 0, %s84
    %s99 = sphi 0, %s85
    %s103 = sphi 0, %s103
    %s105 = sphi 0, %s103
    %s106 = sphi 0, %s105
    %s120 = sphi 0, %s106
    %s124 = sphi 0, %s124
    %s126 = sphi 0, %s124
    %s127 = sphi 0, %s126
    %s141 = sphi 0, %s127
    %s145 = sphi 0, %s145
    %s147 = sphi 0, %s145
    %s148 = sphi 0, %s147
    %s162 = sphi 0, %s148
    %s166 = sphi 0, %s166
    %s168 = sphi 0, %s166
    %s169 = sphi 0, %s168
    %s183 = sphi 0, %s169
    %s189 = sphi 0, %s191
    %s192 = sphi 0, %s189
    %s193 = sphi 0, %s192
    %s209 = sphi 0, %s193
  $region4: #{segment_forward.5} parent=0 // loop_header_branch
    %16 = sbr.rel (%p14) target = $region8
  $region5: #{segment_forward.5} parent=0 // loop_body
    %s18 = ssub.s32 %s13, 1
    %s19 = ssub.s32 %s13, 2
    %s26 = sadd.s32 1, %s21
    %p27 = scmp.ge.s32.totalorder %s26, 1
    %s28 = scalar_select %p27, 0, %s26
    %s29 = sadd.s32 1, %s20
    %s30 = scalar_select %p27, %s29, %s20
    %p31 = scmp.ge.s32.totalorder %s30, 2
    %s32 = scalar_select %p31, 0, %s30
    %s33 = ssub.s32 %s20, %s32
    %s34 = ssub.s32 %s21, %s28
    %s35 = sor.u32 %s33, %s34
    %p36 = scmp.eq.s32.totalorder %s35, 0
    %s38 = sadd.s32 %s37, 1
    %s39 = scalar_select %p36, %s37, %s38
    %p42 = pneg %p36
    %p43 = scmp.eq.s32.totalorder %s13, 1
    %p44 = por %p42, %p43
    %p45 = scmp.ne.s32.totalorder %s37, %s40
    %p46 = scmp.eq.s32.totalorder %s13, 0
    %p47 = por %p45, %p46
    %p48 = scmp.ne.s32.totalorder %s37, %s40
    %p49 = scmp.eq.s32.totalorder %s18, 1
    %p50 = por %p48, %p49
    %p51 = scmp.ne.s32.totalorder %s40, %s41
    %p52 = scmp.eq.s32.totalorder %s18, 0
    %p53 = por %p51, %p52
    %p54 = scmp.ne.s32.totalorder %s40, %s41
    %p55 = scmp.eq.s32.totalorder %s19, 1
    %p56 = por %p54, %p55
    %p58 = scmp.ne.s32.totalorder %s41, %s57
    %p59 = scmp.eq.s32.totalorder %s19, 0
    %p60 = por %p58, %p59
    %s62 = sadd.s32 %s61, 1
    %p65 = scmp.eq.s32.totalorder %s13, 1
    %p66 = scmp.ne.s32.totalorder %s61, %s63
    %p67 = scmp.eq.s32.totalorder %s13, 0
    %p68 = por %p66, %p67
    %p69 = scmp.ne.s32.totalorder %s61, %s63
    %p70 = scmp.eq.s32.totalorder %s18, 1
    %p71 = por %p69, %p70
    %p72 = scmp.ne.s32.totalorder %s63, %s64
    %p73 = scmp.eq.s32.totalorder %s18, 0
    %p74 = por %p72, %p73
    %p75 = scmp.ne.s32.totalorder %s63, %s64
    %p76 = scmp.eq.s32.totalorder %s19, 1
    %p77 = por %p75, %p76
    %p79 = scmp.ne.s32.totalorder %s64, %s78
    %p80 = scmp.eq.s32.totalorder %s19, 0
    %p81 = por %p79, %p80
    %s83 = sadd.s32 %s82, 1
    %p86 = scmp.eq.s32.totalorder %s13, 1
    %p87 = scmp.ne.s32.totalorder %s82, %s84
    %p88 = scmp.eq.s32.totalorder %s13, 0
    %p89 = por %p87, %p88
    %p90 = scmp.ne.s32.totalorder %s82, %s84
    %p91 = scmp.eq.s32.totalorder %s18, 1
    %p92 = por %p90, %p91
    %p93 = scmp.ne.s32.totalorder %s84, %s85
    %p94 = scmp.eq.s32.totalorder %s18, 0
    %p95 = por %p93, %p94
    %p96 = scmp.ne.s32.totalorder %s84, %s85
    %p97 = scmp.eq.s32.totalorder %s19, 1
    %p98 = por %p96, %p97
    %p100 = scmp.ne.s32.totalorder %s85, %s99
    %p101 = scmp.eq.s32.totalorder %s19, 0
    %p102 = por %p100, %p101
    %s104 = sadd.s32 %s103, 1
    %p107 = scmp.eq.s32.totalorder %s13, 1
    %p108 = scmp.ne.s32.totalorder %s103, %s105
    %p109 = scmp.eq.s32.totalorder %s13, 0
    %p110 = por %p108, %p109
    %p111 = scmp.ne.s32.totalorder %s103, %s105
    %p112 = scmp.eq.s32.totalorder %s18, 1
    %p113 = por %p111, %p112
    %p114 = scmp.ne.s32.totalorder %s105, %s106
    %p115 = scmp.eq.s32.totalorder %s18, 0
    %p116 = por %p114, %p115
    %p117 = scmp.ne.s32.totalorder %s105, %s106
    %p118 = scmp.eq.s32.totalorder %s19, 1
    %p119 = por %p117, %p118
    %p121 = scmp.ne.s32.totalorder %s106, %s120
    %p122 = scmp.eq.s32.totalorder %s19, 0
    %p123 = por %p121, %p122
    %s125 = sadd.s32 %s124, 1
    %p128 = scmp.eq.s32.totalorder %s13, 1
    %p129 = scmp.ne.s32.totalorder %s124, %s126
    %p130 = scmp.eq.s32.totalorder %s13, 0
    %p131 = por %p129, %p130
    %p132 = scmp.ne.s32.totalorder %s124, %s126
    %p133 = scmp.eq.s32.totalorder %s18, 1
    %p134 = por %p132, %p133
    %p135 = scmp.ne.s32.totalorder %s126, %s127
    %p136 = scmp.eq.s32.totalorder %s18, 0
    %p137 = por %p135, %p136
    %p138 = scmp.ne.s32.totalorder %s126, %s127
    %p139 = scmp.eq.s32.totalorder %s19, 1
    %p140 = por %p138, %p139
    %p142 = scmp.ne.s32.totalorder %s127, %s141
    %p143 = scmp.eq.s32.totalorder %s19, 0
    %p144 = por %p142, %p143
    %s146 = sadd.s32 %s145, 1
    %p149 = scmp.eq.s32.totalorder %s13, 1
    %p150 = scmp.ne.s32.totalorder %s145, %s147
    %p151 = scmp.eq.s32.totalorder %s13, 0
    %p152 = por %p150, %p151
    %p153 = scmp.ne.s32.totalorder %s145, %s147
    %p154 = scmp.eq.s32.totalorder %s18, 1
    %p155 = por %p153, %p154
    %p156 = scmp.ne.s32.totalorder %s147, %s148
    %p157 = scmp.eq.s32.totalorder %s18, 0
    %p158 = por %p156, %p157
    %p159 = scmp.ne.s32.totalorder %s147, %s148
    %p160 = scmp.eq.s32.totalorder %s19, 1
    %p161 = por %p159, %p160
    %p163 = scmp.ne.s32.totalorder %s148, %s162
    %p164 = scmp.eq.s32.totalorder %s19, 0
    %p165 = por %p163, %p164
    %s167 = sadd.s32 %s166, 1
    %p170 = scmp.eq.s32.totalorder %s13, 1
    %p171 = scmp.ne.s32.totalorder %s166, %s168
    %p172 = scmp.eq.s32.totalorder %s13, 0
    %p173 = por %p171, %p172
    %p174 = scmp.ne.s32.totalorder %s166, %s168
    %p175 = scmp.eq.s32.totalorder %s18, 1
    %p176 = por %p174, %p175
    %p177 = scmp.ne.s32.totalorder %s168, %s169
    %p178 = scmp.eq.s32.totalorder %s18, 0
    %p179 = por %p177, %p178
    %p180 = scmp.ne.s32.totalorder %s168, %s169
    %p181 = scmp.eq.s32.totalorder %s19, 1
    %p182 = por %p180, %p181
    %p184 = scmp.ne.s32.totalorder %s169, %s183
    %p185 = scmp.eq.s32.totalorder %s19, 0
    %p186 = por %p184, %p185
    %s187 = ssub.s32 %s20, %s32
    %p188 = scmp.eq.s32.totalorder %s187, 0
    %s190 = sadd.s32 %s189, 1
    %s191 = scalar_select %p188, %s189, %s190
    %p194 = pneg %p188
    %p195 = scmp.eq.s32.totalorder %s13, 1
    %p196 = por %p194, %p195
    %p197 = scmp.ne.s32.totalorder %s189, %s192
    %p198 = scmp.eq.s32.totalorder %s13, 0
    %p199 = por %p197, %p198
    %p200 = scmp.ne.s32.totalorder %s189, %s192
    %p201 = scmp.eq.s32.totalorder %s18, 1
    %p202 = por %p200, %p201
    %p203 = scmp.ne.s32.totalorder %s192, %s193
    %p204 = scmp.eq.s32.totalorder %s18, 0
    %p205 = por %p203, %p204
    %p206 = scmp.ne.s32.totalorder %s192, %s193
    %p207 = scmp.eq.s32.totalorder %s19, 1
    %p208 = por %p206, %p207
    %p210 = scmp.ne.s32.totalorder %s193, %s209
    %p211 = scmp.eq.s32.totalorder %s19, 0
    %p212 = por %p210, %p211
    %p213 = scmp.le.s32.totalorder 1, %s13
    %p214 = scmp.lt.s32.totalorder %s13, 3
    %p215 = pnand %p213, %p214
    %p216 = pneg %p215
    // Predicated region
    $region9: #{segment_forward.5} parent=5 // pred_check
      _
    $region10: #{segment_forward.5} parent=5 // pred_check_branch
      %218 = sbr.rel (%p215) target = $region12
    $region11: #{segment_forward.5} parent=5 // pred_region
      %s219 = ssub.s32 %s13, 1
      // Predicated region
      $region13: #{segment_forward.5} parent=11 // pred_check
        %p220 = pneg %p74
      $region14: #{segment_forward.5} parent=11 // pred_check_branch
        %222 = sbr.rel (%p220) target = $region16
      $region15: #{segment_forward.5} parent=11 // pred_region
        _
      $region16: #{segment_forward.5} parent=11 // pred_fallthru
        _
      // Predicated region
      $region17: #{segment_forward.5} parent=11 // pred_check
        %p223 = pneg %p95
      $region18: #{segment_forward.5} parent=11 // pred_check_branch
        %225 = sbr.rel (%p223) target = $region20
      $region19: #{segment_forward.5} parent=11 // pred_region
        _
      $region20: #{segment_forward.5} parent=11 // pred_fallthru
        _
      // Predicated region
      $region21: #{segment_forward.5} parent=11 // pred_check
        %p226 = pneg %p116
      $region22: #{segment_forward.5} parent=11 // pred_check_branch
        %228 = sbr.rel (%p226) target = $region24
      $region23: #{segment_forward.5} parent=11 // pred_region
        _
      $region24: #{segment_forward.5} parent=11 // pred_fallthru
        _
      // Predicated region
      $region25: #{segment_forward.5} parent=11 // pred_check
        %p229 = pneg %p137
      $region26: #{segment_forward.5} parent=11 // pred_check_branch
        %231 = sbr.rel (%p229) target = $region28
      $region27: #{segment_forward.5} parent=11 // pred_region
        _
      $region28: #{segment_forward.5} parent=11 // pred_fallthru
        _
      // Predicated region
      $region29: #{segment_forward.5} parent=11 // pred_check
        %p232 = pneg %p158
      $region30: #{segment_forward.5} parent=11 // pred_check_branch
        %234 = sbr.rel (%p232) target = $region32
      $region31: #{segment_forward.5} parent=11 // pred_region
        _
      $region32: #{segment_forward.5} parent=11 // pred_fallthru
        _
      // Predicated region
      $region33: #{segment_forward.5} parent=11 // pred_check
        %p235 = pneg %p179
      $region34: #{segment_forward.5} parent=11 // pred_check_branch
        %237 = sbr.rel (%p235) target = $region36
      $region35: #{segment_forward.5} parent=11 // pred_region
        _
      $region36: #{segment_forward.5} parent=11 // pred_fallthru
        _
    $region12: #{segment_forward.5} parent=5 // pred_fallthru
      _
    %p238 = scmp.lt.s32.totalorder %s13, 2
    // Predicated region
    $region37: #{segment_forward.5} parent=5 // pred_check
      %p239 = pneg %p238
    $region38: #{segment_forward.5} parent=5 // pred_check_branch
      %241 = sbr.rel (%p239) target = $region40
    $region39: #{segment_forward.5} parent=5 // pred_region
      // Predicated region
      $region41: #{segment_forward.5} parent=39 // pred_check
        %p242 = pneg %p47
      $region42: #{segment_forward.5} parent=39 // pred_check_branch
        %244 = sbr.rel (%p242) target = $region44
      $region43: #{segment_forward.5} parent=39 // pred_region
        %s245 = smul.u32 8, %s21
        %p246 = scmp.lt.s32.totalorder %s20, 1
        %s247 = scalar_select %p246, %s20, 1
        %p248 = scmp.lt.s32.totalorder %s245, 7
        %s249 = scalar_select %p248, %s245, 7
        %s250 = smul.addr %s247, 8
        %s251 = sadd.s32 %s249, %s250
        %s252 = smul.addr %s251, 8
        %s253 = scalar_lea.vmem %s0, %s252
        %s254 = smul.u32 8, %s21
      $region44: #{segment_forward.5} parent=39 // pred_fallthru
        _
    $region40: #{segment_forward.5} parent=5 // pred_fallthru
      _
    %p255 = scmp.le.s32.totalorder 1, %s13
    %p256 = scmp.lt.s32.totalorder %s13, 3
    %p257 = pnand %p255, %p256
    %p258 = pneg %p257
    // Predicated region
    $region45: #{segment_forward.5} parent=5 // pred_check
      _
    $region46: #{segment_forward.5} parent=5 // pred_check_branch
      %260 = sbr.rel (%p257) target = $region48
    $region47: #{segment_forward.5} parent=5 // pred_region
      %s261 = ssub.s32 %s13, 1
      %s262 = smul.u32 8, %s23
      %p263 = scmp.lt.s32.totalorder %s22, 1
      %s264 = scalar_select %p263, %s22, 1
      %p265 = scmp.lt.s32.totalorder %s262, 7
      %s266 = scalar_select %p265, %s262, 7
      %s267 = smul.addr %s264, 8
      %s268 = sadd.s32 %s266, %s267
      %s269 = smul.addr %s268, 8
      %s270 = scalar_lea.vmem %s0, %s269
      %p271 = pneg %p53
      %p272 = pneg %p50
      %p273 = pneg %p74
      %p274 = pneg %p71
      %p275 = pneg %p95
      %p276 = pneg %p92
      %p277 = pneg %p116
      %p278 = pneg %p113
      %p279 = pneg %p137
      %p280 = pneg %p134
      %p281 = pneg %p158
      %p282 = pneg %p155
      %p283 = pneg %p179
      %p284 = pneg %p176
      %p285 = pneg %p205
      %p286 = pneg %p202
      %p287 = scmp.lt.s32.totalorder %s22, 1
      %s288 = scalar_select %p287, %s22, 1
      %s289 = smul.addr %s288, 8
      %s290 = scalar_lea.vmem %s7, %s289
      %s291 = smul.u32 8, %s23
      %p292 = scmp.lt.s32.totalorder %s22, 1
      %s293 = scalar_select %p292, %s22, 1
      %p294 = scmp.lt.s32.totalorder %s291, 7
      %s295 = scalar_select %p294, %s291, 7
      %s296 = smul.addr %s293, 8
      %s297 = sadd.s32 %s295, %s296
      %s298 = smul.addr %s297, 8
      %s299 = scalar_lea.vmem %s0, %s298
      %s300 = smul.u32 8, %s23
      %p301 = scmp.lt.s32.totalorder %s22, 1
      %s302 = scalar_select %p301, %s22, 1
      %s303 = smul.addr %s302, 8
      %s304 = scalar_lea.vmem %s7, %s303
      %v306 = vld [vmem:[%s299] sm:$0xff]
      %v307 = vld [vmem:[%s299 + $0x8] sm:$0xff]
      %v308 = vld [vmem:[%s299 + $0x10] sm:$0xff]
      %v309 = vld [vmem:[%s299 + $0x18] sm:$0xff]
      %v310 = vld [vmem:[%s299 + $0x20] sm:$0xff]
      %v311 = vld [vmem:[%s299 + $0x28] sm:$0xff]
      %v312 = vld [vmem:[%s299 + $0x30] sm:$0xff]
      %v313 = vld [vmem:[%s299 + $0x38] sm:$0xff]
      %v314 = vld [vmem:[%s1] sm:$0x7]
      %v315 = vld [vmem:[%s2] sm:$0x1]
      %v317 = vlaneseq
      %v318 = vshrl.u32 %v317, 7
      %v319 = vsub.s32 0, %v318
      %v320 = vrot.slane %v315, %v319
      %vm322 = vcmask 23552
      %v324 = vsel %vm322, %v306, 0
      %v327 = vsel %vm322, %v307, 0
      %v330 = vsel %vm322, %v308, 0
      %v333 = vsel %vm322, %v309, 0
      %v336 = vsel %vm322, %v310, 0
      %v339 = vsel %vm322, %v311, 0
      %v342 = vsel %vm322, %v312, 0
      %v345 = vsel %vm322, %v313, 0
      %vm347 = vcmask 1042432
      %v349 = vsel %vm347, %v314, 0
      %351 = vmatprep.subr.mxu0 0.0
      %352 = vmatpush1.msra.mxu0 %v349
      %353 = vmatprep.subr.mxu0 0.0
      %354 = vmatpush1.msra.mxu0 0.0
      %355 = vmatprep.subr.mxu0 0.0
      %356 = vmatpush1.msra.mxu0 0.0
      %357 = vmatprep.subr.mxu0 0.0
      %358 = vmatpush1.msra.mxu0 0.0
      %359 = vmatprep.subr.mxu0 0.0
      %360 = vmatpush1.msra.mxu0 0.0
      %361 = vmatprep.subr.mxu0 0.0
      %362 = vmatpush1.msra.mxu0 0.0
      %363 = vmatprep.subr.mxu0 0.0
      %364 = vmatpush1.msra.mxu0 0.0
      %365 = vmatprep.subr.mxu0 0.0
      %366 = vmatpush1.msra.mxu0 0.0
      %367 = vmatprep.subr.mxu0 0.0
      %368 = vmatpush1.msra.mxu0 0.0
      %369 = vmatprep.subr.mxu0 0.0
      %370 = vmatpush1.msra.mxu0 0.0
      %371 = vmatprep.subr.mxu0 0.0
      %372 = vmatpush1.msra.mxu0 0.0
      %373 = vmatprep.subr.mxu0 0.0
      %374 = vmatpush1.msra.mxu0 0.0
      %375 = vmatprep.subr.mxu0 0.0
      %376 = vmatpush1.msra.mxu0 0.0
      %377 = vmatprep.subr.mxu0 0.0
      %378 = vmatpush1.msra.mxu0 0.0
      %379 = vmatprep.subr.mxu0 0.0
      %380 = vmatpush1.msra.mxu0 0.0
      %381 = vmatprep.subr.mxu0 0.0
      %382 = vmatpush1.msra.mxu0 0.0
      %383 = vmatprep.subr.mxu0 0.0
      %384 = vmatpush1.msra.mxu0 0.0
      %385 = vmatprep.subr.mxu0 0.0
      %386 = vmatpush1.msra.mxu0 0.0
      %387 = vmatprep.subr.mxu0 0.0
      %388 = vmatpush1.msra.mxu0 0.0
      %389 = vmatprep.subr.mxu0 0.0
      %390 = vmatpush1.msra.mxu0 0.0
      %391 = vmatprep.subr.mxu0 0.0
      %392 = vmatpush1.msra.mxu0 0.0
      %393 = vmatprep.subr.mxu0 0.0
      %394 = vmatpush1.msra.mxu0 0.0
      %395 = vmatprep.subr.mxu0 0.0
      %396 = vmatpush1.msra.mxu0 0.0
      %397 = vmatprep.subr.mxu0 0.0
      %398 = vmatpush1.msra.mxu0 0.0
      %399 = vmatprep.subr.mxu0 0.0
      %400 = vmatpush1.msra.mxu0 0.0
      %401 = vmatprep.subr.mxu0 0.0
      %402 = vmatpush1.msra.mxu0 0.0
      %403 = vmatprep.subr.mxu0 0.0
      %404 = vmatpush1.msra.mxu0 0.0
      %405 = vmatprep.subr.mxu0 0.0
      %406 = vmatpush1.msra.mxu0 0.0
      %407 = vmatprep.subr.mxu0 0.0
      %408 = vmatpush1.msra.mxu0 0.0
      %409 = vmatprep.subr.mxu0 0.0
      %410 = vmatpush1.msra.mxu0 0.0
      %411 = vmatprep.subr.mxu0 0.0
      %412 = vmatpush1.msra.mxu0 0.0
      %413 = vmatprep.subr.mxu0 0.0
      %414 = vmatpush1.msra.mxu0 0.0
      %415 = vmatprep.mubr.f32.mxu0 0.0
      %416 = vmatmul.mubr.f32.gmra.mrb[0].mxu0 %v324
      %v417 = vpop.f32.mrb[0].mxu0
      %v418 = vadd.f32 %v320, %v417
      %v419 = vpop.f32.mrb[0].mxu0
      %420 = vmatprep.mubr.f32.mxu0 0.0
      %421 = vmatmul.mubr.f32.gmra.mrb[0].mxu0 %v327
      %v422 = vpop.f32.mrb[0].mxu0
      %v423 = vadd.f32 %v320, %v422
      %v424 = vpop.f32.mrb[0].mxu0
      %425 = vmatprep.mubr.f32.mxu0 0.0
      %426 = vmatmul.mubr.f32.gmra.mrb[0].mxu0 %v330
      %v427 = vpop.f32.mrb[0].mxu0
      %v428 = vadd.f32 %v320, %v427
      %v429 = vpop.f32.mrb[0].mxu0
      %430 = vmatprep.mubr.f32.mxu0 0.0
      %431 = vmatmul.mubr.f32.gmra.mrb[0].mxu0 %v333
      %v432 = vpop.f32.mrb[0].mxu0
      %v433 = vadd.f32 %v320, %v432
      %v434 = vpop.f32.mrb[0].mxu0
      %435 = vmatprep.mubr.f32.mxu0 0.0
      %436 = vmatmul.mubr.f32.gmra.mrb[0].mxu0 %v336
      %v437 = vpop.f32.mrb[0].mxu0
      %v438 = vadd.f32 %v320, %v437
      %v439 = vpop.f32.mrb[0].mxu0
      %440 = vmatprep.mubr.f32.mxu0 0.0
      %441 = vmatmul.mubr.f32.gmra.mrb[0].mxu0 %v339
      %v442 = vpop.f32.mrb[0].mxu0
      %v443 = vadd.f32 %v320, %v442
      %v444 = vpop.f32.mrb[0].mxu0
      %445 = vmatprep.mubr.f32.mxu0 0.0
      %446 = vmatmul.mubr.f32.gmra.mrb[0].mxu0 %v342
      %v447 = vpop.f32.mrb[0].mxu0
      %v448 = vadd.f32 %v320, %v447
      %v449 = vpop.f32.mrb[0].mxu0
      %450 = vmatprep.mubr.f32.mxu0 0.0
      %451 = vmatmul.mubr.f32.gmra.mrb[0].mxu0 %v345
      %v452 = vpop.f32.mrb[0].mxu0
      %v453 = vadd.f32 %v320, %v452
      %v454 = vpop.f32.mrb[0].mxu0
      %455 = vdwg.mxu0
      %v456 = vmax.f32 %v418, 0.0
      %v457 = vmax.f32 %v423, 0.0
      %v458 = vmax.f32 %v428, 0.0
      %v459 = vmax.f32 %v433, 0.0
      %v460 = vmax.f32 %v438, 0.0
      %v461 = vmax.f32 %v443, 0.0
      %v462 = vmax.f32 %v448, 0.0
      %v463 = vmax.f32 %v453, 0.0
      %v464 = vpack.c.bf16 %v457, %v456
      %v465 = vpack.c.bf16 %v459, %v458
      %v466 = vpack.c.bf16 %v461, %v460
      %v467 = vpack.c.bf16 %v463, %v462
      %v468 = vld [vmem:[%s3] sm:$0xf]
      %v469 = vld [vmem:[%s3 + $0x4] sm:$0xf]
      %v470 = vld [vmem:[%s3 + $0x8] sm:$0xf]
      %v471 = vld [vmem:[%s3 + $0xc] sm:$0xf]
      %v472 = vld [vmem:[%s3 + $0x10] sm:$0xf]
      %v473 = vld [vmem:[%s3 + $0x14] sm:$0xf]
      %v474 = vld [vmem:[%s3 + $0x18] sm:$0xf]
      %v475 = vld [vmem:[%s3 + $0x1c] sm:$0xf]
      %v476 = vld [vmem:[%s4] sm:$0x1]
      %v478 = vlaneseq
      %v479 = vshrl.u32 %v478, 7
      %v480 = vsub.s32 0, %v479
      %v481 = vrot.slane %v476, %v480
      %v491 = vunpack.c.l.b16 %v468
      %v492 = vunpack.c.l.b16 %v469
      %v493 = vunpack.c.l.b16 %v470
      %v494 = vunpack.c.l.b16 %v471
      %v495 = vunpack.c.l.b16 %v472
      %v496 = vunpack.c.l.b16 %v473
      %v497 = vunpack.c.l.b16 %v474
      %v498 = vunpack.c.l.b16 %v475
      %v499 = vpack.c.b16 %v492, %v491
      %v500 = vpack.c.b16 %v494, %v493
      %v501 = vpack.c.b16 %v496, %v495
      %v502 = vpack.c.b16 %v498, %v497
      %vm507 = vcmask 523264
      %v509 = vsel %vm507, %v464, 0
      %v512 = vsel %vm507, %v465, 0
      %v515 = vsel %vm507, %v466, 0
      %v518 = vsel %vm507, %v467, 0
      %520 = vmatprep.subr.bf16.mxu0 0
      %521 = vmatpush1.bf16.msra.mxu0 %v499
      %522 = vmatprep.subr.bf16.mxu0 0
      %523 = vmatpush1.bf16.msra.mxu0 %v500
      %524 = vmatprep.subr.bf16.mxu0 0
      %525 = vmatpush1.bf16.msra.mxu0 %v501
      %526 = vmatprep.subr.bf16.mxu0 0
      %527 = vmatpush1.bf16.msra.mxu0 %v502
      %528 = vmatprep.subr.bf16.mxu0 0
      %529 = vmatpush1.bf16.msra.mxu0 0
      %530 = vmatprep.subr.bf16.mxu0 0
      %531 = vmatpush1.bf16.msra.mxu0 0
      %532 = vmatprep.subr.bf16.mxu0 0
      %533 = vmatpush1.bf16.msra.mxu0 0
      %534 = vmatprep.subr.bf16.mxu0 0
      %535 = vmatpush1.bf16.msra.mxu0 0
      %536 = vmatprep.subr.bf16.mxu0 0
      %537 = vmatpush1.bf16.msra.mxu0 0
      %538 = vmatprep.subr.bf16.mxu0 0
      %539 = vmatpush1.bf16.msra.mxu0 0
      %540 = vmatprep.subr.bf16.mxu0 0
      %541 = vmatpush1.bf16.msra.mxu0 0
      %542 = vmatprep.subr.bf16.mxu0 0
      %543 = vmatpush1.bf16.msra.mxu0 0
      %544 = vmatprep.subr.bf16.mxu0 0
      %545 = vmatpush1.bf16.msra.mxu0 0
      %546 = vmatprep.subr.bf16.mxu0 0
      %547 = vmatpush1.bf16.msra.mxu0 0
      %548 = vmatprep.subr.bf16.mxu0 0
      %549 = vmatpush1.bf16.msra.mxu0 0
      %550 = vmatprep.subr.bf16.mxu0 0
      %551 = vmatpush1.bf16.msra.mxu0 0
      %552 = vmatprep.mubr.bf16.mxu0 0
      %553 = vmatmul.mubr.bf16.gmra.mrb[0].mxu0 %v509
      %v554 = vpop.f32.mrb[0].mxu0
      %v555 = vadd.f32 %v481, %v554
      %v556 = vpop.f32.mrb[0].mxu0
      %v557 = vpop.f32.mrb[0].mxu0
      %v558 = vadd.f32 %v481, %v557
      %v559 = vpop.f32.mrb[0].mxu0
      %560 = vmatprep.mubr.bf16.mxu0 0
      %561 = vmatmul.mubr.bf16.gmra.mrb[0].mxu0 %v512
      %v562 = vpop.f32.mrb[0].mxu0
      %v563 = vadd.f32 %v481, %v562
      %v564 = vpop.f32.mrb[0].mxu0
      %v565 = vpop.f32.mrb[0].mxu0
      %v566 = vadd.f32 %v481, %v565
      %v567 = vpop.f32.mrb[0].mxu0
      %568 = vmatprep.mubr.bf16.mxu0 0
      %569 = vmatmul.mubr.bf16.gmra.mrb[0].mxu0 %v515
      %v570 = vpop.f32.mrb[0].mxu0
      %v571 = vadd.f32 %v481, %v570
      %v572 = vpop.f32.mrb[0].mxu0
      %v573 = vpop.f32.mrb[0].mxu0
      %v574 = vadd.f32 %v481, %v573
      %v575 = vpop.f32.mrb[0].mxu0
      %576 = vmatprep.mubr.bf16.mxu0 0
      %577 = vmatmul.mubr.bf16.gmra.mrb[0].mxu0 %v518
      %v578 = vpop.f32.mrb[0].mxu0
      %v579 = vadd.f32 %v481, %v578
      %v580 = vpop.f32.mrb[0].mxu0
      %v581 = vpop.f32.mrb[0].mxu0
      %v582 = vadd.f32 %v481, %v581
      %v583 = vpop.f32.mrb[0].mxu0
      %584 = vdwg.mxu0
      %v585 = vmax.f32 %v555, 0.0
      %v586 = vmax.f32 %v558, 0.0
      %v587 = vmax.f32 %v563, 0.0
      %v588 = vmax.f32 %v566, 0.0
      %v589 = vmax.f32 %v571, 0.0
      %v590 = vmax.f32 %v574, 0.0
      %v591 = vmax.f32 %v579, 0.0
      %v592 = vmax.f32 %v582, 0.0
      %v593 = vpack.c.bf16 %v586, %v585
      %v594 = vpack.c.bf16 %v588, %v587
      %v595 = vpack.c.bf16 %v590, %v589
      %v596 = vpack.c.bf16 %v592, %v591
      %v597 = vld [vmem:[%s5] sm:$0xff]
      %v598 = vld [vmem:[%s5 + $0x8] sm:$0xff]
      %v599 = vld [vmem:[%s5 + $0x10] sm:$0xff]
      %v600 = vld [vmem:[%s5 + $0x18] sm:$0xff]
      %v601 = vld [vmem:[%s5 + $0x20] sm:$0xff]
      %v602 = vld [vmem:[%s5 + $0x28] sm:$0xff]
      %v603 = vld [vmem:[%s5 + $0x30] sm:$0xff]
      %v604 = vld [vmem:[%s5 + $0x38] sm:$0xff]
      %v605 = vld [vmem:[%s5 + $0x40] sm:$0xff]
      %v606 = vld [vmem:[%s5 + $0x48] sm:$0xff]
      %v607 = vld [vmem:[%s5 + $0x50] sm:$0xff]
      %v608 = vld [vmem:[%s5 + $0x58] sm:$0xff]
      %v609 = vld [vmem:[%s5 + $0x60] sm:$0xff]
      %v610 = vld [vmem:[%s5 + $0x68] sm:$0xff]
      %v611 = vld [vmem:[%s5 + $0x70] sm:$0xff]
      %v612 = vld [vmem:[%s5 + $0x78] sm:$0xff]
      %v613 = vld [vmem:[%s5 + $0x80] sm:$0xff]
      %v614 = vld [vmem:[%s5 + $0x88] sm:$0xff]
      %v615 = vld [vmem:[%s5 + $0x90] sm:$0xff]
      %v616 = vld [vmem:[%s5 + $0x98] sm:$0xff]
      %v617 = vld [vmem:[%s5 + $0xa0] sm:$0xff]
      %v618 = vld [vmem:[%s5 + $0xa8] sm:$0xff]
      %v619 = vld [vmem:[%s5 + $0xb0] sm:$0xff]
      %v620 = vld [vmem:[%s5 + $0xb8] sm:$0xff]
      %v621 = vld [vmem:[%s5 + $0xc0] sm:$0xff]
      %v622 = vld [vmem:[%s5 + $0xc8] sm:$0xff]
      %v623 = vld [vmem:[%s5 + $0xd0] sm:$0xff]
      %v624 = vld [vmem:[%s5 + $0xd8] sm:$0xff]
      %v625 = vld [vmem:[%s5 + $0xe0] sm:$0xff]
      %v626 = vld [vmem:[%s5 + $0xe8] sm:$0xff]
      %v627 = vld [vmem:[%s5 + $0xf0] sm:$0xff]
      %v628 = vld [vmem:[%s5 + $0xf8] sm:$0xff]
      %v629 = vld [vmem:[%s5 + $0x100] sm:$0xff]
      %v630 = vld [vmem:[%s5 + $0x108] sm:$0xff]
      %v631 = vld [vmem:[%s5 + $0x110] sm:$0xff]
      %v632 = vld [vmem:[%s5 + $0x118] sm:$0xff]
      %v633 = vld [vmem:[%s5 + $0x120] sm:$0xff]
      %v634 = vld [vmem:[%s5 + $0x128] sm:$0xff]
      %v635 = vld [vmem:[%s5 + $0x130] sm:$0xff]
      %v636 = vld [vmem:[%s5 + $0x138] sm:$0xff]
      %v637 = vld [vmem:[%s5 + $0x140] sm:$0xff]
      %v638 = vld [vmem:[%s5 + $0x148] sm:$0xff]
      %v639 = vld [vmem:[%s5 + $0x150] sm:$0xff]
      %v640 = vld [vmem:[%s5 + $0x158] sm:$0xff]
      %v641 = vld [vmem:[%s5 + $0x160] sm:$0xff]
      %v642 = vld [vmem:[%s5 + $0x168] sm:$0xff]
      %v643 = vld [vmem:[%s5 + $0x170] sm:$0xff]
      %v644 = vld [vmem:[%s5 + $0x178] sm:$0xff]
      %v645 = vld [vmem:[%s5 + $0x180] sm:$0xff]
      %v646 = vld [vmem:[%s5 + $0x188] sm:$0xff]
      %v647 = vld [vmem:[%s5 + $0x190] sm:$0xff]
      %v648 = vld [vmem:[%s5 + $0x198] sm:$0xff]
      %v649 = vld [vmem:[%s5 + $0x1a0] sm:$0xff]
      %v650 = vld [vmem:[%s5 + $0x1a8] sm:$0xff]
      %v651 = vld [vmem:[%s5 + $0x1b0] sm:$0xff]
      %v652 = vld [vmem:[%s5 + $0x1b8] sm:$0xff]
      %v653 = vld [vmem:[%s5 + $0x1c0] sm:$0xff]
      %v654 = vld [vmem:[%s5 + $0x1c8] sm:$0xff]
      %v655 = vld [vmem:[%s5 + $0x1d0] sm:$0xff]
      %v656 = vld [vmem:[%s5 + $0x1d8] sm:$0xff]
      %v657 = vld [vmem:[%s5 + $0x1e0] sm:$0xff]
      %v658 = vld [vmem:[%s5 + $0x1e8] sm:$0xff]
      %v659 = vld [vmem:[%s5 + $0x1f0] sm:$0xff]
      %v660 = vld [vmem:[%s5 + $0x1f8] sm:$0xff]
      %v661 = vld [vmem:[%s6] sm:$0xff]
      %v663 = vlaneseq
      %v664 = vshrl.u32 %v663, 7
      %v665 = vsub.s32 0, %v664
      %v666 = vrot.slane %v661, %v665
      %v667 = vlaneseq
      %v668 = vshrl.u32 %v667, 7
      %v669 = vsub.s32 1, %v668
      %v670 = vrot.slane %v661, %v669
      %v671 = vlaneseq
      %v672 = vshrl.u32 %v671, 7
      %v673 = vsub.s32 2, %v672
      %v674 = vrot.slane %v661, %v673
      %v675 = vlaneseq
      %v676 = vshrl.u32 %v675, 7
      %v677 = vsub.s32 3, %v676
      %v678 = vrot.slane %v661, %v677
      %v679 = vlaneseq
      %v680 = vshrl.u32 %v679, 7
      %v681 = vsub.s32 4, %v680
      %v682 = vrot.slane %v661, %v681
      %v683 = vlaneseq
      %v684 = vshrl.u32 %v683, 7
      %v685 = vsub.s32 5, %v684
      %v686 = vrot.slane %v661, %v685
      %v687 = vlaneseq
      %v688 = vshrl.u32 %v687, 7
      %v689 = vsub.s32 6, %v688
      %v690 = vrot.slane %v661, %v689
      %v691 = vlaneseq
      %v692 = vshrl.u32 %v691, 7
      %v693 = vsub.s32 7, %v692
      %v694 = vrot.slane %v661, %v693
      %v767 = vunpack.c.l.b16 %v597
      %v768 = vunpack.c.h.b16 %v597
      %v769 = vunpack.c.l.b16 %v598
      %v770 = vunpack.c.h.b16 %v598
      %v771 = vunpack.c.l.b16 %v599
      %v772 = vunpack.c.h.b16 %v599
      %v773 = vunpack.c.l.b16 %v600
      %v774 = vunpack.c.h.b16 %v600
      %v775 = vunpack.c.l.b16 %v601
      %v776 = vunpack.c.h.b16 %v601
      %v777 = vunpack.c.l.b16 %v602
      %v778 = vunpack.c.h.b16 %v602
      %v779 = vunpack.c.l.b16 %v603
      %v780 = vunpack.c.h.b16 %v603
      %v781 = vunpack.c.l.b16 %v604
      %v782 = vunpack.c.h.b16 %v604
      %v783 = vunpack.c.l.b16 %v605
      %v784 = vunpack.c.h.b16 %v605
      %v785 = vunpack.c.l.b16 %v606
      %v786 = vunpack.c.h.b16 %v606
      %v787 = vunpack.c.l.b16 %v607
      %v788 = vunpack.c.h.b16 %v607
      %v789 = vunpack.c.l.b16 %v608
      %v790 = vunpack.c.h.b16 %v608
      %v791 = vunpack.c.l.b16 %v609
      %v792 = vunpack.c.h.b16 %v609
      %v793 = vunpack.c.l.b16 %v610
      %v794 = vunpack.c.h.b16 %v610
      %v795 = vunpack.c.l.b16 %v611
      %v796 = vunpack.c.h.b16 %v611
      %v797 = vunpack.c.l.b16 %v612
      %v798 = vunpack.c.h.b16 %v612
      %v799 = vunpack.c.l.b16 %v613
      %v800 = vunpack.c.h.b16 %v613
      %v801 = vunpack.c.l.b16 %v614
      %v802 = vunpack.c.h.b16 %v614
      %v803 = vunpack.c.l.b16 %v615
      %v804 = vunpack.c.h.b16 %v615
      %v805 = vunpack.c.l.b16 %v616
      %v806 = vunpack.c.h.b16 %v616
      %v807 = vunpack.c.l.b16 %v617
      %v808 = vunpack.c.h.b16 %v617
      %v809 = vunpack.c.l.b16 %v618
      %v810 = vunpack.c.h.b16 %v618
      %v811 = vunpack.c.l.b16 %v619
      %v812 = vunpack.c.h.b16 %v619
      %v813 = vunpack.c.l.b16 %v620
      %v814 = vunpack.c.h.b16 %v620
      %v815 = vunpack.c.l.b16 %v621
      %v816 = vunpack.c.h.b16 %v621
      %v817 = vunpack.c.l.b16 %v622
      %v818 = vunpack.c.h.b16 %v622
      %v819 = vunpack.c.l.b16 %v623
      %v820 = vunpack.c.h.b16 %v623
      %v821 = vunpack.c.l.b16 %v624
      %v822 = vunpack.c.h.b16 %v624
      %v823 = vunpack.c.l.b16 %v625
      %v824 = vunpack.c.h.b16 %v625
      %v825 = vunpack.c.l.b16 %v626
      %v826 = vunpack.c.h.b16 %v626
      %v827 = vunpack.c.l.b16 %v627
      %v828 = vunpack.c.h.b16 %v627
      %v829 = vunpack.c.l.b16 %v628
      %v830 = vunpack.c.h.b16 %v628
      %v831 = vunpack.c.l.b16 %v629
      %v832 = vunpack.c.h.b16 %v629
      %v833 = vunpack.c.l.b16 %v630
      %v834 = vunpack.c.h.b16 %v630
      %v835 = vunpack.c.l.b16 %v631
      %v836 = vunpack.c.h.b16 %v631
      %v837 = vunpack.c.l.b16 %v632
      %v838 = vunpack.c.h.b16 %v632
      %v839 = vunpack.c.l.b16 %v633
      %v840 = vunpack.c.h.b16 %v633
      %v841 = vunpack.c.l.b16 %v634
      %v842 = vunpack.c.h.b16 %v634
      %v843 = vunpack.c.l.b16 %v635
      %v844 = vunpack.c.h.b16 %v635
      %v845 = vunpack.c.l.b16 %v636
      %v846 = vunpack.c.h.b16 %v636
      %v847 = vunpack.c.l.b16 %v637
      %v848 = vunpack.c.h.b16 %v637
      %v849 = vunpack.c.l.b16 %v638
      %v850 = vunpack.c.h.b16 %v638
      %v851 = vunpack.c.l.b16 %v639
      %v852 = vunpack.c.h.b16 %v639
      %v853 = vunpack.c.l.b16 %v640
      %v854 = vunpack.c.h.b16 %v640
      %v855 = vunpack.c.l.b16 %v641
      %v856 = vunpack.c.h.b16 %v641
      %v857 = vunpack.c.l.b16 %v642
      %v858 = vunpack.c.h.b16 %v642
      %v859 = vunpack.c.l.b16 %v643
      %v860 = vunpack.c.h.b16 %v643
      %v861 = vunpack.c.l.b16 %v644
      %v862 = vunpack.c.h.b16 %v644
      %v863 = vunpack.c.l.b16 %v645
      %v864 = vunpack.c.h.b16 %v645
      %v865 = vunpack.c.l.b16 %v646
      %v866 = vunpack.c.h.b16 %v646
      %v867 = vunpack.c.l.b16 %v647
      %v868 = vunpack.c.h.b16 %v647
      %v869 = vunpack.c.l.b16 %v648
      %v870 = vunpack.c.h.b16 %v648
      %v871 = vunpack.c.l.b16 %v649
      %v872 = vunpack.c.h.b16 %v649
      %v873 = vunpack.c.l.b16 %v650
      %v874 = vunpack.c.h.b16 %v650
      %v875 = vunpack.c.l.b16 %v651
      %v876 = vunpack.c.h.b16 %v651
      %v877 = vunpack.c.l.b16 %v652
      %v878 = vunpack.c.h.b16 %v652
      %v879 = vunpack.c.l.b16 %v653
      %v880 = vunpack.c.h.b16 %v653
      %v881 = vunpack.c.l.b16 %v654
      %v882 = vunpack.c.h.b16 %v654
      %v883 = vunpack.c.l.b16 %v655
      %v884 = vunpack.c.h.b16 %v655
      %v885 = vunpack.c.l.b16 %v656
      %v886 = vunpack.c.h.b16 %v656
      %v887 = vunpack.c.l.b16 %v657
      %v888 = vunpack.c.h.b16 %v657
      %v889 = vunpack.c.l.b16 %v658
      %v890 = vunpack.c.h.b16 %v658
      %v891 = vunpack.c.l.b16 %v659
      %v892 = vunpack.c.h.b16 %v659
      %v893 = vunpack.c.l.b16 %v660
      %v894 = vunpack.c.h.b16 %v660
      %v895 = vpack.c.b16 %v775, %v767
      %v896 = vpack.c.b16 %v776, %v768
      %v897 = vpack.c.b16 %v777, %v769
      %v898 = vpack.c.b16 %v778, %v770
      %v899 = vpack.c.b16 %v779, %v771
      %v900 = vpack.c.b16 %v780, %v772
      %v901 = vpack.c.b16 %v781, %v773
      %v902 = vpack.c.b16 %v782, %v774
      %v903 = vpack.c.b16 %v791, %v783
      %v904 = vpack.c.b16 %v792, %v784
      %v905 = vpack.c.b16 %v793, %v785
      %v906 = vpack.c.b16 %v794, %v786
      %v907 = vpack.c.b16 %v795, %v787
      %v908 = vpack.c.b16 %v796, %v788
      %v909 = vpack.c.b16 %v797, %v789
      %v910 = vpack.c.b16 %v798, %v790
      %v911 = vpack.c.b16 %v807, %v799
      %v912 = vpack.c.b16 %v808, %v800
      %v913 = vpack.c.b16 %v809, %v801
      %v914 = vpack.c.b16 %v810, %v802
      %v915 = vpack.c.b16 %v811, %v803
      %v916 = vpack.c.b16 %v812, %v804
      %v917 = vpack.c.b16 %v813, %v805
      %v918 = vpack.c.b16 %v814, %v806
      %v919 = vpack.c.b16 %v823, %v815
      %v920 = vpack.c.b16 %v824, %v816
      %v921 = vpack.c.b16 %v825, %v817
      %v922 = vpack.c.b16 %v826, %v818
      %v923 = vpack.c.b16 %v827, %v819
      %v924 = vpack.c.b16 %v828, %v820
      %v925 = vpack.c.b16 %v829, %v821
      %v926 = vpack.c.b16 %v830, %v822
      %v927 = vpack.c.b16 %v839, %v831
      %v928 = vpack.c.b16 %v840, %v832
      %v929 = vpack.c.b16 %v841, %v833
      %v930 = vpack.c.b16 %v842, %v834
      %v931 = vpack.c.b16 %v843, %v835
      %v932 = vpack.c.b16 %v844, %v836
      %v933 = vpack.c.b16 %v845, %v837
      %v934 = vpack.c.b16 %v846, %v838
      %v935 = vpack.c.b16 %v855, %v847
      %v936 = vpack.c.b16 %v856, %v848
      %v937 = vpack.c.b16 %v857, %v849
      %v938 = vpack.c.b16 %v858, %v850
      %v939 = vpack.c.b16 %v859, %v851
      %v940 = vpack.c.b16 %v860, %v852
      %v941 = vpack.c.b16 %v861, %v853
      %v942 = vpack.c.b16 %v862, %v854
      %v943 = vpack.c.b16 %v871, %v863
      %v944 = vpack.c.b16 %v872, %v864
      %v945 = vpack.c.b16 %v873, %v865
      %v946 = vpack.c.b16 %v874, %v866
      %v947 = vpack.c.b16 %v875, %v867
      %v948 = vpack.c.b16 %v876, %v868
      %v949 = vpack.c.b16 %v877, %v869
      %v950 = vpack.c.b16 %v878, %v870
      %v951 = vpack.c.b16 %v887, %v879
      %v952 = vpack.c.b16 %v888, %v880
      %v953 = vpack.c.b16 %v889, %v881
      %v954 = vpack.c.b16 %v890, %v882
      %v955 = vpack.c.b16 %v891, %v883
      %v956 = vpack.c.b16 %v892, %v884
      %v957 = vpack.c.b16 %v893, %v885
      %v958 = vpack.c.b16 %v894, %v886
      %1023 = vmatprep.subr.bf16.mxu0 %v896
      %1024 = vmatpush1.bf16.msra.mxu0 %v895
      %1025 = vmatprep.subr.bf16.mxu0 %v904
      %1026 = vmatpush1.bf16.msra.mxu0 %v903
      %1027 = vmatprep.subr.bf16.mxu0 %v912
      %1028 = vmatpush1.bf16.msra.mxu0 %v911
      %1029 = vmatprep.subr.bf16.mxu0 %v920
      %1030 = vmatpush1.bf16.msra.mxu0 %v919
      %1031 = vmatprep.subr.bf16.mxu0 %v928
      %1032 = vmatpush1.bf16.msra.mxu0 %v927
      %1033 = vmatprep.subr.bf16.mxu0 %v936
      %1034 = vmatpush1.bf16.msra.mxu0 %v935
      %1035 = vmatprep.subr.bf16.mxu0 %v944
      %1036 = vmatpush1.bf16.msra.mxu0 %v943
      %1037 = vmatprep.subr.bf16.mxu0 %v952
      %1038 = vmatpush1.bf16.msra.mxu0 %v951
      %1039 = vmatprep.subr.bf16.mxu0 0
      %1040 = vmatpush1.bf16.msra.mxu0 0
      %1041 = vmatprep.subr.bf16.mxu0 0
      %1042 = vmatpush1.bf16.msra.mxu0 0
      %1043 = vmatprep.subr.bf16.mxu0 0
      %1044 = vmatpush1.bf16.msra.mxu0 0
      %1045 = vmatprep.subr.bf16.mxu0 0
      %1046 = vmatpush1.bf16.msra.mxu0 0
      %1047 = vmatprep.subr.bf16.mxu0 0
      %1048 = vmatpush1.bf16.msra.mxu0 0
      %1049 = vmatprep.subr.bf16.mxu0 0
      %1050 = vmatpush1.bf16.msra.mxu0 0
      %1051 = vmatprep.subr.bf16.mxu0 0
      %1052 = vmatpush1.bf16.msra.mxu0 0
      %1053 = vmatprep.subr.bf16.mxu0 0
      %1054 = vmatpush1.bf16.msra.mxu0 0
      %1055 = vmatprep.mubr.bf16.mxu0 0
      %1056 = vmatmul.mubr.bf16.gmra.mrb[0].mxu0 %v593
      %v1057 = vpop.f32.mrb[0].mxu0
      %v1058 = vadd.f32 %v666, %v1057
      %v1059 = vpop.f32.mrb[0].mxu0
      %v1060 = vadd.f32 %v670, %v1059
      %v1061 = vpop.f32.mrb[0].mxu0
      %v1062 = vadd.f32 %v666, %v1061
      %v1063 = vpop.f32.mrb[0].mxu0
      %v1064 = vadd.f32 %v670, %v1063
      %1065 = vmatprep.mubr.bf16.mxu0 0
      %1066 = vmatmul.mubr.bf16.gmra.mrb[0].mxu0 %v594
      %v1067 = vpop.f32.mrb[0].mxu0
      %v1068 = vadd.f32 %v666, %v1067
      %v1069 = vpop.f32.mrb[0].mxu0
      %v1070 = vadd.f32 %v670, %v1069
      %v1071 = vpop.f32.mrb[0].mxu0
      %v1072 = vadd.f32 %v666, %v1071
      %v1073 = vpop.f32.mrb[0].mxu0
      %v1074 = vadd.f32 %v670, %v1073
      %1075 = vmatprep.mubr.bf16.mxu0 0
      %1076 = vmatmul.mubr.bf16.gmra.mrb[0].mxu0 %v595
      %v1077 = vpop.f32.mrb[0].mxu0
      %v1078 = vadd.f32 %v666, %v1077
      %v1079 = vpop.f32.mrb[0].mxu0
      %v1080 = vadd.f32 %v670, %v1079
      %v1081 = vpop.f32.mrb[0].mxu0
      %v1082 = vadd.f32 %v666, %v1081
      %v1083 = vpop.f32.mrb[0].mxu0
      %v1084 = vadd.f32 %v670, %v1083
      %1085 = vmatprep.mubr.bf16.mxu0 0
      %1086 = vmatmul.mubr.bf16.gmra.mrb[0].mxu0 %v596
      %v1087 = vpop.f32.mrb[0].mxu0
      %v1088 = vadd.f32 %v666, %v1087
      %v1089 = vpop.f32.mrb[0].mxu0
      %v1090 = vadd.f32 %v670, %v1089
      %v1091 = vpop.f32.mrb[0].mxu0
      %v1092 = vadd.f32 %v666, %v1091
      %v1093 = vpop.f32.mrb[0].mxu0
      %v1094 = vadd.f32 %v670, %v1093
      %1095 = vdwg.mxu0
      %1096 = vmatprep.subr.bf16.mxu0 %v898
      %1097 = vmatpush1.bf16.msra.mxu0 %v897
      %1098 = vmatprep.subr.bf16.mxu0 %v906
      %1099 = vmatpush1.bf16.msra.mxu0 %v905
      %1100 = vmatprep.subr.bf16.mxu0 %v914
      %1101 = vmatpush1.bf16.msra.mxu0 %v913
      %1102 = vmatprep.subr.bf16.mxu0 %v922
      %1103 = vmatpush1.bf16.msra.mxu0 %v921
      %1104 = vmatprep.subr.bf16.mxu0 %v930
      %1105 = vmatpush1.bf16.msra.mxu0 %v929
      %1106 = vmatprep.subr.bf16.mxu0 %v938
      %1107 = vmatpush1.bf16.msra.mxu0 %v937
      %1108 = vmatprep.subr.bf16.mxu0 %v946
      %1109 = vmatpush1.bf16.msra.mxu0 %v945
      %1110 = vmatprep.subr.bf16.mxu0 %v954
      %1111 = vmatpush1.bf16.msra.mxu0 %v953
      %1112 = vmatprep.subr.bf16.mxu0 0
      %1113 = vmatpush1.bf16.msra.mxu0 0
      %1114 = vmatprep.subr.bf16.mxu0 0
      %1115 = vmatpush1.bf16.msra.mxu0 0
      %1116 = vmatprep.subr.bf16.mxu0 0
      %1117 = vmatpush1.bf16.msra.mxu0 0
      %1118 = vmatprep.subr.bf16.mxu0 0
      %1119 = vmatpush1.bf16.msra.mxu0 0
      %1120 = vmatprep.subr.bf16.mxu0 0
      %1121 = vmatpush1.bf16.msra.mxu0 0
      %1122 = vmatprep.subr.bf16.mxu0 0
      %1123 = vmatpush1.bf16.msra.mxu0 0
      %1124 = vmatprep.subr.bf16.mxu0 0
      %1125 = vmatpush1.bf16.msra.mxu0 0
      %1126 = vmatprep.subr.bf16.mxu0 0
      %1127 = vmatpush1.bf16.msra.mxu0 0
      %1128 = vmatprep.mubr.bf16.mxu0 0
      %1129 = vmatmul.mubr.bf16.gmra.mrb[0].mxu0 %v593
      %v1130 = vpop.f32.mrb[0].mxu0
      %v1131 = vadd.f32 %v674, %v1130
      %v1132 = vpop.f32.mrb[0].mxu0
      %v1133 = vadd.f32 %v678, %v1132
      %v1134 = vpop.f32.mrb[0].mxu0
      %v1135 = vadd.f32 %v674, %v1134
      %v1136 = vpop.f32.mrb[0].mxu0
      %v1137 = vadd.f32 %v678, %v1136
      %1138 = vmatprep.mubr.bf16.mxu0 0
      %1139 = vmatmul.mubr.bf16.gmra.mrb[0].mxu0 %v594
      %v1140 = vpop.f32.mrb[0].mxu0
      %v1141 = vadd.f32 %v674, %v1140
      %v1142 = vpop.f32.mrb[0].mxu0
      %v1143 = vadd.f32 %v678, %v1142
      %v1144 = vpop.f32.mrb[0].mxu0
      %v1145 = vadd.f32 %v674, %v1144
      %v1146 = vpop.f32.mrb[0].mxu0
      %v1147 = vadd.f32 %v678, %v1146
      %1148 = vmatprep.mubr.bf16.mxu0 0
      %1149 = vmatmul.mubr.bf16.gmra.mrb[0].mxu0 %v595
      %v1150 = vpop.f32.mrb[0].mxu0
      %v1151 = vadd.f32 %v674, %v1150
      %v1152 = vpop.f32.mrb[0].mxu0
      %v1153 = vadd.f32 %v678, %v1152
      %v1154 = vpop.f32.mrb[0].mxu0
      %v1155 = vadd.f32 %v674, %v1154
      %v1156 = vpop.f32.mrb[0].mxu0
      %v1157 = vadd.f32 %v678, %v1156
      %1158 = vmatprep.mubr.bf16.mxu0 0
      %1159 = vmatmul.mubr.bf16.gmra.mrb[0].mxu0 %v596
      %v1160 = vpop.f32.mrb[0].mxu0
      %v1161 = vadd.f32 %v674, %v1160
      %v1162 = vpop.f32.mrb[0].mxu0
      %v1163 = vadd.f32 %v678, %v1162
      %v1164 = vpop.f32.mrb[0].mxu0
      %v1165 = vadd.f32 %v674, %v1164
      %v1166 = vpop.f32.mrb[0].mxu0
      %v1167 = vadd.f32 %v678, %v1166
      %1168 = vdwg.mxu0
      %1169 = vmatprep.subr.bf16.mxu0 %v900
      %1170 = vmatpush1.bf16.msra.mxu0 %v899
      %1171 = vmatprep.subr.bf16.mxu0 %v908
      %1172 = vmatpush1.bf16.msra.mxu0 %v907
      %1173 = vmatprep.subr.bf16.mxu0 %v916
      %1174 = vmatpush1.bf16.msra.mxu0 %v915
      %1175 = vmatprep.subr.bf16.mxu0 %v924
      %1176 = vmatpush1.bf16.msra.mxu0 %v923
      %1177 = vmatprep.subr.bf16.mxu0 %v932
      %1178 = vmatpush1.bf16.msra.mxu0 %v931
      %1179 = vmatprep.subr.bf16.mxu0 %v940
      %1180 = vmatpush1.bf16.msra.mxu0 %v939
      %1181 = vmatprep.subr.bf16.mxu0 %v948
      %1182 = vmatpush1.bf16.msra.mxu0 %v947
      %1183 = vmatprep.subr.bf16.mxu0 %v956
      %1184 = vmatpush1.bf16.msra.mxu0 %v955
      %1185 = vmatprep.subr.bf16.mxu0 0
      %1186 = vmatpush1.bf16.msra.mxu0 0
      %1187 = vmatprep.subr.bf16.mxu0 0
      %1188 = vmatpush1.bf16.msra.mxu0 0
      %1189 = vmatprep.subr.bf16.mxu0 0
      %1190 = vmatpush1.bf16.msra.mxu0 0
      %1191 = vmatprep.subr.bf16.mxu0 0
      %1192 = vmatpush1.bf16.msra.mxu0 0
      %1193 = vmatprep.subr.bf16.mxu0 0
      %1194 = vmatpush1.bf16.msra.mxu0 0
      %1195 = vmatprep.subr.bf16.mxu0 0
      %1196 = vmatpush1.bf16.msra.mxu0 0
      %1197 = vmatprep.subr.bf16.mxu0 0
      %1198 = vmatpush1.bf16.msra.mxu0 0
      %1199 = vmatprep.subr.bf16.mxu0 0
      %1200 = vmatpush1.bf16.msra.mxu0 0
      %1201 = vmatprep.mubr.bf16.mxu0 0
      %1202 = vmatmul.mubr.bf16.gmra.mrb[0].mxu0 %v593
      %v1203 = vpop.f32.mrb[0].mxu0
      %v1204 = vadd.f32 %v682, %v1203
      %v1205 = vpop.f32.mrb[0].mxu0
      %v1206 = vadd.f32 %v686, %v1205
      %v1207 = vpop.f32.mrb[0].mxu0
      %v1208 = vadd.f32 %v682, %v1207
      %v1209 = vpop.f32.mrb[0].mxu0
      %v1210 = vadd.f32 %v686, %v1209
      %1211 = vmatprep.mubr.bf16.mxu0 0
      %1212 = vmatmul.mubr.bf16.gmra.mrb[0].mxu0 %v594
      %v1213 = vpop.f32.mrb[0].mxu0
      %v1214 = vadd.f32 %v682, %v1213
      %v1215 = vpop.f32.mrb[0].mxu0
      %v1216 = vadd.f32 %v686, %v1215
      %v1217 = vpop.f32.mrb[0].mxu0
      %v1218 = vadd.f32 %v682, %v1217
      %v1219 = vpop.f32.mrb[0].mxu0
      %v1220 = vadd.f32 %v686, %v1219
      %1221 = vmatprep.mubr.bf16.mxu0 0
      %1222 = vmatmul.mubr.bf16.gmra.mrb[0].mxu0 %v595
      %v1223 = vpop.f32.mrb[0].mxu0
      %v1224 = vadd.f32 %v682, %v1223
      %v1225 = vpop.f32.mrb[0].mxu0
      %v1226 = vadd.f32 %v686, %v1225
      %v1227 = vpop.f32.mrb[0].mxu0
      %v1228 = vadd.f32 %v682, %v1227
      %v1229 = vpop.f32.mrb[0].mxu0
      %v1230 = vadd.f32 %v686, %v1229
      %1231 = vmatprep.mubr.bf16.mxu0 0
      %1232 = vmatmul.mubr.bf16.gmra.mrb[0].mxu0 %v596
      %v1233 = vpop.f32.mrb[0].mxu0
      %v1234 = vadd.f32 %v682, %v1233
      %v1235 = vpop.f32.mrb[0].mxu0
      %v1236 = vadd.f32 %v686, %v1235
      %v1237 = vpop.f32.mrb[0].mxu0
      %v1238 = vadd.f32 %v682, %v1237
      %v1239 = vpop.f32.mrb[0].mxu0
      %v1240 = vadd.f32 %v686, %v1239
      %1241 = vdwg.mxu0
      %1242 = vmatprep.subr.bf16.mxu0 %v902
      %1243 = vmatpush1.bf16.msra.mxu0 %v901
      %1244 = vmatprep.subr.bf16.mxu0 %v910
      %1245 = vmatpush1.bf16.msra.mxu0 %v909
      %1246 = vmatprep.subr.bf16.mxu0 %v918
      %1247 = vmatpush1.bf16.msra.mxu0 %v917
      %1248 = vmatprep.subr.bf16.mxu0 %v926
      %1249 = vmatpush1.bf16.msra.mxu0 %v925
      %1250 = vmatprep.subr.bf16.mxu0 %v934
      %1251 = vmatpush1.bf16.msra.mxu0 %v933
      %1252 = vmatprep.subr.bf16.mxu0 %v942
      %1253 = vmatpush1.bf16.msra.mxu0 %v941
      %1254 = vmatprep.subr.bf16.mxu0 %v950
      %1255 = vmatpush1.bf16.msra.mxu0 %v949
      %1256 = vmatprep.subr.bf16.mxu0 %v958
      %1257 = vmatpush1.bf16.msra.mxu0 %v957
      %1258 = vmatprep.subr.bf16.mxu0 0
      %1259 = vmatpush1.bf16.msra.mxu0 0
      %1260 = vmatprep.subr.bf16.mxu0 0
      %1261 = vmatpush1.bf16.msra.mxu0 0
      %1262 = vmatprep.subr.bf16.mxu0 0
      %1263 = vmatpush1.bf16.msra.mxu0 0
      %1264 = vmatprep.subr.bf16.mxu0 0
      %1265 = vmatpush1.bf16.msra.mxu0 0
      %1266 = vmatprep.subr.bf16.mxu0 0
      %1267 = vmatpush1.bf16.msra.mxu0 0
      %1268 = vmatprep.subr.bf16.mxu0 0
      %1269 = vmatpush1.bf16.msra.mxu0 0
      %1270 = vmatprep.subr.bf16.mxu0 0
      %1271 = vmatpush1.bf16.msra.mxu0 0
      %1272 = vmatprep.subr.bf16.mxu0 0
      %1273 = vmatpush1.bf16.msra.mxu0 0
      %1274 = vmatprep.mubr.bf16.mxu0 0
      %1275 = vmatmul.mubr.bf16.gmra.mrb[0].mxu0 %v593
      %v1276 = vpop.f32.mrb[0].mxu0
      %v1277 = vadd.f32 %v690, %v1276
      %v1278 = vpop.f32.mrb[0].mxu0
      %v1279 = vadd.f32 %v694, %v1278
      %v1280 = vpop.f32.mrb[0].mxu0
      %v1281 = vadd.f32 %v690, %v1280
      %v1282 = vpop.f32.mrb[0].mxu0
      %v1283 = vadd.f32 %v694, %v1282
      %1284 = vmatprep.mubr.bf16.mxu0 0
      %1285 = vmatmul.mubr.bf16.gmra.mrb[0].mxu0 %v594
      %v1286 = vpop.f32.mrb[0].mxu0
      %v1287 = vadd.f32 %v690, %v1286
      %v1288 = vpop.f32.mrb[0].mxu0
      %v1289 = vadd.f32 %v694, %v1288
      %v1290 = vpop.f32.mrb[0].mxu0
      %v1291 = vadd.f32 %v690, %v1290
      %v1292 = vpop.f32.mrb[0].mxu0
      %v1293 = vadd.f32 %v694, %v1292
      %1294 = vmatprep.mubr.bf16.mxu0 0
      %1295 = vmatmul.mubr.bf16.gmra.mrb[0].mxu0 %v595
      %v1296 = vpop.f32.mrb[0].mxu0
      %v1297 = vadd.f32 %v690, %v1296
      %v1298 = vpop.f32.mrb[0].mxu0
      %v1299 = vadd.f32 %v694, %v1298
      %v1300 = vpop.f32.mrb[0].mxu0
      %v1301 = vadd.f32 %v690, %v1300
      %v1302 = vpop.f32.mrb[0].mxu0
      %v1303 = vadd.f32 %v694, %v1302
      %1304 = vmatprep.mubr.bf16.mxu0 0
      %1305 = vmatmul.mubr.bf16.gmra.mrb[0].mxu0 %v596
      %v1306 = vpop.f32.mrb[0].mxu0
      %v1307 = vadd.f32 %v690, %v1306
      %v1308 = vpop.f32.mrb[0].mxu0
      %v1309 = vadd.f32 %v694, %v1308
      %v1310 = vpop.f32.mrb[0].mxu0
      %v1311 = vadd.f32 %v690, %v1310
      %v1312 = vpop.f32.mrb[0].mxu0
      %v1313 = vadd.f32 %v694, %v1312
      %1314 = vdwg.mxu0
      %v1315 = vmax.f32 %v1058, 0.0
      %v1316 = vmax.f32 %v1060, 0.0
      %v1317 = vmax.f32 %v1131, 0.0
      %v1318 = vmax.f32 %v1133, 0.0
      %v1319 = vmax.f32 %v1204, 0.0
      %v1320 = vmax.f32 %v1206, 0.0
      %v1321 = vmax.f32 %v1277, 0.0
      %v1322 = vmax.f32 %v1279, 0.0
      %v1323 = vmax.f32 %v1062, 0.0
      %v1324 = vmax.f32 %v1064, 0.0
      %v1325 = vmax.f32 %v1135, 0.0
      %v1326 = vmax.f32 %v1137, 0.0
      %v1327 = vmax.f32 %v1208, 0.0
      %v1328 = vmax.f32 %v1210, 0.0
      %v1329 = vmax.f32 %v1281, 0.0
      %v1330 = vmax.f32 %v1283, 0.0
      %v1331 = vmax.f32 %v1068, 0.0
      %v1332 = vmax.f32 %v1070, 0.0
      %v1333 = vmax.f32 %v1141, 0.0
      %v1334 = vmax.f32 %v1143, 0.0
      %v1335 = vmax.f32 %v1214, 0.0
      %v1336 = vmax.f32 %v1216, 0.0
      %v1337 = vmax.f32 %v1287, 0.0
      %v1338 = vmax.f32 %v1289, 0.0
      %v1339 = vmax.f32 %v1072, 0.0
      %v1340 = vmax.f32 %v1074, 0.0
      %v1341 = vmax.f32 %v1145, 0.0
      %v1342 = vmax.f32 %v1147, 0.0
      %v1343 = vmax.f32 %v1218, 0.0
      %v1344 = vmax.f32 %v1220, 0.0
      %v1345 = vmax.f32 %v1291, 0.0
      %v1346 = vmax.f32 %v1293, 0.0
      %v1347 = vmax.f32 %v1078, 0.0
      %v1348 = vmax.f32 %v1080, 0.0
      %v1349 = vmax.f32 %v1151, 0.0
      %v1350 = vmax.f32 %v1153, 0.0
      %v1351 = vmax.f32 %v1224, 0.0
      %v1352 = vmax.f32 %v1226, 0.0
      %v1353 = vmax.f32 %v1297, 0.0
      %v1354 = vmax.f32 %v1299, 0.0
      %v1355 = vmax.f32 %v1082, 0.0
      %v1356 = vmax.f32 %v1084, 0.0
      %v1357 = vmax.f32 %v1155, 0.0
      %v1358 = vmax.f32 %v1157, 0.0
      %v1359 = vmax.f32 %v1228, 0.0
      %v1360 = vmax.f32 %v1230, 0.0
      %v1361 = vmax.f32 %v1301, 0.0
      %v1362 = vmax.f32 %v1303, 0.0
      %v1363 = vmax.f32 %v1088, 0.0
      %v1364 = vmax.f32 %v1090, 0.0
      %v1365 = vmax.f32 %v1161, 0.0
      %v1366 = vmax.f32 %v1163, 0.0
      %v1367 = vmax.f32 %v1234, 0.0
      %v1368 = vmax.f32 %v1236, 0.0
      %v1369 = vmax.f32 %v1307, 0.0
      %v1370 = vmax.f32 %v1309, 0.0
      %v1371 = vmax.f32 %v1092, 0.0
      %v1372 = vmax.f32 %v1094, 0.0
      %v1373 = vmax.f32 %v1165, 0.0
      %v1374 = vmax.f32 %v1167, 0.0
      %v1375 = vmax.f32 %v1238, 0.0
      %v1376 = vmax.f32 %v1240, 0.0
      %v1377 = vmax.f32 %v1311, 0.0
      %v1378 = vmax.f32 %v1313, 0.0
      %v1379 = vmax.f32 %v1315, %v1323
      %v1380 = vmax.f32 %v1379, %v1331
      %v1381 = vmax.f32 %v1380, %v1339
      %v1382 = vmax.f32 %v1381, %v1347
      %v1383 = vmax.f32 %v1382, %v1355
      %v1384 = vmax.f32 %v1383, %v1363
      %v1385 = vmax.f32 %v1384, %v1371
      %v1386 = vrot.slane %v1385, 4
      %v1387 = vmax.f32 %v1385, %v1386
      %v1388 = vrot.slane %v1387, 2
      %v1389 = vmax.f32 %v1387, %v1388
      %v1390 = vrot.slane %v1389, 1
      %v1391 = vmax.f32 %v1389, %v1390
      %v1392 = vmax.f32 %v1316, %v1324
      %v1393 = vmax.f32 %v1392, %v1332
      %v1394 = vmax.f32 %v1393, %v1340
      %v1395 = vmax.f32 %v1394, %v1348
      %v1396 = vmax.f32 %v1395, %v1356
      %v1397 = vmax.f32 %v1396, %v1364
      %v1398 = vmax.f32 %v1397, %v1372
      %v1399 = vrot.slane %v1398, 4
      %v1400 = vmax.f32 %v1398, %v1399
      %v1401 = vrot.slane %v1400, 2
      %v1402 = vmax.f32 %v1400, %v1401
      %v1403 = vrot.slane %v1402, 1
      %v1404 = vmax.f32 %v1402, %v1403
      %v1405 = vmax.f32 %v1317, %v1325
      %v1406 = vmax.f32 %v1405, %v1333
      %v1407 = vmax.f32 %v1406, %v1341
      %v1408 = vmax.f32 %v1407, %v1349
      %v1409 = vmax.f32 %v1408, %v1357
      %v1410 = vmax.f32 %v1409, %v1365
      %v1411 = vmax.f32 %v1410, %v1373
      %v1412 = vrot.slane %v1411, 4
      %v1413 = vmax.f32 %v1411, %v1412
      %v1414 = vrot.slane %v1413, 2
      %v1415 = vmax.f32 %v1413, %v1414
      %v1416 = vrot.slane %v1415, 1
      %v1417 = vmax.f32 %v1415, %v1416
      %v1418 = vmax.f32 %v1318, %v1326
      %v1419 = vmax.f32 %v1418, %v1334
      %v1420 = vmax.f32 %v1419, %v1342
      %v1421 = vmax.f32 %v1420, %v1350
      %v1422 = vmax.f32 %v1421, %v1358
      %v1423 = vmax.f32 %v1422, %v1366
      %v1424 = vmax.f32 %v1423, %v1374
      %v1425 = vrot.slane %v1424, 4
      %v1426 = vmax.f32 %v1424, %v1425
      %v1427 = vrot.slane %v1426, 2
      %v1428 = vmax.f32 %v1426, %v1427
      %v1429 = vrot.slane %v1428, 1
      %v1430 = vmax.f32 %v1428, %v1429
      %v1431 = vmax.f32 %v1319, %v1327
      %v1432 = vmax.f32 %v1431, %v1335
      %v1433 = vmax.f32 %v1432, %v1343
      %v1434 = vmax.f32 %v1433, %v1351
      %v1435 = vmax.f32 %v1434, %v1359
      %v1436 = vmax.f32 %v1435, %v1367
      %v1437 = vmax.f32 %v1436, %v1375
      %v1438 = vrot.slane %v1437, 4
      %v1439 = vmax.f32 %v1437, %v1438
      %v1440 = vrot.slane %v1439, 2
      %v1441 = vmax.f32 %v1439, %v1440
      %v1442 = vrot.slane %v1441, 1
      %v1443 = vmax.f32 %v1441, %v1442
      %v1444 = vmax.f32 %v1320, %v1328
      %v1445 = vmax.f32 %v1444, %v1336
      %v1446 = vmax.f32 %v1445, %v1344
      %v1447 = vmax.f32 %v1446, %v1352
      %v1448 = vmax.f32 %v1447, %v1360
      %v1449 = vmax.f32 %v1448, %v1368
      %v1450 = vmax.f32 %v1449, %v1376
      %v1451 = vrot.slane %v1450, 4
      %v1452 = vmax.f32 %v1450, %v1451
      %v1453 = vrot.slane %v1452, 2
      %v1454 = vmax.f32 %v1452, %v1453
      %v1455 = vrot.slane %v1454, 1
      %v1456 = vmax.f32 %v1454, %v1455
      %v1457 = vmax.f32 %v1321, %v1329
      %v1458 = vmax.f32 %v1457, %v1337
      %v1459 = vmax.f32 %v1458, %v1345
      %v1460 = vmax.f32 %v1459, %v1353
      %v1461 = vmax.f32 %v1460, %v1361
      %v1462 = vmax.f32 %v1461, %v1369
      %v1463 = vmax.f32 %v1462, %v1377
      %v1464 = vrot.slane %v1463, 4
      %v1465 = vmax.f32 %v1463, %v1464
      %v1466 = vrot.slane %v1465, 2
      %v1467 = vmax.f32 %v1465, %v1466
      %v1468 = vrot.slane %v1467, 1
      %v1469 = vmax.f32 %v1467, %v1468
      %v1470 = vmax.f32 %v1322, %v1330
      %v1471 = vmax.f32 %v1470, %v1338
      %v1472 = vmax.f32 %v1471, %v1346
      %v1473 = vmax.f32 %v1472, %v1354
      %v1474 = vmax.f32 %v1473, %v1362
      %v1475 = vmax.f32 %v1474, %v1370
      %v1476 = vmax.f32 %v1475, %v1378
      %v1477 = vrot.slane %v1476, 4
      %v1478 = vmax.f32 %v1476, %v1477
      %v1479 = vrot.slane %v1478, 2
      %v1480 = vmax.f32 %v1478, %v1479
      %v1481 = vrot.slane %v1480, 1
      %v1482 = vmax.f32 %v1480, %v1481
      %p1483 = scmp.eq.s32.totalorder %s23, 0
      // Predicated region
      $region49: #{segment_forward.5} parent=47 // pred_check
        %p1484 = pneg %p1483
      $region50: #{segment_forward.5} parent=47 // pred_check_branch
        %1486 = sbr.rel (%p1484) target = $region52
      $region51: #{segment_forward.5} parent=47 // pred_region
        %1487 = vst [vmem:[%s304] sm:$0xff] -inf
      $region52: #{segment_forward.5} parent=47 // pred_fallthru
        _
      %v1488 = vld [vmem:[%s304] sm:$0xff]
      %v1497 = vcombine.low %v1391, %v1404
      %v1498 = vcombine.low %v1417, %v1430
      %v1499 = vcombine.low %v1443, %v1456
      %v1500 = vcombine.low %v1469, %v1482
      %v1502 = vunpack.c.l.s4 1966171168
      %v1503 = vunpack.c.0.s8 %v1502
      %v1504 = vlaneseq
      %v1505 = vshrl.u32 %v1504, 7
      %v1506 = vsub.s32 %v1503, %v1505
      %v1507 = vrot.slane %v1497, %v1506
      %v1509 = vunpack.c.l.s4 1966171168
      %v1510 = vunpack.c.0.s8 %v1509
      %v1511 = vlaneseq
      %v1512 = vshrl.u32 %v1511, 7
      %v1513 = vsub.s32 %v1510, %v1512
      %v1514 = vrot.slane %v1498, %v1513
      %v1516 = vunpack.c.l.s4 1966171168
      %v1517 = vunpack.c.0.s8 %v1516
      %v1518 = vlaneseq
      %v1519 = vshrl.u32 %v1518, 7
      %v1520 = vsub.s32 %v1517, %v1519
      %v1521 = vrot.slane %v1499, %v1520
      %v1523 = vunpack.c.l.s4 1966171168
      %v1524 = vunpack.c.0.s8 %v1523
      %v1525 = vlaneseq
      %v1526 = vshrl.u32 %v1525, 7
      %v1527 = vsub.s32 %v1524, %v1526
      %v1528 = vrot.slane %v1500, %v1527
      %v1529 = vcombine.low %v1507, %v1514
      %v1530 = vcombine.low %v1521, %v1528
      %v1532 = vunpack.c.l.s4 1966171168
      %v1533 = vunpack.c.0.s8 %v1532
      %v1534 = vlaneseq
      %v1535 = vshrl.u32 %v1534, 7
      %v1536 = vsub.s32 %v1533, %v1535
      %v1537 = vrot.slane %v1529, %v1536
      %v1539 = vunpack.c.l.s4 1966171168
      %v1540 = vunpack.c.0.s8 %v1539
      %v1541 = vlaneseq
      %v1542 = vshrl.u32 %v1541, 7
      %v1543 = vsub.s32 %v1540, %v1542
      %v1544 = vrot.slane %v1530, %v1543
      %v1545 = vcombine.low %v1537, %v1544
      %v1547 = vmax.f32 %v1488, %v1545
      %1548 = vst [vmem:[%s304] sm:$0xff] %v1547
      %p1549 = scmp.lt.s32.totalorder %s22, 1
      %s1550 = scalar_select %p1549, %s22, 1
      %s1551 = smul.addr %s1550, 8
      %s1552 = scalar_lea.vmem %s7, %s1551
      // Predicated region
      $region53: #{segment_forward.5} parent=47 // pred_check
        %p1553 = pneg %p202
      $region54: #{segment_forward.5} parent=47 // pred_check_branch
        %1555 = sbr.rel (%p1553) target = $region56
      $region55: #{segment_forward.5} parent=47 // pred_region
        _
      $region56: #{segment_forward.5} parent=47 // pred_fallthru
        _
    $region48: #{segment_forward.5} parent=5 // pred_fallthru
      _
    %p1556 = scmp.le.s32.totalorder 2, %s13
    // Predicated region
    $region57: #{segment_forward.5} parent=5 // pred_check
      %p1557 = pneg %p1556
    $region58: #{segment_forward.5} parent=5 // pred_check_branch
      %1559 = sbr.rel (%p1557) target = $region60
    $region59: #{segment_forward.5} parent=5 // pred_region
      %s1560 = ssub.s32 %s13, 2
      // Predicated region
      $region61: #{segment_forward.5} parent=59 // pred_check
        %p1561 = pneg %p208
      $region62: #{segment_forward.5} parent=59 // pred_check_branch
        %1563 = sbr.rel (%p1561) target = $region64
      $region63: #{segment_forward.5} parent=59 // pred_region
        %p1564 = scmp.lt.s32.totalorder %s24, 1
        %s1565 = scalar_select %p1564, %s24, 1
        %s1566 = smul.addr %s1565, 8
        %s1567 = scalar_lea.vmem %s7, %s1566
      $region64: #{segment_forward.5} parent=59 // pred_fallthru
        _
    $region60: #{segment_forward.5} parent=5 // pred_fallthru
      _
  $region6: #{segment_forward.5} parent=0 // loop_footer
    %s17 = sadd.s32 1, %s13
  $region7: #{segment_forward.5} parent=0 // loop_footer_branch
    %12 = sbr.rel target = $region3
  $region8: #{segment_forward.5} parent=0 // loop_exit
    _

// kernel: segment_forward.7
$region0: #{segment_forward.7}
  #allocation0 [shape = 'u32[]', space=smem, size = 0x4, offset = 0x4, fixed_abs, tag = 'smem constant byte address 0x4 - core index']
  #allocation1 [shape = 'u32[144,128]{1,0:T(1,128)}', space=vmem, size = 0x12000, scoped, tag = 'internal scratch']
  %s0 = inlined_call_operand.vmem [shape: f32[2,64,3], index: 0, kind: input, shape index: {}]
  %s1 = inlined_call_operand.vmem [shape: f32[2,3,64], index: 1, kind: input, shape index: {}]
  %s2 = inlined_call_operand.vmem [shape: f32[1,64], index: 2, kind: input, shape index: {}]
  %s3 = inlined_call_operand.vmem [shape: bf16[64,128], index: 3, kind: input, shape index: {}]
  %s4 = inlined_call_operand.vmem [shape: f32[1,128], index: 4, kind: input, shape index: {}]
  %s5 = inlined_call_operand.vmem [shape: bf16[128,1024], index: 5, kind: input, shape index: {}]
  %s6 = inlined_call_operand.vmem [shape: f32[1,1024], index: 6, kind: input, shape index: {}]
  %s7 = inlined_call_operand.vmem [shape: bf16[2,64,64], index: 7, kind: output, shape index: {0}]
  %s8 = inlined_call_operand.vmem [shape: f32[2,1,1024], index: 8, kind: output, shape index: {1}]
  %9 = xla_tuple %s7, %s8
  %s10 = sld [smem:[#allocation0]]
  $region73: #{segment_forward.7} parent=0
    _
  %s12 = ssub.s32 1, %s10
  %s13 = scalar_select 0, %s12, %s10
  loop: start=0, step=1, limit=4
  $region2: #{segment_forward.7} parent=0 // loop_pre_header
    _
  $region3: #{segment_forward.7} parent=0 // loop_header
    %s15 = sphi 0, %s19
    %p16 = scmp.ge.s32.totalorder %s15, 4
    %s22 = sphi 0, %s34
    %s23 = sphi 0, %s30
    %s24 = sphi 0, %s22
    %s25 = sphi 0, %s23
    %s26 = sphi 0, %s24
    %s27 = sphi 0, %s25
    %s39 = sphi 0, %s41
    %s42 = sphi 0, %s39
    %s43 = sphi 0, %s42
    %s59 = sphi 0, %s43
    %s65 = sphi 0, %s67
    %s68 = sphi 0, %s65
    %s69 = sphi 0, %s68
    %s85 = sphi 0, %s69
    %s89 = sphi 0, %s89
    %s91 = sphi 0, %s89
    %s92 = sphi 0, %s91
    %s106 = sphi 0, %s92
    %s110 = sphi 0, %s110
    %s112 = sphi 0, %s110
    %s113 = sphi 0, %s112
    %s127 = sphi 0, %s113
    %s131 = sphi 0, %s131
    %s133 = sphi 0, %s131
    %s134 = sphi 0, %s133
    %s148 = sphi 0, %s134
    %s152 = sphi 0, %s152
    %s154 = sphi 0, %s152
    %s155 = sphi 0, %s154
    %s169 = sphi 0, %s155
    %s173 = sphi 0, %s173
    %s175 = sphi 0, %s173
    %s176 = sphi 0, %s175
    %s190 = sphi 0, %s176
    %s198 = sphi 0, %s200
    %s201 = sphi 0, %s198
    %s202 = sphi 0, %s201
    %s218 = sphi 0, %s202
    %s224 = sphi 0, %s226
    %s227 = sphi 0, %s224
    %s228 = sphi 0, %s227
    %s244 = sphi 0, %s228
  $region4: #{segment_forward.7} parent=0 // loop_header_branch
    %18 = sbr.rel (%p16) target = $region8
  $region5: #{segment_forward.7} parent=0 // loop_body
    %s20 = ssub.s32 %s15, 1
    %s21 = ssub.s32 %s15, 2
    %s28 = sadd.s32 1, %s23
    %p29 = scmp.ge.s32.totalorder %s28, 1
    %s30 = scalar_select %p29, 0, %s28
    %s31 = sadd.s32 1, %s22
    %s32 = scalar_select %p29, %s31, %s22
    %p33 = scmp.ge.s32.totalorder %s32, 2
    %s34 = scalar_select %p33, 0, %s32
    %s35 = ssub.s32 %s22, %s34
    %s36 = ssub.s32 %s23, %s30
    %s37 = sor.u32 %s35, %s36
    %p38 = scmp.eq.s32.totalorder %s37, 0
    %s40 = sadd.s32 %s39, 1
    %s41 = scalar_select %p38, %s39, %s40
    %p44 = pneg %p38
    %p45 = scmp.eq.s32.totalorder %s15, 1
    %p46 = por %p44, %p45
    %p47 = scmp.ne.s32.totalorder %s39, %s42
    %p48 = scmp.eq.s32.totalorder %s15, 0
    %p49 = por %p47, %p48
    %p50 = scmp.ne.s32.totalorder %s39, %s42
    %p51 = scmp.eq.s32.totalorder %s20, 1
    %p52 = por %p50, %p51
    %p53 = scmp.ne.s32.totalorder %s42, %s43
    %p54 = scmp.eq.s32.totalorder %s20, 0
    %p55 = por %p53, %p54
    %p56 = scmp.ne.s32.totalorder %s42, %s43
    %p57 = scmp.eq.s32.totalorder %s21, 1
    %p58 = por %p56, %p57
    %p60 = scmp.ne.s32.totalorder %s43, %s59
    %p61 = scmp.eq.s32.totalorder %s21, 0
    %p62 = por %p60, %p61
    %s63 = ssub.s32 %s22, %s34
    %p64 = scmp.eq.s32.totalorder %s63, 0
    %s66 = sadd.s32 %s65, 1
    %s67 = scalar_select %p64, %s65, %s66
    %p70 = pneg %p64
    %p71 = scmp.eq.s32.totalorder %s15, 1
    %p72 = por %p70, %p71
    %p73 = scmp.ne.s32.totalorder %s65, %s68
    %p74 = scmp.eq.s32.totalorder %s15, 0
    %p75 = por %p73, %p74
    %p76 = scmp.ne.s32.totalorder %s65, %s68
    %p77 = scmp.eq.s32.totalorder %s20, 1
    %p78 = por %p76, %p77
    %p79 = scmp.ne.s32.totalorder %s68, %s69
    %p80 = scmp.eq.s32.totalorder %s20, 0
    %p81 = por %p79, %p80
    %p82 = scmp.ne.s32.totalorder %s68, %s69
    %p83 = scmp.eq.s32.totalorder %s21, 1
    %p84 = por %p82, %p83
    %p86 = scmp.ne.s32.totalorder %s69, %s85
    %p87 = scmp.eq.s32.totalorder %s21, 0
    %p88 = por %p86, %p87
    %s90 = sadd.s32 %s89, 1
    %p93 = scmp.eq.s32.totalorder %s15, 1
    %p94 = scmp.ne.s32.totalorder %s89, %s91
    %p95 = scmp.eq.s32.totalorder %s15, 0
    %p96 = por %p94, %p95
    %p97 = scmp.ne.s32.totalorder %s89, %s91
    %p98 = scmp.eq.s32.totalorder %s20, 1
    %p99 = por %p97, %p98
    %p100 = scmp.ne.s32.totalorder %s91, %s92
    %p101 = scmp.eq.s32.totalorder %s20, 0
    %p102 = por %p100, %p101
    %p103 = scmp.ne.s32.totalorder %s91, %s92
    %p104 = scmp.eq.s32.totalorder %s21, 1
    %p105 = por %p103, %p104
    %p107 = scmp.ne.s32.totalorder %s92, %s106
    %p108 = scmp.eq.s32.totalorder %s21, 0
    %p109 = por %p107, %p108
    %s111 = sadd.s32 %s110, 1
    %p114 = scmp.eq.s32.totalorder %s15, 1
    %p115 = scmp.ne.s32.totalorder %s110, %s112
    %p116 = scmp.eq.s32.totalorder %s15, 0
    %p117 = por %p115, %p116
    %p118 = scmp.ne.s32.totalorder %s110, %s112
    %p119 = scmp.eq.s32.totalorder %s20, 1
    %p120 = por %p118, %p119
    %p121 = scmp.ne.s32.totalorder %s112, %s113
    %p122 = scmp.eq.s32.totalorder %s20, 0
    %p123 = por %p121, %p122
    %p124 = scmp.ne.s32.totalorder %s112, %s113
    %p125 = scmp.eq.s32.totalorder %s21, 1
    %p126 = por %p124, %p125
    %p128 = scmp.ne.s32.totalorder %s113, %s127
    %p129 = scmp.eq.s32.totalorder %s21, 0
    %p130 = por %p128, %p129
    %s132 = sadd.s32 %s131, 1
    %p135 = scmp.eq.s32.totalorder %s15, 1
    %p136 = scmp.ne.s32.totalorder %s131, %s133
    %p137 = scmp.eq.s32.totalorder %s15, 0
    %p138 = por %p136, %p137
    %p139 = scmp.ne.s32.totalorder %s131, %s133
    %p140 = scmp.eq.s32.totalorder %s20, 1
    %p141 = por %p139, %p140
    %p142 = scmp.ne.s32.totalorder %s133, %s134
    %p143 = scmp.eq.s32.totalorder %s20, 0
    %p144 = por %p142, %p143
    %p145 = scmp.ne.s32.totalorder %s133, %s134
    %p146 = scmp.eq.s32.totalorder %s21, 1
    %p147 = por %p145, %p146
    %p149 = scmp.ne.s32.totalorder %s134, %s148
    %p150 = scmp.eq.s32.totalorder %s21, 0
    %p151 = por %p149, %p150
    %s153 = sadd.s32 %s152, 1
    %p156 = scmp.eq.s32.totalorder %s15, 1
    %p157 = scmp.ne.s32.totalorder %s152, %s154
    %p158 = scmp.eq.s32.totalorder %s15, 0
    %p159 = por %p157, %p158
    %p160 = scmp.ne.s32.totalorder %s152, %s154
    %p161 = scmp.eq.s32.totalorder %s20, 1
    %p162 = por %p160, %p161
    %p163 = scmp.ne.s32.totalorder %s154, %s155
    %p164 = scmp.eq.s32.totalorder %s20, 0
    %p165 = por %p163, %p164
    %p166 = scmp.ne.s32.totalorder %s154, %s155
    %p167 = scmp.eq.s32.totalorder %s21, 1
    %p168 = por %p166, %p167
    %p170 = scmp.ne.s32.totalorder %s155, %s169
    %p171 = scmp.eq.s32.totalorder %s21, 0
    %p172 = por %p170, %p171
    %s174 = sadd.s32 %s173, 1
    %p177 = scmp.eq.s32.totalorder %s15, 1
    %p178 = scmp.ne.s32.totalorder %s173, %s175
    %p179 = scmp.eq.s32.totalorder %s15, 0
    %p180 = por %p178, %p179
    %p181 = scmp.ne.s32.totalorder %s173, %s175
    %p182 = scmp.eq.s32.totalorder %s20, 1
    %p183 = por %p181, %p182
    %p184 = scmp.ne.s32.totalorder %s175, %s176
    %p185 = scmp.eq.s32.totalorder %s20, 0
    %p186 = por %p184, %p185
    %p187 = scmp.ne.s32.totalorder %s175, %s176
    %p188 = scmp.eq.s32.totalorder %s21, 1
    %p189 = por %p187, %p188
    %p191 = scmp.ne.s32.totalorder %s176, %s190
    %p192 = scmp.eq.s32.totalorder %s21, 0
    %p193 = por %p191, %p192
    %s194 = ssub.s32 %s22, %s34
    %s195 = ssub.s32 %s23, %s30
    %s196 = sor.u32 %s194, %s195
    %p197 = scmp.eq.s32.totalorder %s196, 0
    %s199 = sadd.s32 %s198, 1
    %s200 = scalar_select %p197, %s198, %s199
    %p203 = pneg %p197
    %p204 = scmp.eq.s32.totalorder %s15, 1
    %p205 = por %p203, %p204
    %p206 = scmp.ne.s32.totalorder %s198, %s201
    %p207 = scmp.eq.s32.totalorder %s15, 0
    %p208 = por %p206, %p207
    %p209 = scmp.ne.s32.totalorder %s198, %s201
    %p210 = scmp.eq.s32.totalorder %s20, 1
    %p211 = por %p209, %p210
    %p212 = scmp.ne.s32.totalorder %s201, %s202
    %p213 = scmp.eq.s32.totalorder %s20, 0
    %p214 = por %p212, %p213
    %p215 = scmp.ne.s32.totalorder %s201, %s202
    %p216 = scmp.eq.s32.totalorder %s21, 1
    %p217 = por %p215, %p216
    %p219 = scmp.ne.s32.totalorder %s202, %s218
    %p220 = scmp.eq.s32.totalorder %s21, 0
    %p221 = por %p219, %p220
    %s222 = ssub.s32 %s22, %s34
    %p223 = scmp.eq.s32.totalorder %s222, 0
    %s225 = sadd.s32 %s224, 1
    %s226 = scalar_select %p223, %s224, %s225
    %p229 = pneg %p223
    %p230 = scmp.eq.s32.totalorder %s15, 1
    %p231 = por %p229, %p230
    %p232 = scmp.ne.s32.totalorder %s224, %s227
    %p233 = scmp.eq.s32.totalorder %s15, 0
    %p234 = por %p232, %p233
    %p235 = scmp.ne.s32.totalorder %s224, %s227
    %p236 = scmp.eq.s32.totalorder %s20, 1
    %p237 = por %p235, %p236
    %p238 = scmp.ne.s32.totalorder %s227, %s228
    %p239 = scmp.eq.s32.totalorder %s20, 0
    %p240 = por %p238, %p239
    %p241 = scmp.ne.s32.totalorder %s227, %s228
    %p242 = scmp.eq.s32.totalorder %s21, 1
    %p243 = por %p241, %p242
    %p245 = scmp.ne.s32.totalorder %s228, %s244
    %p246 = scmp.eq.s32.totalorder %s21, 0
    %p247 = por %p245, %p246
    %p248 = scmp.le.s32.totalorder 1, %s15
    %p249 = scmp.lt.s32.totalorder %s15, 3
    %p250 = pnand %p248, %p249
    %p251 = pneg %p250
    // Predicated region
    $region9: #{segment_forward.7} parent=5 // pred_check
      _
    $region10: #{segment_forward.7} parent=5 // pred_check_branch
      %253 = sbr.rel (%p250) target = $region12
    $region11: #{segment_forward.7} parent=5 // pred_region
      %s254 = ssub.s32 %s15, 1
      // Predicated region
      $region13: #{segment_forward.7} parent=11 // pred_check
        %p255 = pneg %p102
      $region14: #{segment_forward.7} parent=11 // pred_check_branch
        %257 = sbr.rel (%p255) target = $region16
      $region15: #{segment_forward.7} parent=11 // pred_region
        _
      $region16: #{segment_forward.7} parent=11 // pred_fallthru
        _
      // Predicated region
      $region17: #{segment_forward.7} parent=11 // pred_check
        %p258 = pneg %p123
      $region18: #{segment_forward.7} parent=11 // pred_check_branch
        %260 = sbr.rel (%p258) target = $region20
      $region19: #{segment_forward.7} parent=11 // pred_region
        _
      $region20: #{segment_forward.7} parent=11 // pred_fallthru
        _
      // Predicated region
      $region21: #{segment_forward.7} parent=11 // pred_check
        %p261 = pneg %p144
      $region22: #{segment_forward.7} parent=11 // pred_check_branch
        %263 = sbr.rel (%p261) target = $region24
      $region23: #{segment_forward.7} parent=11 // pred_region
        _
      $region24: #{segment_forward.7} parent=11 // pred_fallthru
        _
      // Predicated region
      $region25: #{segment_forward.7} parent=11 // pred_check
        %p264 = pneg %p165
      $region26: #{segment_forward.7} parent=11 // pred_check_branch
        %266 = sbr.rel (%p264) target = $region28
      $region27: #{segment_forward.7} parent=11 // pred_region
        _
      $region28: #{segment_forward.7} parent=11 // pred_fallthru
        _
      // Predicated region
      $region29: #{segment_forward.7} parent=11 // pred_check
        %p267 = pneg %p186
      $region30: #{segment_forward.7} parent=11 // pred_check_branch
        %269 = sbr.rel (%p267) target = $region32
      $region31: #{segment_forward.7} parent=11 // pred_region
        _
      $region32: #{segment_forward.7} parent=11 // pred_fallthru
        _
    $region12: #{segment_forward.7} parent=5 // pred_fallthru
      _
    %p270 = scmp.lt.s32.totalorder %s15, 2
    // Predicated region
    $region33: #{segment_forward.7} parent=5 // pred_check
      %p271 = pneg %p270
    $region34: #{segment_forward.7} parent=5 // pred_check_branch
      %273 = sbr.rel (%p271) target = $region36
    $region35: #{segment_forward.7} parent=5 // pred_region
      // Predicated region
      $region37: #{segment_forward.7} parent=35 // pred_check
        %p274 = pneg %p49
      $region38: #{segment_forward.7} parent=35 // pred_check_branch
        %276 = sbr.rel (%p274) target = $region40
      $region39: #{segment_forward.7} parent=35 // pred_region
        %s277 = smul.u32 8, %s23
        %p278 = scmp.lt.s32.totalorder %s22, 1
        %s279 = scalar_select %p278, %s22, 1
        %p280 = scmp.lt.s32.totalorder %s277, 7
        %s281 = scalar_select %p280, %s277, 7
        %s282 = smul.addr %s279, 8
        %s283 = sadd.s32 %s281, %s282
        %s284 = smul.addr %s283, 8
        %s285 = scalar_lea.vmem %s0, %s284
        %s286 = smul.u32 8, %s23
      $region40: #{segment_forward.7} parent=35 // pred_fallthru
        _
      // Predicated region
      $region41: #{segment_forward.7} parent=35 // pred_check
        %p287 = pneg %p75
      $region42: #{segment_forward.7} parent=35 // pred_check_branch
        %289 = sbr.rel (%p287) target = $region44
      $region43: #{segment_forward.7} parent=35 // pred_region
        %p290 = scmp.lt.s32.totalorder %s22, 1
        %s291 = scalar_select %p290, %s22, 1
        %s292 = smul.addr %s291, 4
        %s293 = scalar_lea.vmem %s1, %s292
      $region44: #{segment_forward.7} parent=35 // pred_fallthru
        _
    $region36: #{segment_forward.7} parent=5 // pred_fallthru
      _
    %p294 = scmp.le.s32.totalorder 1, %s15
    %p295 = scmp.lt.s32.totalorder %s15, 3
    %p296 = pnand %p294, %p295
    %p297 = pneg %p296
    // Predicated region
    $region45: #{segment_forward.7} parent=5 // pred_check
      _
    $region46: #{segment_forward.7} parent=5 // pred_check_branch
      %299 = sbr.rel (%p296) target = $region48
    $region47: #{segment_forward.7} parent=5 // pred_region
      %s300 = ssub.s32 %s15, 1
      %s301 = smul.u32 8, %s25
      %p302 = scmp.lt.s32.totalorder %s24, 1
      %s303 = scalar_select %p302, %s24, 1
      %p304 = scmp.lt.s32.totalorder %s301, 7
      %s305 = scalar_select %p304, %s301, 7
      %s306 = smul.addr %s303, 8
      %s307 = sadd.s32 %s305, %s306
      %s308 = smul.addr %s307, 8
      %s309 = scalar_lea.vmem %s0, %s308
      %p310 = pneg %p55
      %p311 = pneg %p52
      %p312 = scmp.lt.s32.totalorder %s24, 1
      %s313 = scalar_select %p312, %s24, 1
      %s314 = smul.addr %s313, 4
      %s315 = scalar_lea.vmem %s1, %s314
      %p316 = pneg %p81
      %p317 = pneg %p78
      %p318 = pneg %p102
      %p319 = pneg %p99
      %p320 = pneg %p123
      %p321 = pneg %p120
      %p322 = pneg %p144
      %p323 = pneg %p141
      %p324 = pneg %p165
      %p325 = pneg %p162
      %p326 = pneg %p186
      %p327 = pneg %p183
      %p328 = pneg %p214
      %p329 = pneg %p211
      %s330 = smul.u32 8, %s25
      %p331 = scmp.lt.s32.totalorder %s24, 1
      %s332 = scalar_select %p331, %s24, 1
      %p333 = scmp.lt.s32.totalorder %s330, 7
      %s334 = scalar_select %p333, %s330, 7
      %s335 = smul.addr %s332, 8
      %s336 = sadd.s32 %s334, %s335
      %s337 = smul.addr %s336, 4
      %s338 = scalar_lea.vmem %s7, %s337
      %p339 = pneg %p240
      %p340 = pneg %p237
      %p341 = scmp.lt.s32.totalorder %s24, 1
      %s342 = scalar_select %p341, %s24, 1
      %s343 = smul.addr %s342, 8
      %s344 = scalar_lea.vmem %s8, %s343
      %s345 = smul.u32 8, %s25
      %p346 = scmp.lt.s32.totalorder %s24, 1
      %s347 = scalar_select %p346, %s24, 1
      %p348 = scmp.lt.s32.totalorder %s345, 7
      %s349 = scalar_select %p348, %s345, 7
      %s350 = smul.addr %s347, 8
      %s351 = sadd.s32 %s349, %s350
      %s352 = smul.addr %s351, 8
      %s353 = scalar_lea.vmem %s0, %s352
      %s354 = smul.u32 8, %s25
      %p355 = scmp.lt.s32.totalorder %s24, 1
      %s356 = scalar_select %p355, %s24, 1
      %s357 = smul.addr %s356, 4
      %s358 = scalar_lea.vmem %s1, %s357
      %s359 = smul.u32 8, %s25
      %p360 = scmp.lt.s32.totalorder %s24, 1
      %s361 = scalar_select %p360, %s24, 1
      %p362 = scmp.lt.s32.totalorder %s359, 7
      %s363 = scalar_select %p362, %s359, 7
      %s364 = smul.addr %s361, 8
      %s365 = sadd.s32 %s363, %s364
      %s366 = smul.addr %s365, 4
      %s367 = scalar_lea.vmem %s7, %s366
      %s368 = smul.u32 8, %s25
      %p369 = scmp.lt.s32.totalorder %s24, 1
      %s370 = scalar_select %p369, %s24, 1
      %s371 = smul.addr %s370, 8
      %s372 = scalar_lea.vmem %s8, %s371
      %v374 = vld [vmem:[%s353] sm:$0xff]
      %v375 = vld [vmem:[%s353 + $0x8] sm:$0xff]
      %v376 = vld [vmem:[%s353 + $0x10] sm:$0xff]
      %v377 = vld [vmem:[%s353 + $0x18] sm:$0xff]
      %v378 = vld [vmem:[%s353 + $0x20] sm:$0xff]
      %v379 = vld [vmem:[%s353 + $0x28] sm:$0xff]
      %v380 = vld [vmem:[%s353 + $0x30] sm:$0xff]
      %v381 = vld [vmem:[%s353 + $0x38] sm:$0xff]
      %v382 = vld [vmem:[%s358] sm:$0x7]
      %v383 = vld [vmem:[%s2] sm:$0x1]
      %v385 = vlaneseq
      %v386 = vshrl.u32 %v385, 7
      %v387 = vsub.s32 0, %v386
      %v388 = vrot.slane %v383, %v387
      %vm390 = vcmask 23552
      %v392 = vsel %vm390, %v374, 0
      %v395 = vsel %vm390, %v375, 0
      %v398 = vsel %vm390, %v376, 0
      %v401 = vsel %vm390, %v377, 0
      %v404 = vsel %vm390, %v378, 0
      %v407 = vsel %vm390, %v379, 0
      %v410 = vsel %vm390, %v380, 0
      %v413 = vsel %vm390, %v381, 0
      %vm415 = vcmask 1042432
      %v417 = vsel %vm415, %v382, 0
      %419 = vmatprep.subr.mxu0 0.0
      %420 = vmatpush1.msra.mxu0 %v417
      %421 = vmatprep.subr.mxu0 0.0
      %422 = vmatpush1.msra.mxu0 0.0
      %423 = vmatprep.subr.mxu0 0.0
      %424 = vmatpush1.msra.mxu0 0.0
      %425 = vmatprep.subr.mxu0 0.0
      %426 = vmatpush1.msra.mxu0 0.0
      %427 = vmatprep.subr.mxu0 0.0
      %428 = vmatpush1.msra.mxu0 0.0
      %429 = vmatprep.subr.mxu0 0.0
      %430 = vmatpush1.msra.mxu0 0.0
      %431 = vmatprep.subr.mxu0 0.0
      %432 = vmatpush1.msra.mxu0 0.0
      %433 = vmatprep.subr.mxu0 0.0
      %434 = vmatpush1.msra.mxu0 0.0
      %435 = vmatprep.subr.mxu0 0.0
      %436 = vmatpush1.msra.mxu0 0.0
      %437 = vmatprep.subr.mxu0 0.0
      %438 = vmatpush1.msra.mxu0 0.0
      %439 = vmatprep.subr.mxu0 0.0
      %440 = vmatpush1.msra.mxu0 0.0
      %441 = vmatprep.subr.mxu0 0.0
      %442 = vmatpush1.msra.mxu0 0.0
      %443 = vmatprep.subr.mxu0 0.0
      %444 = vmatpush1.msra.mxu0 0.0
      %445 = vmatprep.subr.mxu0 0.0
      %446 = vmatpush1.msra.mxu0 0.0
      %447 = vmatprep.subr.mxu0 0.0
      %448 = vmatpush1.msra.mxu0 0.0
      %449 = vmatprep.subr.mxu0 0.0
      %450 = vmatpush1.msra.mxu0 0.0
      %451 = vmatprep.subr.mxu0 0.0
      %452 = vmatpush1.msra.mxu0 0.0
      %453 = vmatprep.subr.mxu0 0.0
      %454 = vmatpush1.msra.mxu0 0.0
      %455 = vmatprep.subr.mxu0 0.0
      %456 = vmatpush1.msra.mxu0 0.0
      %457 = vmatprep.subr.mxu0 0.0
      %458 = vmatpush1.msra.mxu0 0.0
      %459 = vmatprep.subr.mxu0 0.0
      %460 = vmatpush1.msra.mxu0 0.0
      %461 = vmatprep.subr.mxu0 0.0
      %462 = vmatpush1.msra.mxu0 0.0
      %463 = vmatprep.subr.mxu0 0.0
      %464 = vmatpush1.msra.mxu0 0.0
      %465 = vmatprep.subr.mxu0 0.0
      %466 = vmatpush1.msra.mxu0 0.0
      %467 = vmatprep.subr.mxu0 0.0
      %468 = vmatpush1.msra.mxu0 0.0
      %469 = vmatprep.subr.mxu0 0.0
      %470 = vmatpush1.msra.mxu0 0.0
      %471 = vmatprep.subr.mxu0 0.0
      %472 = vmatpush1.msra.mxu0 0.0
      %473 = vmatprep.subr.mxu0 0.0
      %474 = vmatpush1.msra.mxu0 0.0
      %475 = vmatprep.subr.mxu0 0.0
      %476 = vmatpush1.msra.mxu0 0.0
      %477 = vmatprep.subr.mxu0 0.0
      %478 = vmatpush1.msra.mxu0 0.0
      %479 = vmatprep.subr.mxu0 0.0
      %480 = vmatpush1.msra.mxu0 0.0
      %481 = vmatprep.subr.mxu0 0.0
      %482 = vmatpush1.msra.mxu0 0.0
      %483 = vmatprep.mubr.f32.mxu0 0.0
      %484 = vmatmul.mubr.f32.gmra.mrb[0].mxu0 %v392
      %v485 = vpop.f32.mrb[0].mxu0
      %v486 = vadd.f32 %v388, %v485
      %v487 = vpop.f32.mrb[0].mxu0
      %488 = vmatprep.mubr.f32.mxu0 0.0
      %489 = vmatmul.mubr.f32.gmra.mrb[0].mxu0 %v395
      %v490 = vpop.f32.mrb[0].mxu0
      %v491 = vadd.f32 %v388, %v490
      %v492 = vpop.f32.mrb[0].mxu0
      %493 = vmatprep.mubr.f32.mxu0 0.0
      %494 = vmatmul.mubr.f32.gmra.mrb[0].mxu0 %v398
      %v495 = vpop.f32.mrb[0].mxu0
      %v496 = vadd.f32 %v388, %v495
      %v497 = vpop.f32.mrb[0].mxu0
      %498 = vmatprep.mubr.f32.mxu0 0.0
      %499 = vmatmul.mubr.f32.gmra.mrb[0].mxu0 %v401
      %v500 = vpop.f32.mrb[0].mxu0
      %v501 = vadd.f32 %v388, %v500
      %v502 = vpop.f32.mrb[0].mxu0
      %503 = vmatprep.mubr.f32.mxu0 0.0
      %504 = vmatmul.mubr.f32.gmra.mrb[0].mxu0 %v404
      %v505 = vpop.f32.mrb[0].mxu0
      %v506 = vadd.f32 %v388, %v505
      %v507 = vpop.f32.mrb[0].mxu0
      %508 = vmatprep.mubr.f32.mxu0 0.0
      %509 = vmatmul.mubr.f32.gmra.mrb[0].mxu0 %v407
      %v510 = vpop.f32.mrb[0].mxu0
      %v511 = vadd.f32 %v388, %v510
      %v512 = vpop.f32.mrb[0].mxu0
      %513 = vmatprep.mubr.f32.mxu0 0.0
      %514 = vmatmul.mubr.f32.gmra.mrb[0].mxu0 %v410
      %v515 = vpop.f32.mrb[0].mxu0
      %v516 = vadd.f32 %v388, %v515
      %v517 = vpop.f32.mrb[0].mxu0
      %518 = vmatprep.mubr.f32.mxu0 0.0
      %519 = vmatmul.mubr.f32.gmra.mrb[0].mxu0 %v413
      %v520 = vpop.f32.mrb[0].mxu0
      %v521 = vadd.f32 %v388, %v520
      %v522 = vpop.f32.mrb[0].mxu0
      %523 = vdwg.mxu0
      %v524 = vmax.f32 %v486, 0.0
      %v525 = vmax.f32 %v491, 0.0
      %v526 = vmax.f32 %v496, 0.0
      %v527 = vmax.f32 %v501, 0.0
      %v528 = vmax.f32 %v506, 0.0
      %v529 = vmax.f32 %v511, 0.0
      %v530 = vmax.f32 %v516, 0.0
      %v531 = vmax.f32 %v521, 0.0
      %v532 = vpack.c.bf16 %v525, %v524
      %v533 = vpack.c.bf16 %v527, %v526
      %v534 = vpack.c.bf16 %v529, %v528
      %v535 = vpack.c.bf16 %v531, %v530
      %v540 = vunpack.c.l.b16 %v532
      %v541 = vunpack.c.h.b16 %v532
      %v542 = vunpack.c.l.b16 %v533
      %v543 = vunpack.c.h.b16 %v533
      %v544 = vunpack.c.l.b16 %v534
      %v545 = vunpack.c.h.b16 %v534
      %v546 = vunpack.c.l.b16 %v535
      %v547 = vunpack.c.h.b16 %v535
      %v548 = vpack.c.b16 %v540, %v540
      %v549 = vpack.c.b16 %v541, %v541
      %v550 = vpack.c.b16 %v542, %v542
      %v551 = vpack.c.b16 %v543, %v543
      %v552 = vpack.c.b16 %v544, %v544
      %v553 = vpack.c.b16 %v545, %v545
      %v554 = vpack.c.b16 %v546, %v546
      %v555 = vpack.c.b16 %v547, %v547
      %vm564 = vcmask 519168
      %565 = vst.msk [vmem:[%s367] sm:$0xf] %vm564, %v548
      %566 = vst.msk [vmem:[%s367 + $0x4] sm:$0xf] %vm564, %v549
      %567 = vst.msk [vmem:[%s367 + $0x8] sm:$0xf] %vm564, %v550
      %568 = vst.msk [vmem:[%s367 + $0xc] sm:$0xf] %vm564, %v551
      %569 = vst.msk [vmem:[%s367 + $0x10] sm:$0xf] %vm564, %v552
      %570 = vst.msk [vmem:[%s367 + $0x14] sm:$0xf] %vm564, %v553
      %571 = vst.msk [vmem:[%s367 + $0x18] sm:$0xf] %vm564, %v554
      %572 = vst.msk [vmem:[%s367 + $0x1c] sm:$0xf] %vm564, %v555
      %v573 = vld [vmem:[%s3] sm:$0xf]
      %v574 = vld [vmem:[%s3 + $0x4] sm:$0xf]
      %v575 = vld [vmem:[%s3 + $0x8] sm:$0xf]
      %v576 = vld [vmem:[%s3 + $0xc] sm:$0xf]
      %v577 = vld [vmem:[%s3 + $0x10] sm:$0xf]
      %v578 = vld [vmem:[%s3 + $0x14] sm:$0xf]
      %v579 = vld [vmem:[%s3 + $0x18] sm:$0xf]
      %v580 = vld [vmem:[%s3 + $0x1c] sm:$0xf]
      %v581 = vld [vmem:[%s4] sm:$0x1]
      %v583 = vlaneseq
      %v584 = vshrl.u32 %v583, 7
      %v585 = vsub.s32 0, %v584
      %v586 = vrot.slane %v581, %v585
      %v596 = vunpack.c.l.b16 %v573
      %v597 = vunpack.c.l.b16 %v574
      %v598 = vunpack.c.l.b16 %v575
      %v599 = vunpack.c.l.b16 %v576
      %v600 = vunpack.c.l.b16 %v577
      %v601 = vunpack.c.l.b16 %v578
      %v602 = vunpack.c.l.b16 %v579
      %v603 = vunpack.c.l.b16 %v580
      %v604 = vpack.c.b16 %v597, %v596
      %v605 = vpack.c.b16 %v599, %v598
      %v606 = vpack.c.b16 %v601, %v600
      %v607 = vpack.c.b16 %v603, %v602
      %vm612 = vcmask 523264
      %v614 = vsel %vm612, %v532, 0
      %v617 = vsel %vm612, %v533, 0
      %v620 = vsel %vm612, %v534, 0
      %v623 = vsel %vm612, %v535, 0
      %625 = vmatprep.subr.bf16.mxu0 0
      %626 = vmatpush1.bf16.msra.mxu0 %v604
      %627 = vmatprep.subr.bf16.mxu0 0
      %628 = vmatpush1.bf16.msra.mxu0 %v605
      %629 = vmatprep.subr.bf16.mxu0 0
      %630 = vmatpush1.bf16.msra.mxu0 %v606
      %631 = vmatprep.subr.bf16.mxu0 0
      %632 = vmatpush1.bf16.msra.mxu0 %v607
      %633 = vmatprep.subr.bf16.mxu0 0
      %634 = vmatpush1.bf16.msra.mxu0 0
      %635 = vmatprep.subr.bf16.mxu0 0
      %636 = vmatpush1.bf16.msra.mxu0 0
      %637 = vmatprep.subr.bf16.mxu0 0
      %638 = vmatpush1.bf16.msra.mxu0 0
      %639 = vmatprep.subr.bf16.mxu0 0
      %640 = vmatpush1.bf16.msra.mxu0 0
      %641 = vmatprep.subr.bf16.mxu0 0
      %642 = vmatpush1.bf16.msra.mxu0 0
      %643 = vmatprep.subr.bf16.mxu0 0
      %644 = vmatpush1.bf16.msra.mxu0 0
      %645 = vmatprep.subr.bf16.mxu0 0
      %646 = vmatpush1.bf16.msra.mxu0 0
      %647 = vmatprep.subr.bf16.mxu0 0
      %648 = vmatpush1.bf16.msra.mxu0 0
      %649 = vmatprep.subr.bf16.mxu0 0
      %650 = vmatpush1.bf16.msra.mxu0 0
      %651 = vmatprep.subr.bf16.mxu0 0
      %652 = vmatpush1.bf16.msra.mxu0 0
      %653 = vmatprep.subr.bf16.mxu0 0
      %654 = vmatpush1.bf16.msra.mxu0 0
      %655 = vmatprep.subr.bf16.mxu0 0
      %656 = vmatpush1.bf16.msra.mxu0 0
      %657 = vmatprep.mubr.bf16.mxu0 0
      %658 = vmatmul.mubr.bf16.gmra.mrb[0].mxu0 %v614
      %v659 = vpop.f32.mrb[0].mxu0
      %v660 = vadd.f32 %v586, %v659
      %v661 = vpop.f32.mrb[0].mxu0
      %v662 = vpop.f32.mrb[0].mxu0
      %v663 = vadd.f32 %v586, %v662
      %v664 = vpop.f32.mrb[0].mxu0
      %665 = vmatprep.mubr.bf16.mxu0 0
      %666 = vmatmul.mubr.bf16.gmra.mrb[0].mxu0 %v617
      %v667 = vpop.f32.mrb[0].mxu0
      %v668 = vadd.f32 %v586, %v667
      %v669 = vpop.f32.mrb[0].mxu0
      %v670 = vpop.f32.mrb[0].mxu0
      %v671 = vadd.f32 %v586, %v670
      %v672 = vpop.f32.mrb[0].mxu0
      %673 = vmatprep.mubr.bf16.mxu0 0
      %674 = vmatmul.mubr.bf16.gmra.mrb[0].mxu0 %v620
      %v675 = vpop.f32.mrb[0].mxu0
      %v676 = vadd.f32 %v586, %v675
      %v677 = vpop.f32.mrb[0].mxu0
      %v678 = vpop.f32.mrb[0].mxu0
      %v679 = vadd.f32 %v586, %v678
      %v680 = vpop.f32.mrb[0].mxu0
      %681 = vmatprep.mubr.bf16.mxu0 0
      %682 = vmatmul.mubr.bf16.gmra.mrb[0].mxu0 %v623
      %v683 = vpop.f32.mrb[0].mxu0
      %v684 = vadd.f32 %v586, %v683
      %v685 = vpop.f32.mrb[0].mxu0
      %v686 = vpop.f32.mrb[0].mxu0
      %v687 = vadd.f32 %v586, %v686
      %v688 = vpop.f32.mrb[0].mxu0
      %689 = vdwg.mxu0
      %v690 = vmax.f32 %v660, 0.0
      %v691 = vmax.f32 %v663, 0.0
      %v692 = vmax.f32 %v668, 0.0
      %v693 = vmax.f32 %v671, 0.0
      %v694 = vmax.f32 %v676, 0.0
      %v695 = vmax.f32 %v679, 0.0
      %v696 = vmax.f32 %v684, 0.0
      %v697 = vmax.f32 %v687, 0.0
      %v698 = vpack.c.bf16 %v691, %v690
      %v699 = vpack.c.bf16 %v693, %v692
      %v700 = vpack.c.bf16 %v695, %v694
      %v701 = vpack.c.bf16 %v697, %v696
      %v702 = vld [vmem:[%s5] sm:$0xff]
      %v703 = vld [vmem:[%s5 + $0x8] sm:$0xff]
      %v704 = vld [vmem:[%s5 + $0x10] sm:$0xff]
      %v705 = vld [vmem:[%s5 + $0x18] sm:$0xff]
      %v706 = vld [vmem:[%s5 + $0x20] sm:$0xff]
      %v707 = vld [vmem:[%s5 + $0x28] sm:$0xff]
      %v708 = vld [vmem:[%s5 + $0x30] sm:$0xff]
      %v709 = vld [vmem:[%s5 + $0x38] sm:$0xff]
      %v710 = vld [vmem:[%s5 + $0x40] sm:$0xff]
      %v711 = vld [vmem:[%s5 + $0x48] sm:$0xff]
      %v712 = vld [vmem:[%s5 + $0x50] sm:$0xff]
      %v713 = vld [vmem:[%s5 + $0x58] sm:$0xff]
      %v714 = vld [vmem:[%s5 + $0x60] sm:$0xff]
      %v715 = vld [vmem:[%s5 + $0x68] sm:$0xff]
      %v716 = vld [vmem:[%s5 + $0x70] sm:$0xff]
      %v717 = vld [vmem:[%s5 + $0x78] sm:$0xff]
      %v718 = vld [vmem:[%s5 + $0x80] sm:$0xff]
      %v719 = vld [vmem:[%s5 + $0x88] sm:$0xff]
      %v720 = vld [vmem:[%s5 + $0x90] sm:$0xff]
      %v721 = vld [vmem:[%s5 + $0x98] sm:$0xff]
      %v722 = vld [vmem:[%s5 + $0xa0] sm:$0xff]
      %v723 = vld [vmem:[%s5 + $0xa8] sm:$0xff]
      %v724 = vld [vmem:[%s5 + $0xb0] sm:$0xff]
      %v725 = vld [vmem:[%s5 + $0xb8] sm:$0xff]
      %v726 = vld [vmem:[%s5 + $0xc0] sm:$0xff]
      %v727 = vld [vmem:[%s5 + $0xc8] sm:$0xff]
      %v728 = vld [vmem:[%s5 + $0xd0] sm:$0xff]
      %v729 = vld [vmem:[%s5 + $0xd8] sm:$0xff]
      %v730 = vld [vmem:[%s5 + $0xe0] sm:$0xff]
      %v731 = vld [vmem:[%s5 + $0xe8] sm:$0xff]
      %v732 = vld [vmem:[%s5 + $0xf0] sm:$0xff]
      %v733 = vld [vmem:[%s5 + $0xf8] sm:$0xff]
      %v734 = vld [vmem:[%s5 + $0x100] sm:$0xff]
      %v735 = vld [vmem:[%s5 + $0x108] sm:$0xff]
      %v736 = vld [vmem:[%s5 + $0x110] sm:$0xff]
      %v737 = vld [vmem:[%s5 + $0x118] sm:$0xff]
      %v738 = vld [vmem:[%s5 + $0x120] sm:$0xff]
      %v739 = vld [vmem:[%s5 + $0x128] sm:$0xff]
      %v740 = vld [vmem:[%s5 + $0x130] sm:$0xff]
      %v741 = vld [vmem:[%s5 + $0x138] sm:$0xff]
      %v742 = vld [vmem:[%s5 + $0x140] sm:$0xff]
      %v743 = vld [vmem:[%s5 + $0x148] sm:$0xff]
      %v744 = vld [vmem:[%s5 + $0x150] sm:$0xff]
      %v745 = vld [vmem:[%s5 + $0x158] sm:$0xff]
      %v746 = vld [vmem:[%s5 + $0x160] sm:$0xff]
      %v747 = vld [vmem:[%s5 + $0x168] sm:$0xff]
      %v748 = vld [vmem:[%s5 + $0x170] sm:$0xff]
      %v749 = vld [vmem:[%s5 + $0x178] sm:$0xff]
      %v750 = vld [vmem:[%s5 + $0x180] sm:$0xff]
      %v751 = vld [vmem:[%s5 + $0x188] sm:$0xff]
      %v752 = vld [vmem:[%s5 + $0x190] sm:$0xff]
      %v753 = vld [vmem:[%s5 + $0x198] sm:$0xff]
      %v754 = vld [vmem:[%s5 + $0x1a0] sm:$0xff]
      %v755 = vld [vmem:[%s5 + $0x1a8] sm:$0xff]
      %v756 = vld [vmem:[%s5 + $0x1b0] sm:$0xff]
      %v757 = vld [vmem:[%s5 + $0x1b8] sm:$0xff]
      %v758 = vld [vmem:[%s5 + $0x1c0] sm:$0xff]
      %v759 = vld [vmem:[%s5 + $0x1c8] sm:$0xff]
      %v760 = vld [vmem:[%s5 + $0x1d0] sm:$0xff]
      %v761 = vld [vmem:[%s5 + $0x1d8] sm:$0xff]
      %v762 = vld [vmem:[%s5 + $0x1e0] sm:$0xff]
      %v763 = vld [vmem:[%s5 + $0x1e8] sm:$0xff]
      %v764 = vld [vmem:[%s5 + $0x1f0] sm:$0xff]
      %v765 = vld [vmem:[%s5 + $0x1f8] sm:$0xff]
      %v766 = vld [vmem:[%s6] sm:$0xff]
      %v768 = vlaneseq
      %v769 = vshrl.u32 %v768, 7
      %v770 = vsub.s32 0, %v769
      %v771 = vrot.slane %v766, %v770
      %v772 = vlaneseq
      %v773 = vshrl.u32 %v772, 7
      %v774 = vsub.s32 1, %v773
      %v775 = vrot.slane %v766, %v774
      %v776 = vlaneseq
      %v777 = vshrl.u32 %v776, 7
      %v778 = vsub.s32 2, %v777
      %v779 = vrot.slane %v766, %v778
      %v780 = vlaneseq
      %v781 = vshrl.u32 %v780, 7
      %v782 = vsub.s32 3, %v781
      %v783 = vrot.slane %v766, %v782
      %v784 = vlaneseq
      %v785 = vshrl.u32 %v784, 7
      %v786 = vsub.s32 4, %v785
      %v787 = vrot.slane %v766, %v786
      %v788 = vlaneseq
      %v789 = vshrl.u32 %v788, 7
      %v790 = vsub.s32 5, %v789
      %v791 = vrot.slane %v766, %v790
      %v792 = vlaneseq
      %v793 = vshrl.u32 %v792, 7
      %v794 = vsub.s32 6, %v793
      %v795 = vrot.slane %v766, %v794
      %v796 = vlaneseq
      %v797 = vshrl.u32 %v796, 7
      %v798 = vsub.s32 7, %v797
      %v799 = vrot.slane %v766, %v798
      %v872 = vunpack.c.l.b16 %v702
      %v873 = vunpack.c.h.b16 %v702
      %v874 = vunpack.c.l.b16 %v703
      %v875 = vunpack.c.h.b16 %v703
      %v876 = vunpack.c.l.b16 %v704
      %v877 = vunpack.c.h.b16 %v704
      %v878 = vunpack.c.l.b16 %v705
      %v879 = vunpack.c.h.b16 %v705
      %v880 = vunpack.c.l.b16 %v706
      %v881 = vunpack.c.h.b16 %v706
      %v882 = vunpack.c.l.b16 %v707
      %v883 = vunpack.c.h.b16 %v707
      %v884 = vunpack.c.l.b16 %v708
      %v885 = vunpack.c.h.b16 %v708
      %v886 = vunpack.c.l.b16 %v709
      %v887 = vunpack.c.h.b16 %v709
      %v888 = vunpack.c.l.b16 %v710
      %v889 = vunpack.c.h.b16 %v710
      %v890 = vunpack.c.l.b16 %v711
      %v891 = vunpack.c.h.b16 %v711
      %v892 = vunpack.c.l.b16 %v712
      %v893 = vunpack.c.h.b16 %v712
      %v894 = vunpack.c.l.b16 %v713
      %v895 = vunpack.c.h.b16 %v713
      %v896 = vunpack.c.l.b16 %v714
      %v897 = vunpack.c.h.b16 %v714
      %v898 = vunpack.c.l.b16 %v715
      %v899 = vunpack.c.h.b16 %v715
      %v900 = vunpack.c.l.b16 %v716
      %v901 = vunpack.c.h.b16 %v716
      %v902 = vunpack.c.l.b16 %v717
      %v903 = vunpack.c.h.b16 %v717
      %v904 = vunpack.c.l.b16 %v718
      %v905 = vunpack.c.h.b16 %v718
      %v906 = vunpack.c.l.b16 %v719
      %v907 = vunpack.c.h.b16 %v719
      %v908 = vunpack.c.l.b16 %v720
      %v909 = vunpack.c.h.b16 %v720
      %v910 = vunpack.c.l.b16 %v721
      %v911 = vunpack.c.h.b16 %v721
      %v912 = vunpack.c.l.b16 %v722
      %v913 = vunpack.c.h.b16 %v722
      %v914 = vunpack.c.l.b16 %v723
      %v915 = vunpack.c.h.b16 %v723
      %v916 = vunpack.c.l.b16 %v724
      %v917 = vunpack.c.h.b16 %v724
      %v918 = vunpack.c.l.b16 %v725
      %v919 = vunpack.c.h.b16 %v725
      %v920 = vunpack.c.l.b16 %v726
      %v921 = vunpack.c.h.b16 %v726
      %v922 = vunpack.c.l.b16 %v727
      %v923 = vunpack.c.h.b16 %v727
      %v924 = vunpack.c.l.b16 %v728
      %v925 = vunpack.c.h.b16 %v728
      %v926 = vunpack.c.l.b16 %v729
      %v927 = vunpack.c.h.b16 %v729
      %v928 = vunpack.c.l.b16 %v730
      %v929 = vunpack.c.h.b16 %v730
      %v930 = vunpack.c.l.b16 %v731
      %v931 = vunpack.c.h.b16 %v731
      %v932 = vunpack.c.l.b16 %v732
      %v933 = vunpack.c.h.b16 %v732
      %v934 = vunpack.c.l.b16 %v733
      %v935 = vunpack.c.h.b16 %v733
      %v936 = vunpack.c.l.b16 %v734
      %v937 = vunpack.c.h.b16 %v734
      %v938 = vunpack.c.l.b16 %v735
      %v939 = vunpack.c.h.b16 %v735
      %v940 = vunpack.c.l.b16 %v736
      %v941 = vunpack.c.h.b16 %v736
      %v942 = vunpack.c.l.b16 %v737
      %v943 = vunpack.c.h.b16 %v737
      %v944 = vunpack.c.l.b16 %v738
      %v945 = vunpack.c.h.b16 %v738
      %v946 = vunpack.c.l.b16 %v739
      %v947 = vunpack.c.h.b16 %v739
      %v948 = vunpack.c.l.b16 %v740
      %v949 = vunpack.c.h.b16 %v740
      %v950 = vunpack.c.l.b16 %v741
      %v951 = vunpack.c.h.b16 %v741
      %v952 = vunpack.c.l.b16 %v742
      %v953 = vunpack.c.h.b16 %v742
      %v954 = vunpack.c.l.b16 %v743
      %v955 = vunpack.c.h.b16 %v743
      %v956 = vunpack.c.l.b16 %v744
      %v957 = vunpack.c.h.b16 %v744
      %v958 = vunpack.c.l.b16 %v745
      %v959 = vunpack.c.h.b16 %v745
      %v960 = vunpack.c.l.b16 %v746
      %v961 = vunpack.c.h.b16 %v746
      %v962 = vunpack.c.l.b16 %v747
      %v963 = vunpack.c.h.b16 %v747
      %v964 = vunpack.c.l.b16 %v748
      %v965 = vunpack.c.h.b16 %v748
      %v966 = vunpack.c.l.b16 %v749
      %v967 = vunpack.c.h.b16 %v749
      %v968 = vunpack.c.l.b16 %v750
      %v969 = vunpack.c.h.b16 %v750
      %v970 = vunpack.c.l.b16 %v751
      %v971 = vunpack.c.h.b16 %v751
      %v972 = vunpack.c.l.b16 %v752
      %v973 = vunpack.c.h.b16 %v752
      %v974 = vunpack.c.l.b16 %v753
      %v975 = vunpack.c.h.b16 %v753
      %v976 = vunpack.c.l.b16 %v754
      %v977 = vunpack.c.h.b16 %v754
      %v978 = vunpack.c.l.b16 %v755
      %v979 = vunpack.c.h.b16 %v755
      %v980 = vunpack.c.l.b16 %v756
      %v981 = vunpack.c.h.b16 %v756
      %v982 = vunpack.c.l.b16 %v757
      %v983 = vunpack.c.h.b16 %v757
      %v984 = vunpack.c.l.b16 %v758
      %v985 = vunpack.c.h.b16 %v758
      %v986 = vunpack.c.l.b16 %v759
      %v987 = vunpack.c.h.b16 %v759
      %v988 = vunpack.c.l.b16 %v760
      %v989 = vunpack.c.h.b16 %v760
      %v990 = vunpack.c.l.b16 %v761
      %v991 = vunpack.c.h.b16 %v761
      %v992 = vunpack.c.l.b16 %v762
      %v993 = vunpack.c.h.b16 %v762
      %v994 = vunpack.c.l.b16 %v763
      %v995 = vunpack.c.h.b16 %v763
      %v996 = vunpack.c.l.b16 %v764
      %v997 = vunpack.c.h.b16 %v764
      %v998 = vunpack.c.l.b16 %v765
      %v999 = vunpack.c.h.b16 %v765
      %v1000 = vpack.c.b16 %v880, %v872
      %v1001 = vpack.c.b16 %v881, %v873
      %v1002 = vpack.c.b16 %v882, %v874
      %v1003 = vpack.c.b16 %v883, %v875
      %v1004 = vpack.c.b16 %v884, %v876
      %v1005 = vpack.c.b16 %v885, %v877
      %v1006 = vpack.c.b16 %v886, %v878
      %v1007 = vpack.c.b16 %v887, %v879
      %v1008 = vpack.c.b16 %v896, %v888
      %v1009 = vpack.c.b16 %v897, %v889
      %v1010 = vpack.c.b16 %v898, %v890
      %v1011 = vpack.c.b16 %v899, %v891
      %v1012 = vpack.c.b16 %v900, %v892
      %v1013 = vpack.c.b16 %v901, %v893
      %v1014 = vpack.c.b16 %v902, %v894
      %v1015 = vpack.c.b16 %v903, %v895
      %v1016 = vpack.c.b16 %v912, %v904
      %v1017 = vpack.c.b16 %v913, %v905
      %v1018 = vpack.c.b16 %v914, %v906
      %v1019 = vpack.c.b16 %v915, %v907
      %v1020 = vpack.c.b16 %v916, %v908
      %v1021 = vpack.c.b16 %v917, %v909
      %v1022 = vpack.c.b16 %v918, %v910
      %v1023 = vpack.c.b16 %v919, %v911
      %v1024 = vpack.c.b16 %v928, %v920
      %v1025 = vpack.c.b16 %v929, %v921
      %v1026 = vpack.c.b16 %v930, %v922
      %v1027 = vpack.c.b16 %v931, %v923
      %v1028 = vpack.c.b16 %v932, %v924
      %v1029 = vpack.c.b16 %v933, %v925
      %v1030 = vpack.c.b16 %v934, %v926
      %v1031 = vpack.c.b16 %v935, %v927
      %v1032 = vpack.c.b16 %v944, %v936
      %v1033 = vpack.c.b16 %v945, %v937
      %v1034 = vpack.c.b16 %v946, %v938
      %v1035 = vpack.c.b16 %v947, %v939
      %v1036 = vpack.c.b16 %v948, %v940
      %v1037 = vpack.c.b16 %v949, %v941
      %v1038 = vpack.c.b16 %v950, %v942
      %v1039 = vpack.c.b16 %v951, %v943
      %v1040 = vpack.c.b16 %v960, %v952
      %v1041 = vpack.c.b16 %v961, %v953
      %v1042 = vpack.c.b16 %v962, %v954
      %v1043 = vpack.c.b16 %v963, %v955
      %v1044 = vpack.c.b16 %v964, %v956
      %v1045 = vpack.c.b16 %v965, %v957
      %v1046 = vpack.c.b16 %v966, %v958
      %v1047 = vpack.c.b16 %v967, %v959
      %v1048 = vpack.c.b16 %v976, %v968
      %v1049 = vpack.c.b16 %v977, %v969
      %v1050 = vpack.c.b16 %v978, %v970
      %v1051 = vpack.c.b16 %v979, %v971
      %v1052 = vpack.c.b16 %v980, %v972
      %v1053 = vpack.c.b16 %v981, %v973
      %v1054 = vpack.c.b16 %v982, %v974
      %v1055 = vpack.c.b16 %v983, %v975
      %v1056 = vpack.c.b16 %v992, %v984
      %v1057 = vpack.c.b16 %v993, %v985
      %v1058 = vpack.c.b16 %v994, %v986
      %v1059 = vpack.c.b16 %v995, %v987
      %v1060 = vpack.c.b16 %v996, %v988
      %v1061 = vpack.c.b16 %v997, %v989
      %v1062 = vpack.c.b16 %v998, %v990
      %v1063 = vpack.c.b16 %v999, %v991
      %1128 = vmatprep.subr.bf16.mxu0 %v1001
      %1129 = vmatpush1.bf16.msra.mxu0 %v1000
      %1130 = vmatprep.subr.bf16.mxu0 %v1009
      %1131 = vmatpush1.bf16.msra.mxu0 %v1008
      %1132 = vmatprep.subr.bf16.mxu0 %v1017
      %1133 = vmatpush1.bf16.msra.mxu0 %v1016
      %1134 = vmatprep.subr.bf16.mxu0 %v1025
      %1135 = vmatpush1.bf16.msra.mxu0 %v1024
      %1136 = vmatprep.subr.bf16.mxu0 %v1033
      %1137 = vmatpush1.bf16.msra.mxu0 %v1032
      %1138 = vmatprep.subr.bf16.mxu0 %v1041
      %1139 = vmatpush1.bf16.msra.mxu0 %v1040
      %1140 = vmatprep.subr.bf16.mxu0 %v1049
      %1141 = vmatpush1.bf16.msra.mxu0 %v1048
      %1142 = vmatprep.subr.bf16.mxu0 %v1057
      %1143 = vmatpush1.bf16.msra.mxu0 %v1056
      %1144 = vmatprep.subr.bf16.mxu0 0
      %1145 = vmatpush1.bf16.msra.mxu0 0
      %1146 = vmatprep.subr.bf16.mxu0 0
      %1147 = vmatpush1.bf16.msra.mxu0 0
      %1148 = vmatprep.subr.bf16.mxu0 0
      %1149 = vmatpush1.bf16.msra.mxu0 0
      %1150 = vmatprep.subr.bf16.mxu0 0
      %1151 = vmatpush1.bf16.msra.mxu0 0
      %1152 = vmatprep.subr.bf16.mxu0 0
      %1153 = vmatpush1.bf16.msra.mxu0 0
      %1154 = vmatprep.subr.bf16.mxu0 0
      %1155 = vmatpush1.bf16.msra.mxu0 0
      %1156 = vmatprep.subr.bf16.mxu0 0
      %1157 = vmatpush1.bf16.msra.mxu0 0
      %1158 = vmatprep.subr.bf16.mxu0 0
      %1159 = vmatpush1.bf16.msra.mxu0 0
      %1160 = vmatprep.mubr.bf16.mxu0 0
      %1161 = vmatmul.mubr.bf16.gmra.mrb[0].mxu0 %v698
      %v1162 = vpop.f32.mrb[0].mxu0
      %v1163 = vadd.f32 %v771, %v1162
      %v1164 = vpop.f32.mrb[0].mxu0
      %v1165 = vadd.f32 %v775, %v1164
      %v1166 = vpop.f32.mrb[0].mxu0
      %v1167 = vadd.f32 %v771, %v1166
      %v1168 = vpop.f32.mrb[0].mxu0
      %v1169 = vadd.f32 %v775, %v1168
      %1170 = vmatprep.mubr.bf16.mxu0 0
      %1171 = vmatmul.mubr.bf16.gmra.mrb[0].mxu0 %v699
      %v1172 = vpop.f32.mrb[0].mxu0
      %v1173 = vadd.f32 %v771, %v1172
      %v1174 = vpop.f32.mrb[0].mxu0
      %v1175 = vadd.f32 %v775, %v1174
      %v1176 = vpop.f32.mrb[0].mxu0
      %v1177 = vadd.f32 %v771, %v1176
      %v1178 = vpop.f32.mrb[0].mxu0
      %v1179 = vadd.f32 %v775, %v1178
      %1180 = vmatprep.mubr.bf16.mxu0 0
      %1181 = vmatmul.mubr.bf16.gmra.mrb[0].mxu0 %v700
      %v1182 = vpop.f32.mrb[0].mxu0
      %v1183 = vadd.f32 %v771, %v1182
      %v1184 = vpop.f32.mrb[0].mxu0
      %v1185 = vadd.f32 %v775, %v1184
      %v1186 = vpop.f32.mrb[0].mxu0
      %v1187 = vadd.f32 %v771, %v1186
      %v1188 = vpop.f32.mrb[0].mxu0
      %v1189 = vadd.f32 %v775, %v1188
      %1190 = vmatprep.mubr.bf16.mxu0 0
      %1191 = vmatmul.mubr.bf16.gmra.mrb[0].mxu0 %v701
      %v1192 = vpop.f32.mrb[0].mxu0
      %v1193 = vadd.f32 %v771, %v1192
      %v1194 = vpop.f32.mrb[0].mxu0
      %v1195 = vadd.f32 %v775, %v1194
      %v1196 = vpop.f32.mrb[0].mxu0
      %v1197 = vadd.f32 %v771, %v1196
      %v1198 = vpop.f32.mrb[0].mxu0
      %v1199 = vadd.f32 %v775, %v1198
      %1200 = vdwg.mxu0
      %1201 = vmatprep.subr.bf16.mxu0 %v1003
      %1202 = vmatpush1.bf16.msra.mxu0 %v1002
      %1203 = vmatprep.subr.bf16.mxu0 %v1011
      %1204 = vmatpush1.bf16.msra.mxu0 %v1010
      %1205 = vmatprep.subr.bf16.mxu0 %v1019
      %1206 = vmatpush1.bf16.msra.mxu0 %v1018
      %1207 = vmatprep.subr.bf16.mxu0 %v1027
      %1208 = vmatpush1.bf16.msra.mxu0 %v1026
      %1209 = vmatprep.subr.bf16.mxu0 %v1035
      %1210 = vmatpush1.bf16.msra.mxu0 %v1034
      %1211 = vmatprep.subr.bf16.mxu0 %v1043
      %1212 = vmatpush1.bf16.msra.mxu0 %v1042
      %1213 = vmatprep.subr.bf16.mxu0 %v1051
      %1214 = vmatpush1.bf16.msra.mxu0 %v1050
      %1215 = vmatprep.subr.bf16.mxu0 %v1059
      %1216 = vmatpush1.bf16.msra.mxu0 %v1058
      %1217 = vmatprep.subr.bf16.mxu0 0
      %1218 = vmatpush1.bf16.msra.mxu0 0
      %1219 = vmatprep.subr.bf16.mxu0 0
      %1220 = vmatpush1.bf16.msra.mxu0 0
      %1221 = vmatprep.subr.bf16.mxu0 0
      %1222 = vmatpush1.bf16.msra.mxu0 0
      %1223 = vmatprep.subr.bf16.mxu0 0
      %1224 = vmatpush1.bf16.msra.mxu0 0
      %1225 = vmatprep.subr.bf16.mxu0 0
      %1226 = vmatpush1.bf16.msra.mxu0 0
      %1227 = vmatprep.subr.bf16.mxu0 0
      %1228 = vmatpush1.bf16.msra.mxu0 0
      %1229 = vmatprep.subr.bf16.mxu0 0
      %1230 = vmatpush1.bf16.msra.mxu0 0
      %1231 = vmatprep.subr.bf16.mxu0 0
      %1232 = vmatpush1.bf16.msra.mxu0 0
      %1233 = vmatprep.mubr.bf16.mxu0 0
      %1234 = vmatmul.mubr.bf16.gmra.mrb[0].mxu0 %v698
      %v1235 = vpop.f32.mrb[0].mxu0
      %v1236 = vadd.f32 %v779, %v1235
      %v1237 = vpop.f32.mrb[0].mxu0
      %v1238 = vadd.f32 %v783, %v1237
      %v1239 = vpop.f32.mrb[0].mxu0
      %v1240 = vadd.f32 %v779, %v1239
      %v1241 = vpop.f32.mrb[0].mxu0
      %v1242 = vadd.f32 %v783, %v1241
      %1243 = vmatprep.mubr.bf16.mxu0 0
      %1244 = vmatmul.mubr.bf16.gmra.mrb[0].mxu0 %v699
      %v1245 = vpop.f32.mrb[0].mxu0
      %v1246 = vadd.f32 %v779, %v1245
      %v1247 = vpop.f32.mrb[0].mxu0
      %v1248 = vadd.f32 %v783, %v1247
      %v1249 = vpop.f32.mrb[0].mxu0
      %v1250 = vadd.f32 %v779, %v1249
      %v1251 = vpop.f32.mrb[0].mxu0
      %v1252 = vadd.f32 %v783, %v1251
      %1253 = vmatprep.mubr.bf16.mxu0 0
      %1254 = vmatmul.mubr.bf16.gmra.mrb[0].mxu0 %v700
      %v1255 = vpop.f32.mrb[0].mxu0
      %v1256 = vadd.f32 %v779, %v1255
      %v1257 = vpop.f32.mrb[0].mxu0
      %v1258 = vadd.f32 %v783, %v1257
      %v1259 = vpop.f32.mrb[0].mxu0
      %v1260 = vadd.f32 %v779, %v1259
      %v1261 = vpop.f32.mrb[0].mxu0
      %v1262 = vadd.f32 %v783, %v1261
      %1263 = vmatprep.mubr.bf16.mxu0 0
      %1264 = vmatmul.mubr.bf16.gmra.mrb[0].mxu0 %v701
      %v1265 = vpop.f32.mrb[0].mxu0
      %v1266 = vadd.f32 %v779, %v1265
      %v1267 = vpop.f32.mrb[0].mxu0
      %v1268 = vadd.f32 %v783, %v1267
      %v1269 = vpop.f32.mrb[0].mxu0
      %v1270 = vadd.f32 %v779, %v1269
      %v1271 = vpop.f32.mrb[0].mxu0
      %v1272 = vadd.f32 %v783, %v1271
      %1273 = vdwg.mxu0
      %1274 = vmatprep.subr.bf16.mxu0 %v1005
      %1275 = vmatpush1.bf16.msra.mxu0 %v1004
      %1276 = vmatprep.subr.bf16.mxu0 %v1013
      %1277 = vmatpush1.bf16.msra.mxu0 %v1012
      %1278 = vmatprep.subr.bf16.mxu0 %v1021
      %1279 = vmatpush1.bf16.msra.mxu0 %v1020
      %1280 = vmatprep.subr.bf16.mxu0 %v1029
      %1281 = vmatpush1.bf16.msra.mxu0 %v1028
      %1282 = vmatprep.subr.bf16.mxu0 %v1037
      %1283 = vmatpush1.bf16.msra.mxu0 %v1036
      %1284 = vmatprep.subr.bf16.mxu0 %v1045
      %1285 = vmatpush1.bf16.msra.mxu0 %v1044
      %1286 = vmatprep.subr.bf16.mxu0 %v1053
      %1287 = vmatpush1.bf16.msra.mxu0 %v1052
      %1288 = vmatprep.subr.bf16.mxu0 %v1061
      %1289 = vmatpush1.bf16.msra.mxu0 %v1060
      %1290 = vmatprep.subr.bf16.mxu0 0
      %1291 = vmatpush1.bf16.msra.mxu0 0
      %1292 = vmatprep.subr.bf16.mxu0 0
      %1293 = vmatpush1.bf16.msra.mxu0 0
      %1294 = vmatprep.subr.bf16.mxu0 0
      %1295 = vmatpush1.bf16.msra.mxu0 0
      %1296 = vmatprep.subr.bf16.mxu0 0
      %1297 = vmatpush1.bf16.msra.mxu0 0
      %1298 = vmatprep.subr.bf16.mxu0 0
      %1299 = vmatpush1.bf16.msra.mxu0 0
      %1300 = vmatprep.subr.bf16.mxu0 0
      %1301 = vmatpush1.bf16.msra.mxu0 0
      %1302 = vmatprep.subr.bf16.mxu0 0
      %1303 = vmatpush1.bf16.msra.mxu0 0
      %1304 = vmatprep.subr.bf16.mxu0 0
      %1305 = vmatpush1.bf16.msra.mxu0 0
      %1306 = vmatprep.mubr.bf16.mxu0 0
      %1307 = vmatmul.mubr.bf16.gmra.mrb[0].mxu0 %v698
      %v1308 = vpop.f32.mrb[0].mxu0
      %v1309 = vadd.f32 %v787, %v1308
      %v1310 = vpop.f32.mrb[0].mxu0
      %v1311 = vadd.f32 %v791, %v1310
      %v1312 = vpop.f32.mrb[0].mxu0
      %v1313 = vadd.f32 %v787, %v1312
      %v1314 = vpop.f32.mrb[0].mxu0
      %v1315 = vadd.f32 %v791, %v1314
      %1316 = vmatprep.mubr.bf16.mxu0 0
      %1317 = vmatmul.mubr.bf16.gmra.mrb[0].mxu0 %v699
      %v1318 = vpop.f32.mrb[0].mxu0
      %v1319 = vadd.f32 %v787, %v1318
      %v1320 = vpop.f32.mrb[0].mxu0
      %v1321 = vadd.f32 %v791, %v1320
      %v1322 = vpop.f32.mrb[0].mxu0
      %v1323 = vadd.f32 %v787, %v1322
      %v1324 = vpop.f32.mrb[0].mxu0
      %v1325 = vadd.f32 %v791, %v1324
      %1326 = vmatprep.mubr.bf16.mxu0 0
      %1327 = vmatmul.mubr.bf16.gmra.mrb[0].mxu0 %v700
      %v1328 = vpop.f32.mrb[0].mxu0
      %v1329 = vadd.f32 %v787, %v1328
      %v1330 = vpop.f32.mrb[0].mxu0
      %v1331 = vadd.f32 %v791, %v1330
      %v1332 = vpop.f32.mrb[0].mxu0
      %v1333 = vadd.f32 %v787, %v1332
      %v1334 = vpop.f32.mrb[0].mxu0
      %v1335 = vadd.f32 %v791, %v1334
      %1336 = vmatprep.mubr.bf16.mxu0 0
      %1337 = vmatmul.mubr.bf16.gmra.mrb[0].mxu0 %v701
      %v1338 = vpop.f32.mrb[0].mxu0
      %v1339 = vadd.f32 %v787, %v1338
      %v1340 = vpop.f32.mrb[0].mxu0
      %v1341 = vadd.f32 %v791, %v1340
      %v1342 = vpop.f32.mrb[0].mxu0
      %v1343 = vadd.f32 %v787, %v1342
      %v1344 = vpop.f32.mrb[0].mxu0
      %v1345 = vadd.f32 %v791, %v1344
      %1346 = vdwg.mxu0
      %1347 = vmatprep.subr.bf16.mxu0 %v1007
      %1348 = vmatpush1.bf16.msra.mxu0 %v1006
      %1349 = vmatprep.subr.bf16.mxu0 %v1015
      %1350 = vmatpush1.bf16.msra.mxu0 %v1014
      %1351 = vmatprep.subr.bf16.mxu0 %v1023
      %1352 = vmatpush1.bf16.msra.mxu0 %v1022
      %1353 = vmatprep.subr.bf16.mxu0 %v1031
      %1354 = vmatpush1.bf16.msra.mxu0 %v1030
      %1355 = vmatprep.subr.bf16.mxu0 %v1039
      %1356 = vmatpush1.bf16.msra.mxu0 %v1038
      %1357 = vmatprep.subr.bf16.mxu0 %v1047
      %1358 = vmatpush1.bf16.msra.mxu0 %v1046
      %1359 = vmatprep.subr.bf16.mxu0 %v1055
      %1360 = vmatpush1.bf16.msra.mxu0 %v1054
      %1361 = vmatprep.subr.bf16.mxu0 %v1063
      %1362 = vmatpush1.bf16.msra.mxu0 %v1062
      %1363 = vmatprep.subr.bf16.mxu0 0
      %1364 = vmatpush1.bf16.msra.mxu0 0
      %1365 = vmatprep.subr.bf16.mxu0 0
      %1366 = vmatpush1.bf16.msra.mxu0 0
      %1367 = vmatprep.subr.bf16.mxu0 0
      %1368 = vmatpush1.bf16.msra.mxu0 0
      %1369 = vmatprep.subr.bf16.mxu0 0
      %1370 = vmatpush1.bf16.msra.mxu0 0
      %1371 = vmatprep.subr.bf16.mxu0 0
      %1372 = vmatpush1.bf16.msra.mxu0 0
      %1373 = vmatprep.subr.bf16.mxu0 0
      %1374 = vmatpush1.bf16.msra.mxu0 0
      %1375 = vmatprep.subr.bf16.mxu0 0
      %1376 = vmatpush1.bf16.msra.mxu0 0
      %1377 = vmatprep.subr.bf16.mxu0 0
      %1378 = vmatpush1.bf16.msra.mxu0 0
      %1379 = vmatprep.mubr.bf16.mxu0 0
      %1380 = vmatmul.mubr.bf16.gmra.mrb[0].mxu0 %v698
      %v1381 = vpop.f32.mrb[0].mxu0
      %v1382 = vadd.f32 %v795, %v1381
      %v1383 = vpop.f32.mrb[0].mxu0
      %v1384 = vadd.f32 %v799, %v1383
      %v1385 = vpop.f32.mrb[0].mxu0
      %v1386 = vadd.f32 %v795, %v1385
      %v1387 = vpop.f32.mrb[0].mxu0
      %v1388 = vadd.f32 %v799, %v1387
      %1389 = vmatprep.mubr.bf16.mxu0 0
      %1390 = vmatmul.mubr.bf16.gmra.mrb[0].mxu0 %v699
      %v1391 = vpop.f32.mrb[0].mxu0
      %v1392 = vadd.f32 %v795, %v1391
      %v1393 = vpop.f32.mrb[0].mxu0
      %v1394 = vadd.f32 %v799, %v1393
      %v1395 = vpop.f32.mrb[0].mxu0
      %v1396 = vadd.f32 %v795, %v1395
      %v1397 = vpop.f32.mrb[0].mxu0
      %v1398 = vadd.f32 %v799, %v1397
      %1399 = vmatprep.mubr.bf16.mxu0 0
      %1400 = vmatmul.mubr.bf16.gmra.mrb[0].mxu0 %v700
      %v1401 = vpop.f32.mrb[0].mxu0
      %v1402 = vadd.f32 %v795, %v1401
      %v1403 = vpop.f32.mrb[0].mxu0
      %v1404 = vadd.f32 %v799, %v1403
      %v1405 = vpop.f32.mrb[0].mxu0
      %v1406 = vadd.f32 %v795, %v1405
      %v1407 = vpop.f32.mrb[0].mxu0
      %v1408 = vadd.f32 %v799, %v1407
      %1409 = vmatprep.mubr.bf16.mxu0 0
      %1410 = vmatmul.mubr.bf16.gmra.mrb[0].mxu0 %v701
      %v1411 = vpop.f32.mrb[0].mxu0
      %v1412 = vadd.f32 %v795, %v1411
      %v1413 = vpop.f32.mrb[0].mxu0
      %v1414 = vadd.f32 %v799, %v1413
      %v1415 = vpop.f32.mrb[0].mxu0
      %v1416 = vadd.f32 %v795, %v1415
      %v1417 = vpop.f32.mrb[0].mxu0
      %v1418 = vadd.f32 %v799, %v1417
      %1419 = vdwg.mxu0
      %v1420 = vmax.f32 %v1163, 0.0
      %v1421 = vmax.f32 %v1165, 0.0
      %v1422 = vmax.f32 %v1236, 0.0
      %v1423 = vmax.f32 %v1238, 0.0
      %v1424 = vmax.f32 %v1309, 0.0
      %v1425 = vmax.f32 %v1311, 0.0
      %v1426 = vmax.f32 %v1382, 0.0
      %v1427 = vmax.f32 %v1384, 0.0
      %v1428 = vmax.f32 %v1167, 0.0
      %v1429 = vmax.f32 %v1169, 0.0
      %v1430 = vmax.f32 %v1240, 0.0
      %v1431 = vmax.f32 %v1242, 0.0
      %v1432 = vmax.f32 %v1313, 0.0
      %v1433 = vmax.f32 %v1315, 0.0
      %v1434 = vmax.f32 %v1386, 0.0
      %v1435 = vmax.f32 %v1388, 0.0
      %v1436 = vmax.f32 %v1173, 0.0
      %v1437 = vmax.f32 %v1175, 0.0
      %v1438 = vmax.f32 %v1246, 0.0
      %v1439 = vmax.f32 %v1248, 0.0
      %v1440 = vmax.f32 %v1319, 0.0
      %v1441 = vmax.f32 %v1321, 0.0
      %v1442 = vmax.f32 %v1392, 0.0
      %v1443 = vmax.f32 %v1394, 0.0
      %v1444 = vmax.f32 %v1177, 0.0
      %v1445 = vmax.f32 %v1179, 0.0
      %v1446 = vmax.f32 %v1250, 0.0
      %v1447 = vmax.f32 %v1252, 0.0
      %v1448 = vmax.f32 %v1323, 0.0
      %v1449 = vmax.f32 %v1325, 0.0
      %v1450 = vmax.f32 %v1396, 0.0
      %v1451 = vmax.f32 %v1398, 0.0
      %v1452 = vmax.f32 %v1183, 0.0
      %v1453 = vmax.f32 %v1185, 0.0
      %v1454 = vmax.f32 %v1256, 0.0
      %v1455 = vmax.f32 %v1258, 0.0
      %v1456 = vmax.f32 %v1329, 0.0
      %v1457 = vmax.f32 %v1331, 0.0
      %v1458 = vmax.f32 %v1402, 0.0
      %v1459 = vmax.f32 %v1404, 0.0
      %v1460 = vmax.f32 %v1187, 0.0
      %v1461 = vmax.f32 %v1189, 0.0
      %v1462 = vmax.f32 %v1260, 0.0
      %v1463 = vmax.f32 %v1262, 0.0
      %v1464 = vmax.f32 %v1333, 0.0
      %v1465 = vmax.f32 %v1335, 0.0
      %v1466 = vmax.f32 %v1406, 0.0
      %v1467 = vmax.f32 %v1408, 0.0
      %v1468 = vmax.f32 %v1193, 0.0
      %v1469 = vmax.f32 %v1195, 0.0
      %v1470 = vmax.f32 %v1266, 0.0
      %v1471 = vmax.f32 %v1268, 0.0
      %v1472 = vmax.f32 %v1339, 0.0
      %v1473 = vmax.f32 %v1341, 0.0
      %v1474 = vmax.f32 %v1412, 0.0
      %v1475 = vmax.f32 %v1414, 0.0
      %v1476 = vmax.f32 %v1197, 0.0
      %v1477 = vmax.f32 %v1199, 0.0
      %v1478 = vmax.f32 %v1270, 0.0
      %v1479 = vmax.f32 %v1272, 0.0
      %v1480 = vmax.f32 %v1343, 0.0
      %v1481 = vmax.f32 %v1345, 0.0
      %v1482 = vmax.f32 %v1416, 0.0
      %v1483 = vmax.f32 %v1418, 0.0
      %v1484 = vmax.f32 %v1420, %v1428
      %v1485 = vmax.f32 %v1484, %v1436
      %v1486 = vmax.f32 %v1485, %v1444
      %v1487 = vmax.f32 %v1486, %v1452
      %v1488 = vmax.f32 %v1487, %v1460
      %v1489 = vmax.f32 %v1488, %v1468
      %v1490 = vmax.f32 %v1489, %v1476
      %v1491 = vrot.slane %v1490, 4
      %v1492 = vmax.f32 %v1490, %v1491
      %v1493 = vrot.slane %v1492, 2
      %v1494 = vmax.f32 %v1492, %v1493
      %v1495 = vrot.slane %v1494, 1
      %v1496 = vmax.f32 %v1494, %v1495
      %v1497 = vmax.f32 %v1421, %v1429
      %v1498 = vmax.f32 %v1497, %v1437
      %v1499 = vmax.f32 %v1498, %v1445
      %v1500 = vmax.f32 %v1499, %v1453
      %v1501 = vmax.f32 %v1500, %v1461
      %v1502 = vmax.f32 %v1501, %v1469
      %v1503 = vmax.f32 %v1502, %v1477
      %v1504 = vrot.slane %v1503, 4
      %v1505 = vmax.f32 %v1503, %v1504
      %v1506 = vrot.slane %v1505, 2
      %v1507 = vmax.f32 %v1505, %v1506
      %v1508 = vrot.slane %v1507, 1
      %v1509 = vmax.f32 %v1507, %v1508
      %v1510 = vmax.f32 %v1422, %v1430
      %v1511 = vmax.f32 %v1510, %v1438
      %v1512 = vmax.f32 %v1511, %v1446
      %v1513 = vmax.f32 %v1512, %v1454
      %v1514 = vmax.f32 %v1513, %v1462
      %v1515 = vmax.f32 %v1514, %v1470
      %v1516 = vmax.f32 %v1515, %v1478
      %v1517 = vrot.slane %v1516, 4
      %v1518 = vmax.f32 %v1516, %v1517
      %v1519 = vrot.slane %v1518, 2
      %v1520 = vmax.f32 %v1518, %v1519
      %v1521 = vrot.slane %v1520, 1
      %v1522 = vmax.f32 %v1520, %v1521
      %v1523 = vmax.f32 %v1423, %v1431
      %v1524 = vmax.f32 %v1523, %v1439
      %v1525 = vmax.f32 %v1524, %v1447
      %v1526 = vmax.f32 %v1525, %v1455
      %v1527 = vmax.f32 %v1526, %v1463
      %v1528 = vmax.f32 %v1527, %v1471
      %v1529 = vmax.f32 %v1528, %v1479
      %v1530 = vrot.slane %v1529, 4
      %v1531 = vmax.f32 %v1529, %v1530
      %v1532 = vrot.slane %v1531, 2
      %v1533 = vmax.f32 %v1531, %v1532
      %v1534 = vrot.slane %v1533, 1
      %v1535 = vmax.f32 %v1533, %v1534
      %v1536 = vmax.f32 %v1424, %v1432
      %v1537 = vmax.f32 %v1536, %v1440
      %v1538 = vmax.f32 %v1537, %v1448
      %v1539 = vmax.f32 %v1538, %v1456
      %v1540 = vmax.f32 %v1539, %v1464
      %v1541 = vmax.f32 %v1540, %v1472
      %v1542 = vmax.f32 %v1541, %v1480
      %v1543 = vrot.slane %v1542, 4
      %v1544 = vmax.f32 %v1542, %v1543
      %v1545 = vrot.slane %v1544, 2
      %v1546 = vmax.f32 %v1544, %v1545
      %v1547 = vrot.slane %v1546, 1
      %v1548 = vmax.f32 %v1546, %v1547
      %v1549 = vmax.f32 %v1425, %v1433
      %v1550 = vmax.f32 %v1549, %v1441
      %v1551 = vmax.f32 %v1550, %v1449
      %v1552 = vmax.f32 %v1551, %v1457
      %v1553 = vmax.f32 %v1552, %v1465
      %v1554 = vmax.f32 %v1553, %v1473
      %v1555 = vmax.f32 %v1554, %v1481
      %v1556 = vrot.slane %v1555, 4
      %v1557 = vmax.f32 %v1555, %v1556
      %v1558 = vrot.slane %v1557, 2
      %v1559 = vmax.f32 %v1557, %v1558
      %v1560 = vrot.slane %v1559, 1
      %v1561 = vmax.f32 %v1559, %v1560
      %v1562 = vmax.f32 %v1426, %v1434
      %v1563 = vmax.f32 %v1562, %v1442
      %v1564 = vmax.f32 %v1563, %v1450
      %v1565 = vmax.f32 %v1564, %v1458
      %v1566 = vmax.f32 %v1565, %v1466
      %v1567 = vmax.f32 %v1566, %v1474
      %v1568 = vmax.f32 %v1567, %v1482
      %v1569 = vrot.slane %v1568, 4
      %v1570 = vmax.f32 %v1568, %v1569
      %v1571 = vrot.slane %v1570, 2
      %v1572 = vmax.f32 %v1570, %v1571
      %v1573 = vrot.slane %v1572, 1
      %v1574 = vmax.f32 %v1572, %v1573
      %v1575 = vmax.f32 %v1427, %v1435
      %v1576 = vmax.f32 %v1575, %v1443
      %v1577 = vmax.f32 %v1576, %v1451
      %v1578 = vmax.f32 %v1577, %v1459
      %v1579 = vmax.f32 %v1578, %v1467
      %v1580 = vmax.f32 %v1579, %v1475
      %v1581 = vmax.f32 %v1580, %v1483
      %v1582 = vrot.slane %v1581, 4
      %v1583 = vmax.f32 %v1581, %v1582
      %v1584 = vrot.slane %v1583, 2
      %v1585 = vmax.f32 %v1583, %v1584
      %v1586 = vrot.slane %v1585, 1
      %v1587 = vmax.f32 %v1585, %v1586
      %p1588 = scmp.eq.s32.totalorder %s25, 0
      // Predicated region
      $region49: #{segment_forward.7} parent=47 // pred_check
        %p1589 = pneg %p1588
      $region50: #{segment_forward.7} parent=47 // pred_check_branch
        %1591 = sbr.rel (%p1589) target = $region52
      $region51: #{segment_forward.7} parent=47 // pred_region
        %1592 = vst [vmem:[%s372] sm:$0xff] -inf
      $region52: #{segment_forward.7} parent=47 // pred_fallthru
        _
      %v1593 = vld [vmem:[%s372] sm:$0xff]
      %v1602 = vcombine.low %v1496, %v1509
      %v1603 = vcombine.low %v1522, %v1535
      %v1604 = vcombine.low %v1548, %v1561
      %v1605 = vcombine.low %v1574, %v1587
      %v1607 = vunpack.c.l.s4 1966171168
      %v1608 = vunpack.c.0.s8 %v1607
      %v1609 = vlaneseq
      %v1610 = vshrl.u32 %v1609, 7
      %v1611 = vsub.s32 %v1608, %v1610
      %v1612 = vrot.slane %v1602, %v1611
      %v1614 = vunpack.c.l.s4 1966171168
      %v1615 = vunpack.c.0.s8 %v1614
      %v1616 = vlaneseq
      %v1617 = vshrl.u32 %v1616, 7
      %v1618 = vsub.s32 %v1615, %v1617
      %v1619 = vrot.slane %v1603, %v1618
      %v1621 = vunpack.c.l.s4 1966171168
      %v1622 = vunpack.c.0.s8 %v1621
      %v1623 = vlaneseq
      %v1624 = vshrl.u32 %v1623, 7
      %v1625 = vsub.s32 %v1622, %v1624
      %v1626 = vrot.slane %v1604, %v1625
      %v1628 = vunpack.c.l.s4 1966171168
      %v1629 = vunpack.c.0.s8 %v1628
      %v1630 = vlaneseq
      %v1631 = vshrl.u32 %v1630, 7
      %v1632 = vsub.s32 %v1629, %v1631
      %v1633 = vrot.slane %v1605, %v1632
      %v1634 = vcombine.low %v1612, %v1619
      %v1635 = vcombine.low %v1626, %v1633
      %v1637 = vunpack.c.l.s4 1966171168
      %v1638 = vunpack.c.0.s8 %v1637
      %v1639 = vlaneseq
      %v1640 = vshrl.u32 %v1639, 7
      %v1641 = vsub.s32 %v1638, %v1640
      %v1642 = vrot.slane %v1634, %v1641
      %v1644 = vunpack.c.l.s4 1966171168
      %v1645 = vunpack.c.0.s8 %v1644
      %v1646 = vlaneseq
      %v1647 = vshrl.u32 %v1646, 7
      %v1648 = vsub.s32 %v1645, %v1647
      %v1649 = vrot.slane %v1635, %v1648
      %v1650 = vcombine.low %v1642, %v1649
      %v1652 = vmax.f32 %v1593, %v1650
      %1653 = vst [vmem:[%s372] sm:$0xff] %v1652
      %s1654 = smul.u32 8, %s25
      %p1655 = scmp.lt.s32.totalorder %s24, 1
      %s1656 = scalar_select %p1655, %s24, 1
      %p1657 = scmp.lt.s32.totalorder %s1654, 7
      %s1658 = scalar_select %p1657, %s1654, 7
      %s1659 = smul.addr %s1656, 8
      %s1660 = sadd.s32 %s1658, %s1659
      %s1661 = smul.addr %s1660, 4
      %s1662 = scalar_lea.vmem %s7, %s1661
      %p1663 = scmp.lt.s32.totalorder %s24, 1
      %s1664 = scalar_select %p1663, %s24, 1
      %s1665 = smul.addr %s1664, 8
      %s1666 = scalar_lea.vmem %s8, %s1665
      // Predicated region
      $region53: #{segment_forward.7} parent=47 // pred_check
        %p1667 = pneg %p211
      $region54: #{segment_forward.7} parent=47 // pred_check_branch
        %1669 = sbr.rel (%p1667) target = $region56
      $region55: #{segment_forward.7} parent=47 // pred_region
        %s1670 = smul.u32 8, %s25
      $region56: #{segment_forward.7} parent=47 // pred_fallthru
        _
      // Predicated region
      $region57: #{segment_forward.7} parent=47 // pred_check
        %p1671 = pneg %p237
      $region58: #{segment_forward.7} parent=47 // pred_check_branch
        %1673 = sbr.rel (%p1671) target = $region60
      $region59: #{segment_forward.7} parent=47 // pred_region
        _
      $region60: #{segment_forward.7} parent=47 // pred_fallthru
        _
    $region48: #{segment_forward.7} parent=5 // pred_fallthru
      _
    %p1674 = scmp.le.s32.totalorder 2, %s15
    // Predicated region
    $region61: #{segment_forward.7} parent=5 // pred_check
      %p1675 = pneg %p1674
    $region62: #{segment_forward.7} parent=5 // pred_check_branch
      %1677 = sbr.rel (%p1675) target = $region64
    $region63: #{segment_forward.7} parent=5 // pred_region
      %s1678 = ssub.s32 %s15, 2
      // Predicated region
      $region65: #{segment_forward.7} parent=63 // pred_check
        %p1679 = pneg %p217
      $region66: #{segment_forward.7} parent=63 // pred_check_branch
        %1681 = sbr.rel (%p1679) target = $region68
      $region67: #{segment_forward.7} parent=63 // pred_region
        %s1682 = smul.u32 8, %s27
        %p1683 = scmp.lt.s32.totalorder %s26, 1
        %s1684 = scalar_select %p1683, %s26, 1
        %p1685 = scmp.lt.s32.totalorder %s1682, 7
        %s1686 = scalar_select %p1685, %s1682, 7
        %s1687 = smul.addr %s1684, 8
        %s1688 = sadd.s32 %s1686, %s1687
        %s1689 = smul.addr %s1688, 4
        %s1690 = scalar_lea.vmem %s7, %s1689
      $region68: #{segment_forward.7} parent=63 // pred_fallthru
        _
      // Predicated region
      $region69: #{segment_forward.7} parent=63 // pred_check
        %p1691 = pneg %p243
      $region70: #{segment_forward.7} parent=63 // pred_check_branch
        %1693 = sbr.rel (%p1691) target = $region72
      $region71: #{segment_forward.7} parent=63 // pred_region
        %p1694 = scmp.lt.s32.totalorder %s26, 1
        %s1695 = scalar_select %p1694, %s26, 1
        %s1696 = smul.addr %s1695, 8
        %s1697 = scalar_lea.vmem %s8, %s1696
      $region72: #{segment_forward.7} parent=63 // pred_fallthru
        _
    $region64: #{segment_forward.7} parent=5 // pred_fallthru
      _
  $region6: #{segment_forward.7} parent=0 // loop_footer
    %s19 = sadd.s32 1, %s15
  $region7: #{segment_forward.7} parent=0 // loop_footer_branch
    %14 = sbr.rel target = $region3
  $region8: #{segment_forward.7} parent=0 // loop_exit
    _

// kernel: segment_forward.6
$region0: #{segment_forward.6}
  #allocation0 [shape = 'u32[]', space=smem, size = 0x4, offset = 0x4, fixed_abs, tag = 'smem constant byte address 0x4 - core index']
  #allocation1 [shape = 'u32[144,128]{1,0:T(1,128)}', space=vmem, size = 0x12000, scoped, tag = 'internal scratch']
  %s0 = inlined_call_operand.vmem [shape: f32[2,1024], index: 0, kind: input, shape index: {}]
  %s1 = inlined_call_operand.vmem [shape: bf16[1024,512], index: 1, kind: input, shape index: {}]
  %s2 = inlined_call_operand.vmem [shape: f32[1,512], index: 2, kind: input, shape index: {}]
  %s3 = inlined_call_operand.vmem [shape: bf16[512,256], index: 3, kind: input, shape index: {}]
  %s4 = inlined_call_operand.vmem [shape: f32[1,256], index: 4, kind: input, shape index: {}]
  %s5 = inlined_call_operand.vmem [shape: bf16[256,128], index: 5, kind: input, shape index: {}]
  %s6 = inlined_call_operand.vmem [shape: f32[1,128], index: 6, kind: input, shape index: {}]
  %s7 = inlined_call_operand.vmem [shape: f32[2,128], index: 7, kind: output, shape index: {}]
  %s8 = sld [smem:[#allocation0]]
  $region38: #{segment_forward.6} parent=0
    _
  %s10 = ssub.s32 1, %s8
  %s11 = scalar_select 0, %s10, %s8
  // Predicated region
  $region2: #{segment_forward.6} parent=0 // pred_check
    _
  $region3: #{segment_forward.6} parent=0 // pred_check_branch
    %13 = sbr.rel (0) target = $region5
  $region4: #{segment_forward.6} parent=0 // pred_region
    _
  $region5: #{segment_forward.6} parent=0 // pred_fallthru
    _
  // Predicated region
  $region6: #{segment_forward.6} parent=0 // pred_check
    _
  $region7: #{segment_forward.6} parent=0 // pred_check_branch
    %15 = sbr.rel (0) target = $region9
  $region8: #{segment_forward.6} parent=0 // pred_region
    _
  $region9: #{segment_forward.6} parent=0 // pred_fallthru
    _
  // Predicated region
  $region10: #{segment_forward.6} parent=0 // pred_check
    _
  $region11: #{segment_forward.6} parent=0 // pred_check_branch
    %17 = sbr.rel (0) target = $region13
  $region12: #{segment_forward.6} parent=0 // pred_region
    _
  $region13: #{segment_forward.6} parent=0 // pred_fallthru
    _
  // Predicated region
  $region14: #{segment_forward.6} parent=0 // pred_check
    _
  $region15: #{segment_forward.6} parent=0 // pred_check_branch
    %19 = sbr.rel (0) target = $region17
  $region16: #{segment_forward.6} parent=0 // pred_region
    _
  $region17: #{segment_forward.6} parent=0 // pred_fallthru
    _
  // Predicated region
  $region18: #{segment_forward.6} parent=0 // pred_check
    _
  $region19: #{segment_forward.6} parent=0 // pred_check_branch
    %21 = sbr.rel (0) target = $region21
  $region20: #{segment_forward.6} parent=0 // pred_region
    _
  $region21: #{segment_forward.6} parent=0 // pred_fallthru
    _
  // Predicated region
  $region22: #{segment_forward.6} parent=0 // pred_check
    _
  $region23: #{segment_forward.6} parent=0 // pred_check_branch
    %23 = sbr.rel (0) target = $region25
  $region24: #{segment_forward.6} parent=0 // pred_region
    _
  $region25: #{segment_forward.6} parent=0 // pred_fallthru
    _
  // Predicated region
  $region26: #{segment_forward.6} parent=0 // pred_check
    _
  $region27: #{segment_forward.6} parent=0 // pred_check_branch
    %25 = sbr.rel (0) target = $region29
  $region28: #{segment_forward.6} parent=0 // pred_region
    _
  $region29: #{segment_forward.6} parent=0 // pred_fallthru
    _
  %v27 = vld [vmem:[%s0] sm:$0xff]
  %v28 = vld [vmem:[%s0 + $0x8] sm:$0xff]
  %v31 = vcombine.high %v27, %v27
  %v33 = vunpack.c.l.s4 1983009808
  %v34 = vunpack.c.0.s8 %v33
  %v35 = vlaneseq
  %v36 = vshrl.u32 %v35, 7
  %v37 = vsub.s32 %v34, %v36
  %v38 = vrot.slane %v27, %v37
  %v40 = vunpack.c.l.s4 1983009808
  %v41 = vunpack.c.0.s8 %v40
  %v42 = vlaneseq
  %v43 = vshrl.u32 %v42, 7
  %v44 = vsub.s32 %v41, %v43
  %v45 = vrot.slane %v31, %v44
  %v46 = vcombine.high %v38, %v38
  %v47 = vcombine.high %v45, %v45
  %v48 = vcombine.high %v28, %v28
  %v50 = vunpack.c.l.s4 1983009808
  %v51 = vunpack.c.0.s8 %v50
  %v52 = vlaneseq
  %v53 = vshrl.u32 %v52, 7
  %v54 = vsub.s32 %v51, %v53
  %v55 = vrot.slane %v28, %v54
  %v57 = vunpack.c.l.s4 1983009808
  %v58 = vunpack.c.0.s8 %v57
  %v59 = vlaneseq
  %v60 = vshrl.u32 %v59, 7
  %v61 = vsub.s32 %v58, %v60
  %v62 = vrot.slane %v48, %v61
  %v63 = vcombine.high %v55, %v55
  %v64 = vcombine.high %v62, %v62
  %v73 = vpack.c.bf16 %v38, %v38
  %v74 = vpack.c.bf16 %v46, %v46
  %v75 = vpack.c.bf16 %v45, %v45
  %v76 = vpack.c.bf16 %v47, %v47
  %v77 = vpack.c.bf16 %v55, %v55
  %v78 = vpack.c.bf16 %v63, %v63
  %v79 = vpack.c.bf16 %v62, %v62
  %v80 = vpack.c.bf16 %v64, %v64
  %v81 = vld [vmem:[%s1] sm:$0xff]
  %v82 = vld [vmem:[%s1 + $0x8] sm:$0xff]
  %v83 = vld [vmem:[%s1 + $0x10] sm:$0xff]
  %v84 = vld [vmem:[%s1 + $0x18] sm:$0xff]
  %v85 = vld [vmem:[%s1 + $0x20] sm:$0xff]
  %v86 = vld [vmem:[%s1 + $0x28] sm:$0xff]
  %v87 = vld [vmem:[%s1 + $0x30] sm:$0xff]
  %v88 = vld [vmem:[%s1 + $0x38] sm:$0xff]
  %v89 = vld [vmem:[%s1 + $0x40] sm:$0xff]
  %v90 = vld [vmem:[%s1 + $0x48] sm:$0xff]
  %v91 = vld [vmem:[%s1 + $0x50] sm:$0xff]
  %v92 = vld [vmem:[%s1 + $0x58] sm:$0xff]
  %v93 = vld [vmem:[%s1 + $0x60] sm:$0xff]
  %v94 = vld [vmem:[%s1 + $0x68] sm:$0xff]
  %v95 = vld [vmem:[%s1 + $0x70] sm:$0xff]
  %v96 = vld [vmem:[%s1 + $0x78] sm:$0xff]
  %v97 = vld [vmem:[%s1 + $0x80] sm:$0xff]
  %v98 = vld [vmem:[%s1 + $0x88] sm:$0xff]
  %v99 = vld [vmem:[%s1 + $0x90] sm:$0xff]
  %v100 = vld [vmem:[%s1 + $0x98] sm:$0xff]
  %v101 = vld [vmem:[%s1 + $0xa0] sm:$0xff]
  %v102 = vld [vmem:[%s1 + $0xa8] sm:$0xff]
  %v103 = vld [vmem:[%s1 + $0xb0] sm:$0xff]
  %v104 = vld [vmem:[%s1 + $0xb8] sm:$0xff]
  %v105 = vld [vmem:[%s1 + $0xc0] sm:$0xff]
  %v106 = vld [vmem:[%s1 + $0xc8] sm:$0xff]
  %v107 = vld [vmem:[%s1 + $0xd0] sm:$0xff]
  %v108 = vld [vmem:[%s1 + $0xd8] sm:$0xff]
  %v109 = vld [vmem:[%s1 + $0xe0] sm:$0xff]
  %v110 = vld [vmem:[%s1 + $0xe8] sm:$0xff]
  %v111 = vld [vmem:[%s1 + $0xf0] sm:$0xff]
  %v112 = vld [vmem:[%s1 + $0xf8] sm:$0xff]
  %v113 = vld [vmem:[%s1 + $0x100] sm:$0xff]
  %v114 = vld [vmem:[%s1 + $0x108] sm:$0xff]
  %v115 = vld [vmem:[%s1 + $0x110] sm:$0xff]
  %v116 = vld [vmem:[%s1 + $0x118] sm:$0xff]
  %v117 = vld [vmem:[%s1 + $0x120] sm:$0xff]
  %v118 = vld [vmem:[%s1 + $0x128] sm:$0xff]
  %v119 = vld [vmem:[%s1 + $0x130] sm:$0xff]
  %v120 = vld [vmem:[%s1 + $0x138] sm:$0xff]
  %v121 = vld [vmem:[%s1 + $0x140] sm:$0xff]
  %v122 = vld [vmem:[%s1 + $0x148] sm:$0xff]
  %v123 = vld [vmem:[%s1 + $0x150] sm:$0xff]
  %v124 = vld [vmem:[%s1 + $0x158] sm:$0xff]
  %v125 = vld [vmem:[%s1 + $0x160] sm:$0xff]
  %v126 = vld [vmem:[%s1 + $0x168] sm:$0xff]
  %v127 = vld [vmem:[%s1 + $0x170] sm:$0xff]
  %v128 = vld [vmem:[%s1 + $0x178] sm:$0xff]
  %v129 = vld [vmem:[%s1 + $0x180] sm:$0xff]
  %v130 = vld [vmem:[%s1 + $0x188] sm:$0xff]
  %v131 = vld [vmem:[%s1 + $0x190] sm:$0xff]
  %v132 = vld [vmem:[%s1 + $0x198] sm:$0xff]
  %v133 = vld [vmem:[%s1 + $0x1a0] sm:$0xff]
  %v134 = vld [vmem:[%s1 + $0x1a8] sm:$0xff]
  %v135 = vld [vmem:[%s1 + $0x1b0] sm:$0xff]
  %v136 = vld [vmem:[%s1 + $0x1b8] sm:$0xff]
  %v137 = vld [vmem:[%s1 + $0x1c0] sm:$0xff]
  %v138 = vld [vmem:[%s1 + $0x1c8] sm:$0xff]
  %v139 = vld [vmem:[%s1 + $0x1d0] sm:$0xff]
  %v140 = vld [vmem:[%s1 + $0x1d8] sm:$0xff]
  %v141 = vld [vmem:[%s1 + $0x1e0] sm:$0xff]
  %v142 = vld [vmem:[%s1 + $0x1e8] sm:$0xff]
  %v143 = vld [vmem:[%s1 + $0x1f0] sm:$0xff]
  %v144 = vld [vmem:[%s1 + $0x1f8] sm:$0xff]
  %v145 = vld [vmem:[%s1 + $0x200] sm:$0xff]
  %v146 = vld [vmem:[%s1 + $0x208] sm:$0xff]
  %v147 = vld [vmem:[%s1 + $0x210] sm:$0xff]
  %v148 = vld [vmem:[%s1 + $0x218] sm:$0xff]
  %v149 = vld [vmem:[%s1 + $0x220] sm:$0xff]
  %v150 = vld [vmem:[%s1 + $0x228] sm:$0xff]
  %v151 = vld [vmem:[%s1 + $0x230] sm:$0xff]
  %v152 = vld [vmem:[%s1 + $0x238] sm:$0xff]
  %v153 = vld [vmem:[%s1 + $0x240] sm:$0xff]
  %v154 = vld [vmem:[%s1 + $0x248] sm:$0xff]
  %v155 = vld [vmem:[%s1 + $0x250] sm:$0xff]
  %v156 = vld [vmem:[%s1 + $0x258] sm:$0xff]
  %v157 = vld [vmem:[%s1 + $0x260] sm:$0xff]
  %v158 = vld [vmem:[%s1 + $0x268] sm:$0xff]
  %v159 = vld [vmem:[%s1 + $0x270] sm:$0xff]
  %v160 = vld [vmem:[%s1 + $0x278] sm:$0xff]
  %v161 = vld [vmem:[%s1 + $0x280] sm:$0xff]
  %v162 = vld [vmem:[%s1 + $0x288] sm:$0xff]
  %v163 = vld [vmem:[%s1 + $0x290] sm:$0xff]
  %v164 = vld [vmem:[%s1 + $0x298] sm:$0xff]
  %v165 = vld [vmem:[%s1 + $0x2a0] sm:$0xff]
  %v166 = vld [vmem:[%s1 + $0x2a8] sm:$0xff]
  %v167 = vld [vmem:[%s1 + $0x2b0] sm:$0xff]
  %v168 = vld [vmem:[%s1 + $0x2b8] sm:$0xff]
  %v169 = vld [vmem:[%s1 + $0x2c0] sm:$0xff]
  %v170 = vld [vmem:[%s1 + $0x2c8] sm:$0xff]
  %v171 = vld [vmem:[%s1 + $0x2d0] sm:$0xff]
  %v172 = vld [vmem:[%s1 + $0x2d8] sm:$0xff]
  %v173 = vld [vmem:[%s1 + $0x2e0] sm:$0xff]
  %v174 = vld [vmem:[%s1 + $0x2e8] sm:$0xff]
  %v175 = vld [vmem:[%s1 + $0x2f0] sm:$0xff]
  %v176 = vld [vmem:[%s1 + $0x2f8] sm:$0xff]
  %v177 = vld [vmem:[%s1 + $0x300] sm:$0xff]
  %v178 = vld [vmem:[%s1 + $0x308] sm:$0xff]
  %v179 = vld [vmem:[%s1 + $0x310] sm:$0xff]
  %v180 = vld [vmem:[%s1 + $0x318] sm:$0xff]
  %v181 = vld [vmem:[%s1 + $0x320] sm:$0xff]
  %v182 = vld [vmem:[%s1 + $0x328] sm:$0xff]
  %v183 = vld [vmem:[%s1 + $0x330] sm:$0xff]
  %v184 = vld [vmem:[%s1 + $0x338] sm:$0xff]
  %v185 = vld [vmem:[%s1 + $0x340] sm:$0xff]
  %v186 = vld [vmem:[%s1 + $0x348] sm:$0xff]
  %v187 = vld [vmem:[%s1 + $0x350] sm:$0xff]
  %v188 = vld [vmem:[%s1 + $0x358] sm:$0xff]
  %v189 = vld [vmem:[%s1 + $0x360] sm:$0xff]
  %v190 = vld [vmem:[%s1 + $0x368] sm:$0xff]
  %v191 = vld [vmem:[%s1 + $0x370] sm:$0xff]
  %v192 = vld [vmem:[%s1 + $0x378] sm:$0xff]
  %v193 = vld [vmem:[%s1 + $0x380] sm:$0xff]
  %v194 = vld [vmem:[%s1 + $0x388] sm:$0xff]
  %v195 = vld [vmem:[%s1 + $0x390] sm:$0xff]
  %v196 = vld [vmem:[%s1 + $0x398] sm:$0xff]
  %v197 = vld [vmem:[%s1 + $0x3a0] sm:$0xff]
  %v198 = vld [vmem:[%s1 + $0x3a8] sm:$0xff]
  %v199 = vld [vmem:[%s1 + $0x3b0] sm:$0xff]
  %v200 = vld [vmem:[%s1 + $0x3b8] sm:$0xff]
  %v201 = vld [vmem:[%s1 + $0x3c0] sm:$0xff]
  %v202 = vld [vmem:[%s1 + $0x3c8] sm:$0xff]
  %v203 = vld [vmem:[%s1 + $0x3d0] sm:$0xff]
  %v204 = vld [vmem:[%s1 + $0x3d8] sm:$0xff]
  %v205 = vld [vmem:[%s1 + $0x3e0] sm:$0xff]
  %v206 = vld [vmem:[%s1 + $0x3e8] sm:$0xff]
  %v207 = vld [vmem:[%s1 + $0x3f0] sm:$0xff]
  %v208 = vld [vmem:[%s1 + $0x3f8] sm:$0xff]
  %v209 = vld [vmem:[%s1 + $0x400] sm:$0xff]
  %v210 = vld [vmem:[%s1 + $0x408] sm:$0xff]
  %v211 = vld [vmem:[%s1 + $0x410] sm:$0xff]
  %v212 = vld [vmem:[%s1 + $0x418] sm:$0xff]
  %v213 = vld [vmem:[%s1 + $0x420] sm:$0xff]
  %v214 = vld [vmem:[%s1 + $0x428] sm:$0xff]
  %v215 = vld [vmem:[%s1 + $0x430] sm:$0xff]
  %v216 = vld [vmem:[%s1 + $0x438] sm:$0xff]
  %v217 = vld [vmem:[%s1 + $0x440] sm:$0xff]
  %v218 = vld [vmem:[%s1 + $0x448] sm:$0xff]
  %v219 = vld [vmem:[%s1 + $0x450] sm:$0xff]
  %v220 = vld [vmem:[%s1 + $0x458] sm:$0xff]
  %v221 = vld [vmem:[%s1 + $0x460] sm:$0xff]
  %v222 = vld [vmem:[%s1 + $0x468] sm:$0xff]
  %v223 = vld [vmem:[%s1 + $0x470] sm:$0xff]
  %v224 = vld [vmem:[%s1 + $0x478] sm:$0xff]
  %v225 = vld [vmem:[%s1 + $0x480] sm:$0xff]
  %v226 = vld [vmem:[%s1 + $0x488] sm:$0xff]
  %v227 = vld [vmem:[%s1 + $0x490] sm:$0xff]
  %v228 = vld [vmem:[%s1 + $0x498] sm:$0xff]
  %v229 = vld [vmem:[%s1 + $0x4a0] sm:$0xff]
  %v230 = vld [vmem:[%s1 + $0x4a8] sm:$0xff]
  %v231 = vld [vmem:[%s1 + $0x4b0] sm:$0xff]
  %v232 = vld [vmem:[%s1 + $0x4b8] sm:$0xff]
  %v233 = vld [vmem:[%s1 + $0x4c0] sm:$0xff]
  %v234 = vld [vmem:[%s1 + $0x4c8] sm:$0xff]
  %v235 = vld [vmem:[%s1 + $0x4d0] sm:$0xff]
  %v236 = vld [vmem:[%s1 + $0x4d8] sm:$0xff]
  %v237 = vld [vmem:[%s1 + $0x4e0] sm:$0xff]
  %v238 = vld [vmem:[%s1 + $0x4e8] sm:$0xff]
  %v239 = vld [vmem:[%s1 + $0x4f0] sm:$0xff]
  %v240 = vld [vmem:[%s1 + $0x4f8] sm:$0xff]
  %v241 = vld [vmem:[%s1 + $0x500] sm:$0xff]
  %v242 = vld [vmem:[%s1 + $0x508] sm:$0xff]
  %v243 = vld [vmem:[%s1 + $0x510] sm:$0xff]
  %v244 = vld [vmem:[%s1 + $0x518] sm:$0xff]
  %v245 = vld [vmem:[%s1 + $0x520] sm:$0xff]
  %v246 = vld [vmem:[%s1 + $0x528] sm:$0xff]
  %v247 = vld [vmem:[%s1 + $0x530] sm:$0xff]
  %v248 = vld [vmem:[%s1 + $0x538] sm:$0xff]
  %v249 = vld [vmem:[%s1 + $0x540] sm:$0xff]
  %v250 = vld [vmem:[%s1 + $0x548] sm:$0xff]
  %v251 = vld [vmem:[%s1 + $0x550] sm:$0xff]
  %v252 = vld [vmem:[%s1 + $0x558] sm:$0xff]
  %v253 = vld [vmem:[%s1 + $0x560] sm:$0xff]
  %v254 = vld [vmem:[%s1 + $0x568] sm:$0xff]
  %v255 = vld [vmem:[%s1 + $0x570] sm:$0xff]
  %v256 = vld [vmem:[%s1 + $0x578] sm:$0xff]
  %v257 = vld [vmem:[%s1 + $0x580] sm:$0xff]
  %v258 = vld [vmem:[%s1 + $0x588] sm:$0xff]
  %v259 = vld [vmem:[%s1 + $0x590] sm:$0xff]
  %v260 = vld [vmem:[%s1 + $0x598] sm:$0xff]
  %v261 = vld [vmem:[%s1 + $0x5a0] sm:$0xff]
  %v262 = vld [vmem:[%s1 + $0x5a8] sm:$0xff]
  %v263 = vld [vmem:[%s1 + $0x5b0] sm:$0xff]
  %v264 = vld [vmem:[%s1 + $0x5b8] sm:$0xff]
  %v265 = vld [vmem:[%s1 + $0x5c0] sm:$0xff]
  %v266 = vld [vmem:[%s1 + $0x5c8] sm:$0xff]
  %v267 = vld [vmem:[%s1 + $0x5d0] sm:$0xff]
  %v268 = vld [vmem:[%s1 + $0x5d8] sm:$0xff]
  %v269 = vld [vmem:[%s1 + $0x5e0] sm:$0xff]
  %v270 = vld [vmem:[%s1 + $0x5e8] sm:$0xff]
  %v271 = vld [vmem:[%s1 + $0x5f0] sm:$0xff]
  %v272 = vld [vmem:[%s1 + $0x5f8] sm:$0xff]
  %v273 = vld [vmem:[%s1 + $0x600] sm:$0xff]
  %v274 = vld [vmem:[%s1 + $0x608] sm:$0xff]
  %v275 = vld [vmem:[%s1 + $0x610] sm:$0xff]
  %v276 = vld [vmem:[%s1 + $0x618] sm:$0xff]
  %v277 = vld [vmem:[%s1 + $0x620] sm:$0xff]
  %v278 = vld [vmem:[%s1 + $0x628] sm:$0xff]
  %v279 = vld [vmem:[%s1 + $0x630] sm:$0xff]
  %v280 = vld [vmem:[%s1 + $0x638] sm:$0xff]
  %v281 = vld [vmem:[%s1 + $0x640] sm:$0xff]
  %v282 = vld [vmem:[%s1 + $0x648] sm:$0xff]
  %v283 = vld [vmem:[%s1 + $0x650] sm:$0xff]
  %v284 = vld [vmem:[%s1 + $0x658] sm:$0xff]
  %v285 = vld [vmem:[%s1 + $0x660] sm:$0xff]
  %v286 = vld [vmem:[%s1 + $0x668] sm:$0xff]
  %v287 = vld [vmem:[%s1 + $0x670] sm:$0xff]
  %v288 = vld [vmem:[%s1 + $0x678] sm:$0xff]
  %v289 = vld [vmem:[%s1 + $0x680] sm:$0xff]
  %v290 = vld [vmem:[%s1 + $0x688] sm:$0xff]
  %v291 = vld [vmem:[%s1 + $0x690] sm:$0xff]
  %v292 = vld [vmem:[%s1 + $0x698] sm:$0xff]
  %v293 = vld [vmem:[%s1 + $0x6a0] sm:$0xff]
  %v294 = vld [vmem:[%s1 + $0x6a8] sm:$0xff]
  %v295 = vld [vmem:[%s1 + $0x6b0] sm:$0xff]
  %v296 = vld [vmem:[%s1 + $0x6b8] sm:$0xff]
  %v297 = vld [vmem:[%s1 + $0x6c0] sm:$0xff]
  %v298 = vld [vmem:[%s1 + $0x6c8] sm:$0xff]
  %v299 = vld [vmem:[%s1 + $0x6d0] sm:$0xff]
  %v300 = vld [vmem:[%s1 + $0x6d8] sm:$0xff]
  %v301 = vld [vmem:[%s1 + $0x6e0] sm:$0xff]
  %v302 = vld [vmem:[%s1 + $0x6e8] sm:$0xff]
  %v303 = vld [vmem:[%s1 + $0x6f0] sm:$0xff]
  %v304 = vld [vmem:[%s1 + $0x6f8] sm:$0xff]
  %v305 = vld [vmem:[%s1 + $0x700] sm:$0xff]
  %v306 = vld [vmem:[%s1 + $0x708] sm:$0xff]
  %v307 = vld [vmem:[%s1 + $0x710] sm:$0xff]
  %v308 = vld [vmem:[%s1 + $0x718] sm:$0xff]
  %v309 = vld [vmem:[%s1 + $0x720] sm:$0xff]
  %v310 = vld [vmem:[%s1 + $0x728] sm:$0xff]
  %v311 = vld [vmem:[%s1 + $0x730] sm:$0xff]
  %v312 = vld [vmem:[%s1 + $0x738] sm:$0xff]
  %v313 = vld [vmem:[%s1 + $0x740] sm:$0xff]
  %v314 = vld [vmem:[%s1 + $0x748] sm:$0xff]
  %v315 = vld [vmem:[%s1 + $0x750] sm:$0xff]
  %v316 = vld [vmem:[%s1 + $0x758] sm:$0xff]
  %v317 = vld [vmem:[%s1 + $0x760] sm:$0xff]
  %v318 = vld [vmem:[%s1 + $0x768] sm:$0xff]
  %v319 = vld [vmem:[%s1 + $0x770] sm:$0xff]
  %v320 = vld [vmem:[%s1 + $0x778] sm:$0xff]
  %v321 = vld [vmem:[%s1 + $0x780] sm:$0xff]
  %v322 = vld [vmem:[%s1 + $0x788] sm:$0xff]
  %v323 = vld [vmem:[%s1 + $0x790] sm:$0xff]
  %v324 = vld [vmem:[%s1 + $0x798] sm:$0xff]
  %v325 = vld [vmem:[%s1 + $0x7a0] sm:$0xff]
  %v326 = vld [vmem:[%s1 + $0x7a8] sm:$0xff]
  %v327 = vld [vmem:[%s1 + $0x7b0] sm:$0xff]
  %v328 = vld [vmem:[%s1 + $0x7b8] sm:$0xff]
  %v329 = vld [vmem:[%s1 + $0x7c0] sm:$0xff]
  %v330 = vld [vmem:[%s1 + $0x7c8] sm:$0xff]
  %v331 = vld [vmem:[%s1 + $0x7d0] sm:$0xff]
  %v332 = vld [vmem:[%s1 + $0x7d8] sm:$0xff]
  %v333 = vld [vmem:[%s1 + $0x7e0] sm:$0xff]
  %v334 = vld [vmem:[%s1 + $0x7e8] sm:$0xff]
  %v335 = vld [vmem:[%s1 + $0x7f0] sm:$0xff]
  %v336 = vld [vmem:[%s1 + $0x7f8] sm:$0xff]
  %v337 = vld [vmem:[%s2] sm:$0xf]
  %v339 = vlaneseq
  %v340 = vshrl.u32 %v339, 7
  %v341 = vsub.s32 0, %v340
  %v342 = vrot.slane %v337, %v341
  %v343 = vlaneseq
  %v344 = vshrl.u32 %v343, 7
  %v345 = vsub.s32 1, %v344
  %v346 = vrot.slane %v337, %v345
  %v347 = vlaneseq
  %v348 = vshrl.u32 %v347, 7
  %v349 = vsub.s32 2, %v348
  %v350 = vrot.slane %v337, %v349
  %v351 = vlaneseq
  %v352 = vshrl.u32 %v351, 7
  %v353 = vsub.s32 3, %v352
  %v354 = vrot.slane %v337, %v353
  %v615 = vunpack.c.l.b16 %v81
  %v616 = vunpack.c.h.b16 %v81
  %v617 = vunpack.c.l.b16 %v82
  %v618 = vunpack.c.h.b16 %v82
  %v619 = vunpack.c.l.b16 %v83
  %v620 = vunpack.c.h.b16 %v83
  %v621 = vunpack.c.l.b16 %v84
  %v622 = vunpack.c.h.b16 %v84
  %v623 = vunpack.c.l.b16 %v85
  %v624 = vunpack.c.h.b16 %v85
  %v625 = vunpack.c.l.b16 %v86
  %v626 = vunpack.c.h.b16 %v86
  %v627 = vunpack.c.l.b16 %v87
  %v628 = vunpack.c.h.b16 %v87
  %v629 = vunpack.c.l.b16 %v88
  %v630 = vunpack.c.h.b16 %v88
  %v631 = vunpack.c.l.b16 %v89
  %v632 = vunpack.c.h.b16 %v89
  %v633 = vunpack.c.l.b16 %v90
  %v634 = vunpack.c.h.b16 %v90
  %v635 = vunpack.c.l.b16 %v91
  %v636 = vunpack.c.h.b16 %v91
  %v637 = vunpack.c.l.b16 %v92
  %v638 = vunpack.c.h.b16 %v92
  %v639 = vunpack.c.l.b16 %v93
  %v640 = vunpack.c.h.b16 %v93
  %v641 = vunpack.c.l.b16 %v94
  %v642 = vunpack.c.h.b16 %v94
  %v643 = vunpack.c.l.b16 %v95
  %v644 = vunpack.c.h.b16 %v95
  %v645 = vunpack.c.l.b16 %v96
  %v646 = vunpack.c.h.b16 %v96
  %v647 = vunpack.c.l.b16 %v97
  %v648 = vunpack.c.h.b16 %v97
  %v649 = vunpack.c.l.b16 %v98
  %v650 = vunpack.c.h.b16 %v98
  %v651 = vunpack.c.l.b16 %v99
  %v652 = vunpack.c.h.b16 %v99
  %v653 = vunpack.c.l.b16 %v100
  %v654 = vunpack.c.h.b16 %v100
  %v655 = vunpack.c.l.b16 %v101
  %v656 = vunpack.c.h.b16 %v101
  %v657 = vunpack.c.l.b16 %v102
  %v658 = vunpack.c.h.b16 %v102
  %v659 = vunpack.c.l.b16 %v103
  %v660 = vunpack.c.h.b16 %v103
  %v661 = vunpack.c.l.b16 %v104
  %v662 = vunpack.c.h.b16 %v104
  %v663 = vunpack.c.l.b16 %v105
  %v664 = vunpack.c.h.b16 %v105
  %v665 = vunpack.c.l.b16 %v106
  %v666 = vunpack.c.h.b16 %v106
  %v667 = vunpack.c.l.b16 %v107
  %v668 = vunpack.c.h.b16 %v107
  %v669 = vunpack.c.l.b16 %v108
  %v670 = vunpack.c.h.b16 %v108
  %v671 = vunpack.c.l.b16 %v109
  %v672 = vunpack.c.h.b16 %v109
  %v673 = vunpack.c.l.b16 %v110
  %v674 = vunpack.c.h.b16 %v110
  %v675 = vunpack.c.l.b16 %v111
  %v676 = vunpack.c.h.b16 %v111
  %v677 = vunpack.c.l.b16 %v112
  %v678 = vunpack.c.h.b16 %v112
  %v679 = vunpack.c.l.b16 %v113
  %v680 = vunpack.c.h.b16 %v113
  %v681 = vunpack.c.l.b16 %v114
  %v682 = vunpack.c.h.b16 %v114
  %v683 = vunpack.c.l.b16 %v115
  %v684 = vunpack.c.h.b16 %v115
  %v685 = vunpack.c.l.b16 %v116
  %v686 = vunpack.c.h.b16 %v116
  %v687 = vunpack.c.l.b16 %v117
  %v688 = vunpack.c.h.b16 %v117
  %v689 = vunpack.c.l.b16 %v118
  %v690 = vunpack.c.h.b16 %v118
  %v691 = vunpack.c.l.b16 %v119
  %v692 = vunpack.c.h.b16 %v119
  %v693 = vunpack.c.l.b16 %v120
  %v694 = vunpack.c.h.b16 %v120
  %v695 = vunpack.c.l.b16 %v121
  %v696 = vunpack.c.h.b16 %v121
  %v697 = vunpack.c.l.b16 %v122
  %v698 = vunpack.c.h.b16 %v122
  %v699 = vunpack.c.l.b16 %v123
  %v700 = vunpack.c.h.b16 %v123
  %v701 = vunpack.c.l.b16 %v124
  %v702 = vunpack.c.h.b16 %v124
  %v703 = vunpack.c.l.b16 %v125
  %v704 = vunpack.c.h.b16 %v125
  %v705 = vunpack.c.l.b16 %v126
  %v706 = vunpack.c.h.b16 %v126
  %v707 = vunpack.c.l.b16 %v127
  %v708 = vunpack.c.h.b16 %v127
  %v709 = vunpack.c.l.b16 %v128
  %v710 = vunpack.c.h.b16 %v128
  %v711 = vunpack.c.l.b16 %v129
  %v712 = vunpack.c.h.b16 %v129
  %v713 = vunpack.c.l.b16 %v130
  %v714 = vunpack.c.h.b16 %v130
  %v715 = vunpack.c.l.b16 %v131
  %v716 = vunpack.c.h.b16 %v131
  %v717 = vunpack.c.l.b16 %v132
  %v718 = vunpack.c.h.b16 %v132
  %v719 = vunpack.c.l.b16 %v133
  %v720 = vunpack.c.h.b16 %v133
  %v721 = vunpack.c.l.b16 %v134
  %v722 = vunpack.c.h.b16 %v134
  %v723 = vunpack.c.l.b16 %v135
  %v724 = vunpack.c.h.b16 %v135
  %v725 = vunpack.c.l.b16 %v136
  %v726 = vunpack.c.h.b16 %v136
  %v727 = vunpack.c.l.b16 %v137
  %v728 = vunpack.c.h.b16 %v137
  %v729 = vunpack.c.l.b16 %v138
  %v730 = vunpack.c.h.b16 %v138
  %v731 = vunpack.c.l.b16 %v139
  %v732 = vunpack.c.h.b16 %v139
  %v733 = vunpack.c.l.b16 %v140
  %v734 = vunpack.c.h.b16 %v140
  %v735 = vunpack.c.l.b16 %v141
  %v736 = vunpack.c.h.b16 %v141
  %v737 = vunpack.c.l.b16 %v142
  %v738 = vunpack.c.h.b16 %v142
  %v739 = vunpack.c.l.b16 %v143
  %v740 = vunpack.c.h.b16 %v143
  %v741 = vunpack.c.l.b16 %v144
  %v742 = vunpack.c.h.b16 %v144
  %v743 = vunpack.c.l.b16 %v145
  %v744 = vunpack.c.h.b16 %v145
  %v745 = vunpack.c.l.b16 %v146
  %v746 = vunpack.c.h.b16 %v146
  %v747 = vunpack.c.l.b16 %v147
  %v748 = vunpack.c.h.b16 %v147
  %v749 = vunpack.c.l.b16 %v148
  %v750 = vunpack.c.h.b16 %v148
  %v751 = vunpack.c.l.b16 %v149
  %v752 = vunpack.c.h.b16 %v149
  %v753 = vunpack.c.l.b16 %v150
  %v754 = vunpack.c.h.b16 %v150
  %v755 = vunpack.c.l.b16 %v151
  %v756 = vunpack.c.h.b16 %v151
  %v757 = vunpack.c.l.b16 %v152
  %v758 = vunpack.c.h.b16 %v152
  %v759 = vunpack.c.l.b16 %v153
  %v760 = vunpack.c.h.b16 %v153
  %v761 = vunpack.c.l.b16 %v154
  %v762 = vunpack.c.h.b16 %v154
  %v763 = vunpack.c.l.b16 %v155
  %v764 = vunpack.c.h.b16 %v155
  %v765 = vunpack.c.l.b16 %v156
  %v766 = vunpack.c.h.b16 %v156
  %v767 = vunpack.c.l.b16 %v157
  %v768 = vunpack.c.h.b16 %v157
  %v769 = vunpack.c.l.b16 %v158
  %v770 = vunpack.c.h.b16 %v158
  %v771 = vunpack.c.l.b16 %v159
  %v772 = vunpack.c.h.b16 %v159
  %v773 = vunpack.c.l.b16 %v160
  %v774 = vunpack.c.h.b16 %v160
  %v775 = vunpack.c.l.b16 %v161
  %v776 = vunpack.c.h.b16 %v161
  %v777 = vunpack.c.l.b16 %v162
  %v778 = vunpack.c.h.b16 %v162
  %v779 = vunpack.c.l.b16 %v163
  %v780 = vunpack.c.h.b16 %v163
  %v781 = vunpack.c.l.b16 %v164
  %v782 = vunpack.c.h.b16 %v164
  %v783 = vunpack.c.l.b16 %v165
  %v784 = vunpack.c.h.b16 %v165
  %v785 = vunpack.c.l.b16 %v166
  %v786 = vunpack.c.h.b16 %v166
  %v787 = vunpack.c.l.b16 %v167
  %v788 = vunpack.c.h.b16 %v167
  %v789 = vunpack.c.l.b16 %v168
  %v790 = vunpack.c.h.b16 %v168
  %v791 = vunpack.c.l.b16 %v169
  %v792 = vunpack.c.h.b16 %v169
  %v793 = vunpack.c.l.b16 %v170
  %v794 = vunpack.c.h.b16 %v170
  %v795 = vunpack.c.l.b16 %v171
  %v796 = vunpack.c.h.b16 %v171
  %v797 = vunpack.c.l.b16 %v172
  %v798 = vunpack.c.h.b16 %v172
  %v799 = vunpack.c.l.b16 %v173
  %v800 = vunpack.c.h.b16 %v173
  %v801 = vunpack.c.l.b16 %v174
  %v802 = vunpack.c.h.b16 %v174
  %v803 = vunpack.c.l.b16 %v175
  %v804 = vunpack.c.h.b16 %v175
  %v805 = vunpack.c.l.b16 %v176
  %v806 = vunpack.c.h.b16 %v176
  %v807 = vunpack.c.l.b16 %v177
  %v808 = vunpack.c.h.b16 %v177
  %v809 = vunpack.c.l.b16 %v178
  %v810 = vunpack.c.h.b16 %v178
  %v811 = vunpack.c.l.b16 %v179
  %v812 = vunpack.c.h.b16 %v179
  %v813 = vunpack.c.l.b16 %v180
  %v814 = vunpack.c.h.b16 %v180
  %v815 = vunpack.c.l.b16 %v181
  %v816 = vunpack.c.h.b16 %v181
  %v817 = vunpack.c.l.b16 %v182
  %v818 = vunpack.c.h.b16 %v182
  %v819 = vunpack.c.l.b16 %v183
  %v820 = vunpack.c.h.b16 %v183
  %v821 = vunpack.c.l.b16 %v184
  %v822 = vunpack.c.h.b16 %v184
  %v823 = vunpack.c.l.b16 %v185
  %v824 = vunpack.c.h.b16 %v185
  %v825 = vunpack.c.l.b16 %v186
  %v826 = vunpack.c.h.b16 %v186
  %v827 = vunpack.c.l.b16 %v187
  %v828 = vunpack.c.h.b16 %v187
  %v829 = vunpack.c.l.b16 %v188
  %v830 = vunpack.c.h.b16 %v188
  %v831 = vunpack.c.l.b16 %v189
  %v832 = vunpack.c.h.b16 %v189
  %v833 = vunpack.c.l.b16 %v190
  %v834 = vunpack.c.h.b16 %v190
  %v835 = vunpack.c.l.b16 %v191
  %v836 = vunpack.c.h.b16 %v191
  %v837 = vunpack.c.l.b16 %v192
  %v838 = vunpack.c.h.b16 %v192
  %v839 = vunpack.c.l.b16 %v193
  %v840 = vunpack.c.h.b16 %v193
  %v841 = vunpack.c.l.b16 %v194
  %v842 = vunpack.c.h.b16 %v194
  %v843 = vunpack.c.l.b16 %v195
  %v844 = vunpack.c.h.b16 %v195
  %v845 = vunpack.c.l.b16 %v196
  %v846 = vunpack.c.h.b16 %v196
  %v847 = vunpack.c.l.b16 %v197
  %v848 = vunpack.c.h.b16 %v197
  %v849 = vunpack.c.l.b16 %v198
  %v850 = vunpack.c.h.b16 %v198
  %v851 = vunpack.c.l.b16 %v199
  %v852 = vunpack.c.h.b16 %v199
  %v853 = vunpack.c.l.b16 %v200
  %v854 = vunpack.c.h.b16 %v200
  %v855 = vunpack.c.l.b16 %v201
  %v856 = vunpack.c.h.b16 %v201
  %v857 = vunpack.c.l.b16 %v202
  %v858 = vunpack.c.h.b16 %v202
  %v859 = vunpack.c.l.b16 %v203
  %v860 = vunpack.c.h.b16 %v203
  %v861 = vunpack.c.l.b16 %v204
  %v862 = vunpack.c.h.b16 %v204
  %v863 = vunpack.c.l.b16 %v205
  %v864 = vunpack.c.h.b16 %v205
  %v865 = vunpack.c.l.b16 %v206
  %v866 = vunpack.c.h.b16 %v206
  %v867 = vunpack.c.l.b16 %v207
  %v868 = vunpack.c.h.b16 %v207
  %v869 = vunpack.c.l.b16 %v208
  %v870 = vunpack.c.h.b16 %v208
  %v871 = vunpack.c.l.b16 %v209
  %v872 = vunpack.c.h.b16 %v209
  %v873 = vunpack.c.l.b16 %v210
  %v874 = vunpack.c.h.b16 %v210
  %v875 = vunpack.c.l.b16 %v211
  %v876 = vunpack.c.h.b16 %v211
  %v877 = vunpack.c.l.b16 %v212
  %v878 = vunpack.c.h.b16 %v212
  %v879 = vunpack.c.l.b16 %v213
  %v880 = vunpack.c.h.b16 %v213
  %v881 = vunpack.c.l.b16 %v214
  %v882 = vunpack.c.h.b16 %v214
  %v883 = vunpack.c.l.b16 %v215
  %v884 = vunpack.c.h.b16 %v215
  %v885 = vunpack.c.l.b16 %v216
  %v886 = vunpack.c.h.b16 %v216
  %v887 = vunpack.c.l.b16 %v217
  %v888 = vunpack.c.h.b16 %v217
  %v889 = vunpack.c.l.b16 %v218
  %v890 = vunpack.c.h.b16 %v218
  %v891 = vunpack.c.l.b16 %v219
  %v892 = vunpack.c.h.b16 %v219
  %v893 = vunpack.c.l.b16 %v220
  %v894 = vunpack.c.h.b16 %v220
  %v895 = vunpack.c.l.b16 %v221
  %v896 = vunpack.c.h.b16 %v221
  %v897 = vunpack.c.l.b16 %v222
  %v898 = vunpack.c.h.b16 %v222
  %v899 = vunpack.c.l.b16 %v223
  %v900 = vunpack.c.h.b16 %v223
  %v901 = vunpack.c.l.b16 %v224
  %v902 = vunpack.c.h.b16 %v224
  %v903 = vunpack.c.l.b16 %v225
  %v904 = vunpack.c.h.b16 %v225
  %v905 = vunpack.c.l.b16 %v226
  %v906 = vunpack.c.h.b16 %v226
  %v907 = vunpack.c.l.b16 %v227
  %v908 = vunpack.c.h.b16 %v227
  %v909 = vunpack.c.l.b16 %v228
  %v910 = vunpack.c.h.b16 %v228
  %v911 = vunpack.c.l.b16 %v229
  %v912 = vunpack.c.h.b16 %v229
  %v913 = vunpack.c.l.b16 %v230
  %v914 = vunpack.c.h.b16 %v230
  %v915 = vunpack.c.l.b16 %v231
  %v916 = vunpack.c.h.b16 %v231
  %v917 = vunpack.c.l.b16 %v232
  %v918 = vunpack.c.h.b16 %v232
  %v919 = vunpack.c.l.b16 %v233
  %v920 = vunpack.c.h.b16 %v233
  %v921 = vunpack.c.l.b16 %v234
  %v922 = vunpack.c.h.b16 %v234
  %v923 = vunpack.c.l.b16 %v235
  %v924 = vunpack.c.h.b16 %v235
  %v925 = vunpack.c.l.b16 %v236
  %v926 = vunpack.c.h.b16 %v236
  %v927 = vunpack.c.l.b16 %v237
  %v928 = vunpack.c.h.b16 %v237
  %v929 = vunpack.c.l.b16 %v238
  %v930 = vunpack.c.h.b16 %v238
  %v931 = vunpack.c.l.b16 %v239
  %v932 = vunpack.c.h.b16 %v239
  %v933 = vunpack.c.l.b16 %v240
  %v934 = vunpack.c.h.b16 %v240
  %v935 = vunpack.c.l.b16 %v241
  %v936 = vunpack.c.h.b16 %v241
  %v937 = vunpack.c.l.b16 %v242
  %v938 = vunpack.c.h.b16 %v242
  %v939 = vunpack.c.l.b16 %v243
  %v940 = vunpack.c.h.b16 %v243
  %v941 = vunpack.c.l.b16 %v244
  %v942 = vunpack.c.h.b16 %v244
  %v943 = vunpack.c.l.b16 %v245
  %v944 = vunpack.c.h.b16 %v245
  %v945 = vunpack.c.l.b16 %v246
  %v946 = vunpack.c.h.b16 %v246
  %v947 = vunpack.c.l.b16 %v247
  %v948 = vunpack.c.h.b16 %v247
  %v949 = vunpack.c.l.b16 %v248
  %v950 = vunpack.c.h.b16 %v248
  %v951 = vunpack.c.l.b16 %v249
  %v952 = vunpack.c.h.b16 %v249
  %v953 = vunpack.c.l.b16 %v250
  %v954 = vunpack.c.h.b16 %v250
  %v955 = vunpack.c.l.b16 %v251
  %v956 = vunpack.c.h.b16 %v251
  %v957 = vunpack.c.l.b16 %v252
  %v958 = vunpack.c.h.b16 %v252
  %v959 = vunpack.c.l.b16 %v253
  %v960 = vunpack.c.h.b16 %v253
  %v961 = vunpack.c.l.b16 %v254
  %v962 = vunpack.c.h.b16 %v254
  %v963 = vunpack.c.l.b16 %v255
  %v964 = vunpack.c.h.b16 %v255
  %v965 = vunpack.c.l.b16 %v256
  %v966 = vunpack.c.h.b16 %v256
  %v967 = vunpack.c.l.b16 %v257
  %v968 = vunpack.c.h.b16 %v257
  %v969 = vunpack.c.l.b16 %v258
  %v970 = vunpack.c.h.b16 %v258
  %v971 = vunpack.c.l.b16 %v259
  %v972 = vunpack.c.h.b16 %v259
  %v973 = vunpack.c.l.b16 %v260
  %v974 = vunpack.c.h.b16 %v260
  %v975 = vunpack.c.l.b16 %v261
  %v976 = vunpack.c.h.b16 %v261
  %v977 = vunpack.c.l.b16 %v262
  %v978 = vunpack.c.h.b16 %v262
  %v979 = vunpack.c.l.b16 %v263
  %v980 = vunpack.c.h.b16 %v263
  %v981 = vunpack.c.l.b16 %v264
  %v982 = vunpack.c.h.b16 %v264
  %v983 = vunpack.c.l.b16 %v265
  %v984 = vunpack.c.h.b16 %v265
  %v985 = vunpack.c.l.b16 %v266
  %v986 = vunpack.c.h.b16 %v266
  %v987 = vunpack.c.l.b16 %v267
  %v988 = vunpack.c.h.b16 %v267
  %v989 = vunpack.c.l.b16 %v268
  %v990 = vunpack.c.h.b16 %v268
  %v991 = vunpack.c.l.b16 %v269
  %v992 = vunpack.c.h.b16 %v269
  %v993 = vunpack.c.l.b16 %v270
  %v994 = vunpack.c.h.b16 %v270
  %v995 = vunpack.c.l.b16 %v271
  %v996 = vunpack.c.h.b16 %v271
  %v997 = vunpack.c.l.b16 %v272
  %v998 = vunpack.c.h.b16 %v272
  %v999 = vunpack.c.l.b16 %v273
  %v1000 = vunpack.c.h.b16 %v273
  %v1001 = vunpack.c.l.b16 %v274
  %v1002 = vunpack.c.h.b16 %v274
  %v1003 = vunpack.c.l.b16 %v275
  %v1004 = vunpack.c.h.b16 %v275
  %v1005 = vunpack.c.l.b16 %v276
  %v1006 = vunpack.c.h.b16 %v276
  %v1007 = vunpack.c.l.b16 %v277
  %v1008 = vunpack.c.h.b16 %v277
  %v1009 = vunpack.c.l.b16 %v278
  %v1010 = vunpack.c.h.b16 %v278
  %v1011 = vunpack.c.l.b16 %v279
  %v1012 = vunpack.c.h.b16 %v279
  %v1013 = vunpack.c.l.b16 %v280
  %v1014 = vunpack.c.h.b16 %v280
  %v1015 = vunpack.c.l.b16 %v281
  %v1016 = vunpack.c.h.b16 %v281
  %v1017 = vunpack.c.l.b16 %v282
  %v1018 = vunpack.c.h.b16 %v282
  %v1019 = vunpack.c.l.b16 %v283
  %v1020 = vunpack.c.h.b16 %v283
  %v1021 = vunpack.c.l.b16 %v284
  %v1022 = vunpack.c.h.b16 %v284
  %v1023 = vunpack.c.l.b16 %v285
  %v1024 = vunpack.c.h.b16 %v285
  %v1025 = vunpack.c.l.b16 %v286
  %v1026 = vunpack.c.h.b16 %v286
  %v1027 = vunpack.c.l.b16 %v287
  %v1028 = vunpack.c.h.b16 %v287
  %v1029 = vunpack.c.l.b16 %v288
  %v1030 = vunpack.c.h.b16 %v288
  %v1031 = vunpack.c.l.b16 %v289
  %v1032 = vunpack.c.h.b16 %v289
  %v1033 = vunpack.c.l.b16 %v290
  %v1034 = vunpack.c.h.b16 %v290
  %v1035 = vunpack.c.l.b16 %v291
  %v1036 = vunpack.c.h.b16 %v291
  %v1037 = vunpack.c.l.b16 %v292
  %v1038 = vunpack.c.h.b16 %v292
  %v1039 = vunpack.c.l.b16 %v293
  %v1040 = vunpack.c.h.b16 %v293
  %v1041 = vunpack.c.l.b16 %v294
  %v1042 = vunpack.c.h.b16 %v294
  %v1043 = vunpack.c.l.b16 %v295
  %v1044 = vunpack.c.h.b16 %v295
  %v1045 = vunpack.c.l.b16 %v296
  %v1046 = vunpack.c.h.b16 %v296
  %v1047 = vunpack.c.l.b16 %v297
  %v1048 = vunpack.c.h.b16 %v297
  %v1049 = vunpack.c.l.b16 %v298
  %v1050 = vunpack.c.h.b16 %v298
  %v1051 = vunpack.c.l.b16 %v299
  %v1052 = vunpack.c.h.b16 %v299
  %v1053 = vunpack.c.l.b16 %v300
  %v1054 = vunpack.c.h.b16 %v300
  %v1055 = vunpack.c.l.b16 %v301
  %v1056 = vunpack.c.h.b16 %v301
  %v1057 = vunpack.c.l.b16 %v302
  %v1058 = vunpack.c.h.b16 %v302
  %v1059 = vunpack.c.l.b16 %v303
  %v1060 = vunpack.c.h.b16 %v303
  %v1061 = vunpack.c.l.b16 %v304
  %v1062 = vunpack.c.h.b16 %v304
  %v1063 = vunpack.c.l.b16 %v305
  %v1064 = vunpack.c.h.b16 %v305
  %v1065 = vunpack.c.l.b16 %v306
  %v1066 = vunpack.c.h.b16 %v306
  %v1067 = vunpack.c.l.b16 %v307
  %v1068 = vunpack.c.h.b16 %v307
  %v1069 = vunpack.c.l.b16 %v308
  %v1070 = vunpack.c.h.b16 %v308
  %v1071 = vunpack.c.l.b16 %v309
  %v1072 = vunpack.c.h.b16 %v309
  %v1073 = vunpack.c.l.b16 %v310
  %v1074 = vunpack.c.h.b16 %v310
  %v1075 = vunpack.c.l.b16 %v311
  %v1076 = vunpack.c.h.b16 %v311
  %v1077 = vunpack.c.l.b16 %v312
  %v1078 = vunpack.c.h.b16 %v312
  %v1079 = vunpack.c.l.b16 %v313
  %v1080 = vunpack.c.h.b16 %v313
  %v1081 = vunpack.c.l.b16 %v314
  %v1082 = vunpack.c.h.b16 %v314
  %v1083 = vunpack.c.l.b16 %v315
  %v1084 = vunpack.c.h.b16 %v315
  %v1085 = vunpack.c.l.b16 %v316
  %v1086 = vunpack.c.h.b16 %v316
  %v1087 = vunpack.c.l.b16 %v317
  %v1088 = vunpack.c.h.b16 %v317
  %v1089 = vunpack.c.l.b16 %v318
  %v1090 = vunpack.c.h.b16 %v318
  %v1091 = vunpack.c.l.b16 %v319
  %v1092 = vunpack.c.h.b16 %v319
  %v1093 = vunpack.c.l.b16 %v320
  %v1094 = vunpack.c.h.b16 %v320
  %v1095 = vunpack.c.l.b16 %v321
  %v1096 = vunpack.c.h.b16 %v321
  %v1097 = vunpack.c.l.b16 %v322
  %v1098 = vunpack.c.h.b16 %v322
  %v1099 = vunpack.c.l.b16 %v323
  %v1100 = vunpack.c.h.b16 %v323
  %v1101 = vunpack.c.l.b16 %v324
  %v1102 = vunpack.c.h.b16 %v324
  %v1103 = vunpack.c.l.b16 %v325
  %v1104 = vunpack.c.h.b16 %v325
  %v1105 = vunpack.c.l.b16 %v326
  %v1106 = vunpack.c.h.b16 %v326
  %v1107 = vunpack.c.l.b16 %v327
  %v1108 = vunpack.c.h.b16 %v327
  %v1109 = vunpack.c.l.b16 %v328
  %v1110 = vunpack.c.h.b16 %v328
  %v1111 = vunpack.c.l.b16 %v329
  %v1112 = vunpack.c.h.b16 %v329
  %v1113 = vunpack.c.l.b16 %v330
  %v1114 = vunpack.c.h.b16 %v330
  %v1115 = vunpack.c.l.b16 %v331
  %v1116 = vunpack.c.h.b16 %v331
  %v1117 = vunpack.c.l.b16 %v332
  %v1118 = vunpack.c.h.b16 %v332
  %v1119 = vunpack.c.l.b16 %v333
  %v1120 = vunpack.c.h.b16 %v333
  %v1121 = vunpack.c.l.b16 %v334
  %v1122 = vunpack.c.h.b16 %v334
  %v1123 = vunpack.c.l.b16 %v335
  %v1124 = vunpack.c.h.b16 %v335
  %v1125 = vunpack.c.l.b16 %v336
  %v1126 = vunpack.c.h.b16 %v336
  %v1127 = vpack.c.b16 %v619, %v615
  %v1128 = vpack.c.b16 %v620, %v616
  %v1129 = vpack.c.b16 %v621, %v617
  %v1130 = vpack.c.b16 %v622, %v618
  %v1131 = vpack.c.b16 %v627, %v623
  %v1132 = vpack.c.b16 %v628, %v624
  %v1133 = vpack.c.b16 %v629, %v625
  %v1134 = vpack.c.b16 %v630, %v626
  %v1135 = vpack.c.b16 %v635, %v631
  %v1136 = vpack.c.b16 %v636, %v632
  %v1137 = vpack.c.b16 %v637, %v633
  %v1138 = vpack.c.b16 %v638, %v634
  %v1139 = vpack.c.b16 %v643, %v639
  %v1140 = vpack.c.b16 %v644, %v640
  %v1141 = vpack.c.b16 %v645, %v641
  %v1142 = vpack.c.b16 %v646, %v642
  %v1143 = vpack.c.b16 %v651, %v647
  %v1144 = vpack.c.b16 %v652, %v648
  %v1145 = vpack.c.b16 %v653, %v649
  %v1146 = vpack.c.b16 %v654, %v650
  %v1147 = vpack.c.b16 %v659, %v655
  %v1148 = vpack.c.b16 %v660, %v656
  %v1149 = vpack.c.b16 %v661, %v657
  %v1150 = vpack.c.b16 %v662, %v658
  %v1151 = vpack.c.b16 %v667, %v663
  %v1152 = vpack.c.b16 %v668, %v664
  %v1153 = vpack.c.b16 %v669, %v665
  %v1154 = vpack.c.b16 %v670, %v666
  %v1155 = vpack.c.b16 %v675, %v671
  %v1156 = vpack.c.b16 %v676, %v672
  %v1157 = vpack.c.b16 %v677, %v673
  %v1158 = vpack.c.b16 %v678, %v674
  %v1159 = vpack.c.b16 %v683, %v679
  %v1160 = vpack.c.b16 %v684, %v680
  %v1161 = vpack.c.b16 %v685, %v681
  %v1162 = vpack.c.b16 %v686, %v682
  %v1163 = vpack.c.b16 %v691, %v687
  %v1164 = vpack.c.b16 %v692, %v688
  %v1165 = vpack.c.b16 %v693, %v689
  %v1166 = vpack.c.b16 %v694, %v690
  %v1167 = vpack.c.b16 %v699, %v695
  %v1168 = vpack.c.b16 %v700, %v696
  %v1169 = vpack.c.b16 %v701, %v697
  %v1170 = vpack.c.b16 %v702, %v698
  %v1171 = vpack.c.b16 %v707, %v703
  %v1172 = vpack.c.b16 %v708, %v704
  %v1173 = vpack.c.b16 %v709, %v705
  %v1174 = vpack.c.b16 %v710, %v706
  %v1175 = vpack.c.b16 %v715, %v711
  %v1176 = vpack.c.b16 %v716, %v712
  %v1177 = vpack.c.b16 %v717, %v713
  %v1178 = vpack.c.b16 %v718, %v714
  %v1179 = vpack.c.b16 %v723, %v719
  %v1180 = vpack.c.b16 %v724, %v720
  %v1181 = vpack.c.b16 %v725, %v721
  %v1182 = vpack.c.b16 %v726, %v722
  %v1183 = vpack.c.b16 %v731, %v727
  %v1184 = vpack.c.b16 %v732, %v728
  %v1185 = vpack.c.b16 %v733, %v729
  %v1186 = vpack.c.b16 %v734, %v730
  %v1187 = vpack.c.b16 %v739, %v735
  %v1188 = vpack.c.b16 %v740, %v736
  %v1189 = vpack.c.b16 %v741, %v737
  %v1190 = vpack.c.b16 %v742, %v738
  %v1191 = vpack.c.b16 %v747, %v743
  %v1192 = vpack.c.b16 %v748, %v744
  %v1193 = vpack.c.b16 %v749, %v745
  %v1194 = vpack.c.b16 %v750, %v746
  %v1195 = vpack.c.b16 %v755, %v751
  %v1196 = vpack.c.b16 %v756, %v752
  %v1197 = vpack.c.b16 %v757, %v753
  %v1198 = vpack.c.b16 %v758, %v754
  %v1199 = vpack.c.b16 %v763, %v759
  %v1200 = vpack.c.b16 %v764, %v760
  %v1201 = vpack.c.b16 %v765, %v761
  %v1202 = vpack.c.b16 %v766, %v762
  %v1203 = vpack.c.b16 %v771, %v767
  %v1204 = vpack.c.b16 %v772, %v768
  %v1205 = vpack.c.b16 %v773, %v769
  %v1206 = vpack.c.b16 %v774, %v770
  %v1207 = vpack.c.b16 %v779, %v775
  %v1208 = vpack.c.b16 %v780, %v776
  %v1209 = vpack.c.b16 %v781, %v777
  %v1210 = vpack.c.b16 %v782, %v778
  %v1211 = vpack.c.b16 %v787, %v783
  %v1212 = vpack.c.b16 %v788, %v784
  %v1213 = vpack.c.b16 %v789, %v785
  %v1214 = vpack.c.b16 %v790, %v786
  %v1215 = vpack.c.b16 %v795, %v791
  %v1216 = vpack.c.b16 %v796, %v792
  %v1217 = vpack.c.b16 %v797, %v793
  %v1218 = vpack.c.b16 %v798, %v794
  %v1219 = vpack.c.b16 %v803, %v799
  %v1220 = vpack.c.b16 %v804, %v800
  %v1221 = vpack.c.b16 %v805, %v801
  %v1222 = vpack.c.b16 %v806, %v802
  %v1223 = vpack.c.b16 %v811, %v807
  %v1224 = vpack.c.b16 %v812, %v808
  %v1225 = vpack.c.b16 %v813, %v809
  %v1226 = vpack.c.b16 %v814, %v810
  %v1227 = vpack.c.b16 %v819, %v815
  %v1228 = vpack.c.b16 %v820, %v816
  %v1229 = vpack.c.b16 %v821, %v817
  %v1230 = vpack.c.b16 %v822, %v818
  %v1231 = vpack.c.b16 %v827, %v823
  %v1232 = vpack.c.b16 %v828, %v824
  %v1233 = vpack.c.b16 %v829, %v825
  %v1234 = vpack.c.b16 %v830, %v826
  %v1235 = vpack.c.b16 %v835, %v831
  %v1236 = vpack.c.b16 %v836, %v832
  %v1237 = vpack.c.b16 %v837, %v833
  %v1238 = vpack.c.b16 %v838, %v834
  %v1239 = vpack.c.b16 %v843, %v839
  %v1240 = vpack.c.b16 %v844, %v840
  %v1241 = vpack.c.b16 %v845, %v841
  %v1242 = vpack.c.b16 %v846, %v842
  %v1243 = vpack.c.b16 %v851, %v847
  %v1244 = vpack.c.b16 %v852, %v848
  %v1245 = vpack.c.b16 %v853, %v849
  %v1246 = vpack.c.b16 %v854, %v850
  %v1247 = vpack.c.b16 %v859, %v855
  %v1248 = vpack.c.b16 %v860, %v856
  %v1249 = vpack.c.b16 %v861, %v857
  %v1250 = vpack.c.b16 %v862, %v858
  %v1251 = vpack.c.b16 %v867, %v863
  %v1252 = vpack.c.b16 %v868, %v864
  %v1253 = vpack.c.b16 %v869, %v865
  %v1254 = vpack.c.b16 %v870, %v866
  %v1255 = vpack.c.b16 %v875, %v871
  %v1256 = vpack.c.b16 %v876, %v872
  %v1257 = vpack.c.b16 %v877, %v873
  %v1258 = vpack.c.b16 %v878, %v874
  %v1259 = vpack.c.b16 %v883, %v879
  %v1260 = vpack.c.b16 %v884, %v880
  %v1261 = vpack.c.b16 %v885, %v881
  %v1262 = vpack.c.b16 %v886, %v882
  %v1263 = vpack.c.b16 %v891, %v887
  %v1264 = vpack.c.b16 %v892, %v888
  %v1265 = vpack.c.b16 %v893, %v889
  %v1266 = vpack.c.b16 %v894, %v890
  %v1267 = vpack.c.b16 %v899, %v895
  %v1268 = vpack.c.b16 %v900, %v896
  %v1269 = vpack.c.b16 %v901, %v897
  %v1270 = vpack.c.b16 %v902, %v898
  %v1271 = vpack.c.b16 %v907, %v903
  %v1272 = vpack.c.b16 %v908, %v904
  %v1273 = vpack.c.b16 %v909, %v905
  %v1274 = vpack.c.b16 %v910, %v906
  %v1275 = vpack.c.b16 %v915, %v911
  %v1276 = vpack.c.b16 %v916, %v912
  %v1277 = vpack.c.b16 %v917, %v913
  %v1278 = vpack.c.b16 %v918, %v914
  %v1279 = vpack.c.b16 %v923, %v919
  %v1280 = vpack.c.b16 %v924, %v920
  %v1281 = vpack.c.b16 %v925, %v921
  %v1282 = vpack.c.b16 %v926, %v922
  %v1283 = vpack.c.b16 %v931, %v927
  %v1284 = vpack.c.b16 %v932, %v928
  %v1285 = vpack.c.b16 %v933, %v929
  %v1286 = vpack.c.b16 %v934, %v930
  %v1287 = vpack.c.b16 %v939, %v935
  %v1288 = vpack.c.b16 %v940, %v936
  %v1289 = vpack.c.b16 %v941, %v937
  %v1290 = vpack.c.b16 %v942, %v938
  %v1291 = vpack.c.b16 %v947, %v943
  %v1292 = vpack.c.b16 %v948, %v944
  %v1293 = vpack.c.b16 %v949, %v945
  %v1294 = vpack.c.b16 %v950, %v946
  %v1295 = vpack.c.b16 %v955, %v951
  %v1296 = vpack.c.b16 %v956, %v952
  %v1297 = vpack.c.b16 %v957, %v953
  %v1298 = vpack.c.b16 %v958, %v954
  %v1299 = vpack.c.b16 %v963, %v959
  %v1300 = vpack.c.b16 %v964, %v960
  %v1301 = vpack.c.b16 %v965, %v961
  %v1302 = vpack.c.b16 %v966, %v962
  %v1303 = vpack.c.b16 %v971, %v967
  %v1304 = vpack.c.b16 %v972, %v968
  %v1305 = vpack.c.b16 %v973, %v969
  %v1306 = vpack.c.b16 %v974, %v970
  %v1307 = vpack.c.b16 %v979, %v975
  %v1308 = vpack.c.b16 %v980, %v976
  %v1309 = vpack.c.b16 %v981, %v977
  %v1310 = vpack.c.b16 %v982, %v978
  %v1311 = vpack.c.b16 %v987, %v983
  %v1312 = vpack.c.b16 %v988, %v984
  %v1313 = vpack.c.b16 %v989, %v985
  %v1314 = vpack.c.b16 %v990, %v986
  %v1315 = vpack.c.b16 %v995, %v991
  %v1316 = vpack.c.b16 %v996, %v992
  %v1317 = vpack.c.b16 %v997, %v993
  %v1318 = vpack.c.b16 %v998, %v994
  %v1319 = vpack.c.b16 %v1003, %v999
  %v1320 = vpack.c.b16 %v1004, %v1000
  %v1321 = vpack.c.b16 %v1005, %v1001
  %v1322 = vpack.c.b16 %v1006, %v1002
  %v1323 = vpack.c.b16 %v1011, %v1007
  %v1324 = vpack.c.b16 %v1012, %v1008
  %v1325 = vpack.c.b16 %v1013, %v1009
  %v1326 = vpack.c.b16 %v1014, %v1010
  %v1327 = vpack.c.b16 %v1019, %v1015
  %v1328 = vpack.c.b16 %v1020, %v1016
  %v1329 = vpack.c.b16 %v1021, %v1017
  %v1330 = vpack.c.b16 %v1022, %v1018
  %v1331 = vpack.c.b16 %v1027, %v1023
  %v1332 = vpack.c.b16 %v1028, %v1024
  %v1333 = vpack.c.b16 %v1029, %v1025
  %v1334 = vpack.c.b16 %v1030, %v1026
  %v1335 = vpack.c.b16 %v1035, %v1031
  %v1336 = vpack.c.b16 %v1036, %v1032
  %v1337 = vpack.c.b16 %v1037, %v1033
  %v1338 = vpack.c.b16 %v1038, %v1034
  %v1339 = vpack.c.b16 %v1043, %v1039
  %v1340 = vpack.c.b16 %v1044, %v1040
  %v1341 = vpack.c.b16 %v1045, %v1041
  %v1342 = vpack.c.b16 %v1046, %v1042
  %v1343 = vpack.c.b16 %v1051, %v1047
  %v1344 = vpack.c.b16 %v1052, %v1048
  %v1345 = vpack.c.b16 %v1053, %v1049
  %v1346 = vpack.c.b16 %v1054, %v1050
  %v1347 = vpack.c.b16 %v1059, %v1055
  %v1348 = vpack.c.b16 %v1060, %v1056
  %v1349 = vpack.c.b16 %v1061, %v1057
  %v1350 = vpack.c.b16 %v1062, %v1058
  %v1351 = vpack.c.b16 %v1067, %v1063
  %v1352 = vpack.c.b16 %v1068, %v1064
  %v1353 = vpack.c.b16 %v1069, %v1065
  %v1354 = vpack.c.b16 %v1070, %v1066
  %v1355 = vpack.c.b16 %v1075, %v1071
  %v1356 = vpack.c.b16 %v1076, %v1072
  %v1357 = vpack.c.b16 %v1077, %v1073
  %v1358 = vpack.c.b16 %v1078, %v1074
  %v1359 = vpack.c.b16 %v1083, %v1079
  %v1360 = vpack.c.b16 %v1084, %v1080
  %v1361 = vpack.c.b16 %v1085, %v1081
  %v1362 = vpack.c.b16 %v1086, %v1082
  %v1363 = vpack.c.b16 %v1091, %v1087
  %v1364 = vpack.c.b16 %v1092, %v1088
  %v1365 = vpack.c.b16 %v1093, %v1089
  %v1366 = vpack.c.b16 %v1094, %v1090
  %v1367 = vpack.c.b16 %v1099, %v1095
  %v1368 = vpack.c.b16 %v1100, %v1096
  %v1369 = vpack.c.b16 %v1101, %v1097
  %v1370 = vpack.c.b16 %v1102, %v1098
  %v1371 = vpack.c.b16 %v1107, %v1103
  %v1372 = vpack.c.b16 %v1108, %v1104
  %v1373 = vpack.c.b16 %v1109, %v1105
  %v1374 = vpack.c.b16 %v1110, %v1106
  %v1375 = vpack.c.b16 %v1115, %v1111
  %v1376 = vpack.c.b16 %v1116, %v1112
  %v1377 = vpack.c.b16 %v1117, %v1113
  %v1378 = vpack.c.b16 %v1118, %v1114
  %v1379 = vpack.c.b16 %v1123, %v1119
  %v1380 = vpack.c.b16 %v1124, %v1120
  %v1381 = vpack.c.b16 %v1125, %v1121
  %v1382 = vpack.c.b16 %v1126, %v1122
  %1639 = vmatprep.subr.bf16.mxu0 %v1128
  %1640 = vmatpush1.bf16.msra.mxu0 %v1127
  %1641 = vmatprep.subr.bf16.mxu0 %v1132
  %1642 = vmatpush1.bf16.msra.mxu0 %v1131
  %1643 = vmatprep.subr.bf16.mxu0 %v1136
  %1644 = vmatpush1.bf16.msra.mxu0 %v1135
  %1645 = vmatprep.subr.bf16.mxu0 %v1140
  %1646 = vmatpush1.bf16.msra.mxu0 %v1139
  %1647 = vmatprep.subr.bf16.mxu0 %v1144
  %1648 = vmatpush1.bf16.msra.mxu0 %v1143
  %1649 = vmatprep.subr.bf16.mxu0 %v1148
  %1650 = vmatpush1.bf16.msra.mxu0 %v1147
  %1651 = vmatprep.subr.bf16.mxu0 %v1152
  %1652 = vmatpush1.bf16.msra.mxu0 %v1151
  %1653 = vmatprep.subr.bf16.mxu0 %v1156
  %1654 = vmatpush1.bf16.msra.mxu0 %v1155
  %1655 = vmatprep.subr.bf16.mxu0 %v1160
  %1656 = vmatpush1.bf16.msra.mxu0 %v1159
  %1657 = vmatprep.subr.bf16.mxu0 %v1164
  %1658 = vmatpush1.bf16.msra.mxu0 %v1163
  %1659 = vmatprep.subr.bf16.mxu0 %v1168
  %1660 = vmatpush1.bf16.msra.mxu0 %v1167
  %1661 = vmatprep.subr.bf16.mxu0 %v1172
  %1662 = vmatpush1.bf16.msra.mxu0 %v1171
  %1663 = vmatprep.subr.bf16.mxu0 %v1176
  %1664 = vmatpush1.bf16.msra.mxu0 %v1175
  %1665 = vmatprep.subr.bf16.mxu0 %v1180
  %1666 = vmatpush1.bf16.msra.mxu0 %v1179
  %1667 = vmatprep.subr.bf16.mxu0 %v1184
  %1668 = vmatpush1.bf16.msra.mxu0 %v1183
  %1669 = vmatprep.subr.bf16.mxu0 %v1188
  %1670 = vmatpush1.bf16.msra.mxu0 %v1187
  %1671 = vmatprep.mubr.bf16.mxu0 %v74
  %1672 = vmatmul.mubr.bf16.gmra.mrb[0].mxu0 %v73
  %v1673 = vpop.f32.mrb[0].mxu0
  %v1674 = vadd.f32 %v342, %v1673
  %v1675 = vpop.f32.mrb[0].mxu0
  %v1676 = vadd.f32 %v346, %v1675
  %v1677 = vpop.f32.mrb[0].mxu0
  %v1678 = vpop.f32.mrb[0].mxu0
  %1679 = vdwg.mxu0
  %1680 = vmatprep.subr.bf16.mxu0 %v1192
  %1681 = vmatpush1.bf16.msra.mxu0 %v1191
  %1682 = vmatprep.subr.bf16.mxu0 %v1196
  %1683 = vmatpush1.bf16.msra.mxu0 %v1195
  %1684 = vmatprep.subr.bf16.mxu0 %v1200
  %1685 = vmatpush1.bf16.msra.mxu0 %v1199
  %1686 = vmatprep.subr.bf16.mxu0 %v1204
  %1687 = vmatpush1.bf16.msra.mxu0 %v1203
  %1688 = vmatprep.subr.bf16.mxu0 %v1208
  %1689 = vmatpush1.bf16.msra.mxu0 %v1207
  %1690 = vmatprep.subr.bf16.mxu0 %v1212
  %1691 = vmatpush1.bf16.msra.mxu0 %v1211
  %1692 = vmatprep.subr.bf16.mxu0 %v1216
  %1693 = vmatpush1.bf16.msra.mxu0 %v1215
  %1694 = vmatprep.subr.bf16.mxu0 %v1220
  %1695 = vmatpush1.bf16.msra.mxu0 %v1219
  %1696 = vmatprep.subr.bf16.mxu0 %v1224
  %1697 = vmatpush1.bf16.msra.mxu0 %v1223
  %1698 = vmatprep.subr.bf16.mxu0 %v1228
  %1699 = vmatpush1.bf16.msra.mxu0 %v1227
  %1700 = vmatprep.subr.bf16.mxu0 %v1232
  %1701 = vmatpush1.bf16.msra.mxu0 %v1231
  %1702 = vmatprep.subr.bf16.mxu0 %v1236
  %1703 = vmatpush1.bf16.msra.mxu0 %v1235
  %1704 = vmatprep.subr.bf16.mxu0 %v1240
  %1705 = vmatpush1.bf16.msra.mxu0 %v1239
  %1706 = vmatprep.subr.bf16.mxu0 %v1244
  %1707 = vmatpush1.bf16.msra.mxu0 %v1243
  %1708 = vmatprep.subr.bf16.mxu0 %v1248
  %1709 = vmatpush1.bf16.msra.mxu0 %v1247
  %1710 = vmatprep.subr.bf16.mxu0 %v1252
  %1711 = vmatpush1.bf16.msra.mxu0 %v1251
  %1712 = vmatprep.mubr.bf16.mxu0 %v76
  %1713 = vmatmul.mubr.bf16.gmra.mrb[0].mxu0 %v75
  %v1714 = vpop.f32.mrb[0].mxu0
  %v1715 = vadd.f32 %v1674, %v1714
  %v1716 = vpop.f32.mrb[0].mxu0
  %v1717 = vadd.f32 %v1676, %v1716
  %v1718 = vpop.f32.mrb[0].mxu0
  %v1719 = vpop.f32.mrb[0].mxu0
  %1720 = vdwg.mxu0
  %1721 = vmatprep.subr.bf16.mxu0 %v1256
  %1722 = vmatpush1.bf16.msra.mxu0 %v1255
  %1723 = vmatprep.subr.bf16.mxu0 %v1260
  %1724 = vmatpush1.bf16.msra.mxu0 %v1259
  %1725 = vmatprep.subr.bf16.mxu0 %v1264
  %1726 = vmatpush1.bf16.msra.mxu0 %v1263
  %1727 = vmatprep.subr.bf16.mxu0 %v1268
  %1728 = vmatpush1.bf16.msra.mxu0 %v1267
  %1729 = vmatprep.subr.bf16.mxu0 %v1272
  %1730 = vmatpush1.bf16.msra.mxu0 %v1271
  %1731 = vmatprep.subr.bf16.mxu0 %v1276
  %1732 = vmatpush1.bf16.msra.mxu0 %v1275
  %1733 = vmatprep.subr.bf16.mxu0 %v1280
  %1734 = vmatpush1.bf16.msra.mxu0 %v1279
  %1735 = vmatprep.subr.bf16.mxu0 %v1284
  %1736 = vmatpush1.bf16.msra.mxu0 %v1283
  %1737 = vmatprep.subr.bf16.mxu0 %v1288
  %1738 = vmatpush1.bf16.msra.mxu0 %v1287
  %1739 = vmatprep.subr.bf16.mxu0 %v1292
  %1740 = vmatpush1.bf16.msra.mxu0 %v1291
  %1741 = vmatprep.subr.bf16.mxu0 %v1296
  %1742 = vmatpush1.bf16.msra.mxu0 %v1295
  %1743 = vmatprep.subr.bf16.mxu0 %v1300
  %1744 = vmatpush1.bf16.msra.mxu0 %v1299
  %1745 = vmatprep.subr.bf16.mxu0 %v1304
  %1746 = vmatpush1.bf16.msra.mxu0 %v1303
  %1747 = vmatprep.subr.bf16.mxu0 %v1308
  %1748 = vmatpush1.bf16.msra.mxu0 %v1307
  %1749 = vmatprep.subr.bf16.mxu0 %v1312
  %1750 = vmatpush1.bf16.msra.mxu0 %v1311
  %1751 = vmatprep.subr.bf16.mxu0 %v1316
  %1752 = vmatpush1.bf16.msra.mxu0 %v1315
  %1753 = vmatprep.mubr.bf16.mxu0 %v78
  %1754 = vmatmul.mubr.bf16.gmra.mrb[0].mxu0 %v77
  %v1755 = vpop.f32.mrb[0].mxu0
  %v1756 = vadd.f32 %v1715, %v1755
  %v1757 = vpop.f32.mrb[0].mxu0
  %v1758 = vadd.f32 %v1717, %v1757
  %v1759 = vpop.f32.mrb[0].mxu0
  %v1760 = vpop.f32.mrb[0].mxu0
  %1761 = vdwg.mxu0
  %1762 = vmatprep.subr.bf16.mxu0 %v1320
  %1763 = vmatpush1.bf16.msra.mxu0 %v1319
  %1764 = vmatprep.subr.bf16.mxu0 %v1324
  %1765 = vmatpush1.bf16.msra.mxu0 %v1323
  %1766 = vmatprep.subr.bf16.mxu0 %v1328
  %1767 = vmatpush1.bf16.msra.mxu0 %v1327
  %1768 = vmatprep.subr.bf16.mxu0 %v1332
  %1769 = vmatpush1.bf16.msra.mxu0 %v1331
  %1770 = vmatprep.subr.bf16.mxu0 %v1336
  %1771 = vmatpush1.bf16.msra.mxu0 %v1335
  %1772 = vmatprep.subr.bf16.mxu0 %v1340
  %1773 = vmatpush1.bf16.msra.mxu0 %v1339
  %1774 = vmatprep.subr.bf16.mxu0 %v1344
  %1775 = vmatpush1.bf16.msra.mxu0 %v1343
  %1776 = vmatprep.subr.bf16.mxu0 %v1348
  %1777 = vmatpush1.bf16.msra.mxu0 %v1347
  %1778 = vmatprep.subr.bf16.mxu0 %v1352
  %1779 = vmatpush1.bf16.msra.mxu0 %v1351
  %1780 = vmatprep.subr.bf16.mxu0 %v1356
  %1781 = vmatpush1.bf16.msra.mxu0 %v1355
  %1782 = vmatprep.subr.bf16.mxu0 %v1360
  %1783 = vmatpush1.bf16.msra.mxu0 %v1359
  %1784 = vmatprep.subr.bf16.mxu0 %v1364
  %1785 = vmatpush1.bf16.msra.mxu0 %v1363
  %1786 = vmatprep.subr.bf16.mxu0 %v1368
  %1787 = vmatpush1.bf16.msra.mxu0 %v1367
  %1788 = vmatprep.subr.bf16.mxu0 %v1372
  %1789 = vmatpush1.bf16.msra.mxu0 %v1371
  %1790 = vmatprep.subr.bf16.mxu0 %v1376
  %1791 = vmatpush1.bf16.msra.mxu0 %v1375
  %1792 = vmatprep.subr.bf16.mxu0 %v1380
  %1793 = vmatpush1.bf16.msra.mxu0 %v1379
  %1794 = vmatprep.mubr.bf16.mxu0 %v80
  %1795 = vmatmul.mubr.bf16.gmra.mrb[0].mxu0 %v79
  %v1796 = vpop.f32.mrb[0].mxu0
  %v1797 = vadd.f32 %v1756, %v1796
  %v1798 = vpop.f32.mrb[0].mxu0
  %v1799 = vadd.f32 %v1758, %v1798
  %v1800 = vpop.f32.mrb[0].mxu0
  %v1801 = vpop.f32.mrb[0].mxu0
  %1802 = vdwg.mxu0
  %1803 = vmatprep.subr.bf16.mxu0 %v1130
  %1804 = vmatpush1.bf16.msra.mxu0 %v1129
  %1805 = vmatprep.subr.bf16.mxu0 %v1134
  %1806 = vmatpush1.bf16.msra.mxu0 %v1133
  %1807 = vmatprep.subr.bf16.mxu0 %v1138
  %1808 = vmatpush1.bf16.msra.mxu0 %v1137
  %1809 = vmatprep.subr.bf16.mxu0 %v1142
  %1810 = vmatpush1.bf16.msra.mxu0 %v1141
  %1811 = vmatprep.subr.bf16.mxu0 %v1146
  %1812 = vmatpush1.bf16.msra.mxu0 %v1145
  %1813 = vmatprep.subr.bf16.mxu0 %v1150
  %1814 = vmatpush1.bf16.msra.mxu0 %v1149
  %1815 = vmatprep.subr.bf16.mxu0 %v1154
  %1816 = vmatpush1.bf16.msra.mxu0 %v1153
  %1817 = vmatprep.subr.bf16.mxu0 %v1158
  %1818 = vmatpush1.bf16.msra.mxu0 %v1157
  %1819 = vmatprep.subr.bf16.mxu0 %v1162
  %1820 = vmatpush1.bf16.msra.mxu0 %v1161
  %1821 = vmatprep.subr.bf16.mxu0 %v1166
  %1822 = vmatpush1.bf16.msra.mxu0 %v1165
  %1823 = vmatprep.subr.bf16.mxu0 %v1170
  %1824 = vmatpush1.bf16.msra.mxu0 %v1169
  %1825 = vmatprep.subr.bf16.mxu0 %v1174
  %1826 = vmatpush1.bf16.msra.mxu0 %v1173
  %1827 = vmatprep.subr.bf16.mxu0 %v1178
  %1828 = vmatpush1.bf16.msra.mxu0 %v1177
  %1829 = vmatprep.subr.bf16.mxu0 %v1182
  %1830 = vmatpush1.bf16.msra.mxu0 %v1181
  %1831 = vmatprep.subr.bf16.mxu0 %v1186
  %1832 = vmatpush1.bf16.msra.mxu0 %v1185
  %1833 = vmatprep.subr.bf16.mxu0 %v1190
  %1834 = vmatpush1.bf16.msra.mxu0 %v1189
  %1835 = vmatprep.mubr.bf16.mxu0 %v74
  %1836 = vmatmul.mubr.bf16.gmra.mrb[0].mxu0 %v73
  %v1837 = vpop.f32.mrb[0].mxu0
  %v1838 = vadd.f32 %v350, %v1837
  %v1839 = vpop.f32.mrb[0].mxu0
  %v1840 = vadd.f32 %v354, %v1839
  %v1841 = vpop.f32.mrb[0].mxu0
  %v1842 = vpop.f32.mrb[0].mxu0
  %1843 = vdwg.mxu0
  %1844 = vmatprep.subr.bf16.mxu0 %v1194
  %1845 = vmatpush1.bf16.msra.mxu0 %v1193
  %1846 = vmatprep.subr.bf16.mxu0 %v1198
  %1847 = vmatpush1.bf16.msra.mxu0 %v1197
  %1848 = vmatprep.subr.bf16.mxu0 %v1202
  %1849 = vmatpush1.bf16.msra.mxu0 %v1201
  %1850 = vmatprep.subr.bf16.mxu0 %v1206
  %1851 = vmatpush1.bf16.msra.mxu0 %v1205
  %1852 = vmatprep.subr.bf16.mxu0 %v1210
  %1853 = vmatpush1.bf16.msra.mxu0 %v1209
  %1854 = vmatprep.subr.bf16.mxu0 %v1214
  %1855 = vmatpush1.bf16.msra.mxu0 %v1213
  %1856 = vmatprep.subr.bf16.mxu0 %v1218
  %1857 = vmatpush1.bf16.msra.mxu0 %v1217
  %1858 = vmatprep.subr.bf16.mxu0 %v1222
  %1859 = vmatpush1.bf16.msra.mxu0 %v1221
  %1860 = vmatprep.subr.bf16.mxu0 %v1226
  %1861 = vmatpush1.bf16.msra.mxu0 %v1225
  %1862 = vmatprep.subr.bf16.mxu0 %v1230
  %1863 = vmatpush1.bf16.msra.mxu0 %v1229
  %1864 = vmatprep.subr.bf16.mxu0 %v1234
  %1865 = vmatpush1.bf16.msra.mxu0 %v1233
  %1866 = vmatprep.subr.bf16.mxu0 %v1238
  %1867 = vmatpush1.bf16.msra.mxu0 %v1237
  %1868 = vmatprep.subr.bf16.mxu0 %v1242
  %1869 = vmatpush1.bf16.msra.mxu0 %v1241
  %1870 = vmatprep.subr.bf16.mxu0 %v1246
  %1871 = vmatpush1.bf16.msra.mxu0 %v1245
  %1872 = vmatprep.subr.bf16.mxu0 %v1250
  %1873 = vmatpush1.bf16.msra.mxu0 %v1249
  %1874 = vmatprep.subr.bf16.mxu0 %v1254
  %1875 = vmatpush1.bf16.msra.mxu0 %v1253
  %1876 = vmatprep.mubr.bf16.mxu0 %v76
  %1877 = vmatmul.mubr.bf16.gmra.mrb[0].mxu0 %v75
  %v1878 = vpop.f32.mrb[0].mxu0
  %v1879 = vadd.f32 %v1838, %v1878
  %v1880 = vpop.f32.mrb[0].mxu0
  %v1881 = vadd.f32 %v1840, %v1880
  %v1882 = vpop.f32.mrb[0].mxu0
  %v1883 = vpop.f32.mrb[0].mxu0
  %1884 = vdwg.mxu0
  %1885 = vmatprep.subr.bf16.mxu0 %v1258
  %1886 = vmatpush1.bf16.msra.mxu0 %v1257
  %1887 = vmatprep.subr.bf16.mxu0 %v1262
  %1888 = vmatpush1.bf16.msra.mxu0 %v1261
  %1889 = vmatprep.subr.bf16.mxu0 %v1266
  %1890 = vmatpush1.bf16.msra.mxu0 %v1265
  %1891 = vmatprep.subr.bf16.mxu0 %v1270
  %1892 = vmatpush1.bf16.msra.mxu0 %v1269
  %1893 = vmatprep.subr.bf16.mxu0 %v1274
  %1894 = vmatpush1.bf16.msra.mxu0 %v1273
  %1895 = vmatprep.subr.bf16.mxu0 %v1278
  %1896 = vmatpush1.bf16.msra.mxu0 %v1277
  %1897 = vmatprep.subr.bf16.mxu0 %v1282
  %1898 = vmatpush1.bf16.msra.mxu0 %v1281
  %1899 = vmatprep.subr.bf16.mxu0 %v1286
  %1900 = vmatpush1.bf16.msra.mxu0 %v1285
  %1901 = vmatprep.subr.bf16.mxu0 %v1290
  %1902 = vmatpush1.bf16.msra.mxu0 %v1289
  %1903 = vmatprep.subr.bf16.mxu0 %v1294
  %1904 = vmatpush1.bf16.msra.mxu0 %v1293
  %1905 = vmatprep.subr.bf16.mxu0 %v1298
  %1906 = vmatpush1.bf16.msra.mxu0 %v1297
  %1907 = vmatprep.subr.bf16.mxu0 %v1302
  %1908 = vmatpush1.bf16.msra.mxu0 %v1301
  %1909 = vmatprep.subr.bf16.mxu0 %v1306
  %1910 = vmatpush1.bf16.msra.mxu0 %v1305
  %1911 = vmatprep.subr.bf16.mxu0 %v1310
  %1912 = vmatpush1.bf16.msra.mxu0 %v1309
  %1913 = vmatprep.subr.bf16.mxu0 %v1314
  %1914 = vmatpush1.bf16.msra.mxu0 %v1313
  %1915 = vmatprep.subr.bf16.mxu0 %v1318
  %1916 = vmatpush1.bf16.msra.mxu0 %v1317
  %1917 = vmatprep.mubr.bf16.mxu0 %v78
  %1918 = vmatmul.mubr.bf16.gmra.mrb[0].mxu0 %v77
  %v1919 = vpop.f32.mrb[0].mxu0
  %v1920 = vadd.f32 %v1879, %v1919
  %v1921 = vpop.f32.mrb[0].mxu0
  %v1922 = vadd.f32 %v1881, %v1921
  %v1923 = vpop.f32.mrb[0].mxu0
  %v1924 = vpop.f32.mrb[0].mxu0
  %1925 = vdwg.mxu0
  %1926 = vmatprep.subr.bf16.mxu0 %v1322
  %1927 = vmatpush1.bf16.msra.mxu0 %v1321
  %1928 = vmatprep.subr.bf16.mxu0 %v1326
  %1929 = vmatpush1.bf16.msra.mxu0 %v1325
  %1930 = vmatprep.subr.bf16.mxu0 %v1330
  %1931 = vmatpush1.bf16.msra.mxu0 %v1329
  %1932 = vmatprep.subr.bf16.mxu0 %v1334
  %1933 = vmatpush1.bf16.msra.mxu0 %v1333
  %1934 = vmatprep.subr.bf16.mxu0 %v1338
  %1935 = vmatpush1.bf16.msra.mxu0 %v1337
  %1936 = vmatprep.subr.bf16.mxu0 %v1342
  %1937 = vmatpush1.bf16.msra.mxu0 %v1341
  %1938 = vmatprep.subr.bf16.mxu0 %v1346
  %1939 = vmatpush1.bf16.msra.mxu0 %v1345
  %1940 = vmatprep.subr.bf16.mxu0 %v1350
  %1941 = vmatpush1.bf16.msra.mxu0 %v1349
  %1942 = vmatprep.subr.bf16.mxu0 %v1354
  %1943 = vmatpush1.bf16.msra.mxu0 %v1353
  %1944 = vmatprep.subr.bf16.mxu0 %v1358
  %1945 = vmatpush1.bf16.msra.mxu0 %v1357
  %1946 = vmatprep.subr.bf16.mxu0 %v1362
  %1947 = vmatpush1.bf16.msra.mxu0 %v1361
  %1948 = vmatprep.subr.bf16.mxu0 %v1366
  %1949 = vmatpush1.bf16.msra.mxu0 %v1365
  %1950 = vmatprep.subr.bf16.mxu0 %v1370
  %1951 = vmatpush1.bf16.msra.mxu0 %v1369
  %1952 = vmatprep.subr.bf16.mxu0 %v1374
  %1953 = vmatpush1.bf16.msra.mxu0 %v1373
  %1954 = vmatprep.subr.bf16.mxu0 %v1378
  %1955 = vmatpush1.bf16.msra.mxu0 %v1377
  %1956 = vmatprep.subr.bf16.mxu0 %v1382
  %1957 = vmatpush1.bf16.msra.mxu0 %v1381
  %1958 = vmatprep.mubr.bf16.mxu0 %v80
  %1959 = vmatmul.mubr.bf16.gmra.mrb[0].mxu0 %v79
  %v1960 = vpop.f32.mrb[0].mxu0
  %v1961 = vadd.f32 %v1920, %v1960
  %v1962 = vpop.f32.mrb[0].mxu0
  %v1963 = vadd.f32 %v1922, %v1962
  %v1964 = vpop.f32.mrb[0].mxu0
  %v1965 = vpop.f32.mrb[0].mxu0
  %1966 = vdwg.mxu0
  %v1967 = vmax.f32 %v1797, 0.0
  %v1968 = vmax.f32 %v1799, 0.0
  %v1969 = vmax.f32 %v1961, 0.0
  %v1970 = vmax.f32 %v1963, 0.0
  %v1971 = vpack.c.bf16 %v1967, %v1967
  %v1972 = vpack.c.bf16 %v1968, %v1968
  %v1973 = vpack.c.bf16 %v1969, %v1969
  %v1974 = vpack.c.bf16 %v1970, %v1970
  %v1975 = vld [vmem:[%s3] sm:$0xff]
  %v1976 = vld [vmem:[%s3 + $0x8] sm:$0xff]
  %v1977 = vld [vmem:[%s3 + $0x10] sm:$0xff]
  %v1978 = vld [vmem:[%s3 + $0x18] sm:$0xff]
  %v1979 = vld [vmem:[%s3 + $0x20] sm:$0xff]
  %v1980 = vld [vmem:[%s3 + $0x28] sm:$0xff]
  %v1981 = vld [vmem:[%s3 + $0x30] sm:$0xff]
  %v1982 = vld [vmem:[%s3 + $0x38] sm:$0xff]
  %v1983 = vld [vmem:[%s3 + $0x40] sm:$0xff]
  %v1984 = vld [vmem:[%s3 + $0x48] sm:$0xff]
  %v1985 = vld [vmem:[%s3 + $0x50] sm:$0xff]
  %v1986 = vld [vmem:[%s3 + $0x58] sm:$0xff]
  %v1987 = vld [vmem:[%s3 + $0x60] sm:$0xff]
  %v1988 = vld [vmem:[%s3 + $0x68] sm:$0xff]
  %v1989 = vld [vmem:[%s3 + $0x70] sm:$0xff]
  %v1990 = vld [vmem:[%s3 + $0x78] sm:$0xff]
  %v1991 = vld [vmem:[%s3 + $0x80] sm:$0xff]
  %v1992 = vld [vmem:[%s3 + $0x88] sm:$0xff]
  %v1993 = vld [vmem:[%s3 + $0x90] sm:$0xff]
  %v1994 = vld [vmem:[%s3 + $0x98] sm:$0xff]
  %v1995 = vld [vmem:[%s3 + $0xa0] sm:$0xff]
  %v1996 = vld [vmem:[%s3 + $0xa8] sm:$0xff]
  %v1997 = vld [vmem:[%s3 + $0xb0] sm:$0xff]
  %v1998 = vld [vmem:[%s3 + $0xb8] sm:$0xff]
  %v1999 = vld [vmem:[%s3 + $0xc0] sm:$0xff]
  %v2000 = vld [vmem:[%s3 + $0xc8] sm:$0xff]
  %v2001 = vld [vmem:[%s3 + $0xd0] sm:$0xff]
  %v2002 = vld [vmem:[%s3 + $0xd8] sm:$0xff]
  %v2003 = vld [vmem:[%s3 + $0xe0] sm:$0xff]
  %v2004 = vld [vmem:[%s3 + $0xe8] sm:$0xff]
  %v2005 = vld [vmem:[%s3 + $0xf0] sm:$0xff]
  %v2006 = vld [vmem:[%s3 + $0xf8] sm:$0xff]
  %v2007 = vld [vmem:[%s3 + $0x100] sm:$0xff]
  %v2008 = vld [vmem:[%s3 + $0x108] sm:$0xff]
  %v2009 = vld [vmem:[%s3 + $0x110] sm:$0xff]
  %v2010 = vld [vmem:[%s3 + $0x118] sm:$0xff]
  %v2011 = vld [vmem:[%s3 + $0x120] sm:$0xff]
  %v2012 = vld [vmem:[%s3 + $0x128] sm:$0xff]
  %v2013 = vld [vmem:[%s3 + $0x130] sm:$0xff]
  %v2014 = vld [vmem:[%s3 + $0x138] sm:$0xff]
  %v2015 = vld [vmem:[%s3 + $0x140] sm:$0xff]
  %v2016 = vld [vmem:[%s3 + $0x148] sm:$0xff]
  %v2017 = vld [vmem:[%s3 + $0x150] sm:$0xff]
  %v2018 = vld [vmem:[%s3 + $0x158] sm:$0xff]
  %v2019 = vld [vmem:[%s3 + $0x160] sm:$0xff]
  %v2020 = vld [vmem:[%s3 + $0x168] sm:$0xff]
  %v2021 = vld [vmem:[%s3 + $0x170] sm:$0xff]
  %v2022 = vld [vmem:[%s3 + $0x178] sm:$0xff]
  %v2023 = vld [vmem:[%s3 + $0x180] sm:$0xff]
  %v2024 = vld [vmem:[%s3 + $0x188] sm:$0xff]
  %v2025 = vld [vmem:[%s3 + $0x190] sm:$0xff]
  %v2026 = vld [vmem:[%s3 + $0x198] sm:$0xff]
  %v2027 = vld [vmem:[%s3 + $0x1a0] sm:$0xff]
  %v2028 = vld [vmem:[%s3 + $0x1a8] sm:$0xff]
  %v2029 = vld [vmem:[%s3 + $0x1b0] sm:$0xff]
  %v2030 = vld [vmem:[%s3 + $0x1b8] sm:$0xff]
  %v2031 = vld [vmem:[%s3 + $0x1c0] sm:$0xff]
  %v2032 = vld [vmem:[%s3 + $0x1c8] sm:$0xff]
  %v2033 = vld [vmem:[%s3 + $0x1d0] sm:$0xff]
  %v2034 = vld [vmem:[%s3 + $0x1d8] sm:$0xff]
  %v2035 = vld [vmem:[%s3 + $0x1e0] sm:$0xff]
  %v2036 = vld [vmem:[%s3 + $0x1e8] sm:$0xff]
  %v2037 = vld [vmem:[%s3 + $0x1f0] sm:$0xff]
  %v2038 = vld [vmem:[%s3 + $0x1f8] sm:$0xff]
  %v2039 = vld [vmem:[%s4] sm:$0x3]
  %v2041 = vlaneseq
  %v2042 = vshrl.u32 %v2041, 7
  %v2043 = vsub.s32 0, %v2042
  %v2044 = vrot.slane %v2039, %v2043
  %v2045 = vlaneseq
  %v2046 = vshrl.u32 %v2045, 7
  %v2047 = vsub.s32 1, %v2046
  %v2048 = vrot.slane %v2039, %v2047
  %v2115 = vunpack.c.l.b16 %v1975
  %v2116 = vunpack.c.h.b16 %v1975
  %v2117 = vunpack.c.l.b16 %v1976
  %v2118 = vunpack.c.h.b16 %v1976
  %v2119 = vunpack.c.l.b16 %v1977
  %v2120 = vunpack.c.h.b16 %v1977
  %v2121 = vunpack.c.l.b16 %v1978
  %v2122 = vunpack.c.h.b16 %v1978
  %v2123 = vunpack.c.l.b16 %v1979
  %v2124 = vunpack.c.h.b16 %v1979
  %v2125 = vunpack.c.l.b16 %v1980
  %v2126 = vunpack.c.h.b16 %v1980
  %v2127 = vunpack.c.l.b16 %v1981
  %v2128 = vunpack.c.h.b16 %v1981
  %v2129 = vunpack.c.l.b16 %v1982
  %v2130 = vunpack.c.h.b16 %v1982
  %v2131 = vunpack.c.l.b16 %v1983
  %v2132 = vunpack.c.h.b16 %v1983
  %v2133 = vunpack.c.l.b16 %v1984
  %v2134 = vunpack.c.h.b16 %v1984
  %v2135 = vunpack.c.l.b16 %v1985
  %v2136 = vunpack.c.h.b16 %v1985
  %v2137 = vunpack.c.l.b16 %v1986
  %v2138 = vunpack.c.h.b16 %v1986
  %v2139 = vunpack.c.l.b16 %v1987
  %v2140 = vunpack.c.h.b16 %v1987
  %v2141 = vunpack.c.l.b16 %v1988
  %v2142 = vunpack.c.h.b16 %v1988
  %v2143 = vunpack.c.l.b16 %v1989
  %v2144 = vunpack.c.h.b16 %v1989
  %v2145 = vunpack.c.l.b16 %v1990
  %v2146 = vunpack.c.h.b16 %v1990
  %v2147 = vunpack.c.l.b16 %v1991
  %v2148 = vunpack.c.h.b16 %v1991
  %v2149 = vunpack.c.l.b16 %v1992
  %v2150 = vunpack.c.h.b16 %v1992
  %v2151 = vunpack.c.l.b16 %v1993
  %v2152 = vunpack.c.h.b16 %v1993
  %v2153 = vunpack.c.l.b16 %v1994
  %v2154 = vunpack.c.h.b16 %v1994
  %v2155 = vunpack.c.l.b16 %v1995
  %v2156 = vunpack.c.h.b16 %v1995
  %v2157 = vunpack.c.l.b16 %v1996
  %v2158 = vunpack.c.h.b16 %v1996
  %v2159 = vunpack.c.l.b16 %v1997
  %v2160 = vunpack.c.h.b16 %v1997
  %v2161 = vunpack.c.l.b16 %v1998
  %v2162 = vunpack.c.h.b16 %v1998
  %v2163 = vunpack.c.l.b16 %v1999
  %v2164 = vunpack.c.h.b16 %v1999
  %v2165 = vunpack.c.l.b16 %v2000
  %v2166 = vunpack.c.h.b16 %v2000
  %v2167 = vunpack.c.l.b16 %v2001
  %v2168 = vunpack.c.h.b16 %v2001
  %v2169 = vunpack.c.l.b16 %v2002
  %v2170 = vunpack.c.h.b16 %v2002
  %v2171 = vunpack.c.l.b16 %v2003
  %v2172 = vunpack.c.h.b16 %v2003
  %v2173 = vunpack.c.l.b16 %v2004
  %v2174 = vunpack.c.h.b16 %v2004
  %v2175 = vunpack.c.l.b16 %v2005
  %v2176 = vunpack.c.h.b16 %v2005
  %v2177 = vunpack.c.l.b16 %v2006
  %v2178 = vunpack.c.h.b16 %v2006
  %v2179 = vunpack.c.l.b16 %v2007
  %v2180 = vunpack.c.h.b16 %v2007
  %v2181 = vunpack.c.l.b16 %v2008
  %v2182 = vunpack.c.h.b16 %v2008
  %v2183 = vunpack.c.l.b16 %v2009
  %v2184 = vunpack.c.h.b16 %v2009
  %v2185 = vunpack.c.l.b16 %v2010
  %v2186 = vunpack.c.h.b16 %v2010
  %v2187 = vunpack.c.l.b16 %v2011
  %v2188 = vunpack.c.h.b16 %v2011
  %v2189 = vunpack.c.l.b16 %v2012
  %v2190 = vunpack.c.h.b16 %v2012
  %v2191 = vunpack.c.l.b16 %v2013
  %v2192 = vunpack.c.h.b16 %v2013
  %v2193 = vunpack.c.l.b16 %v2014
  %v2194 = vunpack.c.h.b16 %v2014
  %v2195 = vunpack.c.l.b16 %v2015
  %v2196 = vunpack.c.h.b16 %v2015
  %v2197 = vunpack.c.l.b16 %v2016
  %v2198 = vunpack.c.h.b16 %v2016
  %v2199 = vunpack.c.l.b16 %v2017
  %v2200 = vunpack.c.h.b16 %v2017
  %v2201 = vunpack.c.l.b16 %v2018
  %v2202 = vunpack.c.h.b16 %v2018
  %v2203 = vunpack.c.l.b16 %v2019
  %v2204 = vunpack.c.h.b16 %v2019
  %v2205 = vunpack.c.l.b16 %v2020
  %v2206 = vunpack.c.h.b16 %v2020
  %v2207 = vunpack.c.l.b16 %v2021
  %v2208 = vunpack.c.h.b16 %v2021
  %v2209 = vunpack.c.l.b16 %v2022
  %v2210 = vunpack.c.h.b16 %v2022
  %v2211 = vunpack.c.l.b16 %v2023
  %v2212 = vunpack.c.h.b16 %v2023
  %v2213 = vunpack.c.l.b16 %v2024
  %v2214 = vunpack.c.h.b16 %v2024
  %v2215 = vunpack.c.l.b16 %v2025
  %v2216 = vunpack.c.h.b16 %v2025
  %v2217 = vunpack.c.l.b16 %v2026
  %v2218 = vunpack.c.h.b16 %v2026
  %v2219 = vunpack.c.l.b16 %v2027
  %v2220 = vunpack.c.h.b16 %v2027
  %v2221 = vunpack.c.l.b16 %v2028
  %v2222 = vunpack.c.h.b16 %v2028
  %v2223 = vunpack.c.l.b16 %v2029
  %v2224 = vunpack.c.h.b16 %v2029
  %v2225 = vunpack.c.l.b16 %v2030
  %v2226 = vunpack.c.h.b16 %v2030
  %v2227 = vunpack.c.l.b16 %v2031
  %v2228 = vunpack.c.h.b16 %v2031
  %v2229 = vunpack.c.l.b16 %v2032
  %v2230 = vunpack.c.h.b16 %v2032
  %v2231 = vunpack.c.l.b16 %v2033
  %v2232 = vunpack.c.h.b16 %v2033
  %v2233 = vunpack.c.l.b16 %v2034
  %v2234 = vunpack.c.h.b16 %v2034
  %v2235 = vunpack.c.l.b16 %v2035
  %v2236 = vunpack.c.h.b16 %v2035
  %v2237 = vunpack.c.l.b16 %v2036
  %v2238 = vunpack.c.h.b16 %v2036
  %v2239 = vunpack.c.l.b16 %v2037
  %v2240 = vunpack.c.h.b16 %v2037
  %v2241 = vunpack.c.l.b16 %v2038
  %v2242 = vunpack.c.h.b16 %v2038
  %v2243 = vpack.c.b16 %v2117, %v2115
  %v2244 = vpack.c.b16 %v2118, %v2116
  %v2245 = vpack.c.b16 %v2121, %v2119
  %v2246 = vpack.c.b16 %v2122, %v2120
  %v2247 = vpack.c.b16 %v2125, %v2123
  %v2248 = vpack.c.b16 %v2126, %v2124
  %v2249 = vpack.c.b16 %v2129, %v2127
  %v2250 = vpack.c.b16 %v2130, %v2128
  %v2251 = vpack.c.b16 %v2133, %v2131
  %v2252 = vpack.c.b16 %v2134, %v2132
  %v2253 = vpack.c.b16 %v2137, %v2135
  %v2254 = vpack.c.b16 %v2138, %v2136
  %v2255 = vpack.c.b16 %v2141, %v2139
  %v2256 = vpack.c.b16 %v2142, %v2140
  %v2257 = vpack.c.b16 %v2145, %v2143
  %v2258 = vpack.c.b16 %v2146, %v2144
  %v2259 = vpack.c.b16 %v2149, %v2147
  %v2260 = vpack.c.b16 %v2150, %v2148
  %v2261 = vpack.c.b16 %v2153, %v2151
  %v2262 = vpack.c.b16 %v2154, %v2152
  %v2263 = vpack.c.b16 %v2157, %v2155
  %v2264 = vpack.c.b16 %v2158, %v2156
  %v2265 = vpack.c.b16 %v2161, %v2159
  %v2266 = vpack.c.b16 %v2162, %v2160
  %v2267 = vpack.c.b16 %v2165, %v2163
  %v2268 = vpack.c.b16 %v2166, %v2164
  %v2269 = vpack.c.b16 %v2169, %v2167
  %v2270 = vpack.c.b16 %v2170, %v2168
  %v2271 = vpack.c.b16 %v2173, %v2171
  %v2272 = vpack.c.b16 %v2174, %v2172
  %v2273 = vpack.c.b16 %v2177, %v2175
  %v2274 = vpack.c.b16 %v2178, %v2176
  %v2275 = vpack.c.b16 %v2181, %v2179
  %v2276 = vpack.c.b16 %v2182, %v2180
  %v2277 = vpack.c.b16 %v2185, %v2183
  %v2278 = vpack.c.b16 %v2186, %v2184
  %v2279 = vpack.c.b16 %v2189, %v2187
  %v2280 = vpack.c.b16 %v2190, %v2188
  %v2281 = vpack.c.b16 %v2193, %v2191
  %v2282 = vpack.c.b16 %v2194, %v2192
  %v2283 = vpack.c.b16 %v2197, %v2195
  %v2284 = vpack.c.b16 %v2198, %v2196
  %v2285 = vpack.c.b16 %v2201, %v2199
  %v2286 = vpack.c.b16 %v2202, %v2200
  %v2287 = vpack.c.b16 %v2205, %v2203
  %v2288 = vpack.c.b16 %v2206, %v2204
  %v2289 = vpack.c.b16 %v2209, %v2207
  %v2290 = vpack.c.b16 %v2210, %v2208
  %v2291 = vpack.c.b16 %v2213, %v2211
  %v2292 = vpack.c.b16 %v2214, %v2212
  %v2293 = vpack.c.b16 %v2217, %v2215
  %v2294 = vpack.c.b16 %v2218, %v2216
  %v2295 = vpack.c.b16 %v2221, %v2219
  %v2296 = vpack.c.b16 %v2222, %v2220
  %v2297 = vpack.c.b16 %v2225, %v2223
  %v2298 = vpack.c.b16 %v2226, %v2224
  %v2299 = vpack.c.b16 %v2229, %v2227
  %v2300 = vpack.c.b16 %v2230, %v2228
  %v2301 = vpack.c.b16 %v2233, %v2231
  %v2302 = vpack.c.b16 %v2234, %v2232
  %v2303 = vpack.c.b16 %v2237, %v2235
  %v2304 = vpack.c.b16 %v2238, %v2236
  %v2305 = vpack.c.b16 %v2241, %v2239
  %v2306 = vpack.c.b16 %v2242, %v2240
  %2371 = vmatprep.subr.bf16.mxu0 %v2244
  %2372 = vmatpush1.bf16.msra.mxu0 %v2243
  %2373 = vmatprep.subr.bf16.mxu0 %v2246
  %2374 = vmatpush1.bf16.msra.mxu0 %v2245
  %2375 = vmatprep.subr.bf16.mxu0 %v2248
  %2376 = vmatpush1.bf16.msra.mxu0 %v2247
  %2377 = vmatprep.subr.bf16.mxu0 %v2250
  %2378 = vmatpush1.bf16.msra.mxu0 %v2249
  %2379 = vmatprep.subr.bf16.mxu0 %v2252
  %2380 = vmatpush1.bf16.msra.mxu0 %v2251
  %2381 = vmatprep.subr.bf16.mxu0 %v2254
  %2382 = vmatpush1.bf16.msra.mxu0 %v2253
  %2383 = vmatprep.subr.bf16.mxu0 %v2256
  %2384 = vmatpush1.bf16.msra.mxu0 %v2255
  %2385 = vmatprep.subr.bf16.mxu0 %v2258
  %2386 = vmatpush1.bf16.msra.mxu0 %v2257
  %2387 = vmatprep.subr.bf16.mxu0 %v2260
  %2388 = vmatpush1.bf16.msra.mxu0 %v2259
  %2389 = vmatprep.subr.bf16.mxu0 %v2262
  %2390 = vmatpush1.bf16.msra.mxu0 %v2261
  %2391 = vmatprep.subr.bf16.mxu0 %v2264
  %2392 = vmatpush1.bf16.msra.mxu0 %v2263
  %2393 = vmatprep.subr.bf16.mxu0 %v2266
  %2394 = vmatpush1.bf16.msra.mxu0 %v2265
  %2395 = vmatprep.subr.bf16.mxu0 %v2268
  %2396 = vmatpush1.bf16.msra.mxu0 %v2267
  %2397 = vmatprep.subr.bf16.mxu0 %v2270
  %2398 = vmatpush1.bf16.msra.mxu0 %v2269
  %2399 = vmatprep.subr.bf16.mxu0 %v2272
  %2400 = vmatpush1.bf16.msra.mxu0 %v2271
  %2401 = vmatprep.subr.bf16.mxu0 %v2274
  %2402 = vmatpush1.bf16.msra.mxu0 %v2273
  %2403 = vmatprep.mubr.bf16.mxu0 %v1972
  %2404 = vmatmul.mubr.bf16.gmra.mrb[0].mxu0 %v1971
  %v2405 = vpop.f32.mrb[0].mxu0
  %v2406 = vadd.f32 %v2044, %v2405
  %v2407 = vpop.f32.mrb[0].mxu0
  %v2408 = vadd.f32 %v2048, %v2407
  %v2409 = vpop.f32.mrb[0].mxu0
  %v2410 = vpop.f32.mrb[0].mxu0
  %2411 = vdwg.mxu0
  %2412 = vmatprep.subr.bf16.mxu0 %v2276
  %2413 = vmatpush1.bf16.msra.mxu0 %v2275
  %2414 = vmatprep.subr.bf16.mxu0 %v2278
  %2415 = vmatpush1.bf16.msra.mxu0 %v2277
  %2416 = vmatprep.subr.bf16.mxu0 %v2280
  %2417 = vmatpush1.bf16.msra.mxu0 %v2279
  %2418 = vmatprep.subr.bf16.mxu0 %v2282
  %2419 = vmatpush1.bf16.msra.mxu0 %v2281
  %2420 = vmatprep.subr.bf16.mxu0 %v2284
  %2421 = vmatpush1.bf16.msra.mxu0 %v2283
  %2422 = vmatprep.subr.bf16.mxu0 %v2286
  %2423 = vmatpush1.bf16.msra.mxu0 %v2285
  %2424 = vmatprep.subr.bf16.mxu0 %v2288
  %2425 = vmatpush1.bf16.msra.mxu0 %v2287
  %2426 = vmatprep.subr.bf16.mxu0 %v2290
  %2427 = vmatpush1.bf16.msra.mxu0 %v2289
  %2428 = vmatprep.subr.bf16.mxu0 %v2292
  %2429 = vmatpush1.bf16.msra.mxu0 %v2291
  %2430 = vmatprep.subr.bf16.mxu0 %v2294
  %2431 = vmatpush1.bf16.msra.mxu0 %v2293
  %2432 = vmatprep.subr.bf16.mxu0 %v2296
  %2433 = vmatpush1.bf16.msra.mxu0 %v2295
  %2434 = vmatprep.subr.bf16.mxu0 %v2298
  %2435 = vmatpush1.bf16.msra.mxu0 %v2297
  %2436 = vmatprep.subr.bf16.mxu0 %v2300
  %2437 = vmatpush1.bf16.msra.mxu0 %v2299
  %2438 = vmatprep.subr.bf16.mxu0 %v2302
  %2439 = vmatpush1.bf16.msra.mxu0 %v2301
  %2440 = vmatprep.subr.bf16.mxu0 %v2304
  %2441 = vmatpush1.bf16.msra.mxu0 %v2303
  %2442 = vmatprep.subr.bf16.mxu0 %v2306
  %2443 = vmatpush1.bf16.msra.mxu0 %v2305
  %2444 = vmatprep.mubr.bf16.mxu0 %v1974
  %2445 = vmatmul.mubr.bf16.gmra.mrb[0].mxu0 %v1973
  %v2446 = vpop.f32.mrb[0].mxu0
  %v2447 = vadd.f32 %v2406, %v2446
  %v2448 = vpop.f32.mrb[0].mxu0
  %v2449 = vadd.f32 %v2408, %v2448
  %v2450 = vpop.f32.mrb[0].mxu0
  %v2451 = vpop.f32.mrb[0].mxu0
  %2452 = vdwg.mxu0
  %v2453 = vmax.f32 %v2447, 0.0
  %v2454 = vmax.f32 %v2449, 0.0
  %v2455 = vpack.c.bf16 %v2453, %v2453
  %v2456 = vpack.c.bf16 %v2454, %v2454
  %v2457 = vld [vmem:[%s5] sm:$0xf]
  %v2458 = vld [vmem:[%s5 + $0x4] sm:$0xf]
  %v2459 = vld [vmem:[%s5 + $0x8] sm:$0xf]
  %v2460 = vld [vmem:[%s5 + $0xc] sm:$0xf]
  %v2461 = vld [vmem:[%s5 + $0x10] sm:$0xf]
  %v2462 = vld [vmem:[%s5 + $0x14] sm:$0xf]
  %v2463 = vld [vmem:[%s5 + $0x18] sm:$0xf]
  %v2464 = vld [vmem:[%s5 + $0x1c] sm:$0xf]
  %v2465 = vld [vmem:[%s5 + $0x20] sm:$0xf]
  %v2466 = vld [vmem:[%s5 + $0x24] sm:$0xf]
  %v2467 = vld [vmem:[%s5 + $0x28] sm:$0xf]
  %v2468 = vld [vmem:[%s5 + $0x2c] sm:$0xf]
  %v2469 = vld [vmem:[%s5 + $0x30] sm:$0xf]
  %v2470 = vld [vmem:[%s5 + $0x34] sm:$0xf]
  %v2471 = vld [vmem:[%s5 + $0x38] sm:$0xf]
  %v2472 = vld [vmem:[%s5 + $0x3c] sm:$0xf]
  %v2473 = vld [vmem:[%s5 + $0x40] sm:$0xf]
  %v2474 = vld [vmem:[%s5 + $0x44] sm:$0xf]
  %v2475 = vld [vmem:[%s5 + $0x48] sm:$0xf]
  %v2476 = vld [vmem:[%s5 + $0x4c] sm:$0xf]
  %v2477 = vld [vmem:[%s5 + $0x50] sm:$0xf]
  %v2478 = vld [vmem:[%s5 + $0x54] sm:$0xf]
  %v2479 = vld [vmem:[%s5 + $0x58] sm:$0xf]
  %v2480 = vld [vmem:[%s5 + $0x5c] sm:$0xf]
  %v2481 = vld [vmem:[%s5 + $0x60] sm:$0xf]
  %v2482 = vld [vmem:[%s5 + $0x64] sm:$0xf]
  %v2483 = vld [vmem:[%s5 + $0x68] sm:$0xf]
  %v2484 = vld [vmem:[%s5 + $0x6c] sm:$0xf]
  %v2485 = vld [vmem:[%s5 + $0x70] sm:$0xf]
  %v2486 = vld [vmem:[%s5 + $0x74] sm:$0xf]
  %v2487 = vld [vmem:[%s5 + $0x78] sm:$0xf]
  %v2488 = vld [vmem:[%s5 + $0x7c] sm:$0xf]
  %v2489 = vld [vmem:[%s6] sm:$0x1]
  %v2491 = vlaneseq
  %v2492 = vshrl.u32 %v2491, 7
  %v2493 = vsub.s32 0, %v2492
  %v2494 = vrot.slane %v2489, %v2493
  %v2528 = vunpack.c.l.b16 %v2457
  %v2529 = vunpack.c.l.b16 %v2458
  %v2530 = vunpack.c.l.b16 %v2459
  %v2531 = vunpack.c.l.b16 %v2460
  %v2532 = vunpack.c.l.b16 %v2461
  %v2533 = vunpack.c.l.b16 %v2462
  %v2534 = vunpack.c.l.b16 %v2463
  %v2535 = vunpack.c.l.b16 %v2464
  %v2536 = vunpack.c.l.b16 %v2465
  %v2537 = vunpack.c.l.b16 %v2466
  %v2538 = vunpack.c.l.b16 %v2467
  %v2539 = vunpack.c.l.b16 %v2468
  %v2540 = vunpack.c.l.b16 %v2469
  %v2541 = vunpack.c.l.b16 %v2470
  %v2542 = vunpack.c.l.b16 %v2471
  %v2543 = vunpack.c.l.b16 %v2472
  %v2544 = vunpack.c.l.b16 %v2473
  %v2545 = vunpack.c.l.b16 %v2474
  %v2546 = vunpack.c.l.b16 %v2475
  %v2547 = vunpack.c.l.b16 %v2476
  %v2548 = vunpack.c.l.b16 %v2477
  %v2549 = vunpack.c.l.b16 %v2478
  %v2550 = vunpack.c.l.b16 %v2479
  %v2551 = vunpack.c.l.b16 %v2480
  %v2552 = vunpack.c.l.b16 %v2481
  %v2553 = vunpack.c.l.b16 %v2482
  %v2554 = vunpack.c.l.b16 %v2483
  %v2555 = vunpack.c.l.b16 %v2484
  %v2556 = vunpack.c.l.b16 %v2485
  %v2557 = vunpack.c.l.b16 %v2486
  %v2558 = vunpack.c.l.b16 %v2487
  %v2559 = vunpack.c.l.b16 %v2488
  %v2560 = vpack.c.b16 %v2529, %v2528
  %v2561 = vpack.c.b16 %v2531, %v2530
  %v2562 = vpack.c.b16 %v2533, %v2532
  %v2563 = vpack.c.b16 %v2535, %v2534
  %v2564 = vpack.c.b16 %v2537, %v2536
  %v2565 = vpack.c.b16 %v2539, %v2538
  %v2566 = vpack.c.b16 %v2541, %v2540
  %v2567 = vpack.c.b16 %v2543, %v2542
  %v2568 = vpack.c.b16 %v2545, %v2544
  %v2569 = vpack.c.b16 %v2547, %v2546
  %v2570 = vpack.c.b16 %v2549, %v2548
  %v2571 = vpack.c.b16 %v2551, %v2550
  %v2572 = vpack.c.b16 %v2553, %v2552
  %v2573 = vpack.c.b16 %v2555, %v2554
  %v2574 = vpack.c.b16 %v2557, %v2556
  %v2575 = vpack.c.b16 %v2559, %v2558
  %2592 = vmatprep.subr.bf16.mxu0 0
  %2593 = vmatpush1.bf16.msra.mxu0 %v2560
  %2594 = vmatprep.subr.bf16.mxu0 0
  %2595 = vmatpush1.bf16.msra.mxu0 %v2561
  %2596 = vmatprep.subr.bf16.mxu0 0
  %2597 = vmatpush1.bf16.msra.mxu0 %v2562
  %2598 = vmatprep.subr.bf16.mxu0 0
  %2599 = vmatpush1.bf16.msra.mxu0 %v2563
  %2600 = vmatprep.subr.bf16.mxu0 0
  %2601 = vmatpush1.bf16.msra.mxu0 %v2564
  %2602 = vmatprep.subr.bf16.mxu0 0
  %2603 = vmatpush1.bf16.msra.mxu0 %v2565
  %2604 = vmatprep.subr.bf16.mxu0 0
  %2605 = vmatpush1.bf16.msra.mxu0 %v2566
  %2606 = vmatprep.subr.bf16.mxu0 0
  %2607 = vmatpush1.bf16.msra.mxu0 %v2567
  %2608 = vmatprep.subr.bf16.mxu0 0
  %2609 = vmatpush1.bf16.msra.mxu0 %v2568
  %2610 = vmatprep.subr.bf16.mxu0 0
  %2611 = vmatpush1.bf16.msra.mxu0 %v2569
  %2612 = vmatprep.subr.bf16.mxu0 0
  %2613 = vmatpush1.bf16.msra.mxu0 %v2570
  %2614 = vmatprep.subr.bf16.mxu0 0
  %2615 = vmatpush1.bf16.msra.mxu0 %v2571
  %2616 = vmatprep.subr.bf16.mxu0 0
  %2617 = vmatpush1.bf16.msra.mxu0 %v2572
  %2618 = vmatprep.subr.bf16.mxu0 0
  %2619 = vmatpush1.bf16.msra.mxu0 %v2573
  %2620 = vmatprep.subr.bf16.mxu0 0
  %2621 = vmatpush1.bf16.msra.mxu0 %v2574
  %2622 = vmatprep.subr.bf16.mxu0 0
  %2623 = vmatpush1.bf16.msra.mxu0 %v2575
  %2624 = vmatprep.mubr.bf16.mxu0 %v2456
  %2625 = vmatmul.mubr.bf16.gmra.mrb[0].mxu0 %v2455
  %v2626 = vpop.f32.mrb[0].mxu0
  %v2627 = vadd.f32 %v2494, %v2626
  %v2628 = vpop.f32.mrb[0].mxu0
  %v2629 = vpop.f32.mrb[0].mxu0
  %v2630 = vpop.f32.mrb[0].mxu0
  %2631 = vdwg.mxu0
  %2632 = vst [vmem:[%s7] sm:$0x3] %v2627
  // Predicated region
  $region30: #{segment_forward.6} parent=0 // pred_check
    _
  $region31: #{segment_forward.6} parent=0 // pred_check_branch
    %2634 = sbr.rel (0) target = $region33
  $region32: #{segment_forward.6} parent=0 // pred_region
    _
  $region33: #{segment_forward.6} parent=0 // pred_fallthru
    _
  // Predicated region
  $region34: #{segment_forward.6} parent=0 // pred_check
    _
  $region35: #{segment_forward.6} parent=0 // pred_check_branch
    %2636 = sbr.rel (0) target = $region37
  $region36: #{segment_forward.6} parent=0 // pred_region
    _
  $region37: #{segment_forward.6} parent=0 // pred_fallthru
    _

// kernel: segment_forward.8
$region0: #{segment_forward.8}
  #allocation0 [shape = 'u32[]', space=smem, size = 0x4, offset = 0x4, fixed_abs, tag = 'smem constant byte address 0x4 - core index']
  #allocation1 [shape = 'u32[144,128]{1,0:T(1,128)}', space=vmem, size = 0x12000, scoped, tag = 'internal scratch']
  %s0 = inlined_call_operand.vmem [shape: f32[2,1024], index: 0, kind: input, shape index: {}]
  %s1 = inlined_call_operand.vmem [shape: bf16[1024,512], index: 1, kind: input, shape index: {}]
  %s2 = inlined_call_operand.vmem [shape: f32[1,512], index: 2, kind: input, shape index: {}]
  %s3 = inlined_call_operand.vmem [shape: f32[2,512], index: 3, kind: output, shape index: {}]
  %s4 = sld [smem:[#allocation0]]
  $region22: #{segment_forward.8} parent=0
    _
  %s6 = ssub.s32 1, %s4
  %s7 = scalar_select 0, %s6, %s4
  // Predicated region
  $region2: #{segment_forward.8} parent=0 // pred_check
    _
  $region3: #{segment_forward.8} parent=0 // pred_check_branch
    %9 = sbr.rel (0) target = $region5
  $region4: #{segment_forward.8} parent=0 // pred_region
    _
  $region5: #{segment_forward.8} parent=0 // pred_fallthru
    _
  // Predicated region
  $region6: #{segment_forward.8} parent=0 // pred_check
    _
  $region7: #{segment_forward.8} parent=0 // pred_check_branch
    %11 = sbr.rel (0) target = $region9
  $region8: #{segment_forward.8} parent=0 // pred_region
    _
  $region9: #{segment_forward.8} parent=0 // pred_fallthru
    _
  // Predicated region
  $region10: #{segment_forward.8} parent=0 // pred_check
    _
  $region11: #{segment_forward.8} parent=0 // pred_check_branch
    %13 = sbr.rel (0) target = $region13
  $region12: #{segment_forward.8} parent=0 // pred_region
    _
  $region13: #{segment_forward.8} parent=0 // pred_fallthru
    _
  %v14 = vld [vmem:[%s0] sm:$0xff]
  %v15 = vld [vmem:[%s0 + $0x8] sm:$0xff]
  %v18 = vcombine.high %v14, %v14
  %v20 = vunpack.c.l.s4 1983009808
  %v21 = vunpack.c.0.s8 %v20
  %v22 = vlaneseq
  %v23 = vshrl.u32 %v22, 7
  %v24 = vsub.s32 %v21, %v23
  %v25 = vrot.slane %v14, %v24
  %v27 = vunpack.c.l.s4 1983009808
  %v28 = vunpack.c.0.s8 %v27
  %v29 = vlaneseq
  %v30 = vshrl.u32 %v29, 7
  %v31 = vsub.s32 %v28, %v30
  %v32 = vrot.slane %v18, %v31
  %v33 = vcombine.high %v25, %v25
  %v34 = vcombine.high %v32, %v32
  %v35 = vcombine.high %v15, %v15
  %v37 = vunpack.c.l.s4 1983009808
  %v38 = vunpack.c.0.s8 %v37
  %v39 = vlaneseq
  %v40 = vshrl.u32 %v39, 7
  %v41 = vsub.s32 %v38, %v40
  %v42 = vrot.slane %v15, %v41
  %v44 = vunpack.c.l.s4 1983009808
  %v45 = vunpack.c.0.s8 %v44
  %v46 = vlaneseq
  %v47 = vshrl.u32 %v46, 7
  %v48 = vsub.s32 %v45, %v47
  %v49 = vrot.slane %v35, %v48
  %v50 = vcombine.high %v42, %v42
  %v51 = vcombine.high %v49, %v49
  %v60 = vpack.c.bf16 %v25, %v25
  %v61 = vpack.c.bf16 %v33, %v33
  %v62 = vpack.c.bf16 %v32, %v32
  %v63 = vpack.c.bf16 %v34, %v34
  %v64 = vpack.c.bf16 %v42, %v42
  %v65 = vpack.c.bf16 %v50, %v50
  %v66 = vpack.c.bf16 %v49, %v49
  %v67 = vpack.c.bf16 %v51, %v51
  %v68 = vld [vmem:[%s1] sm:$0xff]
  %v69 = vld [vmem:[%s1 + $0x8] sm:$0xff]
  %v70 = vld [vmem:[%s1 + $0x10] sm:$0xff]
  %v71 = vld [vmem:[%s1 + $0x18] sm:$0xff]
  %v72 = vld [vmem:[%s1 + $0x20] sm:$0xff]
  %v73 = vld [vmem:[%s1 + $0x28] sm:$0xff]
  %v74 = vld [vmem:[%s1 + $0x30] sm:$0xff]
  %v75 = vld [vmem:[%s1 + $0x38] sm:$0xff]
  %v76 = vld [vmem:[%s1 + $0x40] sm:$0xff]
  %v77 = vld [vmem:[%s1 + $0x48] sm:$0xff]
  %v78 = vld [vmem:[%s1 + $0x50] sm:$0xff]
  %v79 = vld [vmem:[%s1 + $0x58] sm:$0xff]
  %v80 = vld [vmem:[%s1 + $0x60] sm:$0xff]
  %v81 = vld [vmem:[%s1 + $0x68] sm:$0xff]
  %v82 = vld [vmem:[%s1 + $0x70] sm:$0xff]
  %v83 = vld [vmem:[%s1 + $0x78] sm:$0xff]
  %v84 = vld [vmem:[%s1 + $0x80] sm:$0xff]
  %v85 = vld [vmem:[%s1 + $0x88] sm:$0xff]
  %v86 = vld [vmem:[%s1 + $0x90] sm:$0xff]
  %v87 = vld [vmem:[%s1 + $0x98] sm:$0xff]
  %v88 = vld [vmem:[%s1 + $0xa0] sm:$0xff]
  %v89 = vld [vmem:[%s1 + $0xa8] sm:$0xff]
  %v90 = vld [vmem:[%s1 + $0xb0] sm:$0xff]
  %v91 = vld [vmem:[%s1 + $0xb8] sm:$0xff]
  %v92 = vld [vmem:[%s1 + $0xc0] sm:$0xff]
  %v93 = vld [vmem:[%s1 + $0xc8] sm:$0xff]
  %v94 = vld [vmem:[%s1 + $0xd0] sm:$0xff]
  %v95 = vld [vmem:[%s1 + $0xd8] sm:$0xff]
  %v96 = vld [vmem:[%s1 + $0xe0] sm:$0xff]
  %v97 = vld [vmem:[%s1 + $0xe8] sm:$0xff]
  %v98 = vld [vmem:[%s1 + $0xf0] sm:$0xff]
  %v99 = vld [vmem:[%s1 + $0xf8] sm:$0xff]
  %v100 = vld [vmem:[%s1 + $0x100] sm:$0xff]
  %v101 = vld [vmem:[%s1 + $0x108] sm:$0xff]
  %v102 = vld [vmem:[%s1 + $0x110] sm:$0xff]
  %v103 = vld [vmem:[%s1 + $0x118] sm:$0xff]
  %v104 = vld [vmem:[%s1 + $0x120] sm:$0xff]
  %v105 = vld [vmem:[%s1 + $0x128] sm:$0xff]
  %v106 = vld [vmem:[%s1 + $0x130] sm:$0xff]
  %v107 = vld [vmem:[%s1 + $0x138] sm:$0xff]
  %v108 = vld [vmem:[%s1 + $0x140] sm:$0xff]
  %v109 = vld [vmem:[%s1 + $0x148] sm:$0xff]
  %v110 = vld [vmem:[%s1 + $0x150] sm:$0xff]
  %v111 = vld [vmem:[%s1 + $0x158] sm:$0xff]
  %v112 = vld [vmem:[%s1 + $0x160] sm:$0xff]
  %v113 = vld [vmem:[%s1 + $0x168] sm:$0xff]
  %v114 = vld [vmem:[%s1 + $0x170] sm:$0xff]
  %v115 = vld [vmem:[%s1 + $0x178] sm:$0xff]
  %v116 = vld [vmem:[%s1 + $0x180] sm:$0xff]
  %v117 = vld [vmem:[%s1 + $0x188] sm:$0xff]
  %v118 = vld [vmem:[%s1 + $0x190] sm:$0xff]
  %v119 = vld [vmem:[%s1 + $0x198] sm:$0xff]
  %v120 = vld [vmem:[%s1 + $0x1a0] sm:$0xff]
  %v121 = vld [vmem:[%s1 + $0x1a8] sm:$0xff]
  %v122 = vld [vmem:[%s1 + $0x1b0] sm:$0xff]
  %v123 = vld [vmem:[%s1 + $0x1b8] sm:$0xff]
  %v124 = vld [vmem:[%s1 + $0x1c0] sm:$0xff]
  %v125 = vld [vmem:[%s1 + $0x1c8] sm:$0xff]
  %v126 = vld [vmem:[%s1 + $0x1d0] sm:$0xff]
  %v127 = vld [vmem:[%s1 + $0x1d8] sm:$0xff]
  %v128 = vld [vmem:[%s1 + $0x1e0] sm:$0xff]
  %v129 = vld [vmem:[%s1 + $0x1e8] sm:$0xff]
  %v130 = vld [vmem:[%s1 + $0x1f0] sm:$0xff]
  %v131 = vld [vmem:[%s1 + $0x1f8] sm:$0xff]
  %v132 = vld [vmem:[%s1 + $0x200] sm:$0xff]
  %v133 = vld [vmem:[%s1 + $0x208] sm:$0xff]
  %v134 = vld [vmem:[%s1 + $0x210] sm:$0xff]
  %v135 = vld [vmem:[%s1 + $0x218] sm:$0xff]
  %v136 = vld [vmem:[%s1 + $0x220] sm:$0xff]
  %v137 = vld [vmem:[%s1 + $0x228] sm:$0xff]
  %v138 = vld [vmem:[%s1 + $0x230] sm:$0xff]
  %v139 = vld [vmem:[%s1 + $0x238] sm:$0xff]
  %v140 = vld [vmem:[%s1 + $0x240] sm:$0xff]
  %v141 = vld [vmem:[%s1 + $0x248] sm:$0xff]
  %v142 = vld [vmem:[%s1 + $0x250] sm:$0xff]
  %v143 = vld [vmem:[%s1 + $0x258] sm:$0xff]
  %v144 = vld [vmem:[%s1 + $0x260] sm:$0xff]
  %v145 = vld [vmem:[%s1 + $0x268] sm:$0xff]
  %v146 = vld [vmem:[%s1 + $0x270] sm:$0xff]
  %v147 = vld [vmem:[%s1 + $0x278] sm:$0xff]
  %v148 = vld [vmem:[%s1 + $0x280] sm:$0xff]
  %v149 = vld [vmem:[%s1 + $0x288] sm:$0xff]
  %v150 = vld [vmem:[%s1 + $0x290] sm:$0xff]
  %v151 = vld [vmem:[%s1 + $0x298] sm:$0xff]
  %v152 = vld [vmem:[%s1 + $0x2a0] sm:$0xff]
  %v153 = vld [vmem:[%s1 + $0x2a8] sm:$0xff]
  %v154 = vld [vmem:[%s1 + $0x2b0] sm:$0xff]
  %v155 = vld [vmem:[%s1 + $0x2b8] sm:$0xff]
  %v156 = vld [vmem:[%s1 + $0x2c0] sm:$0xff]
  %v157 = vld [vmem:[%s1 + $0x2c8] sm:$0xff]
  %v158 = vld [vmem:[%s1 + $0x2d0] sm:$0xff]
  %v159 = vld [vmem:[%s1 + $0x2d8] sm:$0xff]
  %v160 = vld [vmem:[%s1 + $0x2e0] sm:$0xff]
  %v161 = vld [vmem:[%s1 + $0x2e8] sm:$0xff]
  %v162 = vld [vmem:[%s1 + $0x2f0] sm:$0xff]
  %v163 = vld [vmem:[%s1 + $0x2f8] sm:$0xff]
  %v164 = vld [vmem:[%s1 + $0x300] sm:$0xff]
  %v165 = vld [vmem:[%s1 + $0x308] sm:$0xff]
  %v166 = vld [vmem:[%s1 + $0x310] sm:$0xff]
  %v167 = vld [vmem:[%s1 + $0x318] sm:$0xff]
  %v168 = vld [vmem:[%s1 + $0x320] sm:$0xff]
  %v169 = vld [vmem:[%s1 + $0x328] sm:$0xff]
  %v170 = vld [vmem:[%s1 + $0x330] sm:$0xff]
  %v171 = vld [vmem:[%s1 + $0x338] sm:$0xff]
  %v172 = vld [vmem:[%s1 + $0x340] sm:$0xff]
  %v173 = vld [vmem:[%s1 + $0x348] sm:$0xff]
  %v174 = vld [vmem:[%s1 + $0x350] sm:$0xff]
  %v175 = vld [vmem:[%s1 + $0x358] sm:$0xff]
  %v176 = vld [vmem:[%s1 + $0x360] sm:$0xff]
  %v177 = vld [vmem:[%s1 + $0x368] sm:$0xff]
  %v178 = vld [vmem:[%s1 + $0x370] sm:$0xff]
  %v179 = vld [vmem:[%s1 + $0x378] sm:$0xff]
  %v180 = vld [vmem:[%s1 + $0x380] sm:$0xff]
  %v181 = vld [vmem:[%s1 + $0x388] sm:$0xff]
  %v182 = vld [vmem:[%s1 + $0x390] sm:$0xff]
  %v183 = vld [vmem:[%s1 + $0x398] sm:$0xff]
  %v184 = vld [vmem:[%s1 + $0x3a0] sm:$0xff]
  %v185 = vld [vmem:[%s1 + $0x3a8] sm:$0xff]
  %v186 = vld [vmem:[%s1 + $0x3b0] sm:$0xff]
  %v187 = vld [vmem:[%s1 + $0x3b8] sm:$0xff]
  %v188 = vld [vmem:[%s1 + $0x3c0] sm:$0xff]
  %v189 = vld [vmem:[%s1 + $0x3c8] sm:$0xff]
  %v190 = vld [vmem:[%s1 + $0x3d0] sm:$0xff]
  %v191 = vld [vmem:[%s1 + $0x3d8] sm:$0xff]
  %v192 = vld [vmem:[%s1 + $0x3e0] sm:$0xff]
  %v193 = vld [vmem:[%s1 + $0x3e8] sm:$0xff]
  %v194 = vld [vmem:[%s1 + $0x3f0] sm:$0xff]
  %v195 = vld [vmem:[%s1 + $0x3f8] sm:$0xff]
  %v196 = vld [vmem:[%s1 + $0x400] sm:$0xff]
  %v197 = vld [vmem:[%s1 + $0x408] sm:$0xff]
  %v198 = vld [vmem:[%s1 + $0x410] sm:$0xff]
  %v199 = vld [vmem:[%s1 + $0x418] sm:$0xff]
  %v200 = vld [vmem:[%s1 + $0x420] sm:$0xff]
  %v201 = vld [vmem:[%s1 + $0x428] sm:$0xff]
  %v202 = vld [vmem:[%s1 + $0x430] sm:$0xff]
  %v203 = vld [vmem:[%s1 + $0x438] sm:$0xff]
  %v204 = vld [vmem:[%s1 + $0x440] sm:$0xff]
  %v205 = vld [vmem:[%s1 + $0x448] sm:$0xff]
  %v206 = vld [vmem:[%s1 + $0x450] sm:$0xff]
  %v207 = vld [vmem:[%s1 + $0x458] sm:$0xff]
  %v208 = vld [vmem:[%s1 + $0x460] sm:$0xff]
  %v209 = vld [vmem:[%s1 + $0x468] sm:$0xff]
  %v210 = vld [vmem:[%s1 + $0x470] sm:$0xff]
  %v211 = vld [vmem:[%s1 + $0x478] sm:$0xff]
  %v212 = vld [vmem:[%s1 + $0x480] sm:$0xff]
  %v213 = vld [vmem:[%s1 + $0x488] sm:$0xff]
  %v214 = vld [vmem:[%s1 + $0x490] sm:$0xff]
  %v215 = vld [vmem:[%s1 + $0x498] sm:$0xff]
  %v216 = vld [vmem:[%s1 + $0x4a0] sm:$0xff]
  %v217 = vld [vmem:[%s1 + $0x4a8] sm:$0xff]
  %v218 = vld [vmem:[%s1 + $0x4b0] sm:$0xff]
  %v219 = vld [vmem:[%s1 + $0x4b8] sm:$0xff]
  %v220 = vld [vmem:[%s1 + $0x4c0] sm:$0xff]
  %v221 = vld [vmem:[%s1 + $0x4c8] sm:$0xff]
  %v222 = vld [vmem:[%s1 + $0x4d0] sm:$0xff]
  %v223 = vld [vmem:[%s1 + $0x4d8] sm:$0xff]
  %v224 = vld [vmem:[%s1 + $0x4e0] sm:$0xff]
  %v225 = vld [vmem:[%s1 + $0x4e8] sm:$0xff]
  %v226 = vld [vmem:[%s1 + $0x4f0] sm:$0xff]
  %v227 = vld [vmem:[%s1 + $0x4f8] sm:$0xff]
  %v228 = vld [vmem:[%s1 + $0x500] sm:$0xff]
  %v229 = vld [vmem:[%s1 + $0x508] sm:$0xff]
  %v230 = vld [vmem:[%s1 + $0x510] sm:$0xff]
  %v231 = vld [vmem:[%s1 + $0x518] sm:$0xff]
  %v232 = vld [vmem:[%s1 + $0x520] sm:$0xff]
  %v233 = vld [vmem:[%s1 + $0x528] sm:$0xff]
  %v234 = vld [vmem:[%s1 + $0x530] sm:$0xff]
  %v235 = vld [vmem:[%s1 + $0x538] sm:$0xff]
  %v236 = vld [vmem:[%s1 + $0x540] sm:$0xff]
  %v237 = vld [vmem:[%s1 + $0x548] sm:$0xff]
  %v238 = vld [vmem:[%s1 + $0x550] sm:$0xff]
  %v239 = vld [vmem:[%s1 + $0x558] sm:$0xff]
  %v240 = vld [vmem:[%s1 + $0x560] sm:$0xff]
  %v241 = vld [vmem:[%s1 + $0x568] sm:$0xff]
  %v242 = vld [vmem:[%s1 + $0x570] sm:$0xff]
  %v243 = vld [vmem:[%s1 + $0x578] sm:$0xff]
  %v244 = vld [vmem:[%s1 + $0x580] sm:$0xff]
  %v245 = vld [vmem:[%s1 + $0x588] sm:$0xff]
  %v246 = vld [vmem:[%s1 + $0x590] sm:$0xff]
  %v247 = vld [vmem:[%s1 + $0x598] sm:$0xff]
  %v248 = vld [vmem:[%s1 + $0x5a0] sm:$0xff]
  %v249 = vld [vmem:[%s1 + $0x5a8] sm:$0xff]
  %v250 = vld [vmem:[%s1 + $0x5b0] sm:$0xff]
  %v251 = vld [vmem:[%s1 + $0x5b8] sm:$0xff]
  %v252 = vld [vmem:[%s1 + $0x5c0] sm:$0xff]
  %v253 = vld [vmem:[%s1 + $0x5c8] sm:$0xff]
  %v254 = vld [vmem:[%s1 + $0x5d0] sm:$0xff]
  %v255 = vld [vmem:[%s1 + $0x5d8] sm:$0xff]
  %v256 = vld [vmem:[%s1 + $0x5e0] sm:$0xff]
  %v257 = vld [vmem:[%s1 + $0x5e8] sm:$0xff]
  %v258 = vld [vmem:[%s1 + $0x5f0] sm:$0xff]
  %v259 = vld [vmem:[%s1 + $0x5f8] sm:$0xff]
  %v260 = vld [vmem:[%s1 + $0x600] sm:$0xff]
  %v261 = vld [vmem:[%s1 + $0x608] sm:$0xff]
  %v262 = vld [vmem:[%s1 + $0x610] sm:$0xff]
  %v263 = vld [vmem:[%s1 + $0x618] sm:$0xff]
  %v264 = vld [vmem:[%s1 + $0x620] sm:$0xff]
  %v265 = vld [vmem:[%s1 + $0x628] sm:$0xff]
  %v266 = vld [vmem:[%s1 + $0x630] sm:$0xff]
  %v267 = vld [vmem:[%s1 + $0x638] sm:$0xff]
  %v268 = vld [vmem:[%s1 + $0x640] sm:$0xff]
  %v269 = vld [vmem:[%s1 + $0x648] sm:$0xff]
  %v270 = vld [vmem:[%s1 + $0x650] sm:$0xff]
  %v271 = vld [vmem:[%s1 + $0x658] sm:$0xff]
  %v272 = vld [vmem:[%s1 + $0x660] sm:$0xff]
  %v273 = vld [vmem:[%s1 + $0x668] sm:$0xff]
  %v274 = vld [vmem:[%s1 + $0x670] sm:$0xff]
  %v275 = vld [vmem:[%s1 + $0x678] sm:$0xff]
  %v276 = vld [vmem:[%s1 + $0x680] sm:$0xff]
  %v277 = vld [vmem:[%s1 + $0x688] sm:$0xff]
  %v278 = vld [vmem:[%s1 + $0x690] sm:$0xff]
  %v279 = vld [vmem:[%s1 + $0x698] sm:$0xff]
  %v280 = vld [vmem:[%s1 + $0x6a0] sm:$0xff]
  %v281 = vld [vmem:[%s1 + $0x6a8] sm:$0xff]
  %v282 = vld [vmem:[%s1 + $0x6b0] sm:$0xff]
  %v283 = vld [vmem:[%s1 + $0x6b8] sm:$0xff]
  %v284 = vld [vmem:[%s1 + $0x6c0] sm:$0xff]
  %v285 = vld [vmem:[%s1 + $0x6c8] sm:$0xff]
  %v286 = vld [vmem:[%s1 + $0x6d0] sm:$0xff]
  %v287 = vld [vmem:[%s1 + $0x6d8] sm:$0xff]
  %v288 = vld [vmem:[%s1 + $0x6e0] sm:$0xff]
  %v289 = vld [vmem:[%s1 + $0x6e8] sm:$0xff]
  %v290 = vld [vmem:[%s1 + $0x6f0] sm:$0xff]
  %v291 = vld [vmem:[%s1 + $0x6f8] sm:$0xff]
  %v292 = vld [vmem:[%s1 + $0x700] sm:$0xff]
  %v293 = vld [vmem:[%s1 + $0x708] sm:$0xff]
  %v294 = vld [vmem:[%s1 + $0x710] sm:$0xff]
  %v295 = vld [vmem:[%s1 + $0x718] sm:$0xff]
  %v296 = vld [vmem:[%s1 + $0x720] sm:$0xff]
  %v297 = vld [vmem:[%s1 + $0x728] sm:$0xff]
  %v298 = vld [vmem:[%s1 + $0x730] sm:$0xff]
  %v299 = vld [vmem:[%s1 + $0x738] sm:$0xff]
  %v300 = vld [vmem:[%s1 + $0x740] sm:$0xff]
  %v301 = vld [vmem:[%s1 + $0x748] sm:$0xff]
  %v302 = vld [vmem:[%s1 + $0x750] sm:$0xff]
  %v303 = vld [vmem:[%s1 + $0x758] sm:$0xff]
  %v304 = vld [vmem:[%s1 + $0x760] sm:$0xff]
  %v305 = vld [vmem:[%s1 + $0x768] sm:$0xff]
  %v306 = vld [vmem:[%s1 + $0x770] sm:$0xff]
  %v307 = vld [vmem:[%s1 + $0x778] sm:$0xff]
  %v308 = vld [vmem:[%s1 + $0x780] sm:$0xff]
  %v309 = vld [vmem:[%s1 + $0x788] sm:$0xff]
  %v310 = vld [vmem:[%s1 + $0x790] sm:$0xff]
  %v311 = vld [vmem:[%s1 + $0x798] sm:$0xff]
  %v312 = vld [vmem:[%s1 + $0x7a0] sm:$0xff]
  %v313 = vld [vmem:[%s1 + $0x7a8] sm:$0xff]
  %v314 = vld [vmem:[%s1 + $0x7b0] sm:$0xff]
  %v315 = vld [vmem:[%s1 + $0x7b8] sm:$0xff]
  %v316 = vld [vmem:[%s1 + $0x7c0] sm:$0xff]
  %v317 = vld [vmem:[%s1 + $0x7c8] sm:$0xff]
  %v318 = vld [vmem:[%s1 + $0x7d0] sm:$0xff]
  %v319 = vld [vmem:[%s1 + $0x7d8] sm:$0xff]
  %v320 = vld [vmem:[%s1 + $0x7e0] sm:$0xff]
  %v321 = vld [vmem:[%s1 + $0x7e8] sm:$0xff]
  %v322 = vld [vmem:[%s1 + $0x7f0] sm:$0xff]
  %v323 = vld [vmem:[%s1 + $0x7f8] sm:$0xff]
  %v324 = vld [vmem:[%s2] sm:$0xf]
  %v326 = vlaneseq
  %v327 = vshrl.u32 %v326, 7
  %v328 = vsub.s32 0, %v327
  %v329 = vrot.slane %v324, %v328
  %v330 = vlaneseq
  %v331 = vshrl.u32 %v330, 7
  %v332 = vsub.s32 1, %v331
  %v333 = vrot.slane %v324, %v332
  %v334 = vlaneseq
  %v335 = vshrl.u32 %v334, 7
  %v336 = vsub.s32 2, %v335
  %v337 = vrot.slane %v324, %v336
  %v338 = vlaneseq
  %v339 = vshrl.u32 %v338, 7
  %v340 = vsub.s32 3, %v339
  %v341 = vrot.slane %v324, %v340
  %v602 = vunpack.c.l.b16 %v68
  %v603 = vunpack.c.h.b16 %v68
  %v604 = vunpack.c.l.b16 %v69
  %v605 = vunpack.c.h.b16 %v69
  %v606 = vunpack.c.l.b16 %v70
  %v607 = vunpack.c.h.b16 %v70
  %v608 = vunpack.c.l.b16 %v71
  %v609 = vunpack.c.h.b16 %v71
  %v610 = vunpack.c.l.b16 %v72
  %v611 = vunpack.c.h.b16 %v72
  %v612 = vunpack.c.l.b16 %v73
  %v613 = vunpack.c.h.b16 %v73
  %v614 = vunpack.c.l.b16 %v74
  %v615 = vunpack.c.h.b16 %v74
  %v616 = vunpack.c.l.b16 %v75
  %v617 = vunpack.c.h.b16 %v75
  %v618 = vunpack.c.l.b16 %v76
  %v619 = vunpack.c.h.b16 %v76
  %v620 = vunpack.c.l.b16 %v77
  %v621 = vunpack.c.h.b16 %v77
  %v622 = vunpack.c.l.b16 %v78
  %v623 = vunpack.c.h.b16 %v78
  %v624 = vunpack.c.l.b16 %v79
  %v625 = vunpack.c.h.b16 %v79
  %v626 = vunpack.c.l.b16 %v80
  %v627 = vunpack.c.h.b16 %v80
  %v628 = vunpack.c.l.b16 %v81
  %v629 = vunpack.c.h.b16 %v81
  %v630 = vunpack.c.l.b16 %v82
  %v631 = vunpack.c.h.b16 %v82
  %v632 = vunpack.c.l.b16 %v83
  %v633 = vunpack.c.h.b16 %v83
  %v634 = vunpack.c.l.b16 %v84
  %v635 = vunpack.c.h.b16 %v84
  %v636 = vunpack.c.l.b16 %v85
  %v637 = vunpack.c.h.b16 %v85
  %v638 = vunpack.c.l.b16 %v86
  %v639 = vunpack.c.h.b16 %v86
  %v640 = vunpack.c.l.b16 %v87
  %v641 = vunpack.c.h.b16 %v87
  %v642 = vunpack.c.l.b16 %v88
  %v643 = vunpack.c.h.b16 %v88
  %v644 = vunpack.c.l.b16 %v89
  %v645 = vunpack.c.h.b16 %v89
  %v646 = vunpack.c.l.b16 %v90
  %v647 = vunpack.c.h.b16 %v90
  %v648 = vunpack.c.l.b16 %v91
  %v649 = vunpack.c.h.b16 %v91
  %v650 = vunpack.c.l.b16 %v92
  %v651 = vunpack.c.h.b16 %v92
  %v652 = vunpack.c.l.b16 %v93
  %v653 = vunpack.c.h.b16 %v93
  %v654 = vunpack.c.l.b16 %v94
  %v655 = vunpack.c.h.b16 %v94
  %v656 = vunpack.c.l.b16 %v95
  %v657 = vunpack.c.h.b16 %v95
  %v658 = vunpack.c.l.b16 %v96
  %v659 = vunpack.c.h.b16 %v96
  %v660 = vunpack.c.l.b16 %v97
  %v661 = vunpack.c.h.b16 %v97
  %v662 = vunpack.c.l.b16 %v98
  %v663 = vunpack.c.h.b16 %v98
  %v664 = vunpack.c.l.b16 %v99
  %v665 = vunpack.c.h.b16 %v99
  %v666 = vunpack.c.l.b16 %v100
  %v667 = vunpack.c.h.b16 %v100
  %v668 = vunpack.c.l.b16 %v101
  %v669 = vunpack.c.h.b16 %v101
  %v670 = vunpack.c.l.b16 %v102
  %v671 = vunpack.c.h.b16 %v102
  %v672 = vunpack.c.l.b16 %v103
  %v673 = vunpack.c.h.b16 %v103
  %v674 = vunpack.c.l.b16 %v104
  %v675 = vunpack.c.h.b16 %v104
  %v676 = vunpack.c.l.b16 %v105
  %v677 = vunpack.c.h.b16 %v105
  %v678 = vunpack.c.l.b16 %v106
  %v679 = vunpack.c.h.b16 %v106
  %v680 = vunpack.c.l.b16 %v107
  %v681 = vunpack.c.h.b16 %v107
  %v682 = vunpack.c.l.b16 %v108
  %v683 = vunpack.c.h.b16 %v108
  %v684 = vunpack.c.l.b16 %v109
  %v685 = vunpack.c.h.b16 %v109
  %v686 = vunpack.c.l.b16 %v110
  %v687 = vunpack.c.h.b16 %v110
  %v688 = vunpack.c.l.b16 %v111
  %v689 = vunpack.c.h.b16 %v111
  %v690 = vunpack.c.l.b16 %v112
  %v691 = vunpack.c.h.b16 %v112
  %v692 = vunpack.c.l.b16 %v113
  %v693 = vunpack.c.h.b16 %v113
  %v694 = vunpack.c.l.b16 %v114
  %v695 = vunpack.c.h.b16 %v114
  %v696 = vunpack.c.l.b16 %v115
  %v697 = vunpack.c.h.b16 %v115
  %v698 = vunpack.c.l.b16 %v116
  %v699 = vunpack.c.h.b16 %v116
  %v700 = vunpack.c.l.b16 %v117
  %v701 = vunpack.c.h.b16 %v117
  %v702 = vunpack.c.l.b16 %v118
  %v703 = vunpack.c.h.b16 %v118
  %v704 = vunpack.c.l.b16 %v119
  %v705 = vunpack.c.h.b16 %v119
  %v706 = vunpack.c.l.b16 %v120
  %v707 = vunpack.c.h.b16 %v120
  %v708 = vunpack.c.l.b16 %v121
  %v709 = vunpack.c.h.b16 %v121
  %v710 = vunpack.c.l.b16 %v122
  %v711 = vunpack.c.h.b16 %v122
  %v712 = vunpack.c.l.b16 %v123
  %v713 = vunpack.c.h.b16 %v123
  %v714 = vunpack.c.l.b16 %v124
  %v715 = vunpack.c.h.b16 %v124
  %v716 = vunpack.c.l.b16 %v125
  %v717 = vunpack.c.h.b16 %v125
  %v718 = vunpack.c.l.b16 %v126
  %v719 = vunpack.c.h.b16 %v126
  %v720 = vunpack.c.l.b16 %v127
  %v721 = vunpack.c.h.b16 %v127
  %v722 = vunpack.c.l.b16 %v128
  %v723 = vunpack.c.h.b16 %v128
  %v724 = vunpack.c.l.b16 %v129
  %v725 = vunpack.c.h.b16 %v129
  %v726 = vunpack.c.l.b16 %v130
  %v727 = vunpack.c.h.b16 %v130
  %v728 = vunpack.c.l.b16 %v131
  %v729 = vunpack.c.h.b16 %v131
  %v730 = vunpack.c.l.b16 %v132
  %v731 = vunpack.c.h.b16 %v132
  %v732 = vunpack.c.l.b16 %v133
  %v733 = vunpack.c.h.b16 %v133
  %v734 = vunpack.c.l.b16 %v134
  %v735 = vunpack.c.h.b16 %v134
  %v736 = vunpack.c.l.b16 %v135
  %v737 = vunpack.c.h.b16 %v135
  %v738 = vunpack.c.l.b16 %v136
  %v739 = vunpack.c.h.b16 %v136
  %v740 = vunpack.c.l.b16 %v137
  %v741 = vunpack.c.h.b16 %v137
  %v742 = vunpack.c.l.b16 %v138
  %v743 = vunpack.c.h.b16 %v138
  %v744 = vunpack.c.l.b16 %v139
  %v745 = vunpack.c.h.b16 %v139
  %v746 = vunpack.c.l.b16 %v140
  %v747 = vunpack.c.h.b16 %v140
  %v748 = vunpack.c.l.b16 %v141
  %v749 = vunpack.c.h.b16 %v141
  %v750 = vunpack.c.l.b16 %v142
  %v751 = vunpack.c.h.b16 %v142
  %v752 = vunpack.c.l.b16 %v143
  %v753 = vunpack.c.h.b16 %v143
  %v754 = vunpack.c.l.b16 %v144
  %v755 = vunpack.c.h.b16 %v144
  %v756 = vunpack.c.l.b16 %v145
  %v757 = vunpack.c.h.b16 %v145
  %v758 = vunpack.c.l.b16 %v146
  %v759 = vunpack.c.h.b16 %v146
  %v760 = vunpack.c.l.b16 %v147
  %v761 = vunpack.c.h.b16 %v147
  %v762 = vunpack.c.l.b16 %v148
  %v763 = vunpack.c.h.b16 %v148
  %v764 = vunpack.c.l.b16 %v149
  %v765 = vunpack.c.h.b16 %v149
  %v766 = vunpack.c.l.b16 %v150
  %v767 = vunpack.c.h.b16 %v150
  %v768 = vunpack.c.l.b16 %v151
  %v769 = vunpack.c.h.b16 %v151
  %v770 = vunpack.c.l.b16 %v152
  %v771 = vunpack.c.h.b16 %v152
  %v772 = vunpack.c.l.b16 %v153
  %v773 = vunpack.c.h.b16 %v153
  %v774 = vunpack.c.l.b16 %v154
  %v775 = vunpack.c.h.b16 %v154
  %v776 = vunpack.c.l.b16 %v155
  %v777 = vunpack.c.h.b16 %v155
  %v778 = vunpack.c.l.b16 %v156
  %v779 = vunpack.c.h.b16 %v156
  %v780 = vunpack.c.l.b16 %v157
  %v781 = vunpack.c.h.b16 %v157
  %v782 = vunpack.c.l.b16 %v158
  %v783 = vunpack.c.h.b16 %v158
  %v784 = vunpack.c.l.b16 %v159
  %v785 = vunpack.c.h.b16 %v159
  %v786 = vunpack.c.l.b16 %v160
  %v787 = vunpack.c.h.b16 %v160
  %v788 = vunpack.c.l.b16 %v161
  %v789 = vunpack.c.h.b16 %v161
  %v790 = vunpack.c.l.b16 %v162
  %v791 = vunpack.c.h.b16 %v162
  %v792 = vunpack.c.l.b16 %v163
  %v793 = vunpack.c.h.b16 %v163
  %v794 = vunpack.c.l.b16 %v164
  %v795 = vunpack.c.h.b16 %v164
  %v796 = vunpack.c.l.b16 %v165
  %v797 = vunpack.c.h.b16 %v165
  %v798 = vunpack.c.l.b16 %v166
  %v799 = vunpack.c.h.b16 %v166
  %v800 = vunpack.c.l.b16 %v167
  %v801 = vunpack.c.h.b16 %v167
  %v802 = vunpack.c.l.b16 %v168
  %v803 = vunpack.c.h.b16 %v168
  %v804 = vunpack.c.l.b16 %v169
  %v805 = vunpack.c.h.b16 %v169
  %v806 = vunpack.c.l.b16 %v170
  %v807 = vunpack.c.h.b16 %v170
  %v808 = vunpack.c.l.b16 %v171
  %v809 = vunpack.c.h.b16 %v171
  %v810 = vunpack.c.l.b16 %v172
  %v811 = vunpack.c.h.b16 %v172
  %v812 = vunpack.c.l.b16 %v173
  %v813 = vunpack.c.h.b16 %v173
  %v814 = vunpack.c.l.b16 %v174
  %v815 = vunpack.c.h.b16 %v174
  %v816 = vunpack.c.l.b16 %v175
  %v817 = vunpack.c.h.b16 %v175
  %v818 = vunpack.c.l.b16 %v176
  %v819 = vunpack.c.h.b16 %v176
  %v820 = vunpack.c.l.b16 %v177
  %v821 = vunpack.c.h.b16 %v177
  %v822 = vunpack.c.l.b16 %v178
  %v823 = vunpack.c.h.b16 %v178
  %v824 = vunpack.c.l.b16 %v179
  %v825 = vunpack.c.h.b16 %v179
  %v826 = vunpack.c.l.b16 %v180
  %v827 = vunpack.c.h.b16 %v180
  %v828 = vunpack.c.l.b16 %v181
  %v829 = vunpack.c.h.b16 %v181
  %v830 = vunpack.c.l.b16 %v182
  %v831 = vunpack.c.h.b16 %v182
  %v832 = vunpack.c.l.b16 %v183
  %v833 = vunpack.c.h.b16 %v183
  %v834 = vunpack.c.l.b16 %v184
  %v835 = vunpack.c.h.b16 %v184
  %v836 = vunpack.c.l.b16 %v185
  %v837 = vunpack.c.h.b16 %v185
  %v838 = vunpack.c.l.b16 %v186
  %v839 = vunpack.c.h.b16 %v186
  %v840 = vunpack.c.l.b16 %v187
  %v841 = vunpack.c.h.b16 %v187
  %v842 = vunpack.c.l.b16 %v188
  %v843 = vunpack.c.h.b16 %v188
  %v844 = vunpack.c.l.b16 %v189
  %v845 = vunpack.c.h.b16 %v189
  %v846 = vunpack.c.l.b16 %v190
  %v847 = vunpack.c.h.b16 %v190
  %v848 = vunpack.c.l.b16 %v191
  %v849 = vunpack.c.h.b16 %v191
  %v850 = vunpack.c.l.b16 %v192
  %v851 = vunpack.c.h.b16 %v192
  %v852 = vunpack.c.l.b16 %v193
  %v853 = vunpack.c.h.b16 %v193
  %v854 = vunpack.c.l.b16 %v194
  %v855 = vunpack.c.h.b16 %v194
  %v856 = vunpack.c.l.b16 %v195
  %v857 = vunpack.c.h.b16 %v195
  %v858 = vunpack.c.l.b16 %v196
  %v859 = vunpack.c.h.b16 %v196
  %v860 = vunpack.c.l.b16 %v197
  %v861 = vunpack.c.h.b16 %v197
  %v862 = vunpack.c.l.b16 %v198
  %v863 = vunpack.c.h.b16 %v198
  %v864 = vunpack.c.l.b16 %v199
  %v865 = vunpack.c.h.b16 %v199
  %v866 = vunpack.c.l.b16 %v200
  %v867 = vunpack.c.h.b16 %v200
  %v868 = vunpack.c.l.b16 %v201
  %v869 = vunpack.c.h.b16 %v201
  %v870 = vunpack.c.l.b16 %v202
  %v871 = vunpack.c.h.b16 %v202
  %v872 = vunpack.c.l.b16 %v203
  %v873 = vunpack.c.h.b16 %v203
  %v874 = vunpack.c.l.b16 %v204
  %v875 = vunpack.c.h.b16 %v204
  %v876 = vunpack.c.l.b16 %v205
  %v877 = vunpack.c.h.b16 %v205
  %v878 = vunpack.c.l.b16 %v206
  %v879 = vunpack.c.h.b16 %v206
  %v880 = vunpack.c.l.b16 %v207
  %v881 = vunpack.c.h.b16 %v207
  %v882 = vunpack.c.l.b16 %v208
  %v883 = vunpack.c.h.b16 %v208
  %v884 = vunpack.c.l.b16 %v209
  %v885 = vunpack.c.h.b16 %v209
  %v886 = vunpack.c.l.b16 %v210
  %v887 = vunpack.c.h.b16 %v210
  %v888 = vunpack.c.l.b16 %v211
  %v889 = vunpack.c.h.b16 %v211
  %v890 = vunpack.c.l.b16 %v212
  %v891 = vunpack.c.h.b16 %v212
  %v892 = vunpack.c.l.b16 %v213
  %v893 = vunpack.c.h.b16 %v213
  %v894 = vunpack.c.l.b16 %v214
  %v895 = vunpack.c.h.b16 %v214
  %v896 = vunpack.c.l.b16 %v215
  %v897 = vunpack.c.h.b16 %v215
  %v898 = vunpack.c.l.b16 %v216
  %v899 = vunpack.c.h.b16 %v216
  %v900 = vunpack.c.l.b16 %v217
  %v901 = vunpack.c.h.b16 %v217
  %v902 = vunpack.c.l.b16 %v218
  %v903 = vunpack.c.h.b16 %v218
  %v904 = vunpack.c.l.b16 %v219
  %v905 = vunpack.c.h.b16 %v219
  %v906 = vunpack.c.l.b16 %v220
  %v907 = vunpack.c.h.b16 %v220
  %v908 = vunpack.c.l.b16 %v221
  %v909 = vunpack.c.h.b16 %v221
  %v910 = vunpack.c.l.b16 %v222
  %v911 = vunpack.c.h.b16 %v222
  %v912 = vunpack.c.l.b16 %v223
  %v913 = vunpack.c.h.b16 %v223
  %v914 = vunpack.c.l.b16 %v224
  %v915 = vunpack.c.h.b16 %v224
  %v916 = vunpack.c.l.b16 %v225
  %v917 = vunpack.c.h.b16 %v225
  %v918 = vunpack.c.l.b16 %v226
  %v919 = vunpack.c.h.b16 %v226
  %v920 = vunpack.c.l.b16 %v227
  %v921 = vunpack.c.h.b16 %v227
  %v922 = vunpack.c.l.b16 %v228
  %v923 = vunpack.c.h.b16 %v228
  %v924 = vunpack.c.l.b16 %v229
  %v925 = vunpack.c.h.b16 %v229
  %v926 = vunpack.c.l.b16 %v230
  %v927 = vunpack.c.h.b16 %v230
  %v928 = vunpack.c.l.b16 %v231
  %v929 = vunpack.c.h.b16 %v231
  %v930 = vunpack.c.l.b16 %v232
  %v931 = vunpack.c.h.b16 %v232
  %v932 = vunpack.c.l.b16 %v233
  %v933 = vunpack.c.h.b16 %v233
  %v934 = vunpack.c.l.b16 %v234
  %v935 = vunpack.c.h.b16 %v234
  %v936 = vunpack.c.l.b16 %v235
  %v937 = vunpack.c.h.b16 %v235
  %v938 = vunpack.c.l.b16 %v236
  %v939 = vunpack.c.h.b16 %v236
  %v940 = vunpack.c.l.b16 %v237
  %v941 = vunpack.c.h.b16 %v237
  %v942 = vunpack.c.l.b16 %v238
  %v943 = vunpack.c.h.b16 %v238
  %v944 = vunpack.c.l.b16 %v239
  %v945 = vunpack.c.h.b16 %v239
  %v946 = vunpack.c.l.b16 %v240
  %v947 = vunpack.c.h.b16 %v240
  %v948 = vunpack.c.l.b16 %v241
  %v949 = vunpack.c.h.b16 %v241
  %v950 = vunpack.c.l.b16 %v242
  %v951 = vunpack.c.h.b16 %v242
  %v952 = vunpack.c.l.b16 %v243
  %v953 = vunpack.c.h.b16 %v243
  %v954 = vunpack.c.l.b16 %v244
  %v955 = vunpack.c.h.b16 %v244
  %v956 = vunpack.c.l.b16 %v245
  %v957 = vunpack.c.h.b16 %v245
  %v958 = vunpack.c.l.b16 %v246
  %v959 = vunpack.c.h.b16 %v246
  %v960 = vunpack.c.l.b16 %v247
  %v961 = vunpack.c.h.b16 %v247
  %v962 = vunpack.c.l.b16 %v248
  %v963 = vunpack.c.h.b16 %v248
  %v964 = vunpack.c.l.b16 %v249
  %v965 = vunpack.c.h.b16 %v249
  %v966 = vunpack.c.l.b16 %v250
  %v967 = vunpack.c.h.b16 %v250
  %v968 = vunpack.c.l.b16 %v251
  %v969 = vunpack.c.h.b16 %v251
  %v970 = vunpack.c.l.b16 %v252
  %v971 = vunpack.c.h.b16 %v252
  %v972 = vunpack.c.l.b16 %v253
  %v973 = vunpack.c.h.b16 %v253
  %v974 = vunpack.c.l.b16 %v254
  %v975 = vunpack.c.h.b16 %v254
  %v976 = vunpack.c.l.b16 %v255
  %v977 = vunpack.c.h.b16 %v255
  %v978 = vunpack.c.l.b16 %v256
  %v979 = vunpack.c.h.b16 %v256
  %v980 = vunpack.c.l.b16 %v257
  %v981 = vunpack.c.h.b16 %v257
  %v982 = vunpack.c.l.b16 %v258
  %v983 = vunpack.c.h.b16 %v258
  %v984 = vunpack.c.l.b16 %v259
  %v985 = vunpack.c.h.b16 %v259
  %v986 = vunpack.c.l.b16 %v260
  %v987 = vunpack.c.h.b16 %v260
  %v988 = vunpack.c.l.b16 %v261
  %v989 = vunpack.c.h.b16 %v261
  %v990 = vunpack.c.l.b16 %v262
  %v991 = vunpack.c.h.b16 %v262
  %v992 = vunpack.c.l.b16 %v263
  %v993 = vunpack.c.h.b16 %v263
  %v994 = vunpack.c.l.b16 %v264
  %v995 = vunpack.c.h.b16 %v264
  %v996 = vunpack.c.l.b16 %v265
  %v997 = vunpack.c.h.b16 %v265
  %v998 = vunpack.c.l.b16 %v266
  %v999 = vunpack.c.h.b16 %v266
  %v1000 = vunpack.c.l.b16 %v267
  %v1001 = vunpack.c.h.b16 %v267
  %v1002 = vunpack.c.l.b16 %v268
  %v1003 = vunpack.c.h.b16 %v268
  %v1004 = vunpack.c.l.b16 %v269
  %v1005 = vunpack.c.h.b16 %v269
  %v1006 = vunpack.c.l.b16 %v270
  %v1007 = vunpack.c.h.b16 %v270
  %v1008 = vunpack.c.l.b16 %v271
  %v1009 = vunpack.c.h.b16 %v271
  %v1010 = vunpack.c.l.b16 %v272
  %v1011 = vunpack.c.h.b16 %v272
  %v1012 = vunpack.c.l.b16 %v273
  %v1013 = vunpack.c.h.b16 %v273
  %v1014 = vunpack.c.l.b16 %v274
  %v1015 = vunpack.c.h.b16 %v274
  %v1016 = vunpack.c.l.b16 %v275
  %v1017 = vunpack.c.h.b16 %v275
  %v1018 = vunpack.c.l.b16 %v276
  %v1019 = vunpack.c.h.b16 %v276
  %v1020 = vunpack.c.l.b16 %v277
  %v1021 = vunpack.c.h.b16 %v277
  %v1022 = vunpack.c.l.b16 %v278
  %v1023 = vunpack.c.h.b16 %v278
  %v1024 = vunpack.c.l.b16 %v279
  %v1025 = vunpack.c.h.b16 %v279
  %v1026 = vunpack.c.l.b16 %v280
  %v1027 = vunpack.c.h.b16 %v280
  %v1028 = vunpack.c.l.b16 %v281
  %v1029 = vunpack.c.h.b16 %v281
  %v1030 = vunpack.c.l.b16 %v282
  %v1031 = vunpack.c.h.b16 %v282
  %v1032 = vunpack.c.l.b16 %v283
  %v1033 = vunpack.c.h.b16 %v283
  %v1034 = vunpack.c.l.b16 %v284
  %v1035 = vunpack.c.h.b16 %v284
  %v1036 = vunpack.c.l.b16 %v285
  %v1037 = vunpack.c.h.b16 %v285
  %v1038 = vunpack.c.l.b16 %v286
  %v1039 = vunpack.c.h.b16 %v286
  %v1040 = vunpack.c.l.b16 %v287
  %v1041 = vunpack.c.h.b16 %v287
  %v1042 = vunpack.c.l.b16 %v288
  %v1043 = vunpack.c.h.b16 %v288
  %v1044 = vunpack.c.l.b16 %v289
  %v1045 = vunpack.c.h.b16 %v289
  %v1046 = vunpack.c.l.b16 %v290
  %v1047 = vunpack.c.h.b16 %v290
  %v1048 = vunpack.c.l.b16 %v291
  %v1049 = vunpack.c.h.b16 %v291
  %v1050 = vunpack.c.l.b16 %v292
  %v1051 = vunpack.c.h.b16 %v292
  %v1052 = vunpack.c.l.b16 %v293
  %v1053 = vunpack.c.h.b16 %v293
  %v1054 = vunpack.c.l.b16 %v294
  %v1055 = vunpack.c.h.b16 %v294
  %v1056 = vunpack.c.l.b16 %v295
  %v1057 = vunpack.c.h.b16 %v295
  %v1058 = vunpack.c.l.b16 %v296
  %v1059 = vunpack.c.h.b16 %v296
  %v1060 = vunpack.c.l.b16 %v297
  %v1061 = vunpack.c.h.b16 %v297
  %v1062 = vunpack.c.l.b16 %v298
  %v1063 = vunpack.c.h.b16 %v298
  %v1064 = vunpack.c.l.b16 %v299
  %v1065 = vunpack.c.h.b16 %v299
  %v1066 = vunpack.c.l.b16 %v300
  %v1067 = vunpack.c.h.b16 %v300
  %v1068 = vunpack.c.l.b16 %v301
  %v1069 = vunpack.c.h.b16 %v301
  %v1070 = vunpack.c.l.b16 %v302
  %v1071 = vunpack.c.h.b16 %v302
  %v1072 = vunpack.c.l.b16 %v303
  %v1073 = vunpack.c.h.b16 %v303
  %v1074 = vunpack.c.l.b16 %v304
  %v1075 = vunpack.c.h.b16 %v304
  %v1076 = vunpack.c.l.b16 %v305
  %v1077 = vunpack.c.h.b16 %v305
  %v1078 = vunpack.c.l.b16 %v306
  %v1079 = vunpack.c.h.b16 %v306
  %v1080 = vunpack.c.l.b16 %v307
  %v1081 = vunpack.c.h.b16 %v307
  %v1082 = vunpack.c.l.b16 %v308
  %v1083 = vunpack.c.h.b16 %v308
  %v1084 = vunpack.c.l.b16 %v309
  %v1085 = vunpack.c.h.b16 %v309
  %v1086 = vunpack.c.l.b16 %v310
  %v1087 = vunpack.c.h.b16 %v310
  %v1088 = vunpack.c.l.b16 %v311
  %v1089 = vunpack.c.h.b16 %v311
  %v1090 = vunpack.c.l.b16 %v312
  %v1091 = vunpack.c.h.b16 %v312
  %v1092 = vunpack.c.l.b16 %v313
  %v1093 = vunpack.c.h.b16 %v313
  %v1094 = vunpack.c.l.b16 %v314
  %v1095 = vunpack.c.h.b16 %v314
  %v1096 = vunpack.c.l.b16 %v315
  %v1097 = vunpack.c.h.b16 %v315
  %v1098 = vunpack.c.l.b16 %v316
  %v1099 = vunpack.c.h.b16 %v316
  %v1100 = vunpack.c.l.b16 %v317
  %v1101 = vunpack.c.h.b16 %v317
  %v1102 = vunpack.c.l.b16 %v318
  %v1103 = vunpack.c.h.b16 %v318
  %v1104 = vunpack.c.l.b16 %v319
  %v1105 = vunpack.c.h.b16 %v319
  %v1106 = vunpack.c.l.b16 %v320
  %v1107 = vunpack.c.h.b16 %v320
  %v1108 = vunpack.c.l.b16 %v321
  %v1109 = vunpack.c.h.b16 %v321
  %v1110 = vunpack.c.l.b16 %v322
  %v1111 = vunpack.c.h.b16 %v322
  %v1112 = vunpack.c.l.b16 %v323
  %v1113 = vunpack.c.h.b16 %v323
  %v1114 = vpack.c.b16 %v606, %v602
  %v1115 = vpack.c.b16 %v607, %v603
  %v1116 = vpack.c.b16 %v608, %v604
  %v1117 = vpack.c.b16 %v609, %v605
  %v1118 = vpack.c.b16 %v614, %v610
  %v1119 = vpack.c.b16 %v615, %v611
  %v1120 = vpack.c.b16 %v616, %v612
  %v1121 = vpack.c.b16 %v617, %v613
  %v1122 = vpack.c.b16 %v622, %v618
  %v1123 = vpack.c.b16 %v623, %v619
  %v1124 = vpack.c.b16 %v624, %v620
  %v1125 = vpack.c.b16 %v625, %v621
  %v1126 = vpack.c.b16 %v630, %v626
  %v1127 = vpack.c.b16 %v631, %v627
  %v1128 = vpack.c.b16 %v632, %v628
  %v1129 = vpack.c.b16 %v633, %v629
  %v1130 = vpack.c.b16 %v638, %v634
  %v1131 = vpack.c.b16 %v639, %v635
  %v1132 = vpack.c.b16 %v640, %v636
  %v1133 = vpack.c.b16 %v641, %v637
  %v1134 = vpack.c.b16 %v646, %v642
  %v1135 = vpack.c.b16 %v647, %v643
  %v1136 = vpack.c.b16 %v648, %v644
  %v1137 = vpack.c.b16 %v649, %v645
  %v1138 = vpack.c.b16 %v654, %v650
  %v1139 = vpack.c.b16 %v655, %v651
  %v1140 = vpack.c.b16 %v656, %v652
  %v1141 = vpack.c.b16 %v657, %v653
  %v1142 = vpack.c.b16 %v662, %v658
  %v1143 = vpack.c.b16 %v663, %v659
  %v1144 = vpack.c.b16 %v664, %v660
  %v1145 = vpack.c.b16 %v665, %v661
  %v1146 = vpack.c.b16 %v670, %v666
  %v1147 = vpack.c.b16 %v671, %v667
  %v1148 = vpack.c.b16 %v672, %v668
  %v1149 = vpack.c.b16 %v673, %v669
  %v1150 = vpack.c.b16 %v678, %v674
  %v1151 = vpack.c.b16 %v679, %v675
  %v1152 = vpack.c.b16 %v680, %v676
  %v1153 = vpack.c.b16 %v681, %v677
  %v1154 = vpack.c.b16 %v686, %v682
  %v1155 = vpack.c.b16 %v687, %v683
  %v1156 = vpack.c.b16 %v688, %v684
  %v1157 = vpack.c.b16 %v689, %v685
  %v1158 = vpack.c.b16 %v694, %v690
  %v1159 = vpack.c.b16 %v695, %v691
  %v1160 = vpack.c.b16 %v696, %v692
  %v1161 = vpack.c.b16 %v697, %v693
  %v1162 = vpack.c.b16 %v702, %v698
  %v1163 = vpack.c.b16 %v703, %v699
  %v1164 = vpack.c.b16 %v704, %v700
  %v1165 = vpack.c.b16 %v705, %v701
  %v1166 = vpack.c.b16 %v710, %v706
  %v1167 = vpack.c.b16 %v711, %v707
  %v1168 = vpack.c.b16 %v712, %v708
  %v1169 = vpack.c.b16 %v713, %v709
  %v1170 = vpack.c.b16 %v718, %v714
  %v1171 = vpack.c.b16 %v719, %v715
  %v1172 = vpack.c.b16 %v720, %v716
  %v1173 = vpack.c.b16 %v721, %v717
  %v1174 = vpack.c.b16 %v726, %v722
  %v1175 = vpack.c.b16 %v727, %v723
  %v1176 = vpack.c.b16 %v728, %v724
  %v1177 = vpack.c.b16 %v729, %v725
  %v1178 = vpack.c.b16 %v734, %v730
  %v1179 = vpack.c.b16 %v735, %v731
  %v1180 = vpack.c.b16 %v736, %v732
  %v1181 = vpack.c.b16 %v737, %v733
  %v1182 = vpack.c.b16 %v742, %v738
  %v1183 = vpack.c.b16 %v743, %v739
  %v1184 = vpack.c.b16 %v744, %v740
  %v1185 = vpack.c.b16 %v745, %v741
  %v1186 = vpack.c.b16 %v750, %v746
  %v1187 = vpack.c.b16 %v751, %v747
  %v1188 = vpack.c.b16 %v752, %v748
  %v1189 = vpack.c.b16 %v753, %v749
  %v1190 = vpack.c.b16 %v758, %v754
  %v1191 = vpack.c.b16 %v759, %v755
  %v1192 = vpack.c.b16 %v760, %v756
  %v1193 = vpack.c.b16 %v761, %v757
  %v1194 = vpack.c.b16 %v766, %v762
  %v1195 = vpack.c.b16 %v767, %v763
  %v1196 = vpack.c.b16 %v768, %v764
  %v1197 = vpack.c.b16 %v769, %v765
  %v1198 = vpack.c.b16 %v774, %v770
  %v1199 = vpack.c.b16 %v775, %v771
  %v1200 = vpack.c.b16 %v776, %v772
  %v1201 = vpack.c.b16 %v777, %v773
  %v1202 = vpack.c.b16 %v782, %v778
  %v1203 = vpack.c.b16 %v783, %v779
  %v1204 = vpack.c.b16 %v784, %v780
  %v1205 = vpack.c.b16 %v785, %v781
  %v1206 = vpack.c.b16 %v790, %v786
  %v1207 = vpack.c.b16 %v791, %v787
  %v1208 = vpack.c.b16 %v792, %v788
  %v1209 = vpack.c.b16 %v793, %v789
  %v1210 = vpack.c.b16 %v798, %v794
  %v1211 = vpack.c.b16 %v799, %v795
  %v1212 = vpack.c.b16 %v800, %v796
  %v1213 = vpack.c.b16 %v801, %v797
  %v1214 = vpack.c.b16 %v806, %v802
  %v1215 = vpack.c.b16 %v807, %v803
  %v1216 = vpack.c.b16 %v808, %v804
  %v1217 = vpack.c.b16 %v809, %v805
  %v1218 = vpack.c.b16 %v814, %v810
  %v1219 = vpack.c.b16 %v815, %v811
  %v1220 = vpack.c.b16 %v816, %v812
  %v1221 = vpack.c.b16 %v817, %v813
  %v1222 = vpack.c.b16 %v822, %v818
  %v1223 = vpack.c.b16 %v823, %v819
  %v1224 = vpack.c.b16 %v824, %v820
  %v1225 = vpack.c.b16 %v825, %v821
  %v1226 = vpack.c.b16 %v830, %v826
  %v1227 = vpack.c.b16 %v831, %v827
  %v1228 = vpack.c.b16 %v832, %v828
  %v1229 = vpack.c.b16 %v833, %v829
  %v1230 = vpack.c.b16 %v838, %v834
  %v1231 = vpack.c.b16 %v839, %v835
  %v1232 = vpack.c.b16 %v840, %v836
  %v1233 = vpack.c.b16 %v841, %v837
  %v1234 = vpack.c.b16 %v846, %v842
  %v1235 = vpack.c.b16 %v847, %v843
  %v1236 = vpack.c.b16 %v848, %v844
  %v1237 = vpack.c.b16 %v849, %v845
  %v1238 = vpack.c.b16 %v854, %v850
  %v1239 = vpack.c.b16 %v855, %v851
  %v1240 = vpack.c.b16 %v856, %v852
  %v1241 = vpack.c.b16 %v857, %v853
  %v1242 = vpack.c.b16 %v862, %v858
  %v1243 = vpack.c.b16 %v863, %v859
  %v1244 = vpack.c.b16 %v864, %v860
  %v1245 = vpack.c.b16 %v865, %v861
  %v1246 = vpack.c.b16 %v870, %v866
  %v1247 = vpack.c.b16 %v871, %v867
  %v1248 = vpack.c.b16 %v872, %v868
  %v1249 = vpack.c.b16 %v873, %v869
  %v1250 = vpack.c.b16 %v878, %v874
  %v1251 = vpack.c.b16 %v879, %v875
  %v1252 = vpack.c.b16 %v880, %v876
  %v1253 = vpack.c.b16 %v881, %v877
  %v1254 = vpack.c.b16 %v886, %v882
  %v1255 = vpack.c.b16 %v887, %v883
  %v1256 = vpack.c.b16 %v888, %v884
  %v1257 = vpack.c.b16 %v889, %v885
  %v1258 = vpack.c.b16 %v894, %v890
  %v1259 = vpack.c.b16 %v895, %v891
  %v1260 = vpack.c.b16 %v896, %v892
  %v1261 = vpack.c.b16 %v897, %v893
  %v1262 = vpack.c.b16 %v902, %v898
  %v1263 = vpack.c.b16 %v903, %v899
  %v1264 = vpack.c.b16 %v904, %v900
  %v1265 = vpack.c.b16 %v905, %v901
  %v1266 = vpack.c.b16 %v910, %v906
  %v1267 = vpack.c.b16 %v911, %v907
  %v1268 = vpack.c.b16 %v912, %v908
  %v1269 = vpack.c.b16 %v913, %v909
  %v1270 = vpack.c.b16 %v918, %v914
  %v1271 = vpack.c.b16 %v919, %v915
  %v1272 = vpack.c.b16 %v920, %v916
  %v1273 = vpack.c.b16 %v921, %v917
  %v1274 = vpack.c.b16 %v926, %v922
  %v1275 = vpack.c.b16 %v927, %v923
  %v1276 = vpack.c.b16 %v928, %v924
  %v1277 = vpack.c.b16 %v929, %v925
  %v1278 = vpack.c.b16 %v934, %v930
  %v1279 = vpack.c.b16 %v935, %v931
  %v1280 = vpack.c.b16 %v936, %v932
  %v1281 = vpack.c.b16 %v937, %v933
  %v1282 = vpack.c.b16 %v942, %v938
  %v1283 = vpack.c.b16 %v943, %v939
  %v1284 = vpack.c.b16 %v944, %v940
  %v1285 = vpack.c.b16 %v945, %v941
  %v1286 = vpack.c.b16 %v950, %v946
  %v1287 = vpack.c.b16 %v951, %v947
  %v1288 = vpack.c.b16 %v952, %v948
  %v1289 = vpack.c.b16 %v953, %v949
  %v1290 = vpack.c.b16 %v958, %v954
  %v1291 = vpack.c.b16 %v959, %v955
  %v1292 = vpack.c.b16 %v960, %v956
  %v1293 = vpack.c.b16 %v961, %v957
  %v1294 = vpack.c.b16 %v966, %v962
  %v1295 = vpack.c.b16 %v967, %v963
  %v1296 = vpack.c.b16 %v968, %v964
  %v1297 = vpack.c.b16 %v969, %v965
  %v1298 = vpack.c.b16 %v974, %v970
  %v1299 = vpack.c.b16 %v975, %v971
  %v1300 = vpack.c.b16 %v976, %v972
  %v1301 = vpack.c.b16 %v977, %v973
  %v1302 = vpack.c.b16 %v982, %v978
  %v1303 = vpack.c.b16 %v983, %v979
  %v1304 = vpack.c.b16 %v984, %v980
  %v1305 = vpack.c.b16 %v985, %v981
  %v1306 = vpack.c.b16 %v990, %v986
  %v1307 = vpack.c.b16 %v991, %v987
  %v1308 = vpack.c.b16 %v992, %v988
  %v1309 = vpack.c.b16 %v993, %v989
  %v1310 = vpack.c.b16 %v998, %v994
  %v1311 = vpack.c.b16 %v999, %v995
  %v1312 = vpack.c.b16 %v1000, %v996
  %v1313 = vpack.c.b16 %v1001, %v997
  %v1314 = vpack.c.b16 %v1006, %v1002
  %v1315 = vpack.c.b16 %v1007, %v1003
  %v1316 = vpack.c.b16 %v1008, %v1004
  %v1317 = vpack.c.b16 %v1009, %v1005
  %v1318 = vpack.c.b16 %v1014, %v1010
  %v1319 = vpack.c.b16 %v1015, %v1011
  %v1320 = vpack.c.b16 %v1016, %v1012
  %v1321 = vpack.c.b16 %v1017, %v1013
  %v1322 = vpack.c.b16 %v1022, %v1018
  %v1323 = vpack.c.b16 %v1023, %v1019
  %v1324 = vpack.c.b16 %v1024, %v1020
  %v1325 = vpack.c.b16 %v1025, %v1021
  %v1326 = vpack.c.b16 %v1030, %v1026
  %v1327 = vpack.c.b16 %v1031, %v1027
  %v1328 = vpack.c.b16 %v1032, %v1028
  %v1329 = vpack.c.b16 %v1033, %v1029
  %v1330 = vpack.c.b16 %v1038, %v1034
  %v1331 = vpack.c.b16 %v1039, %v1035
  %v1332 = vpack.c.b16 %v1040, %v1036
  %v1333 = vpack.c.b16 %v1041, %v1037
  %v1334 = vpack.c.b16 %v1046, %v1042
  %v1335 = vpack.c.b16 %v1047, %v1043
  %v1336 = vpack.c.b16 %v1048, %v1044
  %v1337 = vpack.c.b16 %v1049, %v1045
  %v1338 = vpack.c.b16 %v1054, %v1050
  %v1339 = vpack.c.b16 %v1055, %v1051
  %v1340 = vpack.c.b16 %v1056, %v1052
  %v1341 = vpack.c.b16 %v1057, %v1053
  %v1342 = vpack.c.b16 %v1062, %v1058
  %v1343 = vpack.c.b16 %v1063, %v1059
  %v1344 = vpack.c.b16 %v1064, %v1060
  %v1345 = vpack.c.b16 %v1065, %v1061
  %v1346 = vpack.c.b16 %v1070, %v1066
  %v1347 = vpack.c.b16 %v1071, %v1067
  %v1348 = vpack.c.b16 %v1072, %v1068
  %v1349 = vpack.c.b16 %v1073, %v1069
  %v1350 = vpack.c.b16 %v1078, %v1074
  %v1351 = vpack.c.b16 %v1079, %v1075
  %v1352 = vpack.c.b16 %v1080, %v1076
  %v1353 = vpack.c.b16 %v1081, %v1077
  %v1354 = vpack.c.b16 %v1086, %v1082
  %v1355 = vpack.c.b16 %v1087, %v1083
  %v1356 = vpack.c.b16 %v1088, %v1084
  %v1357 = vpack.c.b16 %v1089, %v1085
  %v1358 = vpack.c.b16 %v1094, %v1090
  %v1359 = vpack.c.b16 %v1095, %v1091
  %v1360 = vpack.c.b16 %v1096, %v1092
  %v1361 = vpack.c.b16 %v1097, %v1093
  %v1362 = vpack.c.b16 %v1102, %v1098
  %v1363 = vpack.c.b16 %v1103, %v1099
  %v1364 = vpack.c.b16 %v1104, %v1100
  %v1365 = vpack.c.b16 %v1105, %v1101
  %v1366 = vpack.c.b16 %v1110, %v1106
  %v1367 = vpack.c.b16 %v1111, %v1107
  %v1368 = vpack.c.b16 %v1112, %v1108
  %v1369 = vpack.c.b16 %v1113, %v1109
  %1626 = vmatprep.subr.bf16.mxu0 %v1115
  %1627 = vmatpush1.bf16.msra.mxu0 %v1114
  %1628 = vmatprep.subr.bf16.mxu0 %v1119
  %1629 = vmatpush1.bf16.msra.mxu0 %v1118
  %1630 = vmatprep.subr.bf16.mxu0 %v1123
  %1631 = vmatpush1.bf16.msra.mxu0 %v1122
  %1632 = vmatprep.subr.bf16.mxu0 %v1127
  %1633 = vmatpush1.bf16.msra.mxu0 %v1126
  %1634 = vmatprep.subr.bf16.mxu0 %v1131
  %1635 = vmatpush1.bf16.msra.mxu0 %v1130
  %1636 = vmatprep.subr.bf16.mxu0 %v1135
  %1637 = vmatpush1.bf16.msra.mxu0 %v1134
  %1638 = vmatprep.subr.bf16.mxu0 %v1139
  %1639 = vmatpush1.bf16.msra.mxu0 %v1138
  %1640 = vmatprep.subr.bf16.mxu0 %v1143
  %1641 = vmatpush1.bf16.msra.mxu0 %v1142
  %1642 = vmatprep.subr.bf16.mxu0 %v1147
  %1643 = vmatpush1.bf16.msra.mxu0 %v1146
  %1644 = vmatprep.subr.bf16.mxu0 %v1151
  %1645 = vmatpush1.bf16.msra.mxu0 %v1150
  %1646 = vmatprep.subr.bf16.mxu0 %v1155
  %1647 = vmatpush1.bf16.msra.mxu0 %v1154
  %1648 = vmatprep.subr.bf16.mxu0 %v1159
  %1649 = vmatpush1.bf16.msra.mxu0 %v1158
  %1650 = vmatprep.subr.bf16.mxu0 %v1163
  %1651 = vmatpush1.bf16.msra.mxu0 %v1162
  %1652 = vmatprep.subr.bf16.mxu0 %v1167
  %1653 = vmatpush1.bf16.msra.mxu0 %v1166
  %1654 = vmatprep.subr.bf16.mxu0 %v1171
  %1655 = vmatpush1.bf16.msra.mxu0 %v1170
  %1656 = vmatprep.subr.bf16.mxu0 %v1175
  %1657 = vmatpush1.bf16.msra.mxu0 %v1174
  %1658 = vmatprep.mubr.bf16.mxu0 %v61
  %1659 = vmatmul.mubr.bf16.gmra.mrb[0].mxu0 %v60
  %v1660 = vpop.f32.mrb[0].mxu0
  %v1661 = vadd.f32 %v329, %v1660
  %v1662 = vpop.f32.mrb[0].mxu0
  %v1663 = vadd.f32 %v333, %v1662
  %v1664 = vpop.f32.mrb[0].mxu0
  %v1665 = vpop.f32.mrb[0].mxu0
  %1666 = vdwg.mxu0
  %1667 = vmatprep.subr.bf16.mxu0 %v1179
  %1668 = vmatpush1.bf16.msra.mxu0 %v1178
  %1669 = vmatprep.subr.bf16.mxu0 %v1183
  %1670 = vmatpush1.bf16.msra.mxu0 %v1182
  %1671 = vmatprep.subr.bf16.mxu0 %v1187
  %1672 = vmatpush1.bf16.msra.mxu0 %v1186
  %1673 = vmatprep.subr.bf16.mxu0 %v1191
  %1674 = vmatpush1.bf16.msra.mxu0 %v1190
  %1675 = vmatprep.subr.bf16.mxu0 %v1195
  %1676 = vmatpush1.bf16.msra.mxu0 %v1194
  %1677 = vmatprep.subr.bf16.mxu0 %v1199
  %1678 = vmatpush1.bf16.msra.mxu0 %v1198
  %1679 = vmatprep.subr.bf16.mxu0 %v1203
  %1680 = vmatpush1.bf16.msra.mxu0 %v1202
  %1681 = vmatprep.subr.bf16.mxu0 %v1207
  %1682 = vmatpush1.bf16.msra.mxu0 %v1206
  %1683 = vmatprep.subr.bf16.mxu0 %v1211
  %1684 = vmatpush1.bf16.msra.mxu0 %v1210
  %1685 = vmatprep.subr.bf16.mxu0 %v1215
  %1686 = vmatpush1.bf16.msra.mxu0 %v1214
  %1687 = vmatprep.subr.bf16.mxu0 %v1219
  %1688 = vmatpush1.bf16.msra.mxu0 %v1218
  %1689 = vmatprep.subr.bf16.mxu0 %v1223
  %1690 = vmatpush1.bf16.msra.mxu0 %v1222
  %1691 = vmatprep.subr.bf16.mxu0 %v1227
  %1692 = vmatpush1.bf16.msra.mxu0 %v1226
  %1693 = vmatprep.subr.bf16.mxu0 %v1231
  %1694 = vmatpush1.bf16.msra.mxu0 %v1230
  %1695 = vmatprep.subr.bf16.mxu0 %v1235
  %1696 = vmatpush1.bf16.msra.mxu0 %v1234
  %1697 = vmatprep.subr.bf16.mxu0 %v1239
  %1698 = vmatpush1.bf16.msra.mxu0 %v1238
  %1699 = vmatprep.mubr.bf16.mxu0 %v63
  %1700 = vmatmul.mubr.bf16.gmra.mrb[0].mxu0 %v62
  %v1701 = vpop.f32.mrb[0].mxu0
  %v1702 = vadd.f32 %v1661, %v1701
  %v1703 = vpop.f32.mrb[0].mxu0
  %v1704 = vadd.f32 %v1663, %v1703
  %v1705 = vpop.f32.mrb[0].mxu0
  %v1706 = vpop.f32.mrb[0].mxu0
  %1707 = vdwg.mxu0
  %1708 = vmatprep.subr.bf16.mxu0 %v1243
  %1709 = vmatpush1.bf16.msra.mxu0 %v1242
  %1710 = vmatprep.subr.bf16.mxu0 %v1247
  %1711 = vmatpush1.bf16.msra.mxu0 %v1246
  %1712 = vmatprep.subr.bf16.mxu0 %v1251
  %1713 = vmatpush1.bf16.msra.mxu0 %v1250
  %1714 = vmatprep.subr.bf16.mxu0 %v1255
  %1715 = vmatpush1.bf16.msra.mxu0 %v1254
  %1716 = vmatprep.subr.bf16.mxu0 %v1259
  %1717 = vmatpush1.bf16.msra.mxu0 %v1258
  %1718 = vmatprep.subr.bf16.mxu0 %v1263
  %1719 = vmatpush1.bf16.msra.mxu0 %v1262
  %1720 = vmatprep.subr.bf16.mxu0 %v1267
  %1721 = vmatpush1.bf16.msra.mxu0 %v1266
  %1722 = vmatprep.subr.bf16.mxu0 %v1271
  %1723 = vmatpush1.bf16.msra.mxu0 %v1270
  %1724 = vmatprep.subr.bf16.mxu0 %v1275
  %1725 = vmatpush1.bf16.msra.mxu0 %v1274
  %1726 = vmatprep.subr.bf16.mxu0 %v1279
  %1727 = vmatpush1.bf16.msra.mxu0 %v1278
  %1728 = vmatprep.subr.bf16.mxu0 %v1283
  %1729 = vmatpush1.bf16.msra.mxu0 %v1282
  %1730 = vmatprep.subr.bf16.mxu0 %v1287
  %1731 = vmatpush1.bf16.msra.mxu0 %v1286
  %1732 = vmatprep.subr.bf16.mxu0 %v1291
  %1733 = vmatpush1.bf16.msra.mxu0 %v1290
  %1734 = vmatprep.subr.bf16.mxu0 %v1295
  %1735 = vmatpush1.bf16.msra.mxu0 %v1294
  %1736 = vmatprep.subr.bf16.mxu0 %v1299
  %1737 = vmatpush1.bf16.msra.mxu0 %v1298
  %1738 = vmatprep.subr.bf16.mxu0 %v1303
  %1739 = vmatpush1.bf16.msra.mxu0 %v1302
  %1740 = vmatprep.mubr.bf16.mxu0 %v65
  %1741 = vmatmul.mubr.bf16.gmra.mrb[0].mxu0 %v64
  %v1742 = vpop.f32.mrb[0].mxu0
  %v1743 = vadd.f32 %v1702, %v1742
  %v1744 = vpop.f32.mrb[0].mxu0
  %v1745 = vadd.f32 %v1704, %v1744
  %v1746 = vpop.f32.mrb[0].mxu0
  %v1747 = vpop.f32.mrb[0].mxu0
  %1748 = vdwg.mxu0
  %1749 = vmatprep.subr.bf16.mxu0 %v1307
  %1750 = vmatpush1.bf16.msra.mxu0 %v1306
  %1751 = vmatprep.subr.bf16.mxu0 %v1311
  %1752 = vmatpush1.bf16.msra.mxu0 %v1310
  %1753 = vmatprep.subr.bf16.mxu0 %v1315
  %1754 = vmatpush1.bf16.msra.mxu0 %v1314
  %1755 = vmatprep.subr.bf16.mxu0 %v1319
  %1756 = vmatpush1.bf16.msra.mxu0 %v1318
  %1757 = vmatprep.subr.bf16.mxu0 %v1323
  %1758 = vmatpush1.bf16.msra.mxu0 %v1322
  %1759 = vmatprep.subr.bf16.mxu0 %v1327
  %1760 = vmatpush1.bf16.msra.mxu0 %v1326
  %1761 = vmatprep.subr.bf16.mxu0 %v1331
  %1762 = vmatpush1.bf16.msra.mxu0 %v1330
  %1763 = vmatprep.subr.bf16.mxu0 %v1335
  %1764 = vmatpush1.bf16.msra.mxu0 %v1334
  %1765 = vmatprep.subr.bf16.mxu0 %v1339
  %1766 = vmatpush1.bf16.msra.mxu0 %v1338
  %1767 = vmatprep.subr.bf16.mxu0 %v1343
  %1768 = vmatpush1.bf16.msra.mxu0 %v1342
  %1769 = vmatprep.subr.bf16.mxu0 %v1347
  %1770 = vmatpush1.bf16.msra.mxu0 %v1346
  %1771 = vmatprep.subr.bf16.mxu0 %v1351
  %1772 = vmatpush1.bf16.msra.mxu0 %v1350
  %1773 = vmatprep.subr.bf16.mxu0 %v1355
  %1774 = vmatpush1.bf16.msra.mxu0 %v1354
  %1775 = vmatprep.subr.bf16.mxu0 %v1359
  %1776 = vmatpush1.bf16.msra.mxu0 %v1358
  %1777 = vmatprep.subr.bf16.mxu0 %v1363
  %1778 = vmatpush1.bf16.msra.mxu0 %v1362
  %1779 = vmatprep.subr.bf16.mxu0 %v1367
  %1780 = vmatpush1.bf16.msra.mxu0 %v1366
  %1781 = vmatprep.mubr.bf16.mxu0 %v67
  %1782 = vmatmul.mubr.bf16.gmra.mrb[0].mxu0 %v66
  %v1783 = vpop.f32.mrb[0].mxu0
  %v1784 = vadd.f32 %v1743, %v1783
  %v1785 = vpop.f32.mrb[0].mxu0
  %v1786 = vadd.f32 %v1745, %v1785
  %v1787 = vpop.f32.mrb[0].mxu0
  %v1788 = vpop.f32.mrb[0].mxu0
  %1789 = vdwg.mxu0
  %1790 = vmatprep.subr.bf16.mxu0 %v1117
  %1791 = vmatpush1.bf16.msra.mxu0 %v1116
  %1792 = vmatprep.subr.bf16.mxu0 %v1121
  %1793 = vmatpush1.bf16.msra.mxu0 %v1120
  %1794 = vmatprep.subr.bf16.mxu0 %v1125
  %1795 = vmatpush1.bf16.msra.mxu0 %v1124
  %1796 = vmatprep.subr.bf16.mxu0 %v1129
  %1797 = vmatpush1.bf16.msra.mxu0 %v1128
  %1798 = vmatprep.subr.bf16.mxu0 %v1133
  %1799 = vmatpush1.bf16.msra.mxu0 %v1132
  %1800 = vmatprep.subr.bf16.mxu0 %v1137
  %1801 = vmatpush1.bf16.msra.mxu0 %v1136
  %1802 = vmatprep.subr.bf16.mxu0 %v1141
  %1803 = vmatpush1.bf16.msra.mxu0 %v1140
  %1804 = vmatprep.subr.bf16.mxu0 %v1145
  %1805 = vmatpush1.bf16.msra.mxu0 %v1144
  %1806 = vmatprep.subr.bf16.mxu0 %v1149
  %1807 = vmatpush1.bf16.msra.mxu0 %v1148
  %1808 = vmatprep.subr.bf16.mxu0 %v1153
  %1809 = vmatpush1.bf16.msra.mxu0 %v1152
  %1810 = vmatprep.subr.bf16.mxu0 %v1157
  %1811 = vmatpush1.bf16.msra.mxu0 %v1156
  %1812 = vmatprep.subr.bf16.mxu0 %v1161
  %1813 = vmatpush1.bf16.msra.mxu0 %v1160
  %1814 = vmatprep.subr.bf16.mxu0 %v1165
  %1815 = vmatpush1.bf16.msra.mxu0 %v1164
  %1816 = vmatprep.subr.bf16.mxu0 %v1169
  %1817 = vmatpush1.bf16.msra.mxu0 %v1168
  %1818 = vmatprep.subr.bf16.mxu0 %v1173
  %1819 = vmatpush1.bf16.msra.mxu0 %v1172
  %1820 = vmatprep.subr.bf16.mxu0 %v1177
  %1821 = vmatpush1.bf16.msra.mxu0 %v1176
  %1822 = vmatprep.mubr.bf16.mxu0 %v61
  %1823 = vmatmul.mubr.bf16.gmra.mrb[0].mxu0 %v60
  %v1824 = vpop.f32.mrb[0].mxu0
  %v1825 = vadd.f32 %v337, %v1824
  %v1826 = vpop.f32.mrb[0].mxu0
  %v1827 = vadd.f32 %v341, %v1826
  %v1828 = vpop.f32.mrb[0].mxu0
  %v1829 = vpop.f32.mrb[0].mxu0
  %1830 = vdwg.mxu0
  %1831 = vmatprep.subr.bf16.mxu0 %v1181
  %1832 = vmatpush1.bf16.msra.mxu0 %v1180
  %1833 = vmatprep.subr.bf16.mxu0 %v1185
  %1834 = vmatpush1.bf16.msra.mxu0 %v1184
  %1835 = vmatprep.subr.bf16.mxu0 %v1189
  %1836 = vmatpush1.bf16.msra.mxu0 %v1188
  %1837 = vmatprep.subr.bf16.mxu0 %v1193
  %1838 = vmatpush1.bf16.msra.mxu0 %v1192
  %1839 = vmatprep.subr.bf16.mxu0 %v1197
  %1840 = vmatpush1.bf16.msra.mxu0 %v1196
  %1841 = vmatprep.subr.bf16.mxu0 %v1201
  %1842 = vmatpush1.bf16.msra.mxu0 %v1200
  %1843 = vmatprep.subr.bf16.mxu0 %v1205
  %1844 = vmatpush1.bf16.msra.mxu0 %v1204
  %1845 = vmatprep.subr.bf16.mxu0 %v1209
  %1846 = vmatpush1.bf16.msra.mxu0 %v1208
  %1847 = vmatprep.subr.bf16.mxu0 %v1213
  %1848 = vmatpush1.bf16.msra.mxu0 %v1212
  %1849 = vmatprep.subr.bf16.mxu0 %v1217
  %1850 = vmatpush1.bf16.msra.mxu0 %v1216
  %1851 = vmatprep.subr.bf16.mxu0 %v1221
  %1852 = vmatpush1.bf16.msra.mxu0 %v1220
  %1853 = vmatprep.subr.bf16.mxu0 %v1225
  %1854 = vmatpush1.bf16.msra.mxu0 %v1224
  %1855 = vmatprep.subr.bf16.mxu0 %v1229
  %1856 = vmatpush1.bf16.msra.mxu0 %v1228
  %1857 = vmatprep.subr.bf16.mxu0 %v1233
  %1858 = vmatpush1.bf16.msra.mxu0 %v1232
  %1859 = vmatprep.subr.bf16.mxu0 %v1237
  %1860 = vmatpush1.bf16.msra.mxu0 %v1236
  %1861 = vmatprep.subr.bf16.mxu0 %v1241
  %1862 = vmatpush1.bf16.msra.mxu0 %v1240
  %1863 = vmatprep.mubr.bf16.mxu0 %v63
  %1864 = vmatmul.mubr.bf16.gmra.mrb[0].mxu0 %v62
  %v1865 = vpop.f32.mrb[0].mxu0
  %v1866 = vadd.f32 %v1825, %v1865
  %v1867 = vpop.f32.mrb[0].mxu0
  %v1868 = vadd.f32 %v1827, %v1867
  %v1869 = vpop.f32.mrb[0].mxu0
  %v1870 = vpop.f32.mrb[0].mxu0
  %1871 = vdwg.mxu0
  %1872 = vmatprep.subr.bf16.mxu0 %v1245
  %1873 = vmatpush1.bf16.msra.mxu0 %v1244
  %1874 = vmatprep.subr.bf16.mxu0 %v1249
  %1875 = vmatpush1.bf16.msra.mxu0 %v1248
  %1876 = vmatprep.subr.bf16.mxu0 %v1253
  %1877 = vmatpush1.bf16.msra.mxu0 %v1252
  %1878 = vmatprep.subr.bf16.mxu0 %v1257
  %1879 = vmatpush1.bf16.msra.mxu0 %v1256
  %1880 = vmatprep.subr.bf16.mxu0 %v1261
  %1881 = vmatpush1.bf16.msra.mxu0 %v1260
  %1882 = vmatprep.subr.bf16.mxu0 %v1265
  %1883 = vmatpush1.bf16.msra.mxu0 %v1264
  %1884 = vmatprep.subr.bf16.mxu0 %v1269
  %1885 = vmatpush1.bf16.msra.mxu0 %v1268
  %1886 = vmatprep.subr.bf16.mxu0 %v1273
  %1887 = vmatpush1.bf16.msra.mxu0 %v1272
  %1888 = vmatprep.subr.bf16.mxu0 %v1277
  %1889 = vmatpush1.bf16.msra.mxu0 %v1276
  %1890 = vmatprep.subr.bf16.mxu0 %v1281
  %1891 = vmatpush1.bf16.msra.mxu0 %v1280
  %1892 = vmatprep.subr.bf16.mxu0 %v1285
  %1893 = vmatpush1.bf16.msra.mxu0 %v1284
  %1894 = vmatprep.subr.bf16.mxu0 %v1289
  %1895 = vmatpush1.bf16.msra.mxu0 %v1288
  %1896 = vmatprep.subr.bf16.mxu0 %v1293
  %1897 = vmatpush1.bf16.msra.mxu0 %v1292
  %1898 = vmatprep.subr.bf16.mxu0 %v1297
  %1899 = vmatpush1.bf16.msra.mxu0 %v1296
  %1900 = vmatprep.subr.bf16.mxu0 %v1301
  %1901 = vmatpush1.bf16.msra.mxu0 %v1300
  %1902 = vmatprep.subr.bf16.mxu0 %v1305
  %1903 = vmatpush1.bf16.msra.mxu0 %v1304
  %1904 = vmatprep.mubr.bf16.mxu0 %v65
  %1905 = vmatmul.mubr.bf16.gmra.mrb[0].mxu0 %v64
  %v1906 = vpop.f32.mrb[0].mxu0
  %v1907 = vadd.f32 %v1866, %v1906
  %v1908 = vpop.f32.mrb[0].mxu0
  %v1909 = vadd.f32 %v1868, %v1908
  %v1910 = vpop.f32.mrb[0].mxu0
  %v1911 = vpop.f32.mrb[0].mxu0
  %1912 = vdwg.mxu0
  %1913 = vmatprep.subr.bf16.mxu0 %v1309
  %1914 = vmatpush1.bf16.msra.mxu0 %v1308
  %1915 = vmatprep.subr.bf16.mxu0 %v1313
  %1916 = vmatpush1.bf16.msra.mxu0 %v1312
  %1917 = vmatprep.subr.bf16.mxu0 %v1317
  %1918 = vmatpush1.bf16.msra.mxu0 %v1316
  %1919 = vmatprep.subr.bf16.mxu0 %v1321
  %1920 = vmatpush1.bf16.msra.mxu0 %v1320
  %1921 = vmatprep.subr.bf16.mxu0 %v1325
  %1922 = vmatpush1.bf16.msra.mxu0 %v1324
  %1923 = vmatprep.subr.bf16.mxu0 %v1329
  %1924 = vmatpush1.bf16.msra.mxu0 %v1328
  %1925 = vmatprep.subr.bf16.mxu0 %v1333
  %1926 = vmatpush1.bf16.msra.mxu0 %v1332
  %1927 = vmatprep.subr.bf16.mxu0 %v1337
  %1928 = vmatpush1.bf16.msra.mxu0 %v1336
  %1929 = vmatprep.subr.bf16.mxu0 %v1341
  %1930 = vmatpush1.bf16.msra.mxu0 %v1340
  %1931 = vmatprep.subr.bf16.mxu0 %v1345
  %1932 = vmatpush1.bf16.msra.mxu0 %v1344
  %1933 = vmatprep.subr.bf16.mxu0 %v1349
  %1934 = vmatpush1.bf16.msra.mxu0 %v1348
  %1935 = vmatprep.subr.bf16.mxu0 %v1353
  %1936 = vmatpush1.bf16.msra.mxu0 %v1352
  %1937 = vmatprep.subr.bf16.mxu0 %v1357
  %1938 = vmatpush1.bf16.msra.mxu0 %v1356
  %1939 = vmatprep.subr.bf16.mxu0 %v1361
  %1940 = vmatpush1.bf16.msra.mxu0 %v1360
  %1941 = vmatprep.subr.bf16.mxu0 %v1365
  %1942 = vmatpush1.bf16.msra.mxu0 %v1364
  %1943 = vmatprep.subr.bf16.mxu0 %v1369
  %1944 = vmatpush1.bf16.msra.mxu0 %v1368
  %1945 = vmatprep.mubr.bf16.mxu0 %v67
  %1946 = vmatmul.mubr.bf16.gmra.mrb[0].mxu0 %v66
  %v1947 = vpop.f32.mrb[0].mxu0
  %v1948 = vadd.f32 %v1907, %v1947
  %v1949 = vpop.f32.mrb[0].mxu0
  %v1950 = vadd.f32 %v1909, %v1949
  %v1951 = vpop.f32.mrb[0].mxu0
  %v1952 = vpop.f32.mrb[0].mxu0
  %1953 = vdwg.mxu0
  %v1958 = vcombine.low %v1784, %v1786
  %v1959 = vcombine.low %v1948, %v1950
  %v1961 = vunpack.c.l.s4 1983009808
  %v1962 = vunpack.c.0.s8 %v1961
  %v1963 = vlaneseq
  %v1964 = vshrl.u32 %v1963, 7
  %v1965 = vsub.s32 %v1962, %v1964
  %v1966 = vrot.slane %v1958, %v1965
  %v1968 = vunpack.c.l.s4 1983009808
  %v1969 = vunpack.c.0.s8 %v1968
  %v1970 = vlaneseq
  %v1971 = vshrl.u32 %v1970, 7
  %v1972 = vsub.s32 %v1969, %v1971
  %v1973 = vrot.slane %v1959, %v1972
  %v1974 = vcombine.low %v1966, %v1973
  %1976 = vst [vmem:[%s3] sm:$0xff] %v1974
  // Predicated region
  $region14: #{segment_forward.8} parent=0 // pred_check
    _
  $region15: #{segment_forward.8} parent=0 // pred_check_branch
    %1978 = sbr.rel (0) target = $region17
  $region16: #{segment_forward.8} parent=0 // pred_region
    _
  $region17: #{segment_forward.8} parent=0 // pred_fallthru
    _
  // Predicated region
  $region18: #{segment_forward.8} parent=0 // pred_check
    _
  $region19: #{segment_forward.8} parent=0 // pred_check_branch
    %1980 = sbr.rel (0) target = $region21
  $region20: #{segment_forward.8} parent=0 // pred_region
    _
  $region21: #{segment_forward.8} parent=0 // pred_fallthru
    _

// kernel: segment_forward.9
$region0: #{segment_forward.9}
  #allocation0 [shape = 'u32[]', space=smem, size = 0x4, offset = 0x4, fixed_abs, tag = 'smem constant byte address 0x4 - core index']
  #allocation1 [shape = 'u32[144,128]{1,0:T(1,128)}', space=vmem, size = 0x12000, scoped, tag = 'internal scratch']
  %s0 = inlined_call_operand.vmem [shape: bf16[2,64,64], index: 0, kind: input, shape index: {}]
  %s1 = inlined_call_operand.vmem [shape: f32[2,1,512], index: 1, kind: input, shape index: {}]
  %s2 = inlined_call_operand.vmem [shape: bf16[64,512], index: 2, kind: input, shape index: {}]
  %s3 = inlined_call_operand.vmem [shape: bf16[512,256], index: 3, kind: input, shape index: {}]
  %s4 = inlined_call_operand.vmem [shape: f32[1,256], index: 4, kind: input, shape index: {}]
  %s5 = inlined_call_operand.vmem [shape: bf16[256,128], index: 5, kind: input, shape index: {}]
  %s6 = inlined_call_operand.vmem [shape: f32[1,128], index: 6, kind: input, shape index: {}]
  %s7 = inlined_call_operand.vmem [shape: bf16[128,4], index: 7, kind: input, shape index: {}]
  %s8 = inlined_call_operand.vmem [shape: f32[1,4], index: 8, kind: input, shape index: {}]
  %s9 = inlined_call_operand.vmem [shape: f32[2,64,4], index: 9, kind: output, shape index: {}]
  %s10 = sld [smem:[#allocation0]]
  $region69: #{segment_forward.9} parent=0
    _
  %s12 = ssub.s32 1, %s10
  %s13 = scalar_select 0, %s12, %s10
  loop: start=0, step=1, limit=4
  $region2: #{segment_forward.9} parent=0 // loop_pre_header
    _
  $region3: #{segment_forward.9} parent=0 // loop_header
    %s15 = sphi 0, %s19
    %p16 = scmp.ge.s32.totalorder %s15, 4
    %s22 = sphi 0, %s34
    %s23 = sphi 0, %s30
    %s24 = sphi 0, %s22
    %s25 = sphi 0, %s23
    %s26 = sphi 0, %s24
    %s27 = sphi 0, %s25
    %s39 = sphi 0, %s41
    %s42 = sphi 0, %s39
    %s43 = sphi 0, %s42
    %s59 = sphi 0, %s43
    %s65 = sphi 0, %s67
    %s68 = sphi 0, %s65
    %s69 = sphi 0, %s68
    %s85 = sphi 0, %s69
    %s89 = sphi 0, %s89
    %s91 = sphi 0, %s89
    %s92 = sphi 0, %s91
    %s106 = sphi 0, %s92
    %s110 = sphi 0, %s110
    %s112 = sphi 0, %s110
    %s113 = sphi 0, %s112
    %s127 = sphi 0, %s113
    %s131 = sphi 0, %s131
    %s133 = sphi 0, %s131
    %s134 = sphi 0, %s133
    %s148 = sphi 0, %s134
    %s152 = sphi 0, %s152
    %s154 = sphi 0, %s152
    %s155 = sphi 0, %s154
    %s169 = sphi 0, %s155
    %s173 = sphi 0, %s173
    %s175 = sphi 0, %s173
    %s176 = sphi 0, %s175
    %s190 = sphi 0, %s176
    %s194 = sphi 0, %s194
    %s196 = sphi 0, %s194
    %s197 = sphi 0, %s196
    %s211 = sphi 0, %s197
    %s215 = sphi 0, %s215
    %s217 = sphi 0, %s215
    %s218 = sphi 0, %s217
    %s232 = sphi 0, %s218
    %s240 = sphi 0, %s242
    %s243 = sphi 0, %s240
    %s244 = sphi 0, %s243
    %s260 = sphi 0, %s244
  $region4: #{segment_forward.9} parent=0 // loop_header_branch
    %18 = sbr.rel (%p16) target = $region8
  $region5: #{segment_forward.9} parent=0 // loop_body
    %s20 = ssub.s32 %s15, 1
    %s21 = ssub.s32 %s15, 2
    %s28 = sadd.s32 1, %s23
    %p29 = scmp.ge.s32.totalorder %s28, 1
    %s30 = scalar_select %p29, 0, %s28
    %s31 = sadd.s32 1, %s22
    %s32 = scalar_select %p29, %s31, %s22
    %p33 = scmp.ge.s32.totalorder %s32, 2
    %s34 = scalar_select %p33, 0, %s32
    %s35 = ssub.s32 %s22, %s34
    %s36 = ssub.s32 %s23, %s30
    %s37 = sor.u32 %s35, %s36
    %p38 = scmp.eq.s32.totalorder %s37, 0
    %s40 = sadd.s32 %s39, 1
    %s41 = scalar_select %p38, %s39, %s40
    %p44 = pneg %p38
    %p45 = scmp.eq.s32.totalorder %s15, 1
    %p46 = por %p44, %p45
    %p47 = scmp.ne.s32.totalorder %s39, %s42
    %p48 = scmp.eq.s32.totalorder %s15, 0
    %p49 = por %p47, %p48
    %p50 = scmp.ne.s32.totalorder %s39, %s42
    %p51 = scmp.eq.s32.totalorder %s20, 1
    %p52 = por %p50, %p51
    %p53 = scmp.ne.s32.totalorder %s42, %s43
    %p54 = scmp.eq.s32.totalorder %s20, 0
    %p55 = por %p53, %p54
    %p56 = scmp.ne.s32.totalorder %s42, %s43
    %p57 = scmp.eq.s32.totalorder %s21, 1
    %p58 = por %p56, %p57
    %p60 = scmp.ne.s32.totalorder %s43, %s59
    %p61 = scmp.eq.s32.totalorder %s21, 0
    %p62 = por %p60, %p61
    %s63 = ssub.s32 %s22, %s34
    %p64 = scmp.eq.s32.totalorder %s63, 0
    %s66 = sadd.s32 %s65, 1
    %s67 = scalar_select %p64, %s65, %s66
    %p70 = pneg %p64
    %p71 = scmp.eq.s32.totalorder %s15, 1
    %p72 = por %p70, %p71
    %p73 = scmp.ne.s32.totalorder %s65, %s68
    %p74 = scmp.eq.s32.totalorder %s15, 0
    %p75 = por %p73, %p74
    %p76 = scmp.ne.s32.totalorder %s65, %s68
    %p77 = scmp.eq.s32.totalorder %s20, 1
    %p78 = por %p76, %p77
    %p79 = scmp.ne.s32.totalorder %s68, %s69
    %p80 = scmp.eq.s32.totalorder %s20, 0
    %p81 = por %p79, %p80
    %p82 = scmp.ne.s32.totalorder %s68, %s69
    %p83 = scmp.eq.s32.totalorder %s21, 1
    %p84 = por %p82, %p83
    %p86 = scmp.ne.s32.totalorder %s69, %s85
    %p87 = scmp.eq.s32.totalorder %s21, 0
    %p88 = por %p86, %p87
    %s90 = sadd.s32 %s89, 1
    %p93 = scmp.eq.s32.totalorder %s15, 1
    %p94 = scmp.ne.s32.totalorder %s89, %s91
    %p95 = scmp.eq.s32.totalorder %s15, 0
    %p96 = por %p94, %p95
    %p97 = scmp.ne.s32.totalorder %s89, %s91
    %p98 = scmp.eq.s32.totalorder %s20, 1
    %p99 = por %p97, %p98
    %p100 = scmp.ne.s32.totalorder %s91, %s92
    %p101 = scmp.eq.s32.totalorder %s20, 0
    %p102 = por %p100, %p101
    %p103 = scmp.ne.s32.totalorder %s91, %s92
    %p104 = scmp.eq.s32.totalorder %s21, 1
    %p105 = por %p103, %p104
    %p107 = scmp.ne.s32.totalorder %s92, %s106
    %p108 = scmp.eq.s32.totalorder %s21, 0
    %p109 = por %p107, %p108
    %s111 = sadd.s32 %s110, 1
    %p114 = scmp.eq.s32.totalorder %s15, 1
    %p115 = scmp.ne.s32.totalorder %s110, %s112
    %p116 = scmp.eq.s32.totalorder %s15, 0
    %p117 = por %p115, %p116
    %p118 = scmp.ne.s32.totalorder %s110, %s112
    %p119 = scmp.eq.s32.totalorder %s20, 1
    %p120 = por %p118, %p119
    %p121 = scmp.ne.s32.totalorder %s112, %s113
    %p122 = scmp.eq.s32.totalorder %s20, 0
    %p123 = por %p121, %p122
    %p124 = scmp.ne.s32.totalorder %s112, %s113
    %p125 = scmp.eq.s32.totalorder %s21, 1
    %p126 = por %p124, %p125
    %p128 = scmp.ne.s32.totalorder %s113, %s127
    %p129 = scmp.eq.s32.totalorder %s21, 0
    %p130 = por %p128, %p129
    %s132 = sadd.s32 %s131, 1
    %p135 = scmp.eq.s32.totalorder %s15, 1
    %p136 = scmp.ne.s32.totalorder %s131, %s133
    %p137 = scmp.eq.s32.totalorder %s15, 0
    %p138 = por %p136, %p137
    %p139 = scmp.ne.s32.totalorder %s131, %s133
    %p140 = scmp.eq.s32.totalorder %s20, 1
    %p141 = por %p139, %p140
    %p142 = scmp.ne.s32.totalorder %s133, %s134
    %p143 = scmp.eq.s32.totalorder %s20, 0
    %p144 = por %p142, %p143
    %p145 = scmp.ne.s32.totalorder %s133, %s134
    %p146 = scmp.eq.s32.totalorder %s21, 1
    %p147 = por %p145, %p146
    %p149 = scmp.ne.s32.totalorder %s134, %s148
    %p150 = scmp.eq.s32.totalorder %s21, 0
    %p151 = por %p149, %p150
    %s153 = sadd.s32 %s152, 1
    %p156 = scmp.eq.s32.totalorder %s15, 1
    %p157 = scmp.ne.s32.totalorder %s152, %s154
    %p158 = scmp.eq.s32.totalorder %s15, 0
    %p159 = por %p157, %p158
    %p160 = scmp.ne.s32.totalorder %s152, %s154
    %p161 = scmp.eq.s32.totalorder %s20, 1
    %p162 = por %p160, %p161
    %p163 = scmp.ne.s32.totalorder %s154, %s155
    %p164 = scmp.eq.s32.totalorder %s20, 0
    %p165 = por %p163, %p164
    %p166 = scmp.ne.s32.totalorder %s154, %s155
    %p167 = scmp.eq.s32.totalorder %s21, 1
    %p168 = por %p166, %p167
    %p170 = scmp.ne.s32.totalorder %s155, %s169
    %p171 = scmp.eq.s32.totalorder %s21, 0
    %p172 = por %p170, %p171
    %s174 = sadd.s32 %s173, 1
    %p177 = scmp.eq.s32.totalorder %s15, 1
    %p178 = scmp.ne.s32.totalorder %s173, %s175
    %p179 = scmp.eq.s32.totalorder %s15, 0
    %p180 = por %p178, %p179
    %p181 = scmp.ne.s32.totalorder %s173, %s175
    %p182 = scmp.eq.s32.totalorder %s20, 1
    %p183 = por %p181, %p182
    %p184 = scmp.ne.s32.totalorder %s175, %s176
    %p185 = scmp.eq.s32.totalorder %s20, 0
    %p186 = por %p184, %p185
    %p187 = scmp.ne.s32.totalorder %s175, %s176
    %p188 = scmp.eq.s32.totalorder %s21, 1
    %p189 = por %p187, %p188
    %p191 = scmp.ne.s32.totalorder %s176, %s190
    %p192 = scmp.eq.s32.totalorder %s21, 0
    %p193 = por %p191, %p192
    %s195 = sadd.s32 %s194, 1
    %p198 = scmp.eq.s32.totalorder %s15, 1
    %p199 = scmp.ne.s32.totalorder %s194, %s196
    %p200 = scmp.eq.s32.totalorder %s15, 0
    %p201 = por %p199, %p200
    %p202 = scmp.ne.s32.totalorder %s194, %s196
    %p203 = scmp.eq.s32.totalorder %s20, 1
    %p204 = por %p202, %p203
    %p205 = scmp.ne.s32.totalorder %s196, %s197
    %p206 = scmp.eq.s32.totalorder %s20, 0
    %p207 = por %p205, %p206
    %p208 = scmp.ne.s32.totalorder %s196, %s197
    %p209 = scmp.eq.s32.totalorder %s21, 1
    %p210 = por %p208, %p209
    %p212 = scmp.ne.s32.totalorder %s197, %s211
    %p213 = scmp.eq.s32.totalorder %s21, 0
    %p214 = por %p212, %p213
    %s216 = sadd.s32 %s215, 1
    %p219 = scmp.eq.s32.totalorder %s15, 1
    %p220 = scmp.ne.s32.totalorder %s215, %s217
    %p221 = scmp.eq.s32.totalorder %s15, 0
    %p222 = por %p220, %p221
    %p223 = scmp.ne.s32.totalorder %s215, %s217
    %p224 = scmp.eq.s32.totalorder %s20, 1
    %p225 = por %p223, %p224
    %p226 = scmp.ne.s32.totalorder %s217, %s218
    %p227 = scmp.eq.s32.totalorder %s20, 0
    %p228 = por %p226, %p227
    %p229 = scmp.ne.s32.totalorder %s217, %s218
    %p230 = scmp.eq.s32.totalorder %s21, 1
    %p231 = por %p229, %p230
    %p233 = scmp.ne.s32.totalorder %s218, %s232
    %p234 = scmp.eq.s32.totalorder %s21, 0
    %p235 = por %p233, %p234
    %s236 = ssub.s32 %s22, %s34
    %s237 = ssub.s32 %s23, %s30
    %s238 = sor.u32 %s236, %s237
    %p239 = scmp.eq.s32.totalorder %s238, 0
    %s241 = sadd.s32 %s240, 1
    %s242 = scalar_select %p239, %s240, %s241
    %p245 = pneg %p239
    %p246 = scmp.eq.s32.totalorder %s15, 1
    %p247 = por %p245, %p246
    %p248 = scmp.ne.s32.totalorder %s240, %s243
    %p249 = scmp.eq.s32.totalorder %s15, 0
    %p250 = por %p248, %p249
    %p251 = scmp.ne.s32.totalorder %s240, %s243
    %p252 = scmp.eq.s32.totalorder %s20, 1
    %p253 = por %p251, %p252
    %p254 = scmp.ne.s32.totalorder %s243, %s244
    %p255 = scmp.eq.s32.totalorder %s20, 0
    %p256 = por %p254, %p255
    %p257 = scmp.ne.s32.totalorder %s243, %s244
    %p258 = scmp.eq.s32.totalorder %s21, 1
    %p259 = por %p257, %p258
    %p261 = scmp.ne.s32.totalorder %s244, %s260
    %p262 = scmp.eq.s32.totalorder %s21, 0
    %p263 = por %p261, %p262
    %p264 = scmp.le.s32.totalorder 1, %s15
    %p265 = scmp.lt.s32.totalorder %s15, 3
    %p266 = pnand %p264, %p265
    %p267 = pneg %p266
    // Predicated region
    $region9: #{segment_forward.9} parent=5 // pred_check
      _
    $region10: #{segment_forward.9} parent=5 // pred_check_branch
      %269 = sbr.rel (%p266) target = $region12
    $region11: #{segment_forward.9} parent=5 // pred_region
      %s270 = ssub.s32 %s15, 1
      // Predicated region
      $region13: #{segment_forward.9} parent=11 // pred_check
        %p271 = pneg %p102
      $region14: #{segment_forward.9} parent=11 // pred_check_branch
        %273 = sbr.rel (%p271) target = $region16
      $region15: #{segment_forward.9} parent=11 // pred_region
        _
      $region16: #{segment_forward.9} parent=11 // pred_fallthru
        _
      // Predicated region
      $region17: #{segment_forward.9} parent=11 // pred_check
        %p274 = pneg %p123
      $region18: #{segment_forward.9} parent=11 // pred_check_branch
        %276 = sbr.rel (%p274) target = $region20
      $region19: #{segment_forward.9} parent=11 // pred_region
        _
      $region20: #{segment_forward.9} parent=11 // pred_fallthru
        _
      // Predicated region
      $region21: #{segment_forward.9} parent=11 // pred_check
        %p277 = pneg %p144
      $region22: #{segment_forward.9} parent=11 // pred_check_branch
        %279 = sbr.rel (%p277) target = $region24
      $region23: #{segment_forward.9} parent=11 // pred_region
        _
      $region24: #{segment_forward.9} parent=11 // pred_fallthru
        _
      // Predicated region
      $region25: #{segment_forward.9} parent=11 // pred_check
        %p280 = pneg %p165
      $region26: #{segment_forward.9} parent=11 // pred_check_branch
        %282 = sbr.rel (%p280) target = $region28
      $region27: #{segment_forward.9} parent=11 // pred_region
        _
      $region28: #{segment_forward.9} parent=11 // pred_fallthru
        _
      // Predicated region
      $region29: #{segment_forward.9} parent=11 // pred_check
        %p283 = pneg %p186
      $region30: #{segment_forward.9} parent=11 // pred_check_branch
        %285 = sbr.rel (%p283) target = $region32
      $region31: #{segment_forward.9} parent=11 // pred_region
        _
      $region32: #{segment_forward.9} parent=11 // pred_fallthru
        _
      // Predicated region
      $region33: #{segment_forward.9} parent=11 // pred_check
        %p286 = pneg %p207
      $region34: #{segment_forward.9} parent=11 // pred_check_branch
        %288 = sbr.rel (%p286) target = $region36
      $region35: #{segment_forward.9} parent=11 // pred_region
        _
      $region36: #{segment_forward.9} parent=11 // pred_fallthru
        _
      // Predicated region
      $region37: #{segment_forward.9} parent=11 // pred_check
        %p289 = pneg %p228
      $region38: #{segment_forward.9} parent=11 // pred_check_branch
        %291 = sbr.rel (%p289) target = $region40
      $region39: #{segment_forward.9} parent=11 // pred_region
        _
      $region40: #{segment_forward.9} parent=11 // pred_fallthru
        _
    $region12: #{segment_forward.9} parent=5 // pred_fallthru
      _
    %p292 = scmp.lt.s32.totalorder %s15, 2
    // Predicated region
    $region41: #{segment_forward.9} parent=5 // pred_check
      %p293 = pneg %p292
    $region42: #{segment_forward.9} parent=5 // pred_check_branch
      %295 = sbr.rel (%p293) target = $region44
    $region43: #{segment_forward.9} parent=5 // pred_region
      // Predicated region
      $region45: #{segment_forward.9} parent=43 // pred_check
        %p296 = pneg %p49
      $region46: #{segment_forward.9} parent=43 // pred_check_branch
        %298 = sbr.rel (%p296) target = $region48
      $region47: #{segment_forward.9} parent=43 // pred_region
        %s299 = smul.u32 8, %s23
        %p300 = scmp.lt.s32.totalorder %s22, 1
        %s301 = scalar_select %p300, %s22, 1
        %p302 = scmp.lt.s32.totalorder %s299, 7
        %s303 = scalar_select %p302, %s299, 7
        %s304 = smul.addr %s301, 8
        %s305 = sadd.s32 %s303, %s304
        %s306 = smul.addr %s305, 4
        %s307 = scalar_lea.vmem %s0, %s306
        %s308 = smul.u32 8, %s23
      $region48: #{segment_forward.9} parent=43 // pred_fallthru
        _
      // Predicated region
      $region49: #{segment_forward.9} parent=43 // pred_check
        %p309 = pneg %p75
      $region50: #{segment_forward.9} parent=43 // pred_check_branch
        %311 = sbr.rel (%p309) target = $region52
      $region51: #{segment_forward.9} parent=43 // pred_region
        %p312 = scmp.lt.s32.totalorder %s22, 1
        %s313 = scalar_select %p312, %s22, 1
        %s314 = smul.addr %s313, 4
        %s315 = scalar_lea.vmem %s1, %s314
      $region52: #{segment_forward.9} parent=43 // pred_fallthru
        _
    $region44: #{segment_forward.9} parent=5 // pred_fallthru
      _
    %p316 = scmp.le.s32.totalorder 1, %s15
    %p317 = scmp.lt.s32.totalorder %s15, 3
    %p318 = pnand %p316, %p317
    %p319 = pneg %p318
    // Predicated region
    $region53: #{segment_forward.9} parent=5 // pred_check
      _
    $region54: #{segment_forward.9} parent=5 // pred_check_branch
      %321 = sbr.rel (%p318) target = $region56
    $region55: #{segment_forward.9} parent=5 // pred_region
      %s322 = ssub.s32 %s15, 1
      %s323 = smul.u32 8, %s25
      %p324 = scmp.lt.s32.totalorder %s24, 1
      %s325 = scalar_select %p324, %s24, 1
      %p326 = scmp.lt.s32.totalorder %s323, 7
      %s327 = scalar_select %p326, %s323, 7
      %s328 = smul.addr %s325, 8
      %s329 = sadd.s32 %s327, %s328
      %s330 = smul.addr %s329, 4
      %s331 = scalar_lea.vmem %s0, %s330
      %p332 = pneg %p55
      %p333 = pneg %p52
      %p334 = scmp.lt.s32.totalorder %s24, 1
      %s335 = scalar_select %p334, %s24, 1
      %s336 = smul.addr %s335, 4
      %s337 = scalar_lea.vmem %s1, %s336
      %p338 = pneg %p81
      %p339 = pneg %p78
      %p340 = pneg %p102
      %p341 = pneg %p99
      %p342 = pneg %p123
      %p343 = pneg %p120
      %p344 = pneg %p144
      %p345 = pneg %p141
      %p346 = pneg %p165
      %p347 = pneg %p162
      %p348 = pneg %p186
      %p349 = pneg %p183
      %p350 = pneg %p207
      %p351 = pneg %p204
      %p352 = pneg %p228
      %p353 = pneg %p225
      %p354 = pneg %p256
      %p355 = pneg %p253
      %s356 = smul.u32 8, %s25
      %p357 = scmp.lt.s32.totalorder %s24, 1
      %s358 = scalar_select %p357, %s24, 1
      %p359 = scmp.lt.s32.totalorder %s356, 7
      %s360 = scalar_select %p359, %s356, 7
      %s361 = smul.addr %s358, 8
      %s362 = sadd.s32 %s360, %s361
      %s363 = smul.addr %s362, 8
      %s364 = scalar_lea.vmem %s9, %s363
      %s365 = smul.u32 8, %s25
      %p366 = scmp.lt.s32.totalorder %s24, 1
      %s367 = scalar_select %p366, %s24, 1
      %p368 = scmp.lt.s32.totalorder %s365, 7
      %s369 = scalar_select %p368, %s365, 7
      %s370 = smul.addr %s367, 8
      %s371 = sadd.s32 %s369, %s370
      %s372 = smul.addr %s371, 4
      %s373 = scalar_lea.vmem %s0, %s372
      %s374 = smul.u32 8, %s25
      %p375 = scmp.lt.s32.totalorder %s24, 1
      %s376 = scalar_select %p375, %s24, 1
      %s377 = smul.addr %s376, 4
      %s378 = scalar_lea.vmem %s1, %s377
      %s379 = smul.u32 8, %s25
      %p380 = scmp.lt.s32.totalorder %s24, 1
      %s381 = scalar_select %p380, %s24, 1
      %p382 = scmp.lt.s32.totalorder %s379, 7
      %s383 = scalar_select %p382, %s379, 7
      %s384 = smul.addr %s381, 8
      %s385 = sadd.s32 %s383, %s384
      %s386 = smul.addr %s385, 8
      %s387 = scalar_lea.vmem %s9, %s386
      %s388 = smul.u32 8, %s25
      %v390 = vld [vmem:[%s373] sm:$0xf]
      %v391 = vld [vmem:[%s373 + $0x4] sm:$0xf]
      %v392 = vld [vmem:[%s373 + $0x8] sm:$0xf]
      %v393 = vld [vmem:[%s373 + $0xc] sm:$0xf]
      %v394 = vld [vmem:[%s373 + $0x10] sm:$0xf]
      %v395 = vld [vmem:[%s373 + $0x14] sm:$0xf]
      %v396 = vld [vmem:[%s373 + $0x18] sm:$0xf]
      %v397 = vld [vmem:[%s373 + $0x1c] sm:$0xf]
      %v398 = vld [vmem:[%s378] sm:$0xf]
      %v399 = vld [vmem:[%s2] sm:$0xff]
      %v400 = vld [vmem:[%s2 + $0x8] sm:$0xff]
      %v401 = vld [vmem:[%s2 + $0x10] sm:$0xff]
      %v402 = vld [vmem:[%s2 + $0x18] sm:$0xff]
      %v403 = vld [vmem:[%s2 + $0x20] sm:$0xff]
      %v404 = vld [vmem:[%s2 + $0x28] sm:$0xff]
      %v405 = vld [vmem:[%s2 + $0x30] sm:$0xff]
      %v406 = vld [vmem:[%s2 + $0x38] sm:$0xff]
      %v407 = vld [vmem:[%s2 + $0x40] sm:$0xff]
      %v408 = vld [vmem:[%s2 + $0x48] sm:$0xff]
      %v409 = vld [vmem:[%s2 + $0x50] sm:$0xff]
      %v410 = vld [vmem:[%s2 + $0x58] sm:$0xff]
      %v411 = vld [vmem:[%s2 + $0x60] sm:$0xff]
      %v412 = vld [vmem:[%s2 + $0x68] sm:$0xff]
      %v413 = vld [vmem:[%s2 + $0x70] sm:$0xff]
      %v414 = vld [vmem:[%s2 + $0x78] sm:$0xff]
      %v416 = vlaneseq
      %v417 = vshrl.u32 %v416, 7
      %v418 = vsub.s32 0, %v417
      %v419 = vrot.slane %v398, %v418
      %v420 = vlaneseq
      %v421 = vshrl.u32 %v420, 7
      %v422 = vsub.s32 1, %v421
      %v423 = vrot.slane %v398, %v422
      %v424 = vlaneseq
      %v425 = vshrl.u32 %v424, 7
      %v426 = vsub.s32 2, %v425
      %v427 = vrot.slane %v398, %v426
      %v428 = vlaneseq
      %v429 = vshrl.u32 %v428, 7
      %v430 = vsub.s32 3, %v429
      %v431 = vrot.slane %v398, %v430
      %v444 = vunpack.c.l.b16 %v390
      %v445 = vunpack.c.l.b16 %v391
      %v446 = vunpack.c.l.b16 %v392
      %v447 = vunpack.c.l.b16 %v393
      %v448 = vunpack.c.l.b16 %v394
      %v449 = vunpack.c.l.b16 %v395
      %v450 = vunpack.c.l.b16 %v396
      %v451 = vunpack.c.l.b16 %v397
      %v452 = vpack.c.b16 %v445, %v444
      %v453 = vpack.c.b16 %v447, %v446
      %v454 = vpack.c.b16 %v449, %v448
      %v455 = vpack.c.b16 %v451, %v450
      %v472 = vunpack.c.l.b16 %v399
      %v473 = vunpack.c.h.b16 %v399
      %v474 = vunpack.c.l.b16 %v400
      %v475 = vunpack.c.h.b16 %v400
      %v476 = vunpack.c.l.b16 %v401
      %v477 = vunpack.c.h.b16 %v401
      %v478 = vunpack.c.l.b16 %v402
      %v479 = vunpack.c.h.b16 %v402
      %v480 = vunpack.c.l.b16 %v403
      %v481 = vunpack.c.h.b16 %v403
      %v482 = vunpack.c.l.b16 %v404
      %v483 = vunpack.c.h.b16 %v404
      %v484 = vunpack.c.l.b16 %v405
      %v485 = vunpack.c.h.b16 %v405
      %v486 = vunpack.c.l.b16 %v406
      %v487 = vunpack.c.h.b16 %v406
      %v488 = vunpack.c.l.b16 %v407
      %v489 = vunpack.c.h.b16 %v407
      %v490 = vunpack.c.l.b16 %v408
      %v491 = vunpack.c.h.b16 %v408
      %v492 = vunpack.c.l.b16 %v409
      %v493 = vunpack.c.h.b16 %v409
      %v494 = vunpack.c.l.b16 %v410
      %v495 = vunpack.c.h.b16 %v410
      %v496 = vunpack.c.l.b16 %v411
      %v497 = vunpack.c.h.b16 %v411
      %v498 = vunpack.c.l.b16 %v412
      %v499 = vunpack.c.h.b16 %v412
      %v500 = vunpack.c.l.b16 %v413
      %v501 = vunpack.c.h.b16 %v413
      %v502 = vunpack.c.l.b16 %v414
      %v503 = vunpack.c.h.b16 %v414
      %v504 = vpack.c.b16 %v476, %v472
      %v505 = vpack.c.b16 %v477, %v473
      %v506 = vpack.c.b16 %v478, %v474
      %v507 = vpack.c.b16 %v479, %v475
      %v508 = vpack.c.b16 %v484, %v480
      %v509 = vpack.c.b16 %v485, %v481
      %v510 = vpack.c.b16 %v486, %v482
      %v511 = vpack.c.b16 %v487, %v483
      %v512 = vpack.c.b16 %v492, %v488
      %v513 = vpack.c.b16 %v493, %v489
      %v514 = vpack.c.b16 %v494, %v490
      %v515 = vpack.c.b16 %v495, %v491
      %v516 = vpack.c.b16 %v500, %v496
      %v517 = vpack.c.b16 %v501, %v497
      %v518 = vpack.c.b16 %v502, %v498
      %v519 = vpack.c.b16 %v503, %v499
      %vm536 = vcmask 523264
      %v538 = vsel %vm536, %v452, 0
      %v541 = vsel %vm536, %v453, 0
      %v544 = vsel %vm536, %v454, 0
      %v547 = vsel %vm536, %v455, 0
      %549 = vmatprep.subr.bf16.mxu0 %v505
      %550 = vmatpush1.bf16.msra.mxu0 %v504
      %551 = vmatprep.subr.bf16.mxu0 %v509
      %552 = vmatpush1.bf16.msra.mxu0 %v508
      %553 = vmatprep.subr.bf16.mxu0 %v513
      %554 = vmatpush1.bf16.msra.mxu0 %v512
      %555 = vmatprep.subr.bf16.mxu0 %v517
      %556 = vmatpush1.bf16.msra.mxu0 %v516
      %557 = vmatprep.subr.bf16.mxu0 0
      %558 = vmatpush1.bf16.msra.mxu0 0
      %559 = vmatprep.subr.bf16.mxu0 0
      %560 = vmatpush1.bf16.msra.mxu0 0
      %561 = vmatprep.subr.bf16.mxu0 0
      %562 = vmatpush1.bf16.msra.mxu0 0
      %563 = vmatprep.subr.bf16.mxu0 0
      %564 = vmatpush1.bf16.msra.mxu0 0
      %565 = vmatprep.subr.bf16.mxu0 0
      %566 = vmatpush1.bf16.msra.mxu0 0
      %567 = vmatprep.subr.bf16.mxu0 0
      %568 = vmatpush1.bf16.msra.mxu0 0
      %569 = vmatprep.subr.bf16.mxu0 0
      %570 = vmatpush1.bf16.msra.mxu0 0
      %571 = vmatprep.subr.bf16.mxu0 0
      %572 = vmatpush1.bf16.msra.mxu0 0
      %573 = vmatprep.subr.bf16.mxu0 0
      %574 = vmatpush1.bf16.msra.mxu0 0
      %575 = vmatprep.subr.bf16.mxu0 0
      %576 = vmatpush1.bf16.msra.mxu0 0
      %577 = vmatprep.subr.bf16.mxu0 0
      %578 = vmatpush1.bf16.msra.mxu0 0
      %579 = vmatprep.subr.bf16.mxu0 0
      %580 = vmatpush1.bf16.msra.mxu0 0
      %581 = vmatprep.mubr.bf16.mxu0 0
      %582 = vmatmul.mubr.bf16.gmra.mrb[0].mxu0 %v538
      %v583 = vpop.f32.mrb[0].mxu0
      %v584 = vadd.f32 %v419, %v583
      %v585 = vpop.f32.mrb[0].mxu0
      %v586 = vadd.f32 %v423, %v585
      %v587 = vpop.f32.mrb[0].mxu0
      %v588 = vadd.f32 %v419, %v587
      %v589 = vpop.f32.mrb[0].mxu0
      %v590 = vadd.f32 %v423, %v589
      %591 = vmatprep.mubr.bf16.mxu0 0
      %592 = vmatmul.mubr.bf16.gmra.mrb[0].mxu0 %v541
      %v593 = vpop.f32.mrb[0].mxu0
      %v594 = vadd.f32 %v419, %v593
      %v595 = vpop.f32.mrb[0].mxu0
      %v596 = vadd.f32 %v423, %v595
      %v597 = vpop.f32.mrb[0].mxu0
      %v598 = vadd.f32 %v419, %v597
      %v599 = vpop.f32.mrb[0].mxu0
      %v600 = vadd.f32 %v423, %v599
      %601 = vmatprep.mubr.bf16.mxu0 0
      %602 = vmatmul.mubr.bf16.gmra.mrb[0].mxu0 %v544
      %v603 = vpop.f32.mrb[0].mxu0
      %v604 = vadd.f32 %v419, %v603
      %v605 = vpop.f32.mrb[0].mxu0
      %v606 = vadd.f32 %v423, %v605
      %v607 = vpop.f32.mrb[0].mxu0
      %v608 = vadd.f32 %v419, %v607
      %v609 = vpop.f32.mrb[0].mxu0
      %v610 = vadd.f32 %v423, %v609
      %611 = vmatprep.mubr.bf16.mxu0 0
      %612 = vmatmul.mubr.bf16.gmra.mrb[0].mxu0 %v547
      %v613 = vpop.f32.mrb[0].mxu0
      %v614 = vadd.f32 %v419, %v613
      %v615 = vpop.f32.mrb[0].mxu0
      %v616 = vadd.f32 %v423, %v615
      %v617 = vpop.f32.mrb[0].mxu0
      %v618 = vadd.f32 %v419, %v617
      %v619 = vpop.f32.mrb[0].mxu0
      %v620 = vadd.f32 %v423, %v619
      %621 = vdwg.mxu0
      %622 = vmatprep.subr.bf16.mxu0 %v507
      %623 = vmatpush1.bf16.msra.mxu0 %v506
      %624 = vmatprep.subr.bf16.mxu0 %v511
      %625 = vmatpush1.bf16.msra.mxu0 %v510
      %626 = vmatprep.subr.bf16.mxu0 %v515
      %627 = vmatpush1.bf16.msra.mxu0 %v514
      %628 = vmatprep.subr.bf16.mxu0 %v519
      %629 = vmatpush1.bf16.msra.mxu0 %v518
      %630 = vmatprep.subr.bf16.mxu0 0
      %631 = vmatpush1.bf16.msra.mxu0 0
      %632 = vmatprep.subr.bf16.mxu0 0
      %633 = vmatpush1.bf16.msra.mxu0 0
      %634 = vmatprep.subr.bf16.mxu0 0
      %635 = vmatpush1.bf16.msra.mxu0 0
      %636 = vmatprep.subr.bf16.mxu0 0
      %637 = vmatpush1.bf16.msra.mxu0 0
      %638 = vmatprep.subr.bf16.mxu0 0
      %639 = vmatpush1.bf16.msra.mxu0 0
      %640 = vmatprep.subr.bf16.mxu0 0
      %641 = vmatpush1.bf16.msra.mxu0 0
      %642 = vmatprep.subr.bf16.mxu0 0
      %643 = vmatpush1.bf16.msra.mxu0 0
      %644 = vmatprep.subr.bf16.mxu0 0
      %645 = vmatpush1.bf16.msra.mxu0 0
      %646 = vmatprep.subr.bf16.mxu0 0
      %647 = vmatpush1.bf16.msra.mxu0 0
      %648 = vmatprep.subr.bf16.mxu0 0
      %649 = vmatpush1.bf16.msra.mxu0 0
      %650 = vmatprep.subr.bf16.mxu0 0
      %651 = vmatpush1.bf16.msra.mxu0 0
      %652 = vmatprep.subr.bf16.mxu0 0
      %653 = vmatpush1.bf16.msra.mxu0 0
      %654 = vmatprep.mubr.bf16.mxu0 0
      %655 = vmatmul.mubr.bf16.gmra.mrb[0].mxu0 %v538
      %v656 = vpop.f32.mrb[0].mxu0
      %v657 = vadd.f32 %v427, %v656
      %v658 = vpop.f32.mrb[0].mxu0
      %v659 = vadd.f32 %v431, %v658
      %v660 = vpop.f32.mrb[0].mxu0
      %v661 = vadd.f32 %v427, %v660
      %v662 = vpop.f32.mrb[0].mxu0
      %v663 = vadd.f32 %v431, %v662
      %664 = vmatprep.mubr.bf16.mxu0 0
      %665 = vmatmul.mubr.bf16.gmra.mrb[0].mxu0 %v541
      %v666 = vpop.f32.mrb[0].mxu0
      %v667 = vadd.f32 %v427, %v666
      %v668 = vpop.f32.mrb[0].mxu0
      %v669 = vadd.f32 %v431, %v668
      %v670 = vpop.f32.mrb[0].mxu0
      %v671 = vadd.f32 %v427, %v670
      %v672 = vpop.f32.mrb[0].mxu0
      %v673 = vadd.f32 %v431, %v672
      %674 = vmatprep.mubr.bf16.mxu0 0
      %675 = vmatmul.mubr.bf16.gmra.mrb[0].mxu0 %v544
      %v676 = vpop.f32.mrb[0].mxu0
      %v677 = vadd.f32 %v427, %v676
      %v678 = vpop.f32.mrb[0].mxu0
      %v679 = vadd.f32 %v431, %v678
      %v680 = vpop.f32.mrb[0].mxu0
      %v681 = vadd.f32 %v427, %v680
      %v682 = vpop.f32.mrb[0].mxu0
      %v683 = vadd.f32 %v431, %v682
      %684 = vmatprep.mubr.bf16.mxu0 0
      %685 = vmatmul.mubr.bf16.gmra.mrb[0].mxu0 %v547
      %v686 = vpop.f32.mrb[0].mxu0
      %v687 = vadd.f32 %v427, %v686
      %v688 = vpop.f32.mrb[0].mxu0
      %v689 = vadd.f32 %v431, %v688
      %v690 = vpop.f32.mrb[0].mxu0
      %v691 = vadd.f32 %v427, %v690
      %v692 = vpop.f32.mrb[0].mxu0
      %v693 = vadd.f32 %v431, %v692
      %694 = vdwg.mxu0
      %v695 = vmax.f32 %v584, 0.0
      %v696 = vmax.f32 %v586, 0.0
      %v697 = vmax.f32 %v657, 0.0
      %v698 = vmax.f32 %v659, 0.0
      %v699 = vmax.f32 %v588, 0.0
      %v700 = vmax.f32 %v590, 0.0
      %v701 = vmax.f32 %v661, 0.0
      %v702 = vmax.f32 %v663, 0.0
      %v703 = vmax.f32 %v594, 0.0
      %v704 = vmax.f32 %v596, 0.0
      %v705 = vmax.f32 %v667, 0.0
      %v706 = vmax.f32 %v669, 0.0
      %v707 = vmax.f32 %v598, 0.0
      %v708 = vmax.f32 %v600, 0.0
      %v709 = vmax.f32 %v671, 0.0
      %v710 = vmax.f32 %v673, 0.0
      %v711 = vmax.f32 %v604, 0.0
      %v712 = vmax.f32 %v606, 0.0
      %v713 = vmax.f32 %v677, 0.0
      %v714 = vmax.f32 %v679, 0.0
      %v715 = vmax.f32 %v608, 0.0
      %v716 = vmax.f32 %v610, 0.0
      %v717 = vmax.f32 %v681, 0.0
      %v718 = vmax.f32 %v683, 0.0
      %v719 = vmax.f32 %v614, 0.0
      %v720 = vmax.f32 %v616, 0.0
      %v721 = vmax.f32 %v687, 0.0
      %v722 = vmax.f32 %v689, 0.0
      %v723 = vmax.f32 %v618, 0.0
      %v724 = vmax.f32 %v620, 0.0
      %v725 = vmax.f32 %v691, 0.0
      %v726 = vmax.f32 %v693, 0.0
      %v727 = vpack.c.bf16 %v699, %v695
      %v728 = vpack.c.bf16 %v700, %v696
      %v729 = vpack.c.bf16 %v701, %v697
      %v730 = vpack.c.bf16 %v702, %v698
      %v731 = vpack.c.bf16 %v707, %v703
      %v732 = vpack.c.bf16 %v708, %v704
      %v733 = vpack.c.bf16 %v709, %v705
      %v734 = vpack.c.bf16 %v710, %v706
      %v735 = vpack.c.bf16 %v715, %v711
      %v736 = vpack.c.bf16 %v716, %v712
      %v737 = vpack.c.bf16 %v717, %v713
      %v738 = vpack.c.bf16 %v718, %v714
      %v739 = vpack.c.bf16 %v723, %v719
      %v740 = vpack.c.bf16 %v724, %v720
      %v741 = vpack.c.bf16 %v725, %v721
      %v742 = vpack.c.bf16 %v726, %v722
      %v743 = vld [vmem:[%s3] sm:$0xff]
      %v744 = vld [vmem:[%s3 + $0x8] sm:$0xff]
      %v745 = vld [vmem:[%s3 + $0x10] sm:$0xff]
      %v746 = vld [vmem:[%s3 + $0x18] sm:$0xff]
      %v747 = vld [vmem:[%s3 + $0x20] sm:$0xff]
      %v748 = vld [vmem:[%s3 + $0x28] sm:$0xff]
      %v749 = vld [vmem:[%s3 + $0x30] sm:$0xff]
      %v750 = vld [vmem:[%s3 + $0x38] sm:$0xff]
      %v751 = vld [vmem:[%s3 + $0x40] sm:$0xff]
      %v752 = vld [vmem:[%s3 + $0x48] sm:$0xff]
      %v753 = vld [vmem:[%s3 + $0x50] sm:$0xff]
      %v754 = vld [vmem:[%s3 + $0x58] sm:$0xff]
      %v755 = vld [vmem:[%s3 + $0x60] sm:$0xff]
      %v756 = vld [vmem:[%s3 + $0x68] sm:$0xff]
      %v757 = vld [vmem:[%s3 + $0x70] sm:$0xff]
      %v758 = vld [vmem:[%s3 + $0x78] sm:$0xff]
      %v759 = vld [vmem:[%s3 + $0x80] sm:$0xff]
      %v760 = vld [vmem:[%s3 + $0x88] sm:$0xff]
      %v761 = vld [vmem:[%s3 + $0x90] sm:$0xff]
      %v762 = vld [vmem:[%s3 + $0x98] sm:$0xff]
      %v763 = vld [vmem:[%s3 + $0xa0] sm:$0xff]
      %v764 = vld [vmem:[%s3 + $0xa8] sm:$0xff]
      %v765 = vld [vmem:[%s3 + $0xb0] sm:$0xff]
      %v766 = vld [vmem:[%s3 + $0xb8] sm:$0xff]
      %v767 = vld [vmem:[%s3 + $0xc0] sm:$0xff]
      %v768 = vld [vmem:[%s3 + $0xc8] sm:$0xff]
      %v769 = vld [vmem:[%s3 + $0xd0] sm:$0xff]
      %v770 = vld [vmem:[%s3 + $0xd8] sm:$0xff]
      %v771 = vld [vmem:[%s3 + $0xe0] sm:$0xff]
      %v772 = vld [vmem:[%s3 + $0xe8] sm:$0xff]
      %v773 = vld [vmem:[%s3 + $0xf0] sm:$0xff]
      %v774 = vld [vmem:[%s3 + $0xf8] sm:$0xff]
      %v775 = vld [vmem:[%s3 + $0x100] sm:$0xff]
      %v776 = vld [vmem:[%s3 + $0x108] sm:$0xff]
      %v777 = vld [vmem:[%s3 + $0x110] sm:$0xff]
      %v778 = vld [vmem:[%s3 + $0x118] sm:$0xff]
      %v779 = vld [vmem:[%s3 + $0x120] sm:$0xff]
      %v780 = vld [vmem:[%s3 + $0x128] sm:$0xff]
      %v781 = vld [vmem:[%s3 + $0x130] sm:$0xff]
      %v782 = vld [vmem:[%s3 + $0x138] sm:$0xff]
      %v783 = vld [vmem:[%s3 + $0x140] sm:$0xff]
      %v784 = vld [vmem:[%s3 + $0x148] sm:$0xff]
      %v785 = vld [vmem:[%s3 + $0x150] sm:$0xff]
      %v786 = vld [vmem:[%s3 + $0x158] sm:$0xff]
      %v787 = vld [vmem:[%s3 + $0x160] sm:$0xff]
      %v788 = vld [vmem:[%s3 + $0x168] sm:$0xff]
      %v789 = vld [vmem:[%s3 + $0x170] sm:$0xff]
      %v790 = vld [vmem:[%s3 + $0x178] sm:$0xff]
      %v791 = vld [vmem:[%s3 + $0x180] sm:$0xff]
      %v792 = vld [vmem:[%s3 + $0x188] sm:$0xff]
      %v793 = vld [vmem:[%s3 + $0x190] sm:$0xff]
      %v794 = vld [vmem:[%s3 + $0x198] sm:$0xff]
      %v795 = vld [vmem:[%s3 + $0x1a0] sm:$0xff]
      %v796 = vld [vmem:[%s3 + $0x1a8] sm:$0xff]
      %v797 = vld [vmem:[%s3 + $0x1b0] sm:$0xff]
      %v798 = vld [vmem:[%s3 + $0x1b8] sm:$0xff]
      %v799 = vld [vmem:[%s3 + $0x1c0] sm:$0xff]
      %v800 = vld [vmem:[%s3 + $0x1c8] sm:$0xff]
      %v801 = vld [vmem:[%s3 + $0x1d0] sm:$0xff]
      %v802 = vld [vmem:[%s3 + $0x1d8] sm:$0xff]
      %v803 = vld [vmem:[%s3 + $0x1e0] sm:$0xff]
      %v804 = vld [vmem:[%s3 + $0x1e8] sm:$0xff]
      %v805 = vld [vmem:[%s3 + $0x1f0] sm:$0xff]
      %v806 = vld [vmem:[%s3 + $0x1f8] sm:$0xff]
      %v807 = vld [vmem:[%s4] sm:$0x3]
      %v809 = vlaneseq
      %v810 = vshrl.u32 %v809, 7
      %v811 = vsub.s32 0, %v810
      %v812 = vrot.slane %v807, %v811
      %v813 = vlaneseq
      %v814 = vshrl.u32 %v813, 7
      %v815 = vsub.s32 1, %v814
      %v816 = vrot.slane %v807, %v815
      %v883 = vunpack.c.l.b16 %v743
      %v884 = vunpack.c.h.b16 %v743
      %v885 = vunpack.c.l.b16 %v744
      %v886 = vunpack.c.h.b16 %v744
      %v887 = vunpack.c.l.b16 %v745
      %v888 = vunpack.c.h.b16 %v745
      %v889 = vunpack.c.l.b16 %v746
      %v890 = vunpack.c.h.b16 %v746
      %v891 = vunpack.c.l.b16 %v747
      %v892 = vunpack.c.h.b16 %v747
      %v893 = vunpack.c.l.b16 %v748
      %v894 = vunpack.c.h.b16 %v748
      %v895 = vunpack.c.l.b16 %v749
      %v896 = vunpack.c.h.b16 %v749
      %v897 = vunpack.c.l.b16 %v750
      %v898 = vunpack.c.h.b16 %v750
      %v899 = vunpack.c.l.b16 %v751
      %v900 = vunpack.c.h.b16 %v751
      %v901 = vunpack.c.l.b16 %v752
      %v902 = vunpack.c.h.b16 %v752
      %v903 = vunpack.c.l.b16 %v753
      %v904 = vunpack.c.h.b16 %v753
      %v905 = vunpack.c.l.b16 %v754
      %v906 = vunpack.c.h.b16 %v754
      %v907 = vunpack.c.l.b16 %v755
      %v908 = vunpack.c.h.b16 %v755
      %v909 = vunpack.c.l.b16 %v756
      %v910 = vunpack.c.h.b16 %v756
      %v911 = vunpack.c.l.b16 %v757
      %v912 = vunpack.c.h.b16 %v757
      %v913 = vunpack.c.l.b16 %v758
      %v914 = vunpack.c.h.b16 %v758
      %v915 = vunpack.c.l.b16 %v759
      %v916 = vunpack.c.h.b16 %v759
      %v917 = vunpack.c.l.b16 %v760
      %v918 = vunpack.c.h.b16 %v760
      %v919 = vunpack.c.l.b16 %v761
      %v920 = vunpack.c.h.b16 %v761
      %v921 = vunpack.c.l.b16 %v762
      %v922 = vunpack.c.h.b16 %v762
      %v923 = vunpack.c.l.b16 %v763
      %v924 = vunpack.c.h.b16 %v763
      %v925 = vunpack.c.l.b16 %v764
      %v926 = vunpack.c.h.b16 %v764
      %v927 = vunpack.c.l.b16 %v765
      %v928 = vunpack.c.h.b16 %v765
      %v929 = vunpack.c.l.b16 %v766
      %v930 = vunpack.c.h.b16 %v766
      %v931 = vunpack.c.l.b16 %v767
      %v932 = vunpack.c.h.b16 %v767
      %v933 = vunpack.c.l.b16 %v768
      %v934 = vunpack.c.h.b16 %v768
      %v935 = vunpack.c.l.b16 %v769
      %v936 = vunpack.c.h.b16 %v769
      %v937 = vunpack.c.l.b16 %v770
      %v938 = vunpack.c.h.b16 %v770
      %v939 = vunpack.c.l.b16 %v771
      %v940 = vunpack.c.h.b16 %v771
      %v941 = vunpack.c.l.b16 %v772
      %v942 = vunpack.c.h.b16 %v772
      %v943 = vunpack.c.l.b16 %v773
      %v944 = vunpack.c.h.b16 %v773
      %v945 = vunpack.c.l.b16 %v774
      %v946 = vunpack.c.h.b16 %v774
      %v947 = vunpack.c.l.b16 %v775
      %v948 = vunpack.c.h.b16 %v775
      %v949 = vunpack.c.l.b16 %v776
      %v950 = vunpack.c.h.b16 %v776
      %v951 = vunpack.c.l.b16 %v777
      %v952 = vunpack.c.h.b16 %v777
      %v953 = vunpack.c.l.b16 %v778
      %v954 = vunpack.c.h.b16 %v778
      %v955 = vunpack.c.l.b16 %v779
      %v956 = vunpack.c.h.b16 %v779
      %v957 = vunpack.c.l.b16 %v780
      %v958 = vunpack.c.h.b16 %v780
      %v959 = vunpack.c.l.b16 %v781
      %v960 = vunpack.c.h.b16 %v781
      %v961 = vunpack.c.l.b16 %v782
      %v962 = vunpack.c.h.b16 %v782
      %v963 = vunpack.c.l.b16 %v783
      %v964 = vunpack.c.h.b16 %v783
      %v965 = vunpack.c.l.b16 %v784
      %v966 = vunpack.c.h.b16 %v784
      %v967 = vunpack.c.l.b16 %v785
      %v968 = vunpack.c.h.b16 %v785
      %v969 = vunpack.c.l.b16 %v786
      %v970 = vunpack.c.h.b16 %v786
      %v971 = vunpack.c.l.b16 %v787
      %v972 = vunpack.c.h.b16 %v787
      %v973 = vunpack.c.l.b16 %v788
      %v974 = vunpack.c.h.b16 %v788
      %v975 = vunpack.c.l.b16 %v789
      %v976 = vunpack.c.h.b16 %v789
      %v977 = vunpack.c.l.b16 %v790
      %v978 = vunpack.c.h.b16 %v790
      %v979 = vunpack.c.l.b16 %v791
      %v980 = vunpack.c.h.b16 %v791
      %v981 = vunpack.c.l.b16 %v792
      %v982 = vunpack.c.h.b16 %v792
      %v983 = vunpack.c.l.b16 %v793
      %v984 = vunpack.c.h.b16 %v793
      %v985 = vunpack.c.l.b16 %v794
      %v986 = vunpack.c.h.b16 %v794
      %v987 = vunpack.c.l.b16 %v795
      %v988 = vunpack.c.h.b16 %v795
      %v989 = vunpack.c.l.b16 %v796
      %v990 = vunpack.c.h.b16 %v796
      %v991 = vunpack.c.l.b16 %v797
      %v992 = vunpack.c.h.b16 %v797
      %v993 = vunpack.c.l.b16 %v798
      %v994 = vunpack.c.h.b16 %v798
      %v995 = vunpack.c.l.b16 %v799
      %v996 = vunpack.c.h.b16 %v799
      %v997 = vunpack.c.l.b16 %v800
      %v998 = vunpack.c.h.b16 %v800
      %v999 = vunpack.c.l.b16 %v801
      %v1000 = vunpack.c.h.b16 %v801
      %v1001 = vunpack.c.l.b16 %v802
      %v1002 = vunpack.c.h.b16 %v802
      %v1003 = vunpack.c.l.b16 %v803
      %v1004 = vunpack.c.h.b16 %v803
      %v1005 = vunpack.c.l.b16 %v804
      %v1006 = vunpack.c.h.b16 %v804
      %v1007 = vunpack.c.l.b16 %v805
      %v1008 = vunpack.c.h.b16 %v805
      %v1009 = vunpack.c.l.b16 %v806
      %v1010 = vunpack.c.h.b16 %v806
      %v1011 = vpack.c.b16 %v885, %v883
      %v1012 = vpack.c.b16 %v886, %v884
      %v1013 = vpack.c.b16 %v889, %v887
      %v1014 = vpack.c.b16 %v890, %v888
      %v1015 = vpack.c.b16 %v893, %v891
      %v1016 = vpack.c.b16 %v894, %v892
      %v1017 = vpack.c.b16 %v897, %v895
      %v1018 = vpack.c.b16 %v898, %v896
      %v1019 = vpack.c.b16 %v901, %v899
      %v1020 = vpack.c.b16 %v902, %v900
      %v1021 = vpack.c.b16 %v905, %v903
      %v1022 = vpack.c.b16 %v906, %v904
      %v1023 = vpack.c.b16 %v909, %v907
      %v1024 = vpack.c.b16 %v910, %v908
      %v1025 = vpack.c.b16 %v913, %v911
      %v1026 = vpack.c.b16 %v914, %v912
      %v1027 = vpack.c.b16 %v917, %v915
      %v1028 = vpack.c.b16 %v918, %v916
      %v1029 = vpack.c.b16 %v921, %v919
      %v1030 = vpack.c.b16 %v922, %v920
      %v1031 = vpack.c.b16 %v925, %v923
      %v1032 = vpack.c.b16 %v926, %v924
      %v1033 = vpack.c.b16 %v929, %v927
      %v1034 = vpack.c.b16 %v930, %v928
      %v1035 = vpack.c.b16 %v933, %v931
      %v1036 = vpack.c.b16 %v934, %v932
      %v1037 = vpack.c.b16 %v937, %v935
      %v1038 = vpack.c.b16 %v938, %v936
      %v1039 = vpack.c.b16 %v941, %v939
      %v1040 = vpack.c.b16 %v942, %v940
      %v1041 = vpack.c.b16 %v945, %v943
      %v1042 = vpack.c.b16 %v946, %v944
      %v1043 = vpack.c.b16 %v949, %v947
      %v1044 = vpack.c.b16 %v950, %v948
      %v1045 = vpack.c.b16 %v953, %v951
      %v1046 = vpack.c.b16 %v954, %v952
      %v1047 = vpack.c.b16 %v957, %v955
      %v1048 = vpack.c.b16 %v958, %v956
      %v1049 = vpack.c.b16 %v961, %v959
      %v1050 = vpack.c.b16 %v962, %v960
      %v1051 = vpack.c.b16 %v965, %v963
      %v1052 = vpack.c.b16 %v966, %v964
      %v1053 = vpack.c.b16 %v969, %v967
      %v1054 = vpack.c.b16 %v970, %v968
      %v1055 = vpack.c.b16 %v973, %v971
      %v1056 = vpack.c.b16 %v974, %v972
      %v1057 = vpack.c.b16 %v977, %v975
      %v1058 = vpack.c.b16 %v978, %v976
      %v1059 = vpack.c.b16 %v981, %v979
      %v1060 = vpack.c.b16 %v982, %v980
      %v1061 = vpack.c.b16 %v985, %v983
      %v1062 = vpack.c.b16 %v986, %v984
      %v1063 = vpack.c.b16 %v989, %v987
      %v1064 = vpack.c.b16 %v990, %v988
      %v1065 = vpack.c.b16 %v993, %v991
      %v1066 = vpack.c.b16 %v994, %v992
      %v1067 = vpack.c.b16 %v997, %v995
      %v1068 = vpack.c.b16 %v998, %v996
      %v1069 = vpack.c.b16 %v1001, %v999
      %v1070 = vpack.c.b16 %v1002, %v1000
      %v1071 = vpack.c.b16 %v1005, %v1003
      %v1072 = vpack.c.b16 %v1006, %v1004
      %v1073 = vpack.c.b16 %v1009, %v1007
      %v1074 = vpack.c.b16 %v1010, %v1008
      %1139 = vmatprep.subr.bf16.mxu0 %v1012
      %1140 = vmatpush1.bf16.msra.mxu0 %v1011
      %1141 = vmatprep.subr.bf16.mxu0 %v1014
      %1142 = vmatpush1.bf16.msra.mxu0 %v1013
      %1143 = vmatprep.subr.bf16.mxu0 %v1016
      %1144 = vmatpush1.bf16.msra.mxu0 %v1015
      %1145 = vmatprep.subr.bf16.mxu0 %v1018
      %1146 = vmatpush1.bf16.msra.mxu0 %v1017
      %1147 = vmatprep.subr.bf16.mxu0 %v1020
      %1148 = vmatpush1.bf16.msra.mxu0 %v1019
      %1149 = vmatprep.subr.bf16.mxu0 %v1022
      %1150 = vmatpush1.bf16.msra.mxu0 %v1021
      %1151 = vmatprep.subr.bf16.mxu0 %v1024
      %1152 = vmatpush1.bf16.msra.mxu0 %v1023
      %1153 = vmatprep.subr.bf16.mxu0 %v1026
      %1154 = vmatpush1.bf16.msra.mxu0 %v1025
      %1155 = vmatprep.subr.bf16.mxu0 %v1028
      %1156 = vmatpush1.bf16.msra.mxu0 %v1027
      %1157 = vmatprep.subr.bf16.mxu0 %v1030
      %1158 = vmatpush1.bf16.msra.mxu0 %v1029
      %1159 = vmatprep.subr.bf16.mxu0 %v1032
      %1160 = vmatpush1.bf16.msra.mxu0 %v1031
      %1161 = vmatprep.subr.bf16.mxu0 %v1034
      %1162 = vmatpush1.bf16.msra.mxu0 %v1033
      %1163 = vmatprep.subr.bf16.mxu0 %v1036
      %1164 = vmatpush1.bf16.msra.mxu0 %v1035
      %1165 = vmatprep.subr.bf16.mxu0 %v1038
      %1166 = vmatpush1.bf16.msra.mxu0 %v1037
      %1167 = vmatprep.subr.bf16.mxu0 %v1040
      %1168 = vmatpush1.bf16.msra.mxu0 %v1039
      %1169 = vmatprep.subr.bf16.mxu0 %v1042
      %1170 = vmatpush1.bf16.msra.mxu0 %v1041
      %1171 = vmatprep.mubr.bf16.mxu0 %v728
      %1172 = vmatmul.mubr.bf16.gmra.mrb[0].mxu0 %v727
      %v1173 = vpop.f32.mrb[0].mxu0
      %v1174 = vadd.f32 %v812, %v1173
      %v1175 = vpop.f32.mrb[0].mxu0
      %v1176 = vadd.f32 %v816, %v1175
      %v1177 = vpop.f32.mrb[0].mxu0
      %v1178 = vadd.f32 %v812, %v1177
      %v1179 = vpop.f32.mrb[0].mxu0
      %v1180 = vadd.f32 %v816, %v1179
      %1181 = vmatprep.mubr.bf16.mxu0 %v732
      %1182 = vmatmul.mubr.bf16.gmra.mrb[0].mxu0 %v731
      %v1183 = vpop.f32.mrb[0].mxu0
      %v1184 = vadd.f32 %v812, %v1183
      %v1185 = vpop.f32.mrb[0].mxu0
      %v1186 = vadd.f32 %v816, %v1185
      %v1187 = vpop.f32.mrb[0].mxu0
      %v1188 = vadd.f32 %v812, %v1187
      %v1189 = vpop.f32.mrb[0].mxu0
      %v1190 = vadd.f32 %v816, %v1189
      %1191 = vmatprep.mubr.bf16.mxu0 %v736
      %1192 = vmatmul.mubr.bf16.gmra.mrb[0].mxu0 %v735
      %v1193 = vpop.f32.mrb[0].mxu0
      %v1194 = vadd.f32 %v812, %v1193
      %v1195 = vpop.f32.mrb[0].mxu0
      %v1196 = vadd.f32 %v816, %v1195
      %v1197 = vpop.f32.mrb[0].mxu0
      %v1198 = vadd.f32 %v812, %v1197
      %v1199 = vpop.f32.mrb[0].mxu0
      %v1200 = vadd.f32 %v816, %v1199
      %1201 = vmatprep.mubr.bf16.mxu0 %v740
      %1202 = vmatmul.mubr.bf16.gmra.mrb[0].mxu0 %v739
      %v1203 = vpop.f32.mrb[0].mxu0
      %v1204 = vadd.f32 %v812, %v1203
      %v1205 = vpop.f32.mrb[0].mxu0
      %v1206 = vadd.f32 %v816, %v1205
      %v1207 = vpop.f32.mrb[0].mxu0
      %v1208 = vadd.f32 %v812, %v1207
      %v1209 = vpop.f32.mrb[0].mxu0
      %v1210 = vadd.f32 %v816, %v1209
      %1211 = vdwg.mxu0
      %1212 = vmatprep.subr.bf16.mxu0 %v1044
      %1213 = vmatpush1.bf16.msra.mxu0 %v1043
      %1214 = vmatprep.subr.bf16.mxu0 %v1046
      %1215 = vmatpush1.bf16.msra.mxu0 %v1045
      %1216 = vmatprep.subr.bf16.mxu0 %v1048
      %1217 = vmatpush1.bf16.msra.mxu0 %v1047
      %1218 = vmatprep.subr.bf16.mxu0 %v1050
      %1219 = vmatpush1.bf16.msra.mxu0 %v1049
      %1220 = vmatprep.subr.bf16.mxu0 %v1052
      %1221 = vmatpush1.bf16.msra.mxu0 %v1051
      %1222 = vmatprep.subr.bf16.mxu0 %v1054
      %1223 = vmatpush1.bf16.msra.mxu0 %v1053
      %1224 = vmatprep.subr.bf16.mxu0 %v1056
      %1225 = vmatpush1.bf16.msra.mxu0 %v1055
      %1226 = vmatprep.subr.bf16.mxu0 %v1058
      %1227 = vmatpush1.bf16.msra.mxu0 %v1057
      %1228 = vmatprep.subr.bf16.mxu0 %v1060
      %1229 = vmatpush1.bf16.msra.mxu0 %v1059
      %1230 = vmatprep.subr.bf16.mxu0 %v1062
      %1231 = vmatpush1.bf16.msra.mxu0 %v1061
      %1232 = vmatprep.subr.bf16.mxu0 %v1064
      %1233 = vmatpush1.bf16.msra.mxu0 %v1063
      %1234 = vmatprep.subr.bf16.mxu0 %v1066
      %1235 = vmatpush1.bf16.msra.mxu0 %v1065
      %1236 = vmatprep.subr.bf16.mxu0 %v1068
      %1237 = vmatpush1.bf16.msra.mxu0 %v1067
      %1238 = vmatprep.subr.bf16.mxu0 %v1070
      %1239 = vmatpush1.bf16.msra.mxu0 %v1069
      %1240 = vmatprep.subr.bf16.mxu0 %v1072
      %1241 = vmatpush1.bf16.msra.mxu0 %v1071
      %1242 = vmatprep.subr.bf16.mxu0 %v1074
      %1243 = vmatpush1.bf16.msra.mxu0 %v1073
      %1244 = vmatprep.mubr.bf16.mxu0 %v730
      %1245 = vmatmul.mubr.bf16.gmra.mrb[0].mxu0 %v729
      %v1246 = vpop.f32.mrb[0].mxu0
      %v1247 = vadd.f32 %v1174, %v1246
      %v1248 = vpop.f32.mrb[0].mxu0
      %v1249 = vadd.f32 %v1176, %v1248
      %v1250 = vpop.f32.mrb[0].mxu0
      %v1251 = vadd.f32 %v1178, %v1250
      %v1252 = vpop.f32.mrb[0].mxu0
      %v1253 = vadd.f32 %v1180, %v1252
      %1254 = vmatprep.mubr.bf16.mxu0 %v734
      %1255 = vmatmul.mubr.bf16.gmra.mrb[0].mxu0 %v733
      %v1256 = vpop.f32.mrb[0].mxu0
      %v1257 = vadd.f32 %v1184, %v1256
      %v1258 = vpop.f32.mrb[0].mxu0
      %v1259 = vadd.f32 %v1186, %v1258
      %v1260 = vpop.f32.mrb[0].mxu0
      %v1261 = vadd.f32 %v1188, %v1260
      %v1262 = vpop.f32.mrb[0].mxu0
      %v1263 = vadd.f32 %v1190, %v1262
      %1264 = vmatprep.mubr.bf16.mxu0 %v738
      %1265 = vmatmul.mubr.bf16.gmra.mrb[0].mxu0 %v737
      %v1266 = vpop.f32.mrb[0].mxu0
      %v1267 = vadd.f32 %v1194, %v1266
      %v1268 = vpop.f32.mrb[0].mxu0
      %v1269 = vadd.f32 %v1196, %v1268
      %v1270 = vpop.f32.mrb[0].mxu0
      %v1271 = vadd.f32 %v1198, %v1270
      %v1272 = vpop.f32.mrb[0].mxu0
      %v1273 = vadd.f32 %v1200, %v1272
      %1274 = vmatprep.mubr.bf16.mxu0 %v742
      %1275 = vmatmul.mubr.bf16.gmra.mrb[0].mxu0 %v741
      %v1276 = vpop.f32.mrb[0].mxu0
      %v1277 = vadd.f32 %v1204, %v1276
      %v1278 = vpop.f32.mrb[0].mxu0
      %v1279 = vadd.f32 %v1206, %v1278
      %v1280 = vpop.f32.mrb[0].mxu0
      %v1281 = vadd.f32 %v1208, %v1280
      %v1282 = vpop.f32.mrb[0].mxu0
      %v1283 = vadd.f32 %v1210, %v1282
      %1284 = vdwg.mxu0
      %v1285 = vmax.f32 %v1247, 0.0
      %v1286 = vmax.f32 %v1249, 0.0
      %v1287 = vmax.f32 %v1251, 0.0
      %v1288 = vmax.f32 %v1253, 0.0
      %v1289 = vmax.f32 %v1257, 0.0
      %v1290 = vmax.f32 %v1259, 0.0
      %v1291 = vmax.f32 %v1261, 0.0
      %v1292 = vmax.f32 %v1263, 0.0
      %v1293 = vmax.f32 %v1267, 0.0
      %v1294 = vmax.f32 %v1269, 0.0
      %v1295 = vmax.f32 %v1271, 0.0
      %v1296 = vmax.f32 %v1273, 0.0
      %v1297 = vmax.f32 %v1277, 0.0
      %v1298 = vmax.f32 %v1279, 0.0
      %v1299 = vmax.f32 %v1281, 0.0
      %v1300 = vmax.f32 %v1283, 0.0
      %v1301 = vpack.c.bf16 %v1287, %v1285
      %v1302 = vpack.c.bf16 %v1288, %v1286
      %v1303 = vpack.c.bf16 %v1291, %v1289
      %v1304 = vpack.c.bf16 %v1292, %v1290
      %v1305 = vpack.c.bf16 %v1295, %v1293
      %v1306 = vpack.c.bf16 %v1296, %v1294
      %v1307 = vpack.c.bf16 %v1299, %v1297
      %v1308 = vpack.c.bf16 %v1300, %v1298
      %v1309 = vld [vmem:[%s5] sm:$0xf]
      %v1310 = vld [vmem:[%s5 + $0x4] sm:$0xf]
      %v1311 = vld [vmem:[%s5 + $0x8] sm:$0xf]
      %v1312 = vld [vmem:[%s5 + $0xc] sm:$0xf]
      %v1313 = vld [vmem:[%s5 + $0x10] sm:$0xf]
      %v1314 = vld [vmem:[%s5 + $0x14] sm:$0xf]
      %v1315 = vld [vmem:[%s5 + $0x18] sm:$0xf]
      %v1316 = vld [vmem:[%s5 + $0x1c] sm:$0xf]
      %v1317 = vld [vmem:[%s5 + $0x20] sm:$0xf]
      %v1318 = vld [vmem:[%s5 + $0x24] sm:$0xf]
      %v1319 = vld [vmem:[%s5 + $0x28] sm:$0xf]
      %v1320 = vld [vmem:[%s5 + $0x2c] sm:$0xf]
      %v1321 = vld [vmem:[%s5 + $0x30] sm:$0xf]
      %v1322 = vld [vmem:[%s5 + $0x34] sm:$0xf]
      %v1323 = vld [vmem:[%s5 + $0x38] sm:$0xf]
      %v1324 = vld [vmem:[%s5 + $0x3c] sm:$0xf]
      %v1325 = vld [vmem:[%s5 + $0x40] sm:$0xf]
      %v1326 = vld [vmem:[%s5 + $0x44] sm:$0xf]
      %v1327 = vld [vmem:[%s5 + $0x48] sm:$0xf]
      %v1328 = vld [vmem:[%s5 + $0x4c] sm:$0xf]
      %v1329 = vld [vmem:[%s5 + $0x50] sm:$0xf]
      %v1330 = vld [vmem:[%s5 + $0x54] sm:$0xf]
      %v1331 = vld [vmem:[%s5 + $0x58] sm:$0xf]
      %v1332 = vld [vmem:[%s5 + $0x5c] sm:$0xf]
      %v1333 = vld [vmem:[%s5 + $0x60] sm:$0xf]
      %v1334 = vld [vmem:[%s5 + $0x64] sm:$0xf]
      %v1335 = vld [vmem:[%s5 + $0x68] sm:$0xf]
      %v1336 = vld [vmem:[%s5 + $0x6c] sm:$0xf]
      %v1337 = vld [vmem:[%s5 + $0x70] sm:$0xf]
      %v1338 = vld [vmem:[%s5 + $0x74] sm:$0xf]
      %v1339 = vld [vmem:[%s5 + $0x78] sm:$0xf]
      %v1340 = vld [vmem:[%s5 + $0x7c] sm:$0xf]
      %v1341 = vld [vmem:[%s6] sm:$0x1]
      %v1343 = vlaneseq
      %v1344 = vshrl.u32 %v1343, 7
      %v1345 = vsub.s32 0, %v1344
      %v1346 = vrot.slane %v1341, %v1345
      %v1380 = vunpack.c.l.b16 %v1309
      %v1381 = vunpack.c.l.b16 %v1310
      %v1382 = vunpack.c.l.b16 %v1311
      %v1383 = vunpack.c.l.b16 %v1312
      %v1384 = vunpack.c.l.b16 %v1313
      %v1385 = vunpack.c.l.b16 %v1314
      %v1386 = vunpack.c.l.b16 %v1315
      %v1387 = vunpack.c.l.b16 %v1316
      %v1388 = vunpack.c.l.b16 %v1317
      %v1389 = vunpack.c.l.b16 %v1318
      %v1390 = vunpack.c.l.b16 %v1319
      %v1391 = vunpack.c.l.b16 %v1320
      %v1392 = vunpack.c.l.b16 %v1321
      %v1393 = vunpack.c.l.b16 %v1322
      %v1394 = vunpack.c.l.b16 %v1323
      %v1395 = vunpack.c.l.b16 %v1324
      %v1396 = vunpack.c.l.b16 %v1325
      %v1397 = vunpack.c.l.b16 %v1326
      %v1398 = vunpack.c.l.b16 %v1327
      %v1399 = vunpack.c.l.b16 %v1328
      %v1400 = vunpack.c.l.b16 %v1329
      %v1401 = vunpack.c.l.b16 %v1330
      %v1402 = vunpack.c.l.b16 %v1331
      %v1403 = vunpack.c.l.b16 %v1332
      %v1404 = vunpack.c.l.b16 %v1333
      %v1405 = vunpack.c.l.b16 %v1334
      %v1406 = vunpack.c.l.b16 %v1335
      %v1407 = vunpack.c.l.b16 %v1336
      %v1408 = vunpack.c.l.b16 %v1337
      %v1409 = vunpack.c.l.b16 %v1338
      %v1410 = vunpack.c.l.b16 %v1339
      %v1411 = vunpack.c.l.b16 %v1340
      %v1412 = vpack.c.b16 %v1381, %v1380
      %v1413 = vpack.c.b16 %v1383, %v1382
      %v1414 = vpack.c.b16 %v1385, %v1384
      %v1415 = vpack.c.b16 %v1387, %v1386
      %v1416 = vpack.c.b16 %v1389, %v1388
      %v1417 = vpack.c.b16 %v1391, %v1390
      %v1418 = vpack.c.b16 %v1393, %v1392
      %v1419 = vpack.c.b16 %v1395, %v1394
      %v1420 = vpack.c.b16 %v1397, %v1396
      %v1421 = vpack.c.b16 %v1399, %v1398
      %v1422 = vpack.c.b16 %v1401, %v1400
      %v1423 = vpack.c.b16 %v1403, %v1402
      %v1424 = vpack.c.b16 %v1405, %v1404
      %v1425 = vpack.c.b16 %v1407, %v1406
      %v1426 = vpack.c.b16 %v1409, %v1408
      %v1427 = vpack.c.b16 %v1411, %v1410
      %1444 = vmatprep.subr.bf16.mxu0 0
      %1445 = vmatpush1.bf16.msra.mxu0 %v1412
      %1446 = vmatprep.subr.bf16.mxu0 0
      %1447 = vmatpush1.bf16.msra.mxu0 %v1413
      %1448 = vmatprep.subr.bf16.mxu0 0
      %1449 = vmatpush1.bf16.msra.mxu0 %v1414
      %1450 = vmatprep.subr.bf16.mxu0 0
      %1451 = vmatpush1.bf16.msra.mxu0 %v1415
      %1452 = vmatprep.subr.bf16.mxu0 0
      %1453 = vmatpush1.bf16.msra.mxu0 %v1416
      %1454 = vmatprep.subr.bf16.mxu0 0
      %1455 = vmatpush1.bf16.msra.mxu0 %v1417
      %1456 = vmatprep.subr.bf16.mxu0 0
      %1457 = vmatpush1.bf16.msra.mxu0 %v1418
      %1458 = vmatprep.subr.bf16.mxu0 0
      %1459 = vmatpush1.bf16.msra.mxu0 %v1419
      %1460 = vmatprep.subr.bf16.mxu0 0
      %1461 = vmatpush1.bf16.msra.mxu0 %v1420
      %1462 = vmatprep.subr.bf16.mxu0 0
      %1463 = vmatpush1.bf16.msra.mxu0 %v1421
      %1464 = vmatprep.subr.bf16.mxu0 0
      %1465 = vmatpush1.bf16.msra.mxu0 %v1422
      %1466 = vmatprep.subr.bf16.mxu0 0
      %1467 = vmatpush1.bf16.msra.mxu0 %v1423
      %1468 = vmatprep.subr.bf16.mxu0 0
      %1469 = vmatpush1.bf16.msra.mxu0 %v1424
      %1470 = vmatprep.subr.bf16.mxu0 0
      %1471 = vmatpush1.bf16.msra.mxu0 %v1425
      %1472 = vmatprep.subr.bf16.mxu0 0
      %1473 = vmatpush1.bf16.msra.mxu0 %v1426
      %1474 = vmatprep.subr.bf16.mxu0 0
      %1475 = vmatpush1.bf16.msra.mxu0 %v1427
      %1476 = vmatprep.mubr.bf16.mxu0 %v1302
      %1477 = vmatmul.mubr.bf16.gmra.mrb[0].mxu0 %v1301
      %v1478 = vpop.f32.mrb[0].mxu0
      %v1479 = vadd.f32 %v1346, %v1478
      %v1480 = vpop.f32.mrb[0].mxu0
      %v1481 = vpop.f32.mrb[0].mxu0
      %v1482 = vadd.f32 %v1346, %v1481
      %v1483 = vpop.f32.mrb[0].mxu0
      %1484 = vmatprep.mubr.bf16.mxu0 %v1304
      %1485 = vmatmul.mubr.bf16.gmra.mrb[0].mxu0 %v1303
      %v1486 = vpop.f32.mrb[0].mxu0
      %v1487 = vadd.f32 %v1346, %v1486
      %v1488 = vpop.f32.mrb[0].mxu0
      %v1489 = vpop.f32.mrb[0].mxu0
      %v1490 = vadd.f32 %v1346, %v1489
      %v1491 = vpop.f32.mrb[0].mxu0
      %1492 = vmatprep.mubr.bf16.mxu0 %v1306
      %1493 = vmatmul.mubr.bf16.gmra.mrb[0].mxu0 %v1305
      %v1494 = vpop.f32.mrb[0].mxu0
      %v1495 = vadd.f32 %v1346, %v1494
      %v1496 = vpop.f32.mrb[0].mxu0
      %v1497 = vpop.f32.mrb[0].mxu0
      %v1498 = vadd.f32 %v1346, %v1497
      %v1499 = vpop.f32.mrb[0].mxu0
      %1500 = vmatprep.mubr.bf16.mxu0 %v1308
      %1501 = vmatmul.mubr.bf16.gmra.mrb[0].mxu0 %v1307
      %v1502 = vpop.f32.mrb[0].mxu0
      %v1503 = vadd.f32 %v1346, %v1502
      %v1504 = vpop.f32.mrb[0].mxu0
      %v1505 = vpop.f32.mrb[0].mxu0
      %v1506 = vadd.f32 %v1346, %v1505
      %v1507 = vpop.f32.mrb[0].mxu0
      %1508 = vdwg.mxu0
      %v1509 = vmax.f32 %v1479, 0.0
      %v1510 = vmax.f32 %v1482, 0.0
      %v1511 = vmax.f32 %v1487, 0.0
      %v1512 = vmax.f32 %v1490, 0.0
      %v1513 = vmax.f32 %v1495, 0.0
      %v1514 = vmax.f32 %v1498, 0.0
      %v1515 = vmax.f32 %v1503, 0.0
      %v1516 = vmax.f32 %v1506, 0.0
      %v1517 = vpack.c.bf16 %v1510, %v1509
      %v1518 = vpack.c.bf16 %v1512, %v1511
      %v1519 = vpack.c.bf16 %v1514, %v1513
      %v1520 = vpack.c.bf16 %v1516, %v1515
      %v1521 = vld [vmem:[%s7] sm:$0xf]
      %v1522 = vld [vmem:[%s7 + $0x4] sm:$0xf]
      %v1523 = vld [vmem:[%s7 + $0x8] sm:$0xf]
      %v1524 = vld [vmem:[%s7 + $0xc] sm:$0xf]
      %v1525 = vld [vmem:[%s7 + $0x10] sm:$0xf]
      %v1526 = vld [vmem:[%s7 + $0x14] sm:$0xf]
      %v1527 = vld [vmem:[%s7 + $0x18] sm:$0xf]
      %v1528 = vld [vmem:[%s7 + $0x1c] sm:$0xf]
      %v1529 = vld [vmem:[%s7 + $0x20] sm:$0xf]
      %v1530 = vld [vmem:[%s7 + $0x24] sm:$0xf]
      %v1531 = vld [vmem:[%s7 + $0x28] sm:$0xf]
      %v1532 = vld [vmem:[%s7 + $0x2c] sm:$0xf]
      %v1533 = vld [vmem:[%s7 + $0x30] sm:$0xf]
      %v1534 = vld [vmem:[%s7 + $0x34] sm:$0xf]
      %v1535 = vld [vmem:[%s7 + $0x38] sm:$0xf]
      %v1536 = vld [vmem:[%s7 + $0x3c] sm:$0xf]
      %v1537 = vld [vmem:[%s8] sm:$0x1]
      %v1539 = vlaneseq
      %v1540 = vshrl.u32 %v1539, 7
      %v1541 = vsub.s32 0, %v1540
      %v1542 = vrot.slane %v1537, %v1541
      %v1560 = vunpack.c.l.b16 %v1521
      %v1561 = vunpack.c.l.b16 %v1522
      %v1562 = vunpack.c.l.b16 %v1523
      %v1563 = vunpack.c.l.b16 %v1524
      %v1564 = vunpack.c.l.b16 %v1525
      %v1565 = vunpack.c.l.b16 %v1526
      %v1566 = vunpack.c.l.b16 %v1527
      %v1567 = vunpack.c.l.b16 %v1528
      %v1568 = vunpack.c.l.b16 %v1529
      %v1569 = vunpack.c.l.b16 %v1530
      %v1570 = vunpack.c.l.b16 %v1531
      %v1571 = vunpack.c.l.b16 %v1532
      %v1572 = vunpack.c.l.b16 %v1533
      %v1573 = vunpack.c.l.b16 %v1534
      %v1574 = vunpack.c.l.b16 %v1535
      %v1575 = vunpack.c.l.b16 %v1536
      %v1576 = vpack.c.b16 %v1561, %v1560
      %v1577 = vpack.c.b16 %v1563, %v1562
      %v1578 = vpack.c.b16 %v1565, %v1564
      %v1579 = vpack.c.b16 %v1567, %v1566
      %v1580 = vpack.c.b16 %v1569, %v1568
      %v1581 = vpack.c.b16 %v1571, %v1570
      %v1582 = vpack.c.b16 %v1573, %v1572
      %v1583 = vpack.c.b16 %v1575, %v1574
      %1592 = vmatprep.subr.bf16.mxu0 0
      %1593 = vmatpush1.bf16.msra.mxu0 %v1576
      %1594 = vmatprep.subr.bf16.mxu0 0
      %1595 = vmatpush1.bf16.msra.mxu0 %v1577
      %1596 = vmatprep.subr.bf16.mxu0 0
      %1597 = vmatpush1.bf16.msra.mxu0 %v1578
      %1598 = vmatprep.subr.bf16.mxu0 0
      %1599 = vmatpush1.bf16.msra.mxu0 %v1579
      %1600 = vmatprep.subr.bf16.mxu0 0
      %1601 = vmatpush1.bf16.msra.mxu0 %v1580
      %1602 = vmatprep.subr.bf16.mxu0 0
      %1603 = vmatpush1.bf16.msra.mxu0 %v1581
      %1604 = vmatprep.subr.bf16.mxu0 0
      %1605 = vmatpush1.bf16.msra.mxu0 %v1582
      %1606 = vmatprep.subr.bf16.mxu0 0
      %1607 = vmatpush1.bf16.msra.mxu0 %v1583
      %1608 = vmatprep.subr.bf16.mxu0 0
      %1609 = vmatpush1.bf16.msra.mxu0 0
      %1610 = vmatprep.subr.bf16.mxu0 0
      %1611 = vmatpush1.bf16.msra.mxu0 0
      %1612 = vmatprep.subr.bf16.mxu0 0
      %1613 = vmatpush1.bf16.msra.mxu0 0
      %1614 = vmatprep.subr.bf16.mxu0 0
      %1615 = vmatpush1.bf16.msra.mxu0 0
      %1616 = vmatprep.subr.bf16.mxu0 0
      %1617 = vmatpush1.bf16.msra.mxu0 0
      %1618 = vmatprep.subr.bf16.mxu0 0
      %1619 = vmatpush1.bf16.msra.mxu0 0
      %1620 = vmatprep.subr.bf16.mxu0 0
      %1621 = vmatpush1.bf16.msra.mxu0 0
      %1622 = vmatprep.subr.bf16.mxu0 0
      %1623 = vmatpush1.bf16.msra.mxu0 0
      %1624 = vmatprep.mubr.bf16.mxu0 0
      %1625 = vmatmul.mubr.bf16.gmra.mrb[0].mxu0 %v1517
      %v1626 = vpop.f32.mrb[0].mxu0
      %v1627 = vadd.f32 %v1542, %v1626
      %v1628 = vpop.f32.mrb[0].mxu0
      %v1629 = vpop.f32.mrb[0].mxu0
      %v1630 = vadd.f32 %v1542, %v1629
      %v1631 = vpop.f32.mrb[0].mxu0
      %1632 = vmatprep.mubr.bf16.mxu0 0
      %1633 = vmatmul.mubr.bf16.gmra.mrb[0].mxu0 %v1518
      %v1634 = vpop.f32.mrb[0].mxu0
      %v1635 = vadd.f32 %v1542, %v1634
      %v1636 = vpop.f32.mrb[0].mxu0
      %v1637 = vpop.f32.mrb[0].mxu0
      %v1638 = vadd.f32 %v1542, %v1637
      %v1639 = vpop.f32.mrb[0].mxu0
      %1640 = vmatprep.mubr.bf16.mxu0 0
      %1641 = vmatmul.mubr.bf16.gmra.mrb[0].mxu0 %v1519
      %v1642 = vpop.f32.mrb[0].mxu0
      %v1643 = vadd.f32 %v1542, %v1642
      %v1644 = vpop.f32.mrb[0].mxu0
      %v1645 = vpop.f32.mrb[0].mxu0
      %v1646 = vadd.f32 %v1542, %v1645
      %v1647 = vpop.f32.mrb[0].mxu0
      %1648 = vmatprep.mubr.bf16.mxu0 0
      %1649 = vmatmul.mubr.bf16.gmra.mrb[0].mxu0 %v1520
      %v1650 = vpop.f32.mrb[0].mxu0
      %v1651 = vadd.f32 %v1542, %v1650
      %v1652 = vpop.f32.mrb[0].mxu0
      %v1653 = vpop.f32.mrb[0].mxu0
      %v1654 = vadd.f32 %v1542, %v1653
      %v1655 = vpop.f32.mrb[0].mxu0
      %1656 = vdwg.mxu0
      %vm1657 = vcmask 31744
      %v1658 = vsel %vm1657, %v1627, -inf
      %1659 = vmax.xlane.f32.xlu0 %v1658
      %v1660 = vpop.xlane.xlu0 %1659
      %v1661 = vsel %vm1657, %v1630, -inf
      %1662 = vmax.xlane.f32.xlu0 %v1661
      %v1663 = vpop.xlane.xlu0 %1662
      %v1664 = vsel %vm1657, %v1635, -inf
      %1665 = vmax.xlane.f32.xlu0 %v1664
      %v1666 = vpop.xlane.xlu0 %1665
      %v1667 = vsel %vm1657, %v1638, -inf
      %1668 = vmax.xlane.f32.xlu0 %v1667
      %v1669 = vpop.xlane.xlu0 %1668
      %v1670 = vsel %vm1657, %v1643, -inf
      %1671 = vmax.xlane.f32.xlu0 %v1670
      %v1672 = vpop.xlane.xlu0 %1671
      %v1673 = vsel %vm1657, %v1646, -inf
      %1674 = vmax.xlane.f32.xlu0 %v1673
      %v1675 = vpop.xlane.xlu0 %1674
      %v1676 = vsel %vm1657, %v1651, -inf
      %1677 = vmax.xlane.f32.xlu0 %v1676
      %v1678 = vpop.xlane.xlu0 %1677
      %v1679 = vsel %vm1657, %v1654, -inf
      %1680 = vmax.xlane.f32.xlu0 %v1679
      %v1681 = vpop.xlane.xlu0 %1680
      %v1682 = vsub.f32 %v1627, %v1660
      %v1683 = vsub.f32 %v1630, %v1663
      %v1684 = vsub.f32 %v1635, %v1666
      %v1685 = vsub.f32 %v1638, %v1669
      %v1686 = vsub.f32 %v1643, %v1672
      %v1687 = vsub.f32 %v1646, %v1675
      %v1688 = vsub.f32 %v1651, %v1678
      %v1689 = vsub.f32 %v1654, %v1681
      %v1690 = vmul.f32 %v1682, 1.442695
      %v1691 = vpow.pop %v1690
      %v1692 = vmul.f32 %v1683, 1.442695
      %v1693 = vpow.pop %v1692
      %v1694 = vmul.f32 %v1684, 1.442695
      %v1695 = vpow.pop %v1694
      %v1696 = vmul.f32 %v1685, 1.442695
      %v1697 = vpow.pop %v1696
      %v1698 = vmul.f32 %v1686, 1.442695
      %v1699 = vpow.pop %v1698
      %v1700 = vmul.f32 %v1687, 1.442695
      %v1701 = vpow.pop %v1700
      %v1702 = vmul.f32 %v1688, 1.442695
      %v1703 = vpow.pop %v1702
      %v1704 = vmul.f32 %v1689, 1.442695
      %v1705 = vpow.pop %v1704
      %v1706 = vsel %vm1657, %v1691, 0.0
      %1707 = vadd.xlane.f32.xlu0 %v1706
      %v1708 = vpop.xlane.xlu0 %1707
      %v1709 = vsel %vm1657, %v1693, 0.0
      %1710 = vadd.xlane.f32.xlu0 %v1709
      %v1711 = vpop.xlane.xlu0 %1710
      %v1712 = vsel %vm1657, %v1695, 0.0
      %1713 = vadd.xlane.f32.xlu0 %v1712
      %v1714 = vpop.xlane.xlu0 %1713
      %v1715 = vsel %vm1657, %v1697, 0.0
      %1716 = vadd.xlane.f32.xlu0 %v1715
      %v1717 = vpop.xlane.xlu0 %1716
      %v1718 = vsel %vm1657, %v1699, 0.0
      %1719 = vadd.xlane.f32.xlu0 %v1718
      %v1720 = vpop.xlane.xlu0 %1719
      %v1721 = vsel %vm1657, %v1701, 0.0
      %1722 = vadd.xlane.f32.xlu0 %v1721
      %v1723 = vpop.xlane.xlu0 %1722
      %v1724 = vsel %vm1657, %v1703, 0.0
      %1725 = vadd.xlane.f32.xlu0 %v1724
      %v1726 = vpop.xlane.xlu0 %1725
      %v1727 = vsel %vm1657, %v1705, 0.0
      %1728 = vadd.xlane.f32.xlu0 %v1727
      %v1729 = vpop.xlane.xlu0 %1728
      %v1730 = vlog2.pop %v1708
      %v1731 = vmul.f32 %v1730, 0.6931472
      %v1732 = vlog2.pop %v1711
      %v1733 = vmul.f32 %v1732, 0.6931472
      %v1734 = vlog2.pop %v1714
      %v1735 = vmul.f32 %v1734, 0.6931472
      %v1736 = vlog2.pop %v1717
      %v1737 = vmul.f32 %v1736, 0.6931472
      %v1738 = vlog2.pop %v1720
      %v1739 = vmul.f32 %v1738, 0.6931472
      %v1740 = vlog2.pop %v1723
      %v1741 = vmul.f32 %v1740, 0.6931472
      %v1742 = vlog2.pop %v1726
      %v1743 = vmul.f32 %v1742, 0.6931472
      %v1744 = vlog2.pop %v1729
      %v1745 = vmul.f32 %v1744, 0.6931472
      %v1746 = vsub.f32 %v1682, %v1731
      %v1747 = vsub.f32 %v1683, %v1733
      %v1748 = vsub.f32 %v1684, %v1735
      %v1749 = vsub.f32 %v1685, %v1737
      %v1750 = vsub.f32 %v1686, %v1739
      %v1751 = vsub.f32 %v1687, %v1741
      %v1752 = vsub.f32 %v1688, %v1743
      %v1753 = vsub.f32 %v1689, %v1745
      %1754 = vst.msk [vmem:[%s387] sm:$0xff] %vm1657, %v1746
      %1755 = vst.msk [vmem:[%s387 + $0x8] sm:$0xff] %vm1657, %v1747
      %1756 = vst.msk [vmem:[%s387 + $0x10] sm:$0xff] %vm1657, %v1748
      %1757 = vst.msk [vmem:[%s387 + $0x18] sm:$0xff] %vm1657, %v1749
      %1758 = vst.msk [vmem:[%s387 + $0x20] sm:$0xff] %vm1657, %v1750
      %1759 = vst.msk [vmem:[%s387 + $0x28] sm:$0xff] %vm1657, %v1751
      %1760 = vst.msk [vmem:[%s387 + $0x30] sm:$0xff] %vm1657, %v1752
      %1761 = vst.msk [vmem:[%s387 + $0x38] sm:$0xff] %vm1657, %v1753
      %s1762 = smul.u32 8, %s25
      %p1763 = scmp.lt.s32.totalorder %s24, 1
      %s1764 = scalar_select %p1763, %s24, 1
      %p1765 = scmp.lt.s32.totalorder %s1762, 7
      %s1766 = scalar_select %p1765, %s1762, 7
      %s1767 = smul.addr %s1764, 8
      %s1768 = sadd.s32 %s1766, %s1767
      %s1769 = smul.addr %s1768, 8
      %s1770 = scalar_lea.vmem %s9, %s1769
      // Predicated region
      $region57: #{segment_forward.9} parent=55 // pred_check
        %p1771 = pneg %p253
      $region58: #{segment_forward.9} parent=55 // pred_check_branch
        %1773 = sbr.rel (%p1771) target = $region60
      $region59: #{segment_forward.9} parent=55 // pred_region
        %s1774 = smul.u32 8, %s25
      $region60: #{segment_forward.9} parent=55 // pred_fallthru
        _
    $region56: #{segment_forward.9} parent=5 // pred_fallthru
      _
    %p1775 = scmp.le.s32.totalorder 2, %s15
    // Predicated region
    $region61: #{segment_forward.9} parent=5 // pred_check
      %p1776 = pneg %p1775
    $region62: #{segment_forward.9} parent=5 // pred_check_branch
      %1778 = sbr.rel (%p1776) target = $region64
    $region63: #{segment_forward.9} parent=5 // pred_region
      %s1779 = ssub.s32 %s15, 2
      // Predicated region
      $region65: #{segment_forward.9} parent=63 // pred_check
        %p1780 = pneg %p259
      $region66: #{segment_forward.9} parent=63 // pred_check_branch
        %1782 = sbr.rel (%p1780) target = $region68
      $region67: #{segment_forward.9} parent=63 // pred_region
        %s1783 = smul.u32 8, %s27
        %p1784 = scmp.lt.s32.totalorder %s26, 1
        %s1785 = scalar_select %p1784, %s26, 1
        %p1786 = scmp.lt.s32.totalorder %s1783, 7
        %s1787 = scalar_select %p1786, %s1783, 7
        %s1788 = smul.addr %s1785, 8
        %s1789 = sadd.s32 %s1787, %s1788
        %s1790 = smul.addr %s1789, 8
        %s1791 = scalar_lea.vmem %s9, %s1790
      $region68: #{segment_forward.9} parent=63 // pred_fallthru
        _
    $region64: #{segment_forward.9} parent=5 // pred_fallthru
      _
  $region6: #{segment_forward.9} parent=0 // loop_footer
    %s19 = sadd.s32 1, %s15
  $region7: #{segment_forward.9} parent=0 // loop_footer_branch
    %14 = sbr.rel target = $region3
  $region8: #{segment_forward.9} parent=0 // loop_exit
    _

</llo_original>
